<compile_context>
chip_gen: v7x
topology: tpu7x:2x2x1
jax: 0.10.0
libtpu: 0.0.40
codegen_flags: <defaults>
</compile_context>

<pallas_src>
import functools

import numpy as np

import jax
import jax.numpy as jnp
from jax import lax
from jax.experimental import pallas as pl
from jax.experimental.pallas import tpu as pltpu

_NEG_BIAS = -1e9  # "-inf" stand-in for padded key columns (avoids inf-inf NaNs)


def _round_up(n, m):
    return ((n + m - 1) // m) * m


def _token_pad_multiple(compute_dtype):
    """Sublane-tile multiple for the token axis (8 for 32-bit, 16 for bf16,
    32 for 8-bit) so row blocks and in-kernel window reshapes are tile-legal."""
    bits = np.dtype(compute_dtype).itemsize * 8
    return max(8, 256 // bits)


def _vmem_limit_bytes(default=48 * 1024 * 1024):
    """Generation-aware scoped-VMEM budget: ~3/4 of physical per-core VMEM
    (v7x 64 MiB -> 48 MiB, v5e/v6e 128 MiB -> 96 MiB), capped at 112 MiB."""
    try:
        info = pltpu.get_tpu_info()
        cap = getattr(info, "vmem_capacity_bytes", None)
        if cap:
            return int(min(cap * 3 // 4, 112 * 1024 * 1024))
    except Exception:
        pass
    return default


def _window_attn_kernel(*refs, num_heads, head_dim, tokens, has_mask,
                        compute_dtype):
    """One grid step = TB windows (TB*Np rows).

    refs (in order):
      x_ref     : (TB*Np, C)      compute_dtype
      wqkv_ref  : (C, 3C)         compute_dtype (Q columns pre-scaled)
      bqkv_ref  : (1, 3C)         f32           (Q part pre-scaled)
      rbias_ref : (H, Np, Np)     f32  (padded key columns hold -1e9)
      mask_ref  : (TB, Np, Np)    f32  (only when has_mask)
      wproj_ref : (C, C)          compute_dtype
      bproj_ref : (1, C)          f32
      o_ref     : (TB*Np, C)      output dtype
      ctx_ref   : (TB*Np, C)      compute_dtype VMEM scratch (per-head context)
    """
    if has_mask:
        (x_ref, wqkv_ref, bqkv_ref, rbias_ref, mask_ref,
         wproj_ref, bproj_ref, o_ref, ctx_ref) = refs
    else:
        (x_ref, wqkv_ref, bqkv_ref, rbias_ref,
         wproj_ref, bproj_ref, o_ref, ctx_ref) = refs
        mask_ref = None

    C = num_heads * head_dim
    N = tokens                                    # padded window length
    TBN = x_ref.shape[0]
    TB = TBN // N

    # ---- One big QKV projection (MXU, f32 accumulation), bias add, then a
    #      single cast to the compute dtype for everything downstream.
    qkv = jnp.dot(x_ref[...], wqkv_ref[...],
                  preferred_element_type=jnp.float32)
    qkv = (qkv + bqkv_ref[...]).astype(compute_dtype)      # (TB*Np, 3C)
    qkv3 = qkv.reshape(TB, N, 3 * C)              # free view: N % tile == 0

    rbias = rbias_ref[...]                        # (H, Np, Np) f32
    mvals = mask_ref[...] if has_mask else None   # (TB, Np, Np) f32

    # ---- Per-head attention.  Each head's context is written into a VMEM
    #      scratch (no f32 accumulator live across the unrolled loop); the
    #      output projection is then ONE full-depth (TBN, C) @ (C, C) matmul.
    # TODO(synk): softmax lane-packing of several small windows along the
    # 128-lane axis (block-diagonal bias) is not implemented.
    for h in range(num_heads):                    # static unroll (H is small)
        lo = h * head_dim
        hi = lo + head_dim
        q = qkv3[:, :, lo:hi]                     # (TB, Np, hd) bf16
        k = qkv3[:, :, C + lo:C + hi]
        v = qkv3[:, :, 2 * C + lo:2 * C + hi]

        # q @ k^T, contracting head_dim on both sides (no explicit transpose).
        s = lax.dot_general(q, k,
                            dimension_numbers=(((2,), (2,)), ((0,), (0,))),
                            preferred_element_type=jnp.float32)   # (TB,Np,Np)
        s = s + rbias[h][None]                    # rel-pos bias (+ key padding)
        if has_mask:
            s = s + mvals                         # shifted-window mask

        # Numerically-stable softmax in f32; denominator on the EUP slot.
        m = jnp.max(s, axis=-1, keepdims=True)
        e = jnp.exp(s - m)
        p = e * pl.reciprocal(jnp.sum(e, axis=-1, keepdims=True), approx=True)
        # TODO(synk): attn_drop is p=0.0 in this module -> identity.

        ctx = lax.dot_general(p.astype(compute_dtype), v,
                              dimension_numbers=(((2,), (1,)), ((0,), (0,))),
                              preferred_element_type=jnp.float32)  # (TB,Np,hd)
        ctx_ref[:, lo:hi] = ctx.reshape(TBN, head_dim).astype(compute_dtype)

    # ---- Single full-depth output projection (K = C) + bias.
    y = jnp.dot(ctx_ref[...], wproj_ref[...],
                preferred_element_type=jnp.float32) + bproj_ref[...]
    # TODO(synk): proj_drop is p=0.0 in this module -> identity.
    o_ref[...] = y.astype(o_ref.dtype)


def _pick_block_windows(B_, Np, nW=None, target_rows=256):
    """Windows per grid step: largest TB such that TB | B_ (and TB | nW when a
    mask is used), TB*Np is tile-legal (% 8 == 0) and <= target_rows, and the
    grid keeps >= 2 steps, preferring an even step count so the parallel axis
    splits cleanly across v7x's two TensorCores."""
    candidates = []
    for t in range(1, B_ + 1):
        if B_ % t:
            continue
        if nW is not None and nW % t:
            continue
        if (t * Np) % 8:
            continue
        if t * Np > max(target_rows, Np):
            continue
        if t > 1 and B_ // t < 2:
            continue
        candidates.append(t)
    if not candidates:
        return 1
    even = [t for t in candidates if (B_ // t) % 2 == 0]
    return max(even or candidates)


def prepare_params(params, *, window_size, num_heads,
                   compute_dtype=jnp.bfloat16):
    """One-time parameter transform (do NOT repeat per call):
       - fold the q scale into the Q columns of wqkv / bqkv,
       - gather the relative-position bias table into an (H, Np, Np) tensor,
         padding the window length to a sublane-tile multiple and blocking the
         padded key columns with a large negative bias,
       - cast matmul weights to the MXU compute dtype (bf16)."""
    wqkv = params["wqkv"].astype(jnp.float32)        # (C, 3C)
    bqkv = params["bqkv"].astype(jnp.float32)        # (1, 3C)
    C = wqkv.shape[0]
    head_dim = C // num_heads
    scale = head_dim ** (-0.5)
    wqkv = wqkv.at[:, :C].multiply(scale)
    bqkv = bqkv.at[:, :C].multiply(scale)

    wh, ww = window_size
    N = wh * ww
    coords = jnp.stack(
        jnp.meshgrid(jnp.arange(wh), jnp.arange(ww), indexing="ij"))
    cf = coords.reshape(2, -1)                                   # (2, N)
    rel = jnp.transpose(cf[:, :, None] - cf[:, None, :], (1, 2, 0))
    rel = rel.at[:, :, 0].add(wh - 1)
    rel = rel.at[:, :, 1].add(ww - 1)
    rel = rel.at[:, :, 0].multiply(2 * ww - 1)
    rpi = rel.sum(-1)                                            # (N, N)
    rb = params["rel_pos_table"][rpi.reshape(-1)].reshape(N, N, num_heads)
    rel_bias = jnp.transpose(rb, (2, 0, 1)).astype(jnp.float32)  # (H, N, N)

    Np = _round_up(N, _token_pad_multiple(compute_dtype))
    if Np != N:
        # Padded key columns (and padded query rows) get a large negative bias
        # so the softmax ignores them; padded query rows are sliced away later.
        rel_bias = jnp.pad(rel_bias, ((0, 0), (0, Np - N), (0, Np - N)),
                           constant_values=_NEG_BIAS)

    return {
        "wqkv": wqkv.astype(compute_dtype),
        "bqkv": bqkv,                                            # f32
        "wproj": params["wproj"].astype(compute_dtype),
        "bproj": params["bproj"].astype(jnp.float32),
        "rel_bias": rel_bias,                                    # (H, Np, Np)
    }


def window_attention(x, prepared, *, window_size, num_heads, mask=None,
                     block_windows=None, target_rows=None,
                     compute_dtype=jnp.bfloat16, out_dtype=None,
                     single_buffer_weights=True):
    """Pallas wrapper reproducing WindowAttention.forward.

    x    : (B_, N, C), N = window_size[0] * window_size[1]
    mask : optional (nW, N, N); B_ must be a multiple of nW.
    """
    B_, N, C = x.shape
    assert N == window_size[0] * window_size[1]
    assert C % num_heads == 0
    head_dim = C // num_heads
    out_dtype = out_dtype or x.dtype

    Np = _round_up(N, _token_pad_multiple(compute_dtype))
    assert prepared["rel_bias"].shape == (num_heads, Np, Np), (
        "prepared params were built with a different window size / dtype")

    vmem_bytes = _vmem_limit_bytes()
    if target_rows is None:
        # v5e/v6e (>= 96 MiB budget): 512-row steps amortize grid overhead;
        # v7x (48 MiB budget): stay at 256 rows.
        target_rows = 512 if vmem_bytes >= (96 << 20) else 256

    nW = None if mask is None else int(mask.shape[0])
    TB = block_windows or _pick_block_windows(B_, Np, nW, target_rows)
    assert B_ % TB == 0
    if nW is not None:
        assert B_ % nW == 0 and nW % TB == 0

    rows = TB * Np
    grid = (B_ // TB,)

    # Pad the token axis (tile-legal row blocks, free in-kernel reshapes);
    # padded keys are blocked by the -1e9 bias baked into rel_bias.
    if Np != N:
        x = jnp.pad(x, ((0, 0), (0, Np - N), (0, 0)))
    x2 = x.reshape(B_ * Np, C).astype(compute_dtype)   # lane-friendly 2-D slab

    mask_p = None
    if mask is not None:
        mask_p = mask.astype(jnp.float32)
        if Np != N:
            mask_p = jnp.pad(mask_p, ((0, 0), (0, Np - N), (0, Np - N)))

    kernel = functools.partial(
        _window_attn_kernel, num_heads=num_heads, head_dim=head_dim,
        tokens=Np, has_mask=mask is not None, compute_dtype=compute_dtype)

    def _const2(b):
        return (0, 0)

    def _const3(b):
        return (0, 0, 0)

    def run(use_buffered):
        def const_spec(shape):
            imap = _const2 if len(shape) == 2 else _const3
            if use_buffered:
                # Resident weights/bias: single-buffer to halve their VMEM
                # footprint (matters for large C under v7x's 64 MiB VMEM).
                return pl.BlockSpec(shape, imap, pipeline_mode=pl.Buffered(1))
            return pl.BlockSpec(shape, imap)

        in_specs = [
            pl.BlockSpec((rows, C), lambda b: (b, 0)),            # x
            const_spec((C, 3 * C)),                               # wqkv
            const_spec((1, 3 * C)),                               # bqkv
            const_spec((num_heads, Np, Np)),                      # rel bias
        ]
        args = [x2, prepared["wqkv"], prepared["bqkv"], prepared["rel_bias"]]
        if mask_p is not None:
            n_mask_blocks = nW // TB
            in_specs.append(
                pl.BlockSpec((TB, Np, Np),
                             lambda b: (b % n_mask_blocks, 0, 0)))
            args.append(mask_p)
        in_specs += [const_spec((C, C)), const_spec((1, C))]
        args += [prepared["wproj"], prepared["bproj"]]

        return pl.pallas_call(
            kernel,
            out_shape=jax.ShapeDtypeStruct((B_ * Np, C), out_dtype),
            grid_spec=pltpu.PrefetchScalarGridSpec(
                num_scalar_prefetch=0,
                grid=grid,
                in_specs=in_specs,
                out_specs=pl.BlockSpec((rows, C), lambda b: (b, 0)),
                scratch_shapes=[pltpu.VMEM((rows, C), compute_dtype)]),
            compiler_params=pltpu.CompilerParams(
                dimension_semantics=("parallel",),
                vmem_limit_bytes=vmem_bytes),
        )(*args)

    if single_buffer_weights:
        try:
            out2 = jax.block_until_ready(run(True))
        except Exception:   # pipeline_mode unsupported -> default double buffer
            out2 = run(False)
    else:
        out2 = run(False)

    out = out2.reshape(B_, Np, C)
    if Np != N:
        out = out[:, :N, :]
    return out


def _reference(x, params, *, window_size, num_heads, mask=None):
    """Pure-JAX f32 reference mirroring the PyTorch forward (raw params)."""
    B_, N, C = x.shape
    head_dim = C // num_heads
    scale = head_dim ** (-0.5)

    qkv = x @ params["wqkv"] + params["bqkv"][0]
    qkv = qkv.reshape(B_, N, 3, num_heads, head_dim).transpose(2, 0, 3, 1, 4)
    q, k, v = qkv[0] * scale, qkv[1], qkv[2]                 # (B_, H, N, hd)
    attn = jnp.einsum("bhnd,bhmd->bhnm", q, k)

    wh, ww = window_size
    coords = jnp.stack(
        jnp.meshgrid(jnp.arange(wh), jnp.arange(ww), indexing="ij"))
    cf = coords.reshape(2, -1)
    rel = jnp.transpose(cf[:, :, None] - cf[:, None, :], (1, 2, 0))
    rel = rel.at[:, :, 0].add(wh - 1)
    rel = rel.at[:, :, 1].add(ww - 1)
    rel = rel.at[:, :, 0].multiply(2 * ww - 1)
    rpi = rel.sum(-1)
    rb = params["rel_pos_table"][rpi.reshape(-1)].reshape(N, N, num_heads)
    rb = jnp.transpose(rb, (2, 0, 1))
    attn = attn + rb[None]

    if mask is not None:
        nW = mask.shape[0]
        attn = attn.reshape(B_ // nW, nW, num_heads, N, N) + mask[None, :, None]
        attn = attn.reshape(-1, num_heads, N, N)
    attn = jax.nn.softmax(attn, axis=-1)
    out = jnp.einsum("bhnm,bhmd->bhnd", attn, v)
    out = out.transpose(0, 2, 1, 3).reshape(B_, N, C)
    return out @ params["wproj"] + params["bproj"][0]


def _make_params(key, dim, num_heads, window_size):
    k0, k1, k2, k3, k4 = jax.random.split(key, 5)
    table_len = (2 * window_size[0] - 1) * (2 * window_size[1] - 1)
    return {
        "wqkv": jax.random.normal(k0, (dim, 3 * dim), jnp.float32) * 0.02,
        "bqkv": jax.random.normal(k1, (1, 3 * dim), jnp.float32) * 0.02,
        "wproj": jax.random.normal(k2, (dim, dim), jnp.float32) * 0.02,
        "bproj": jax.random.normal(k3, (1, dim), jnp.float32) * 0.02,
        # trunc_normal_(std=0.02)
        "rel_pos_table": (jax.random.truncated_normal(
            k4, -2.0, 2.0, (table_len, num_heads), jnp.float32) * 0.02),
    }


def _check(name, out, ref, atol=5e-3, rtol=5e-2):
    err = float(jnp.max(jnp.abs(out - ref)))
    assert jnp.allclose(out, ref, atol=atol, rtol=rtol), (name, err)


if __name__ == "__main__":
    key = jax.random.PRNGKey(0)
    kp, kx, km, kp2, kx2, km2 = jax.random.split(key, 6)

    # ---- Case 1: 4x4 window (N=16, already tile-aligned), dim=32, 4 heads.
    dim, num_heads, window_size = 32, 4, (4, 4)
    N = window_size[0] * window_size[1]
    nW, batch = 4, 4
    B_ = batch * nW

    params = _make_params(kp, dim, num_heads, window_size)
    prepared = prepare_params(params, window_size=window_size,
                              num_heads=num_heads)
    x = jax.random.normal(kx, (B_, N, dim), jnp.float32)

    out = jax.block_until_ready(
        window_attention(x, prepared, window_size=window_size,
                         num_heads=num_heads, mask=None))
    assert out.shape == (B_, N, dim)
    _check("4x4/no-mask", out,
           _reference(x, params, window_size=window_size,
                      num_heads=num_heads, mask=None))

    mask = jnp.where(jax.random.uniform(km, (nW, N, N)) > 0.5,
                     0.0, -100.0).astype(jnp.float32)
    out_m = jax.block_until_ready(
        window_attention(x, prepared, window_size=window_size,
                         num_heads=num_heads, mask=mask))
    _check("4x4/mask", out_m,
           _reference(x, params, window_size=window_size,
                      num_heads=num_heads, mask=mask))

    # ---- Case 2: 3x3 window (N=9 -> padded to 16); exercises the token
    #      padding path used for real Swin 7x7 windows (49 -> 56/64).
    dim2, num_heads2, window_size2 = 32, 4, (3, 3)
    N2 = window_size2[0] * window_size2[1]
    nW2, batch2 = 4, 2
    B2 = batch2 * nW2

    params2 = _make_params(kp2, dim2, num_heads2, window_size2)
    prepared2 = prepare_params(params2, window_size=window_size2,
                               num_heads=num_heads2)
    xs = jax.random.normal(kx2, (B2, N2, dim2), jnp.float32)
    mask2 = jnp.where(jax.random.uniform(km2, (nW2, N2, N2)) > 0.5,
                      0.0, -100.0).astype(jnp.float32)

    out_p = jax.block_until_ready(
        window_attention(xs, prepared2, window_size=window_size2,
                         num_heads=num_heads2, mask=mask2))
    assert out_p.shape == (B2, N2, dim2)
    _check("3x3/mask+pad", out_p,
           _reference(xs, params2, window_size=window_size2,
                      num_heads=num_heads2, mask=mask2))

    print("KERNEL_OK")
</pallas_src>

<mosaic_0001>
module attributes {stable_mosaic.version = 11 : i64} {
  func.func @_window_attn_kernel(%arg0: i32, %arg1: memref<128x32xbf16, #tpu.memory_space<vmem>>, %arg2: memref<32x96xbf16, #tpu.memory_space<vmem>>, %arg3: memref<1x96xf32, #tpu.memory_space<vmem>>, %arg4: memref<4x16x16xf32, #tpu.memory_space<vmem>>, %arg5: memref<32x32xbf16, #tpu.memory_space<vmem>>, %arg6: memref<1x32xf32, #tpu.memory_space<vmem>>, %arg7: memref<128x32xf32, #tpu.memory_space<vmem>>, %arg8: memref<128x32xbf16, #tpu.memory_space<vmem>>) attributes {dimension_semantics = [#tpu.dimension_semantics<parallel>], iteration_bounds = array<i64: 2>, scalar_prefetch = 0 : i64, scratch_operands = 1 : i64, tpu.core_type = #tpu.core_type<tc>, window_params = [{transform_indices = @transform_0, window_bounds = array<i64: 128, 32>}, {pipeline_mode = #tpu.pipeline_mode<synchronous>, transform_indices = @transform_1, window_bounds = array<i64: 32, 96>}, {pipeline_mode = #tpu.pipeline_mode<synchronous>, transform_indices = @transform_2, window_bounds = array<i64: 1, 96>}, {pipeline_mode = #tpu.pipeline_mode<synchronous>, transform_indices = @transform_3, window_bounds = array<i64: 4, 16, 16>}, {pipeline_mode = #tpu.pipeline_mode<synchronous>, transform_indices = @transform_4, window_bounds = array<i64: 32, 32>}, {pipeline_mode = #tpu.pipeline_mode<synchronous>, transform_indices = @transform_5, window_bounds = array<i64: 1, 32>}, {transform_indices = @transform_6, window_bounds = array<i64: 128, 32>}]} {
    %c0 = arith.constant 0 : index
    %c0_0 = arith.constant 0 : index
    %0 = vector.load %arg1[%c0, %c0_0] : memref<128x32xbf16, #tpu.memory_space<vmem>>, vector<128x32xbf16>
    %c0_1 = arith.constant 0 : index
    %c0_2 = arith.constant 0 : index
    %1 = vector.load %arg2[%c0_1, %c0_2] : memref<32x96xbf16, #tpu.memory_space<vmem>>, vector<32x96xbf16>
    %cst = arith.constant dense<0.000000e+00> : vector<128x96xf32>
    %2 = tpu.matmul %0, %1, %cst {dimension_numbers = #tpu.dot_dimension_numbers<[1], [0], [0], [1], [0, 0, 1, 1], [], []>} : vector<128x32xbf16>, vector<32x96xbf16>, vector<128x96xf32> -> vector<128x96xf32>
    %c0_3 = arith.constant 0 : index
    %c0_4 = arith.constant 0 : index
    %3 = vector.load %arg3[%c0_3, %c0_4] : memref<1x96xf32, #tpu.memory_space<vmem>>, vector<1x96xf32>
    %4 = vector.broadcast %3 : vector<1x96xf32> to vector<128x96xf32>
    %5 = arith.addf %2, %4 : vector<128x96xf32>
    %6 = arith.truncf %5 : vector<128x96xf32> to vector<128x96xbf16>
    %7 = vector.shape_cast %6 : vector<128x96xbf16> to vector<8x16x96xbf16>
    %c0_5 = arith.constant 0 : index
    %c0_6 = arith.constant 0 : index
    %c0_7 = arith.constant 0 : index
    %8 = vector.load %arg4[%c0_5, %c0_6, %c0_7] : memref<4x16x16xf32, #tpu.memory_space<vmem>>, vector<4x16x16xf32>
    %9 = vector.extract_strided_slice %7 {offsets = [0, 0, 0], sizes = [8, 16, 8], strides = [1, 1, 1]} : vector<8x16x96xbf16> to vector<8x16x8xbf16>
    %10 = vector.extract_strided_slice %7 {offsets = [0, 0, 32], sizes = [8, 16, 8], strides = [1, 1, 1]} : vector<8x16x96xbf16> to vector<8x16x8xbf16>
    %11 = vector.extract_strided_slice %7 {offsets = [0, 0, 64], sizes = [8, 16, 8], strides = [1, 1, 1]} : vector<8x16x96xbf16> to vector<8x16x8xbf16>
    %cst_8 = arith.constant dense<0.000000e+00> : vector<8x16x16xf32>
    %12 = tpu.matmul %9, %10, %cst_8 {dimension_numbers = #tpu.dot_dimension_numbers<[2], [2], [1], [1], [0, 0, 0, 1, 1, 1], [0], [0]>} : vector<8x16x8xbf16>, vector<8x16x8xbf16>, vector<8x16x16xf32> -> vector<8x16x16xf32>
    %13 = vector.extract_strided_slice %8 {offsets = [0, 0, 0], sizes = [1, 16, 16], strides = [1, 1, 1]} : vector<4x16x16xf32> to vector<1x16x16xf32>
    %14 = vector.shape_cast %13 : vector<1x16x16xf32> to vector<16x16xf32>
    %15 = vector.shape_cast %14 : vector<16x16xf32> to vector<1x16x16xf32>
    %16 = vector.broadcast %15 : vector<1x16x16xf32> to vector<8x16x16xf32>
    %17 = arith.addf %12, %16 : vector<8x16x16xf32>
    %cst_9 = arith.constant dense<0xFF800000> : vector<8x16xf32>
    %18 = vector.multi_reduction <maximumf>, %17, %cst_9 [2] : vector<8x16x16xf32> to vector<8x16xf32>
    %19 = vector.shape_cast %18 : vector<8x16xf32> to vector<8x16x1xf32>
    %20 = vector.broadcast %19 : vector<8x16x1xf32> to vector<8x16x16xf32>
    %21 = arith.subf %17, %20 : vector<8x16x16xf32>
    %22 = math.exp %21 : vector<8x16x16xf32>
    %cst_10 = arith.constant dense<0.000000e+00> : vector<8x16xf32>
    %23 = vector.multi_reduction <add>, %22, %cst_10 [2] : vector<8x16x16xf32> to vector<8x16xf32>
    %24 = vector.shape_cast %23 : vector<8x16xf32> to vector<8x16x1xf32>
    %25 = tpu.reciprocal %24 {approx = true} : vector<8x16x1xf32> -> vector<8x16x1xf32>
    %26 = vector.broadcast %25 : vector<8x16x1xf32> to vector<8x16x16xf32>
    %27 = arith.mulf %22, %26 : vector<8x16x16xf32>
    %28 = arith.truncf %27 : vector<8x16x16xf32> to vector<8x16x16xbf16>
    %cst_11 = arith.constant dense<0.000000e+00> : vector<8x16x8xf32>
    %29 = tpu.matmul %28, %11, %cst_11 {dimension_numbers = #tpu.dot_dimension_numbers<[2], [1], [1], [2], [0, 0, 0, 1, 1, 2], [0], [0]>} : vector<8x16x16xbf16>, vector<8x16x8xbf16>, vector<8x16x8xf32> -> vector<8x16x8xf32>
    %30 = vector.shape_cast %29 : vector<8x16x8xf32> to vector<128x8xf32>
    %31 = arith.truncf %30 : vector<128x8xf32> to vector<128x8xbf16>
    %c0_12 = arith.constant 0 : index
    %c0_13 = arith.constant 0 : index
    %32 = vector.load %arg8[%c0_12, %c0_13] : memref<128x32xbf16, #tpu.memory_space<vmem>>, vector<128x8xbf16>
    tpu.vector_store %arg8[%c0_12, %c0_13], %31 {strides = array<i32>} : memref<128x32xbf16, #tpu.memory_space<vmem>>, vector<128x8xbf16>,
    %33 = vector.extract_strided_slice %7 {offsets = [0, 0, 8], sizes = [8, 16, 8], strides = [1, 1, 1]} : vector<8x16x96xbf16> to vector<8x16x8xbf16>
    %34 = vector.extract_strided_slice %7 {offsets = [0, 0, 40], sizes = [8, 16, 8], strides = [1, 1, 1]} : vector<8x16x96xbf16> to vector<8x16x8xbf16>
    %35 = vector.extract_strided_slice %7 {offsets = [0, 0, 72], sizes = [8, 16, 8], strides = [1, 1, 1]} : vector<8x16x96xbf16> to vector<8x16x8xbf16>
    %cst_14 = arith.constant dense<0.000000e+00> : vector<8x16x16xf32>
    %36 = tpu.matmul %33, %34, %cst_14 {dimension_numbers = #tpu.dot_dimension_numbers<[2], [2], [1], [1], [0, 0, 0, 1, 1, 1], [0], [0]>} : vector<8x16x8xbf16>, vector<8x16x8xbf16>, vector<8x16x16xf32> -> vector<8x16x16xf32>
    %37 = vector.extract_strided_slice %8 {offsets = [1, 0, 0], sizes = [1, 16, 16], strides = [1, 1, 1]} : vector<4x16x16xf32> to vector<1x16x16xf32>
    %38 = vector.shape_cast %37 : vector<1x16x16xf32> to vector<16x16xf32>
    %39 = vector.shape_cast %38 : vector<16x16xf32> to vector<1x16x16xf32>
    %40 = vector.broadcast %39 : vector<1x16x16xf32> to vector<8x16x16xf32>
    %41 = arith.addf %36, %40 : vector<8x16x16xf32>
    %cst_15 = arith.constant dense<0xFF800000> : vector<8x16xf32>
    %42 = vector.multi_reduction <maximumf>, %41, %cst_15 [2] : vector<8x16x16xf32> to vector<8x16xf32>
    %43 = vector.shape_cast %42 : vector<8x16xf32> to vector<8x16x1xf32>
    %44 = vector.broadcast %43 : vector<8x16x1xf32> to vector<8x16x16xf32>
    %45 = arith.subf %41, %44 : vector<8x16x16xf32>
    %46 = math.exp %45 : vector<8x16x16xf32>
    %cst_16 = arith.constant dense<0.000000e+00> : vector<8x16xf32>
    %47 = vector.multi_reduction <add>, %46, %cst_16 [2] : vector<8x16x16xf32> to vector<8x16xf32>
    %48 = vector.shape_cast %47 : vector<8x16xf32> to vector<8x16x1xf32>
    %49 = tpu.reciprocal %48 {approx = true} : vector<8x16x1xf32> -> vector<8x16x1xf32>
    %50 = vector.broadcast %49 : vector<8x16x1xf32> to vector<8x16x16xf32>
    %51 = arith.mulf %46, %50 : vector<8x16x16xf32>
    %52 = arith.truncf %51 : vector<8x16x16xf32> to vector<8x16x16xbf16>
    %cst_17 = arith.constant dense<0.000000e+00> : vector<8x16x8xf32>
    %53 = tpu.matmul %52, %35, %cst_17 {dimension_numbers = #tpu.dot_dimension_numbers<[2], [1], [1], [2], [0, 0, 0, 1, 1, 2], [0], [0]>} : vector<8x16x16xbf16>, vector<8x16x8xbf16>, vector<8x16x8xf32> -> vector<8x16x8xf32>
    %54 = vector.shape_cast %53 : vector<8x16x8xf32> to vector<128x8xf32>
    %55 = arith.truncf %54 : vector<128x8xf32> to vector<128x8xbf16>
    %c0_18 = arith.constant 0 : index
    %c8 = arith.constant 8 : index
    %56 = vector.load %arg8[%c0_18, %c8] : memref<128x32xbf16, #tpu.memory_space<vmem>>, vector<128x8xbf16>
    tpu.vector_store %arg8[%c0_18, %c8], %55 {strides = array<i32>} : memref<128x32xbf16, #tpu.memory_space<vmem>>, vector<128x8xbf16>,
    %57 = vector.extract_strided_slice %7 {offsets = [0, 0, 16], sizes = [8, 16, 8], strides = [1, 1, 1]} : vector<8x16x96xbf16> to vector<8x16x8xbf16>
    %58 = vector.extract_strided_slice %7 {offsets = [0, 0, 48], sizes = [8, 16, 8], strides = [1, 1, 1]} : vector<8x16x96xbf16> to vector<8x16x8xbf16>
    %59 = vector.extract_strided_slice %7 {offsets = [0, 0, 80], sizes = [8, 16, 8], strides = [1, 1, 1]} : vector<8x16x96xbf16> to vector<8x16x8xbf16>
    %cst_19 = arith.constant dense<0.000000e+00> : vector<8x16x16xf32>
    %60 = tpu.matmul %57, %58, %cst_19 {dimension_numbers = #tpu.dot_dimension_numbers<[2], [2], [1], [1], [0, 0, 0, 1, 1, 1], [0], [0]>} : vector<8x16x8xbf16>, vector<8x16x8xbf16>, vector<8x16x16xf32> -> vector<8x16x16xf32>
    %61 = vector.extract_strided_slice %8 {offsets = [2, 0, 0], sizes = [1, 16, 16], strides = [1, 1, 1]} : vector<4x16x16xf32> to vector<1x16x16xf32>
    %62 = vector.shape_cast %61 : vector<1x16x16xf32> to vector<16x16xf32>
    %63 = vector.shape_cast %62 : vector<16x16xf32> to vector<1x16x16xf32>
    %64 = vector.broadcast %63 : vector<1x16x16xf32> to vector<8x16x16xf32>
    %65 = arith.addf %60, %64 : vector<8x16x16xf32>
    %cst_20 = arith.constant dense<0xFF800000> : vector<8x16xf32>
    %66 = vector.multi_reduction <maximumf>, %65, %cst_20 [2] : vector<8x16x16xf32> to vector<8x16xf32>
    %67 = vector.shape_cast %66 : vector<8x16xf32> to vector<8x16x1xf32>
    %68 = vector.broadcast %67 : vector<8x16x1xf32> to vector<8x16x16xf32>
    %69 = arith.subf %65, %68 : vector<8x16x16xf32>
    %70 = math.exp %69 : vector<8x16x16xf32>
    %cst_21 = arith.constant dense<0.000000e+00> : vector<8x16xf32>
    %71 = vector.multi_reduction <add>, %70, %cst_21 [2] : vector<8x16x16xf32> to vector<8x16xf32>
    %72 = vector.shape_cast %71 : vector<8x16xf32> to vector<8x16x1xf32>
    %73 = tpu.reciprocal %72 {approx = true} : vector<8x16x1xf32> -> vector<8x16x1xf32>
    %74 = vector.broadcast %73 : vector<8x16x1xf32> to vector<8x16x16xf32>
    %75 = arith.mulf %70, %74 : vector<8x16x16xf32>
    %76 = arith.truncf %75 : vector<8x16x16xf32> to vector<8x16x16xbf16>
    %cst_22 = arith.constant dense<0.000000e+00> : vector<8x16x8xf32>
    %77 = tpu.matmul %76, %59, %cst_22 {dimension_numbers = #tpu.dot_dimension_numbers<[2], [1], [1], [2], [0, 0, 0, 1, 1, 2], [0], [0]>} : vector<8x16x16xbf16>, vector<8x16x8xbf16>, vector<8x16x8xf32> -> vector<8x16x8xf32>
    %78 = vector.shape_cast %77 : vector<8x16x8xf32> to vector<128x8xf32>
    %79 = arith.truncf %78 : vector<128x8xf32> to vector<128x8xbf16>
    %c0_23 = arith.constant 0 : index
    %c16 = arith.constant 16 : index
    %80 = vector.load %arg8[%c0_23, %c16] : memref<128x32xbf16, #tpu.memory_space<vmem>>, vector<128x8xbf16>
    tpu.vector_store %arg8[%c0_23, %c16], %79 {strides = array<i32>} : memref<128x32xbf16, #tpu.memory_space<vmem>>, vector<128x8xbf16>,
    %81 = vector.extract_strided_slice %7 {offsets = [0, 0, 24], sizes = [8, 16, 8], strides = [1, 1, 1]} : vector<8x16x96xbf16> to vector<8x16x8xbf16>
    %82 = vector.extract_strided_slice %7 {offsets = [0, 0, 56], sizes = [8, 16, 8], strides = [1, 1, 1]} : vector<8x16x96xbf16> to vector<8x16x8xbf16>
    %83 = vector.extract_strided_slice %7 {offsets = [0, 0, 88], sizes = [8, 16, 8], strides = [1, 1, 1]} : vector<8x16x96xbf16> to vector<8x16x8xbf16>
    %cst_24 = arith.constant dense<0.000000e+00> : vector<8x16x16xf32>
    %84 = tpu.matmul %81, %82, %cst_24 {dimension_numbers = #tpu.dot_dimension_numbers<[2], [2], [1], [1], [0, 0, 0, 1, 1, 1], [0], [0]>} : vector<8x16x8xbf16>, vector<8x16x8xbf16>, vector<8x16x16xf32> -> vector<8x16x16xf32>
    %85 = vector.extract_strided_slice %8 {offsets = [3, 0, 0], sizes = [1, 16, 16], strides = [1, 1, 1]} : vector<4x16x16xf32> to vector<1x16x16xf32>
    %86 = vector.shape_cast %85 : vector<1x16x16xf32> to vector<16x16xf32>
    %87 = vector.shape_cast %86 : vector<16x16xf32> to vector<1x16x16xf32>
    %88 = vector.broadcast %87 : vector<1x16x16xf32> to vector<8x16x16xf32>
    %89 = arith.addf %84, %88 : vector<8x16x16xf32>
    %cst_25 = arith.constant dense<0xFF800000> : vector<8x16xf32>
    %90 = vector.multi_reduction <maximumf>, %89, %cst_25 [2] : vector<8x16x16xf32> to vector<8x16xf32>
    %91 = vector.shape_cast %90 : vector<8x16xf32> to vector<8x16x1xf32>
    %92 = vector.broadcast %91 : vector<8x16x1xf32> to vector<8x16x16xf32>
    %93 = arith.subf %89, %92 : vector<8x16x16xf32>
    %94 = math.exp %93 : vector<8x16x16xf32>
    %cst_26 = arith.constant dense<0.000000e+00> : vector<8x16xf32>
    %95 = vector.multi_reduction <add>, %94, %cst_26 [2] : vector<8x16x16xf32> to vector<8x16xf32>
    %96 = vector.shape_cast %95 : vector<8x16xf32> to vector<8x16x1xf32>
    %97 = tpu.reciprocal %96 {approx = true} : vector<8x16x1xf32> -> vector<8x16x1xf32>
    %98 = vector.broadcast %97 : vector<8x16x1xf32> to vector<8x16x16xf32>
    %99 = arith.mulf %94, %98 : vector<8x16x16xf32>
    %100 = arith.truncf %99 : vector<8x16x16xf32> to vector<8x16x16xbf16>
    %cst_27 = arith.constant dense<0.000000e+00> : vector<8x16x8xf32>
    %101 = tpu.matmul %100, %83, %cst_27 {dimension_numbers = #tpu.dot_dimension_numbers<[2], [1], [1], [2], [0, 0, 0, 1, 1, 2], [0], [0]>} : vector<8x16x16xbf16>, vector<8x16x8xbf16>, vector<8x16x8xf32> -> vector<8x16x8xf32>
    %102 = vector.shape_cast %101 : vector<8x16x8xf32> to vector<128x8xf32>
    %103 = arith.truncf %102 : vector<128x8xf32> to vector<128x8xbf16>
    %c0_28 = arith.constant 0 : index
    %c24 = arith.constant 24 : index
    %104 = vector.load %arg8[%c0_28, %c24] : memref<128x32xbf16, #tpu.memory_space<vmem>>, vector<128x8xbf16>
    tpu.vector_store %arg8[%c0_28, %c24], %103 {strides = array<i32>} : memref<128x32xbf16, #tpu.memory_space<vmem>>, vector<128x8xbf16>,
    %c0_29 = arith.constant 0 : index
    %c0_30 = arith.constant 0 : index
    %105 = vector.load %arg8[%c0_29, %c0_30] : memref<128x32xbf16, #tpu.memory_space<vmem>>, vector<128x32xbf16>
    %c0_31 = arith.constant 0 : index
    %c0_32 = arith.constant 0 : index
    %106 = vector.load %arg5[%c0_31, %c0_32] : memref<32x32xbf16, #tpu.memory_space<vmem>>, vector<32x32xbf16>
    %cst_33 = arith.constant dense<0.000000e+00> : vector<128x32xf32>
    %107 = tpu.matmul %105, %106, %cst_33 {dimension_numbers = #tpu.dot_dimension_numbers<[1], [0], [0], [1], [0, 0, 1, 1], [], []>} : vector<128x32xbf16>, vector<32x32xbf16>, vector<128x32xf32> -> vector<128x32xf32>
    %c0_34 = arith.constant 0 : index
    %c0_35 = arith.constant 0 : index
    %108 = vector.load %arg6[%c0_34, %c0_35] : memref<1x32xf32, #tpu.memory_space<vmem>>, vector<1x32xf32>
    %109 = vector.broadcast %108 : vector<1x32xf32> to vector<128x32xf32>
    %110 = arith.addf %107, %109 : vector<128x32xf32>
    %c0_36 = arith.constant 0 : index
    %c0_37 = arith.constant 0 : index
    %111 = vector.load %arg7[%c0_36, %c0_37] : memref<128x32xf32, #tpu.memory_space<vmem>>, vector<128x32xf32>
    tpu.vector_store %arg7[%c0_36, %c0_37], %110 {strides = array<i32>} : memref<128x32xf32, #tpu.memory_space<vmem>>, vector<128x32xf32>,
    return
  }
  func.func @transform_0(%arg0: i32) -> (i32, i32) {
    %c0_i32 = arith.constant 0 : i32
    %c0_i32_0 = arith.constant 0 : i32
    return %arg0, %c0_i32 : i32, i32
  }
  func.func @transform_1(%arg0: i32) -> (i32, i32) {
    %c0_i32 = arith.constant 0 : i32
    %c0_i32_0 = arith.constant 0 : i32
    %c0_i32_1 = arith.constant 0 : i32
    return %c0_i32, %c0_i32_0 : i32, i32
  }
  func.func @transform_2(%arg0: i32) -> (i32, i32) {
    %c0_i32 = arith.constant 0 : i32
    %c0_i32_0 = arith.constant 0 : i32
    %c0_i32_1 = arith.constant 0 : i32
    return %c0_i32, %c0_i32_0 : i32, i32
  }
  func.func @transform_3(%arg0: i32) -> (i32, i32, i32) {
    %c0_i32 = arith.constant 0 : i32
    %c0_i32_0 = arith.constant 0 : i32
    %c0_i32_1 = arith.constant 0 : i32
    %c0_i32_2 = arith.constant 0 : i32
    return %c0_i32, %c0_i32_0, %c0_i32_1 : i32, i32, i32
  }
  func.func @transform_4(%arg0: i32) -> (i32, i32) {
    %c0_i32 = arith.constant 0 : i32
    %c0_i32_0 = arith.constant 0 : i32
    %c0_i32_1 = arith.constant 0 : i32
    return %c0_i32, %c0_i32_0 : i32, i32
  }
  func.func @transform_5(%arg0: i32) -> (i32, i32) {
    %c0_i32 = arith.constant 0 : i32
    %c0_i32_0 = arith.constant 0 : i32
    %c0_i32_1 = arith.constant 0 : i32
    return %c0_i32, %c0_i32_0 : i32, i32
  }
  func.func @transform_6(%arg0: i32) -> (i32, i32) {
    %c0_i32 = arith.constant 0 : i32
    %c0_i32_0 = arith.constant 0 : i32
    return %arg0, %c0_i32 : i32, i32
  }
}

module attributes {stable_mosaic.version = 11 : i64} {
  func.func @_window_attn_kernel(%arg0: i32, %arg1: memref<128x32xbf16, #tpu.memory_space<vmem>>, %arg2: memref<32x96xbf16, #tpu.memory_space<vmem>>, %arg3: memref<1x96xf32, #tpu.memory_space<vmem>>, %arg4: memref<4x16x16xf32, #tpu.memory_space<vmem>>, %arg5: memref<32x32xbf16, #tpu.memory_space<vmem>>, %arg6: memref<1x32xf32, #tpu.memory_space<vmem>>, %arg7: memref<128x32xf32, #tpu.memory_space<vmem>>, %arg8: memref<128x32xbf16, #tpu.memory_space<vmem>>) attributes {dimension_semantics = [#tpu.dimension_semantics<parallel>], iteration_bounds = array<i64: 2>, scalar_prefetch = 0 : i64, scratch_operands = 1 : i64, tpu.core_type = #tpu.core_type<tc>, window_params = [{transform_indices = @transform_0, window_bounds = array<i64: 128, 32>}, {pipeline_mode = #tpu.pipeline_mode<synchronous>, transform_indices = @transform_1, window_bounds = array<i64: 32, 96>}, {pipeline_mode = #tpu.pipeline_mode<synchronous>, transform_indices = @transform_2, window_bounds = array<i64: 1, 96>}, {pipeline_mode = #tpu.pipeline_mode<synchronous>, transform_indices = @transform_3, window_bounds = array<i64: 4, 16, 16>}, {pipeline_mode = #tpu.pipeline_mode<synchronous>, transform_indices = @transform_4, window_bounds = array<i64: 32, 32>}, {pipeline_mode = #tpu.pipeline_mode<synchronous>, transform_indices = @transform_5, window_bounds = array<i64: 1, 32>}, {transform_indices = @transform_6, window_bounds = array<i64: 128, 32>}]} {
    %c0 = arith.constant 0 : index
    %c0_0 = arith.constant 0 : index
    %0 = vector.load %arg1[%c0, %c0_0] : memref<128x32xbf16, #tpu.memory_space<vmem>>, vector<128x32xbf16>
    %c0_1 = arith.constant 0 : index
    %c0_2 = arith.constant 0 : index
    %1 = vector.load %arg2[%c0_1, %c0_2] : memref<32x96xbf16, #tpu.memory_space<vmem>>, vector<32x96xbf16>
    %cst = arith.constant dense<0.000000e+00> : vector<128x96xf32>
    %2 = tpu.matmul %0, %1, %cst {dimension_numbers = #tpu.dot_dimension_numbers<[1], [0], [0], [1], [0, 0, 1, 1], [], []>} : vector<128x32xbf16>, vector<32x96xbf16>, vector<128x96xf32> -> vector<128x96xf32>
    %c0_3 = arith.constant 0 : index
    %c0_4 = arith.constant 0 : index
    %3 = vector.load %arg3[%c0_3, %c0_4] : memref<1x96xf32, #tpu.memory_space<vmem>>, vector<1x96xf32>
    %4 = vector.broadcast %3 : vector<1x96xf32> to vector<128x96xf32>
    %5 = arith.addf %2, %4 : vector<128x96xf32>
    %6 = arith.truncf %5 : vector<128x96xf32> to vector<128x96xbf16>
    %7 = vector.shape_cast %6 : vector<128x96xbf16> to vector<8x16x96xbf16>
    %c0_5 = arith.constant 0 : index
    %c0_6 = arith.constant 0 : index
    %c0_7 = arith.constant 0 : index
    %8 = vector.load %arg4[%c0_5, %c0_6, %c0_7] : memref<4x16x16xf32, #tpu.memory_space<vmem>>, vector<4x16x16xf32>
    %9 = vector.extract_strided_slice %7 {offsets = [0, 0, 0], sizes = [8, 16, 8], strides = [1, 1, 1]} : vector<8x16x96xbf16> to vector<8x16x8xbf16>
    %10 = vector.extract_strided_slice %7 {offsets = [0, 0, 32], sizes = [8, 16, 8], strides = [1, 1, 1]} : vector<8x16x96xbf16> to vector<8x16x8xbf16>
    %11 = vector.extract_strided_slice %7 {offsets = [0, 0, 64], sizes = [8, 16, 8], strides = [1, 1, 1]} : vector<8x16x96xbf16> to vector<8x16x8xbf16>
    %cst_8 = arith.constant dense<0.000000e+00> : vector<8x16x16xf32>
    %12 = tpu.matmul %9, %10, %cst_8 {dimension_numbers = #tpu.dot_dimension_numbers<[2], [2], [1], [1], [0, 0, 0, 1, 1, 1], [0], [0]>} : vector<8x16x8xbf16>, vector<8x16x8xbf16>, vector<8x16x16xf32> -> vector<8x16x16xf32>
    %13 = vector.extract_strided_slice %8 {offsets = [0, 0, 0], sizes = [1, 16, 16], strides = [1, 1, 1]} : vector<4x16x16xf32> to vector<1x16x16xf32>
    %14 = vector.shape_cast %13 : vector<1x16x16xf32> to vector<16x16xf32>
    %15 = vector.shape_cast %14 : vector<16x16xf32> to vector<1x16x16xf32>
    %16 = vector.broadcast %15 : vector<1x16x16xf32> to vector<8x16x16xf32>
    %17 = arith.addf %12, %16 : vector<8x16x16xf32>
    %cst_9 = arith.constant dense<0xFF800000> : vector<8x16xf32>
    %18 = vector.multi_reduction <maximumf>, %17, %cst_9 [2] : vector<8x16x16xf32> to vector<8x16xf32>
    %19 = vector.shape_cast %18 : vector<8x16xf32> to vector<8x16x1xf32>
    %20 = vector.broadcast %19 : vector<8x16x1xf32> to vector<8x16x16xf32>
    %21 = arith.subf %17, %20 : vector<8x16x16xf32>
    %22 = math.exp %21 : vector<8x16x16xf32>
    %cst_10 = arith.constant dense<0.000000e+00> : vector<8x16xf32>
    %23 = vector.multi_reduction <add>, %22, %cst_10 [2] : vector<8x16x16xf32> to vector<8x16xf32>
    %24 = vector.shape_cast %23 : vector<8x16xf32> to vector<8x16x1xf32>
    %25 = tpu.reciprocal %24 {approx = true} : vector<8x16x1xf32> -> vector<8x16x1xf32>
    %26 = vector.broadcast %25 : vector<8x16x1xf32> to vector<8x16x16xf32>
    %27 = arith.mulf %22, %26 : vector<8x16x16xf32>
    %28 = arith.truncf %27 : vector<8x16x16xf32> to vector<8x16x16xbf16>
    %cst_11 = arith.constant dense<0.000000e+00> : vector<8x16x8xf32>
    %29 = tpu.matmul %28, %11, %cst_11 {dimension_numbers = #tpu.dot_dimension_numbers<[2], [1], [1], [2], [0, 0, 0, 1, 1, 2], [0], [0]>} : vector<8x16x16xbf16>, vector<8x16x8xbf16>, vector<8x16x8xf32> -> vector<8x16x8xf32>
    %30 = vector.shape_cast %29 : vector<8x16x8xf32> to vector<128x8xf32>
    %31 = arith.truncf %30 : vector<128x8xf32> to vector<128x8xbf16>
    %c0_12 = arith.constant 0 : index
    %c0_13 = arith.constant 0 : index
    %32 = vector.load %arg8[%c0_12, %c0_13] : memref<128x32xbf16, #tpu.memory_space<vmem>>, vector<128x8xbf16>
    tpu.vector_store %arg8[%c0_12, %c0_13], %31 {strides = array<i32>} : memref<128x32xbf16, #tpu.memory_space<vmem>>, vector<128x8xbf16>,
    %33 = vector.extract_strided_slice %7 {offsets = [0, 0, 8], sizes = [8, 16, 8], strides = [1, 1, 1]} : vector<8x16x96xbf16> to vector<8x16x8xbf16>
    %34 = vector.extract_strided_slice %7 {offsets = [0, 0, 40], sizes = [8, 16, 8], strides = [1, 1, 1]} : vector<8x16x96xbf16> to vector<8x16x8xbf16>
    %35 = vector.extract_strided_slice %7 {offsets = [0, 0, 72], sizes = [8, 16, 8], strides = [1, 1, 1]} : vector<8x16x96xbf16> to vector<8x16x8xbf16>
    %cst_14 = arith.constant dense<0.000000e+00> : vector<8x16x16xf32>
    %36 = tpu.matmul %33, %34, %cst_14 {dimension_numbers = #tpu.dot_dimension_numbers<[2], [2], [1], [1], [0, 0, 0, 1, 1, 1], [0], [0]>} : vector<8x16x8xbf16>, vector<8x16x8xbf16>, vector<8x16x16xf32> -> vector<8x16x16xf32>
    %37 = vector.extract_strided_slice %8 {offsets = [1, 0, 0], sizes = [1, 16, 16], strides = [1, 1, 1]} : vector<4x16x16xf32> to vector<1x16x16xf32>
    %38 = vector.shape_cast %37 : vector<1x16x16xf32> to vector<16x16xf32>
    %39 = vector.shape_cast %38 : vector<16x16xf32> to vector<1x16x16xf32>
    %40 = vector.broadcast %39 : vector<1x16x16xf32> to vector<8x16x16xf32>
    %41 = arith.addf %36, %40 : vector<8x16x16xf32>
    %cst_15 = arith.constant dense<0xFF800000> : vector<8x16xf32>
    %42 = vector.multi_reduction <maximumf>, %41, %cst_15 [2] : vector<8x16x16xf32> to vector<8x16xf32>
    %43 = vector.shape_cast %42 : vector<8x16xf32> to vector<8x16x1xf32>
    %44 = vector.broadcast %43 : vector<8x16x1xf32> to vector<8x16x16xf32>
    %45 = arith.subf %41, %44 : vector<8x16x16xf32>
    %46 = math.exp %45 : vector<8x16x16xf32>
    %cst_16 = arith.constant dense<0.000000e+00> : vector<8x16xf32>
    %47 = vector.multi_reduction <add>, %46, %cst_16 [2] : vector<8x16x16xf32> to vector<8x16xf32>
    %48 = vector.shape_cast %47 : vector<8x16xf32> to vector<8x16x1xf32>
    %49 = tpu.reciprocal %48 {approx = true} : vector<8x16x1xf32> -> vector<8x16x1xf32>
    %50 = vector.broadcast %49 : vector<8x16x1xf32> to vector<8x16x16xf32>
    %51 = arith.mulf %46, %50 : vector<8x16x16xf32>
    %52 = arith.truncf %51 : vector<8x16x16xf32> to vector<8x16x16xbf16>
    %cst_17 = arith.constant dense<0.000000e+00> : vector<8x16x8xf32>
    %53 = tpu.matmul %52, %35, %cst_17 {dimension_numbers = #tpu.dot_dimension_numbers<[2], [1], [1], [2], [0, 0, 0, 1, 1, 2], [0], [0]>} : vector<8x16x16xbf16>, vector<8x16x8xbf16>, vector<8x16x8xf32> -> vector<8x16x8xf32>
    %54 = vector.shape_cast %53 : vector<8x16x8xf32> to vector<128x8xf32>
    %55 = arith.truncf %54 : vector<128x8xf32> to vector<128x8xbf16>
    %c0_18 = arith.constant 0 : index
    %c8 = arith.constant 8 : index
    %56 = vector.load %arg8[%c0_18, %c8] : memref<128x32xbf16, #tpu.memory_space<vmem>>, vector<128x8xbf16>
    tpu.vector_store %arg8[%c0_18, %c8], %55 {strides = array<i32>} : memref<128x32xbf16, #tpu.memory_space<vmem>>, vector<128x8xbf16>,
    %57 = vector.extract_strided_slice %7 {offsets = [0, 0, 16], sizes = [8, 16, 8], strides = [1, 1, 1]} : vector<8x16x96xbf16> to vector<8x16x8xbf16>
    %58 = vector.extract_strided_slice %7 {offsets = [0, 0, 48], sizes = [8, 16, 8], strides = [1, 1, 1]} : vector<8x16x96xbf16> to vector<8x16x8xbf16>
    %59 = vector.extract_strided_slice %7 {offsets = [0, 0, 80], sizes = [8, 16, 8], strides = [1, 1, 1]} : vector<8x16x96xbf16> to vector<8x16x8xbf16>
    %cst_19 = arith.constant dense<0.000000e+00> : vector<8x16x16xf32>
    %60 = tpu.matmul %57, %58, %cst_19 {dimension_numbers = #tpu.dot_dimension_numbers<[2], [2], [1], [1], [0, 0, 0, 1, 1, 1], [0], [0]>} : vector<8x16x8xbf16>, vector<8x16x8xbf16>, vector<8x16x16xf32> -> vector<8x16x16xf32>
    %61 = vector.extract_strided_slice %8 {offsets = [2, 0, 0], sizes = [1, 16, 16], strides = [1, 1, 1]} : vector<4x16x16xf32> to vector<1x16x16xf32>
    %62 = vector.shape_cast %61 : vector<1x16x16xf32> to vector<16x16xf32>
    %63 = vector.shape_cast %62 : vector<16x16xf32> to vector<1x16x16xf32>
    %64 = vector.broadcast %63 : vector<1x16x16xf32> to vector<8x16x16xf32>
    %65 = arith.addf %60, %64 : vector<8x16x16xf32>
    %cst_20 = arith.constant dense<0xFF800000> : vector<8x16xf32>
    %66 = vector.multi_reduction <maximumf>, %65, %cst_20 [2] : vector<8x16x16xf32> to vector<8x16xf32>
    %67 = vector.shape_cast %66 : vector<8x16xf32> to vector<8x16x1xf32>
    %68 = vector.broadcast %67 : vector<8x16x1xf32> to vector<8x16x16xf32>
    %69 = arith.subf %65, %68 : vector<8x16x16xf32>
    %70 = math.exp %69 : vector<8x16x16xf32>
    %cst_21 = arith.constant dense<0.000000e+00> : vector<8x16xf32>
    %71 = vector.multi_reduction <add>, %70, %cst_21 [2] : vector<8x16x16xf32> to vector<8x16xf32>
    %72 = vector.shape_cast %71 : vector<8x16xf32> to vector<8x16x1xf32>
    %73 = tpu.reciprocal %72 {approx = true} : vector<8x16x1xf32> -> vector<8x16x1xf32>
    %74 = vector.broadcast %73 : vector<8x16x1xf32> to vector<8x16x16xf32>
    %75 = arith.mulf %70, %74 : vector<8x16x16xf32>
    %76 = arith.truncf %75 : vector<8x16x16xf32> to vector<8x16x16xbf16>
    %cst_22 = arith.constant dense<0.000000e+00> : vector<8x16x8xf32>
    %77 = tpu.matmul %76, %59, %cst_22 {dimension_numbers = #tpu.dot_dimension_numbers<[2], [1], [1], [2], [0, 0, 0, 1, 1, 2], [0], [0]>} : vector<8x16x16xbf16>, vector<8x16x8xbf16>, vector<8x16x8xf32> -> vector<8x16x8xf32>
    %78 = vector.shape_cast %77 : vector<8x16x8xf32> to vector<128x8xf32>
    %79 = arith.truncf %78 : vector<128x8xf32> to vector<128x8xbf16>
    %c0_23 = arith.constant 0 : index
    %c16 = arith.constant 16 : index
    %80 = vector.load %arg8[%c0_23, %c16] : memref<128x32xbf16, #tpu.memory_space<vmem>>, vector<128x8xbf16>
    tpu.vector_store %arg8[%c0_23, %c16], %79 {strides = array<i32>} : memref<128x32xbf16, #tpu.memory_space<vmem>>, vector<128x8xbf16>,
    %81 = vector.extract_strided_slice %7 {offsets = [0, 0, 24], sizes = [8, 16, 8], strides = [1, 1, 1]} : vector<8x16x96xbf16> to vector<8x16x8xbf16>
    %82 = vector.extract_strided_slice %7 {offsets = [0, 0, 56], sizes = [8, 16, 8], strides = [1, 1, 1]} : vector<8x16x96xbf16> to vector<8x16x8xbf16>
    %83 = vector.extract_strided_slice %7 {offsets = [0, 0, 88], sizes = [8, 16, 8], strides = [1, 1, 1]} : vector<8x16x96xbf16> to vector<8x16x8xbf16>
    %cst_24 = arith.constant dense<0.000000e+00> : vector<8x16x16xf32>
    %84 = tpu.matmul %81, %82, %cst_24 {dimension_numbers = #tpu.dot_dimension_numbers<[2], [2], [1], [1], [0, 0, 0, 1, 1, 1], [0], [0]>} : vector<8x16x8xbf16>, vector<8x16x8xbf16>, vector<8x16x16xf32> -> vector<8x16x16xf32>
    %85 = vector.extract_strided_slice %8 {offsets = [3, 0, 0], sizes = [1, 16, 16], strides = [1, 1, 1]} : vector<4x16x16xf32> to vector<1x16x16xf32>
    %86 = vector.shape_cast %85 : vector<1x16x16xf32> to vector<16x16xf32>
    %87 = vector.shape_cast %86 : vector<16x16xf32> to vector<1x16x16xf32>
    %88 = vector.broadcast %87 : vector<1x16x16xf32> to vector<8x16x16xf32>
    %89 = arith.addf %84, %88 : vector<8x16x16xf32>
    %cst_25 = arith.constant dense<0xFF800000> : vector<8x16xf32>
    %90 = vector.multi_reduction <maximumf>, %89, %cst_25 [2] : vector<8x16x16xf32> to vector<8x16xf32>
    %91 = vector.shape_cast %90 : vector<8x16xf32> to vector<8x16x1xf32>
    %92 = vector.broadcast %91 : vector<8x16x1xf32> to vector<8x16x16xf32>
    %93 = arith.subf %89, %92 : vector<8x16x16xf32>
    %94 = math.exp %93 : vector<8x16x16xf32>
    %cst_26 = arith.constant dense<0.000000e+00> : vector<8x16xf32>
    %95 = vector.multi_reduction <add>, %94, %cst_26 [2] : vector<8x16x16xf32> to vector<8x16xf32>
    %96 = vector.shape_cast %95 : vector<8x16xf32> to vector<8x16x1xf32>
    %97 = tpu.reciprocal %96 {approx = true} : vector<8x16x1xf32> -> vector<8x16x1xf32>
    %98 = vector.broadcast %97 : vector<8x16x1xf32> to vector<8x16x16xf32>
    %99 = arith.mulf %94, %98 : vector<8x16x16xf32>
    %100 = arith.truncf %99 : vector<8x16x16xf32> to vector<8x16x16xbf16>
    %cst_27 = arith.constant dense<0.000000e+00> : vector<8x16x8xf32>
    %101 = tpu.matmul %100, %83, %cst_27 {dimension_numbers = #tpu.dot_dimension_numbers<[2], [1], [1], [2], [0, 0, 0, 1, 1, 2], [0], [0]>} : vector<8x16x16xbf16>, vector<8x16x8xbf16>, vector<8x16x8xf32> -> vector<8x16x8xf32>
    %102 = vector.shape_cast %101 : vector<8x16x8xf32> to vector<128x8xf32>
    %103 = arith.truncf %102 : vector<128x8xf32> to vector<128x8xbf16>
    %c0_28 = arith.constant 0 : index
    %c24 = arith.constant 24 : index
    %104 = vector.load %arg8[%c0_28, %c24] : memref<128x32xbf16, #tpu.memory_space<vmem>>, vector<128x8xbf16>
    tpu.vector_store %arg8[%c0_28, %c24], %103 {strides = array<i32>} : memref<128x32xbf16, #tpu.memory_space<vmem>>, vector<128x8xbf16>,
    %c0_29 = arith.constant 0 : index
    %c0_30 = arith.constant 0 : index
    %105 = vector.load %arg8[%c0_29, %c0_30] : memref<128x32xbf16, #tpu.memory_space<vmem>>, vector<128x32xbf16>
    %c0_31 = arith.constant 0 : index
    %c0_32 = arith.constant 0 : index
    %106 = vector.load %arg5[%c0_31, %c0_32] : memref<32x32xbf16, #tpu.memory_space<vmem>>, vector<32x32xbf16>
    %cst_33 = arith.constant dense<0.000000e+00> : vector<128x32xf32>
    %107 = tpu.matmul %105, %106, %cst_33 {dimension_numbers = #tpu.dot_dimension_numbers<[1], [0], [0], [1], [0, 0, 1, 1], [], []>} : vector<128x32xbf16>, vector<32x32xbf16>, vector<128x32xf32> -> vector<128x32xf32>
    %c0_34 = arith.constant 0 : index
    %c0_35 = arith.constant 0 : index
    %108 = vector.load %arg6[%c0_34, %c0_35] : memref<1x32xf32, #tpu.memory_space<vmem>>, vector<1x32xf32>
    %109 = vector.broadcast %108 : vector<1x32xf32> to vector<128x32xf32>
    %110 = arith.addf %107, %109 : vector<128x32xf32>
    %c0_36 = arith.constant 0 : index
    %c0_37 = arith.constant 0 : index
    %111 = vector.load %arg7[%c0_36, %c0_37] : memref<128x32xf32, #tpu.memory_space<vmem>>, vector<128x32xf32>
    tpu.vector_store %arg7[%c0_36, %c0_37], %110 {strides = array<i32>} : memref<128x32xf32, #tpu.memory_space<vmem>>, vector<128x32xf32>,
    return
  }
  func.func @transform_0(%arg0: i32) -> (i32, i32) {
    %c0_i32 = arith.constant 0 : i32
    %c0_i32_0 = arith.constant 0 : i32
    return %arg0, %c0_i32 : i32, i32
  }
  func.func @transform_1(%arg0: i32) -> (i32, i32) {
    %c0_i32 = arith.constant 0 : i32
    %c0_i32_0 = arith.constant 0 : i32
    %c0_i32_1 = arith.constant 0 : i32
    return %c0_i32, %c0_i32_0 : i32, i32
  }
  func.func @transform_2(%arg0: i32) -> (i32, i32) {
    %c0_i32 = arith.constant 0 : i32
    %c0_i32_0 = arith.constant 0 : i32
    %c0_i32_1 = arith.constant 0 : i32
    return %c0_i32, %c0_i32_0 : i32, i32
  }
  func.func @transform_3(%arg0: i32) -> (i32, i32, i32) {
    %c0_i32 = arith.constant 0 : i32
    %c0_i32_0 = arith.constant 0 : i32
    %c0_i32_1 = arith.constant 0 : i32
    %c0_i32_2 = arith.constant 0 : i32
    return %c0_i32, %c0_i32_0, %c0_i32_1 : i32, i32, i32
  }
  func.func @transform_4(%arg0: i32) -> (i32, i32) {
    %c0_i32 = arith.constant 0 : i32
    %c0_i32_0 = arith.constant 0 : i32
    %c0_i32_1 = arith.constant 0 : i32
    return %c0_i32, %c0_i32_0 : i32, i32
  }
  func.func @transform_5(%arg0: i32) -> (i32, i32) {
    %c0_i32 = arith.constant 0 : i32
    %c0_i32_0 = arith.constant 0 : i32
    %c0_i32_1 = arith.constant 0 : i32
    return %c0_i32, %c0_i32_0 : i32, i32
  }
  func.func @transform_6(%arg0: i32) -> (i32, i32) {
    %c0_i32 = arith.constant 0 : i32
    %c0_i32_0 = arith.constant 0 : i32
    return %arg0, %c0_i32 : i32, i32
  }
}

</mosaic_0001>

<llo_original>
// kernel: tpu_custom_call.1
$region0: #{tpu_custom_call.1}
  #allocation0 [shape = 'u32[]', space=smem, size = 0x4, offset = 0x4, fixed_abs, tag = 'smem constant byte address 0x4 - core index']
  #allocation1 [shape = 'u32[144,128]{1,0:T(1,128)}', space=vmem, size = 0x12000, scoped, tag = 'internal scratch']
  #allocation2 [shape = 'bf16[128,32]{1,0:T(16,128)(2,1)}', space=vmem, size = 0x8000, scoped, tag = 'scratch operand']
  %s0 = inlined_call_operand.vmem [shape: bf16[256,32], index: 0, kind: input, shape index: {}]
  %s1 = inlined_call_operand.vmem [shape: bf16[32,96], index: 1, kind: input, shape index: {}]
  %s2 = inlined_call_operand.vmem [shape: f32[1,96], index: 2, kind: input, shape index: {}]
  %s3 = inlined_call_operand.vmem [shape: f32[4,16,16], index: 3, kind: input, shape index: {}]
  %s4 = inlined_call_operand.vmem [shape: bf16[32,32], index: 4, kind: input, shape index: {}]
  %s5 = inlined_call_operand.vmem [shape: f32[1,32], index: 5, kind: input, shape index: {}]
  %s6 = inlined_call_operand.vmem [shape: f32[256,32], index: 6, kind: output, shape index: {}]
  %s7 = sld [smem:[#allocation0]]
  $region57: #{tpu_custom_call.1} parent=0
    _
  %s9 = ssub.s32 1, %s7
  %s10 = scalar_select 0, %s9, %s7
  loop: start=0, step=1, limit=4
  $region2: #{tpu_custom_call.1} parent=0 // loop_pre_header
    _
  $region3: #{tpu_custom_call.1} parent=0 // loop_header
    %s12 = sphi 0, %s16
    %p13 = scmp.ge.s32.totalorder %s12, 4
    %s22 = sphi 0, %s24
    %s25 = sphi 0, %s22
    %s26 = sphi 0, %s25
    %s42 = sphi 0, %s26
    %s46 = sphi 0, %s46
    %s48 = sphi 0, %s46
    %s49 = sphi 0, %s48
    %s63 = sphi 0, %s49
    %s67 = sphi 0, %s67
    %s69 = sphi 0, %s67
    %s70 = sphi 0, %s69
    %s84 = sphi 0, %s70
    %s88 = sphi 0, %s88
    %s90 = sphi 0, %s88
    %s91 = sphi 0, %s90
    %s105 = sphi 0, %s91
    %s109 = sphi 0, %s109
    %s111 = sphi 0, %s109
    %s112 = sphi 0, %s111
    %s126 = sphi 0, %s112
    %s130 = sphi 0, %s130
    %s132 = sphi 0, %s130
    %s133 = sphi 0, %s132
    %s147 = sphi 0, %s133
    %s153 = sphi 0, %s155
    %s156 = sphi 0, %s153
    %s157 = sphi 0, %s156
    %s173 = sphi 0, %s157
  $region4: #{tpu_custom_call.1} parent=0 // loop_header_branch
    %15 = sbr.rel (%p13) target = $region8
  $region5: #{tpu_custom_call.1} parent=0 // loop_body
    %s17 = ssub.s32 %s12, 1
    %s18 = ssub.s32 %s12, 2
    %s19 = sadd.s32 %s12, 1
    %s20 = ssub.s32 %s12, %s19
    %p21 = scmp.eq.s32.totalorder %s20, 0
    %s23 = sadd.s32 %s22, 1
    %s24 = scalar_select %p21, %s22, %s23
    %p27 = pneg %p21
    %p28 = scmp.eq.s32.totalorder %s12, 1
    %p29 = por %p27, %p28
    %p30 = scmp.ne.s32.totalorder %s22, %s25
    %p31 = scmp.eq.s32.totalorder %s12, 0
    %p32 = por %p30, %p31
    %p33 = scmp.ne.s32.totalorder %s22, %s25
    %p34 = scmp.eq.s32.totalorder %s17, 1
    %p35 = por %p33, %p34
    %p36 = scmp.ne.s32.totalorder %s25, %s26
    %p37 = scmp.eq.s32.totalorder %s17, 0
    %p38 = por %p36, %p37
    %p39 = scmp.ne.s32.totalorder %s25, %s26
    %p40 = scmp.eq.s32.totalorder %s18, 1
    %p41 = por %p39, %p40
    %p43 = scmp.ne.s32.totalorder %s26, %s42
    %p44 = scmp.eq.s32.totalorder %s18, 0
    %p45 = por %p43, %p44
    %s47 = sadd.s32 %s46, 1
    %p50 = scmp.eq.s32.totalorder %s12, 1
    %p51 = scmp.ne.s32.totalorder %s46, %s48
    %p52 = scmp.eq.s32.totalorder %s12, 0
    %p53 = por %p51, %p52
    %p54 = scmp.ne.s32.totalorder %s46, %s48
    %p55 = scmp.eq.s32.totalorder %s17, 1
    %p56 = por %p54, %p55
    %p57 = scmp.ne.s32.totalorder %s48, %s49
    %p58 = scmp.eq.s32.totalorder %s17, 0
    %p59 = por %p57, %p58
    %p60 = scmp.ne.s32.totalorder %s48, %s49
    %p61 = scmp.eq.s32.totalorder %s18, 1
    %p62 = por %p60, %p61
    %p64 = scmp.ne.s32.totalorder %s49, %s63
    %p65 = scmp.eq.s32.totalorder %s18, 0
    %p66 = por %p64, %p65
    %s68 = sadd.s32 %s67, 1
    %p71 = scmp.eq.s32.totalorder %s12, 1
    %p72 = scmp.ne.s32.totalorder %s67, %s69
    %p73 = scmp.eq.s32.totalorder %s12, 0
    %p74 = por %p72, %p73
    %p75 = scmp.ne.s32.totalorder %s67, %s69
    %p76 = scmp.eq.s32.totalorder %s17, 1
    %p77 = por %p75, %p76
    %p78 = scmp.ne.s32.totalorder %s69, %s70
    %p79 = scmp.eq.s32.totalorder %s17, 0
    %p80 = por %p78, %p79
    %p81 = scmp.ne.s32.totalorder %s69, %s70
    %p82 = scmp.eq.s32.totalorder %s18, 1
    %p83 = por %p81, %p82
    %p85 = scmp.ne.s32.totalorder %s70, %s84
    %p86 = scmp.eq.s32.totalorder %s18, 0
    %p87 = por %p85, %p86
    %s89 = sadd.s32 %s88, 1
    %p92 = scmp.eq.s32.totalorder %s12, 1
    %p93 = scmp.ne.s32.totalorder %s88, %s90
    %p94 = scmp.eq.s32.totalorder %s12, 0
    %p95 = por %p93, %p94
    %p96 = scmp.ne.s32.totalorder %s88, %s90
    %p97 = scmp.eq.s32.totalorder %s17, 1
    %p98 = por %p96, %p97
    %p99 = scmp.ne.s32.totalorder %s90, %s91
    %p100 = scmp.eq.s32.totalorder %s17, 0
    %p101 = por %p99, %p100
    %p102 = scmp.ne.s32.totalorder %s90, %s91
    %p103 = scmp.eq.s32.totalorder %s18, 1
    %p104 = por %p102, %p103
    %p106 = scmp.ne.s32.totalorder %s91, %s105
    %p107 = scmp.eq.s32.totalorder %s18, 0
    %p108 = por %p106, %p107
    %s110 = sadd.s32 %s109, 1
    %p113 = scmp.eq.s32.totalorder %s12, 1
    %p114 = scmp.ne.s32.totalorder %s109, %s111
    %p115 = scmp.eq.s32.totalorder %s12, 0
    %p116 = por %p114, %p115
    %p117 = scmp.ne.s32.totalorder %s109, %s111
    %p118 = scmp.eq.s32.totalorder %s17, 1
    %p119 = por %p117, %p118
    %p120 = scmp.ne.s32.totalorder %s111, %s112
    %p121 = scmp.eq.s32.totalorder %s17, 0
    %p122 = por %p120, %p121
    %p123 = scmp.ne.s32.totalorder %s111, %s112
    %p124 = scmp.eq.s32.totalorder %s18, 1
    %p125 = por %p123, %p124
    %p127 = scmp.ne.s32.totalorder %s112, %s126
    %p128 = scmp.eq.s32.totalorder %s18, 0
    %p129 = por %p127, %p128
    %s131 = sadd.s32 %s130, 1
    %p134 = scmp.eq.s32.totalorder %s12, 1
    %p135 = scmp.ne.s32.totalorder %s130, %s132
    %p136 = scmp.eq.s32.totalorder %s12, 0
    %p137 = por %p135, %p136
    %p138 = scmp.ne.s32.totalorder %s130, %s132
    %p139 = scmp.eq.s32.totalorder %s17, 1
    %p140 = por %p138, %p139
    %p141 = scmp.ne.s32.totalorder %s132, %s133
    %p142 = scmp.eq.s32.totalorder %s17, 0
    %p143 = por %p141, %p142
    %p144 = scmp.ne.s32.totalorder %s132, %s133
    %p145 = scmp.eq.s32.totalorder %s18, 1
    %p146 = por %p144, %p145
    %p148 = scmp.ne.s32.totalorder %s133, %s147
    %p149 = scmp.eq.s32.totalorder %s18, 0
    %p150 = por %p148, %p149
    %s151 = ssub.s32 %s12, %s19
    %p152 = scmp.eq.s32.totalorder %s151, 0
    %s154 = sadd.s32 %s153, 1
    %s155 = scalar_select %p152, %s153, %s154
    %p158 = pneg %p152
    %p159 = scmp.eq.s32.totalorder %s12, 1
    %p160 = por %p158, %p159
    %p161 = scmp.ne.s32.totalorder %s153, %s156
    %p162 = scmp.eq.s32.totalorder %s12, 0
    %p163 = por %p161, %p162
    %p164 = scmp.ne.s32.totalorder %s153, %s156
    %p165 = scmp.eq.s32.totalorder %s17, 1
    %p166 = por %p164, %p165
    %p167 = scmp.ne.s32.totalorder %s156, %s157
    %p168 = scmp.eq.s32.totalorder %s17, 0
    %p169 = por %p167, %p168
    %p170 = scmp.ne.s32.totalorder %s156, %s157
    %p171 = scmp.eq.s32.totalorder %s18, 1
    %p172 = por %p170, %p171
    %p174 = scmp.ne.s32.totalorder %s157, %s173
    %p175 = scmp.eq.s32.totalorder %s18, 0
    %p176 = por %p174, %p175
    %p177 = scmp.le.s32.totalorder 1, %s12
    %p178 = scmp.lt.s32.totalorder %s12, 3
    %p179 = pnand %p177, %p178
    %p180 = pneg %p179
    // Predicated region
    $region9: #{tpu_custom_call.1} parent=5 // pred_check
      _
    $region10: #{tpu_custom_call.1} parent=5 // pred_check_branch
      %182 = sbr.rel (%p179) target = $region12
    $region11: #{tpu_custom_call.1} parent=5 // pred_region
      %s183 = ssub.s32 %s12, 1
      // Predicated region
      $region13: #{tpu_custom_call.1} parent=11 // pred_check
        %p184 = pneg %p59
      $region14: #{tpu_custom_call.1} parent=11 // pred_check_branch
        %186 = sbr.rel (%p184) target = $region16
      $region15: #{tpu_custom_call.1} parent=11 // pred_region
        _
      $region16: #{tpu_custom_call.1} parent=11 // pred_fallthru
        _
      // Predicated region
      $region17: #{tpu_custom_call.1} parent=11 // pred_check
        %p187 = pneg %p80
      $region18: #{tpu_custom_call.1} parent=11 // pred_check_branch
        %189 = sbr.rel (%p187) target = $region20
      $region19: #{tpu_custom_call.1} parent=11 // pred_region
        _
      $region20: #{tpu_custom_call.1} parent=11 // pred_fallthru
        _
      // Predicated region
      $region21: #{tpu_custom_call.1} parent=11 // pred_check
        %p190 = pneg %p101
      $region22: #{tpu_custom_call.1} parent=11 // pred_check_branch
        %192 = sbr.rel (%p190) target = $region24
      $region23: #{tpu_custom_call.1} parent=11 // pred_region
        _
      $region24: #{tpu_custom_call.1} parent=11 // pred_fallthru
        _
      // Predicated region
      $region25: #{tpu_custom_call.1} parent=11 // pred_check
        %p193 = pneg %p122
      $region26: #{tpu_custom_call.1} parent=11 // pred_check_branch
        %195 = sbr.rel (%p193) target = $region28
      $region27: #{tpu_custom_call.1} parent=11 // pred_region
        _
      $region28: #{tpu_custom_call.1} parent=11 // pred_fallthru
        _
      // Predicated region
      $region29: #{tpu_custom_call.1} parent=11 // pred_check
        %p196 = pneg %p143
      $region30: #{tpu_custom_call.1} parent=11 // pred_check_branch
        %198 = sbr.rel (%p196) target = $region32
      $region31: #{tpu_custom_call.1} parent=11 // pred_region
        _
      $region32: #{tpu_custom_call.1} parent=11 // pred_fallthru
        _
    $region12: #{tpu_custom_call.1} parent=5 // pred_fallthru
      _
    %p199 = scmp.lt.s32.totalorder %s12, 2
    // Predicated region
    $region33: #{tpu_custom_call.1} parent=5 // pred_check
      %p200 = pneg %p199
    $region34: #{tpu_custom_call.1} parent=5 // pred_check_branch
      %202 = sbr.rel (%p200) target = $region36
    $region35: #{tpu_custom_call.1} parent=5 // pred_region
      // Predicated region
      $region37: #{tpu_custom_call.1} parent=35 // pred_check
        %p203 = pneg %p32
      $region38: #{tpu_custom_call.1} parent=35 // pred_check_branch
        %205 = sbr.rel (%p203) target = $region40
      $region39: #{tpu_custom_call.1} parent=35 // pred_region
        %s206 = smul.u32 16, %s12
        %p207 = scmp.lt.s32.totalorder %s206, 31
        %s208 = scalar_select %p207, %s206, 31
        %s209 = smul.addr %s208, 4
        %s210 = scalar_lea.vmem %s0, %s209
        %s211 = smul.u32 16, %s12
      $region40: #{tpu_custom_call.1} parent=35 // pred_fallthru
        _
    $region36: #{tpu_custom_call.1} parent=5 // pred_fallthru
      _
    %p212 = scmp.le.s32.totalorder 1, %s12
    %p213 = scmp.lt.s32.totalorder %s12, 3
    %p214 = pnand %p212, %p213
    %p215 = pneg %p214
    // Predicated region
    $region41: #{tpu_custom_call.1} parent=5 // pred_check
      _
    $region42: #{tpu_custom_call.1} parent=5 // pred_check_branch
      %217 = sbr.rel (%p214) target = $region44
    $region43: #{tpu_custom_call.1} parent=5 // pred_region
      %s218 = ssub.s32 %s12, 1
      %s219 = smul.u32 16, %s17
      %p220 = scmp.lt.s32.totalorder %s219, 31
      %s221 = scalar_select %p220, %s219, 31
      %s222 = smul.addr %s221, 4
      %s223 = scalar_lea.vmem %s0, %s222
      %p224 = pneg %p38
      %p225 = pneg %p35
      %p226 = pneg %p59
      %p227 = pneg %p56
      %p228 = pneg %p80
      %p229 = pneg %p77
      %p230 = pneg %p101
      %p231 = pneg %p98
      %p232 = pneg %p122
      %p233 = pneg %p119
      %p234 = pneg %p143
      %p235 = pneg %p140
      %p236 = pneg %p169
      %p237 = pneg %p166
      %s238 = smul.u32 16, %s17
      %p239 = scmp.lt.s32.totalorder %s238, 31
      %s240 = scalar_select %p239, %s238, 31
      %s241 = smul.addr %s240, 8
      %s242 = scalar_lea.vmem %s6, %s241
      %s243 = smul.u32 16, %s17
      %p244 = scmp.lt.s32.totalorder %s243, 31
      %s245 = scalar_select %p244, %s243, 31
      %s246 = smul.addr %s245, 4
      %s247 = scalar_lea.vmem %s0, %s246
      %s248 = smul.u32 16, %s17
      %s249 = smul.u32 16, %s17
      %p250 = scmp.lt.s32.totalorder %s249, 31
      %s251 = scalar_select %p250, %s249, 31
      %s252 = smul.addr %s251, 8
      %s253 = scalar_lea.vmem %s6, %s252
      %s254 = smul.u32 16, %s17
      %v256 = vld [vmem:[%s247] sm:$0xf]
      %v257 = vld [vmem:[%s247 + $0x4] sm:$0xf]
      %v258 = vld [vmem:[%s247 + $0x8] sm:$0xf]
      %v259 = vld [vmem:[%s247 + $0xc] sm:$0xf]
      %v260 = vld [vmem:[%s247 + $0x10] sm:$0xf]
      %v261 = vld [vmem:[%s247 + $0x14] sm:$0xf]
      %v262 = vld [vmem:[%s247 + $0x18] sm:$0xf]
      %v263 = vld [vmem:[%s247 + $0x1c] sm:$0xf]
      %v264 = vld [vmem:[%s247 + $0x20] sm:$0xf]
      %v265 = vld [vmem:[%s247 + $0x24] sm:$0xf]
      %v266 = vld [vmem:[%s247 + $0x28] sm:$0xf]
      %v267 = vld [vmem:[%s247 + $0x2c] sm:$0xf]
      %v268 = vld [vmem:[%s247 + $0x30] sm:$0xf]
      %v269 = vld [vmem:[%s247 + $0x34] sm:$0xf]
      %v270 = vld [vmem:[%s247 + $0x38] sm:$0xf]
      %v271 = vld [vmem:[%s247 + $0x3c] sm:$0xf]
      %v272 = vld [vmem:[%s1] sm:$0xf]
      %v273 = vld [vmem:[%s1 + $0x4] sm:$0xf]
      %v274 = vld [vmem:[%s1 + $0x8] sm:$0xf]
      %v275 = vld [vmem:[%s1 + $0xc] sm:$0xf]
      %v276 = vld [vmem:[%s2] sm:$0x1]
      %v278 = vlaneseq
      %v279 = vshrl.u32 %v278, 7
      %v280 = vsub.s32 0, %v279
      %v281 = vrot.slane %v276, %v280
      %v299 = vunpack.c.l.b16 %v256
      %v300 = vunpack.c.l.b16 %v257
      %v301 = vunpack.c.l.b16 %v258
      %v302 = vunpack.c.l.b16 %v259
      %v303 = vunpack.c.l.b16 %v260
      %v304 = vunpack.c.l.b16 %v261
      %v305 = vunpack.c.l.b16 %v262
      %v306 = vunpack.c.l.b16 %v263
      %v307 = vunpack.c.l.b16 %v264
      %v308 = vunpack.c.l.b16 %v265
      %v309 = vunpack.c.l.b16 %v266
      %v310 = vunpack.c.l.b16 %v267
      %v311 = vunpack.c.l.b16 %v268
      %v312 = vunpack.c.l.b16 %v269
      %v313 = vunpack.c.l.b16 %v270
      %v314 = vunpack.c.l.b16 %v271
      %v315 = vpack.c.b16 %v300, %v299
      %v316 = vpack.c.b16 %v302, %v301
      %v317 = vpack.c.b16 %v304, %v303
      %v318 = vpack.c.b16 %v306, %v305
      %v319 = vpack.c.b16 %v308, %v307
      %v320 = vpack.c.b16 %v310, %v309
      %v321 = vpack.c.b16 %v312, %v311
      %v322 = vpack.c.b16 %v314, %v313
      %v327 = vunpack.c.l.b16 %v272
      %v328 = vunpack.c.l.b16 %v273
      %v329 = vunpack.c.l.b16 %v274
      %v330 = vunpack.c.l.b16 %v275
      %v331 = vpack.c.b16 %v328, %v327
      %v332 = vpack.c.b16 %v330, %v329
      %vm335 = vcmask 261120
      %v337 = vsel %vm335, %v315, 0
      %v340 = vsel %vm335, %v316, 0
      %v343 = vsel %vm335, %v317, 0
      %v346 = vsel %vm335, %v318, 0
      %v349 = vsel %vm335, %v319, 0
      %v352 = vsel %vm335, %v320, 0
      %v355 = vsel %vm335, %v321, 0
      %v358 = vsel %vm335, %v322, 0
      %360 = vmatprep.subr.bf16.mxu0 0
      %361 = vmatpush1.bf16.msra.mxu0 %v331
      %362 = vmatprep.subr.bf16.mxu0 0
      %363 = vmatpush1.bf16.msra.mxu0 %v332
      %364 = vmatprep.subr.bf16.mxu0 0
      %365 = vmatpush1.bf16.msra.mxu0 0
      %366 = vmatprep.subr.bf16.mxu0 0
      %367 = vmatpush1.bf16.msra.mxu0 0
      %368 = vmatprep.subr.bf16.mxu0 0
      %369 = vmatpush1.bf16.msra.mxu0 0
      %370 = vmatprep.subr.bf16.mxu0 0
      %371 = vmatpush1.bf16.msra.mxu0 0
      %372 = vmatprep.subr.bf16.mxu0 0
      %373 = vmatpush1.bf16.msra.mxu0 0
      %374 = vmatprep.subr.bf16.mxu0 0
      %375 = vmatpush1.bf16.msra.mxu0 0
      %376 = vmatprep.subr.bf16.mxu0 0
      %377 = vmatpush1.bf16.msra.mxu0 0
      %378 = vmatprep.subr.bf16.mxu0 0
      %379 = vmatpush1.bf16.msra.mxu0 0
      %380 = vmatprep.subr.bf16.mxu0 0
      %381 = vmatpush1.bf16.msra.mxu0 0
      %382 = vmatprep.subr.bf16.mxu0 0
      %383 = vmatpush1.bf16.msra.mxu0 0
      %384 = vmatprep.subr.bf16.mxu0 0
      %385 = vmatpush1.bf16.msra.mxu0 0
      %386 = vmatprep.subr.bf16.mxu0 0
      %387 = vmatpush1.bf16.msra.mxu0 0
      %388 = vmatprep.subr.bf16.mxu0 0
      %389 = vmatpush1.bf16.msra.mxu0 0
      %390 = vmatprep.subr.bf16.mxu0 0
      %391 = vmatpush1.bf16.msra.mxu0 0
      %392 = vmatprep.mubr.bf16.mxu0 0
      %393 = vmatmul.mubr.bf16.gmra.mrb[0].mxu0 %v337
      %v394 = vpop.f32.mrb[0].mxu0
      %v395 = vadd.f32 %v281, %v394
      %v396 = vpop.f32.mrb[0].mxu0
      %v397 = vpop.f32.mrb[0].mxu0
      %v398 = vadd.f32 %v281, %v397
      %v399 = vpop.f32.mrb[0].mxu0
      %400 = vmatprep.mubr.bf16.mxu0 0
      %401 = vmatmul.mubr.bf16.gmra.mrb[0].mxu0 %v340
      %v402 = vpop.f32.mrb[0].mxu0
      %v403 = vadd.f32 %v281, %v402
      %v404 = vpop.f32.mrb[0].mxu0
      %v405 = vpop.f32.mrb[0].mxu0
      %v406 = vadd.f32 %v281, %v405
      %v407 = vpop.f32.mrb[0].mxu0
      %408 = vmatprep.mubr.bf16.mxu0 0
      %409 = vmatmul.mubr.bf16.gmra.mrb[0].mxu0 %v343
      %v410 = vpop.f32.mrb[0].mxu0
      %v411 = vadd.f32 %v281, %v410
      %v412 = vpop.f32.mrb[0].mxu0
      %v413 = vpop.f32.mrb[0].mxu0
      %v414 = vadd.f32 %v281, %v413
      %v415 = vpop.f32.mrb[0].mxu0
      %416 = vmatprep.mubr.bf16.mxu0 0
      %417 = vmatmul.mubr.bf16.gmra.mrb[0].mxu0 %v346
      %v418 = vpop.f32.mrb[0].mxu0
      %v419 = vadd.f32 %v281, %v418
      %v420 = vpop.f32.mrb[0].mxu0
      %v421 = vpop.f32.mrb[0].mxu0
      %v422 = vadd.f32 %v281, %v421
      %v423 = vpop.f32.mrb[0].mxu0
      %424 = vmatprep.mubr.bf16.mxu0 0
      %425 = vmatmul.mubr.bf16.gmra.mrb[0].mxu0 %v349
      %v426 = vpop.f32.mrb[0].mxu0
      %v427 = vadd.f32 %v281, %v426
      %v428 = vpop.f32.mrb[0].mxu0
      %v429 = vpop.f32.mrb[0].mxu0
      %v430 = vadd.f32 %v281, %v429
      %v431 = vpop.f32.mrb[0].mxu0
      %432 = vmatprep.mubr.bf16.mxu0 0
      %433 = vmatmul.mubr.bf16.gmra.mrb[0].mxu0 %v352
      %v434 = vpop.f32.mrb[0].mxu0
      %v435 = vadd.f32 %v281, %v434
      %v436 = vpop.f32.mrb[0].mxu0
      %v437 = vpop.f32.mrb[0].mxu0
      %v438 = vadd.f32 %v281, %v437
      %v439 = vpop.f32.mrb[0].mxu0
      %440 = vmatprep.mubr.bf16.mxu0 0
      %441 = vmatmul.mubr.bf16.gmra.mrb[0].mxu0 %v355
      %v442 = vpop.f32.mrb[0].mxu0
      %v443 = vadd.f32 %v281, %v442
      %v444 = vpop.f32.mrb[0].mxu0
      %v445 = vpop.f32.mrb[0].mxu0
      %v446 = vadd.f32 %v281, %v445
      %v447 = vpop.f32.mrb[0].mxu0
      %448 = vmatprep.mubr.bf16.mxu0 0
      %449 = vmatmul.mubr.bf16.gmra.mrb[0].mxu0 %v358
      %v450 = vpop.f32.mrb[0].mxu0
      %v451 = vadd.f32 %v281, %v450
      %v452 = vpop.f32.mrb[0].mxu0
      %v453 = vpop.f32.mrb[0].mxu0
      %v454 = vadd.f32 %v281, %v453
      %v455 = vpop.f32.mrb[0].mxu0
      %456 = vdwg.mxu0
      %v457 = vpack.c.bf16 %v398, %v395
      %v458 = vpack.c.bf16 %v406, %v403
      %v459 = vpack.c.bf16 %v414, %v411
      %v460 = vpack.c.bf16 %v422, %v419
      %v461 = vpack.c.bf16 %v430, %v427
      %v462 = vpack.c.bf16 %v438, %v435
      %v463 = vpack.c.bf16 %v446, %v443
      %v464 = vpack.c.bf16 %v454, %v451
      %v465 = vld [vmem:[%s3] sm:$0xff]
      %v466 = vld [vmem:[%s3 + $0x8] sm:$0xff]
      %v467 = vld [vmem:[%s3 + $0x10] sm:$0xff]
      %v468 = vld [vmem:[%s3 + $0x18] sm:$0xff]
      %v469 = vld [vmem:[%s3 + $0x20] sm:$0xff]
      %v470 = vld [vmem:[%s3 + $0x28] sm:$0xff]
      %v471 = vld [vmem:[%s3 + $0x30] sm:$0xff]
      %v472 = vld [vmem:[%s3 + $0x38] sm:$0xff]
      %474 = vrot.lane.b32.xlu0 %v457, 96
      %v475 = vpop.permute.xlu0 %474
      %vm476 = vcmask 64512
      %v478 = vsel %vm476, %v457, 0
      %v481 = vsel %vm476, %v475, 0
      %483 = vmatprep.subr.bf16.mxu0 0
      %484 = vmatpush1.bf16.xpose.msra.mxu0 %v481
      %485 = vmatprep.subr.bf16.mxu0 0
      %486 = vmatpush1.bf16.xpose.msra.mxu0 0
      %487 = vmatprep.subr.bf16.mxu0 0
      %488 = vmatpush1.bf16.xpose.msra.mxu0 0
      %489 = vmatprep.subr.bf16.mxu0 0
      %490 = vmatpush1.bf16.xpose.msra.mxu0 0
      %491 = vmatprep.subr.bf16.mxu0 0
      %492 = vmatpush1.bf16.xpose.msra.mxu0 0
      %493 = vmatprep.subr.bf16.mxu0 0
      %494 = vmatpush1.bf16.xpose.msra.mxu0 0
      %495 = vmatprep.subr.bf16.mxu0 0
      %496 = vmatpush1.bf16.xpose.msra.mxu0 0
      %497 = vmatprep.subr.bf16.mxu0 0
      %498 = vmatpush1.bf16.xpose.msra.mxu0 0
      %499 = vmatprep.subr.bf16.mxu0 0
      %500 = vmatpush1.bf16.xpose.msra.mxu0 0
      %501 = vmatprep.subr.bf16.mxu0 0
      %502 = vmatpush1.bf16.xpose.msra.mxu0 0
      %503 = vmatprep.subr.bf16.mxu0 0
      %504 = vmatpush1.bf16.xpose.msra.mxu0 0
      %505 = vmatprep.subr.bf16.mxu0 0
      %506 = vmatpush1.bf16.xpose.msra.mxu0 0
      %507 = vmatprep.subr.bf16.mxu0 0
      %508 = vmatpush1.bf16.xpose.msra.mxu0 0
      %509 = vmatprep.subr.bf16.mxu0 0
      %510 = vmatpush1.bf16.xpose.msra.mxu0 0
      %511 = vmatprep.subr.bf16.mxu0 0
      %512 = vmatpush1.bf16.xpose.msra.mxu0 0
      %513 = vmatprep.subr.bf16.mxu0 0
      %514 = vmatpush1.bf16.xpose.msra.mxu0 0
      %515 = vmatprep.mubr.bf16.mxu0 0
      %516 = vmatmul.mubr.bf16.gmra.mrb[0].mxu0 %v478
      %v517 = vpop.f32.mrb[0].mxu0
      %v518 = vadd.f32 %v465, %v517
      %v519 = vpop.f32.mrb[0].mxu0
      %v520 = vpop.f32.mrb[0].mxu0
      %v521 = vadd.f32 %v466, %v520
      %v522 = vpop.f32.mrb[0].mxu0
      %523 = vdwg.mxu0
      %525 = vrot.lane.b32.xlu0 %v458, 96
      %v526 = vpop.permute.xlu0 %525
      %v528 = vsel %vm476, %v458, 0
      %v531 = vsel %vm476, %v526, 0
      %533 = vmatprep.subr.bf16.mxu0 0
      %534 = vmatpush1.bf16.xpose.msra.mxu0 %v531
      %535 = vmatprep.subr.bf16.mxu0 0
      %536 = vmatpush1.bf16.xpose.msra.mxu0 0
      %537 = vmatprep.subr.bf16.mxu0 0
      %538 = vmatpush1.bf16.xpose.msra.mxu0 0
      %539 = vmatprep.subr.bf16.mxu0 0
      %540 = vmatpush1.bf16.xpose.msra.mxu0 0
      %541 = vmatprep.subr.bf16.mxu0 0
      %542 = vmatpush1.bf16.xpose.msra.mxu0 0
      %543 = vmatprep.subr.bf16.mxu0 0
      %544 = vmatpush1.bf16.xpose.msra.mxu0 0
      %545 = vmatprep.subr.bf16.mxu0 0
      %546 = vmatpush1.bf16.xpose.msra.mxu0 0
      %547 = vmatprep.subr.bf16.mxu0 0
      %548 = vmatpush1.bf16.xpose.msra.mxu0 0
      %549 = vmatprep.subr.bf16.mxu0 0
      %550 = vmatpush1.bf16.xpose.msra.mxu0 0
      %551 = vmatprep.subr.bf16.mxu0 0
      %552 = vmatpush1.bf16.xpose.msra.mxu0 0
      %553 = vmatprep.subr.bf16.mxu0 0
      %554 = vmatpush1.bf16.xpose.msra.mxu0 0
      %555 = vmatprep.subr.bf16.mxu0 0
      %556 = vmatpush1.bf16.xpose.msra.mxu0 0
      %557 = vmatprep.subr.bf16.mxu0 0
      %558 = vmatpush1.bf16.xpose.msra.mxu0 0
      %559 = vmatprep.subr.bf16.mxu0 0
      %560 = vmatpush1.bf16.xpose.msra.mxu0 0
      %561 = vmatprep.subr.bf16.mxu0 0
      %562 = vmatpush1.bf16.xpose.msra.mxu0 0
      %563 = vmatprep.subr.bf16.mxu0 0
      %564 = vmatpush1.bf16.xpose.msra.mxu0 0
      %565 = vmatprep.mubr.bf16.mxu0 0
      %566 = vmatmul.mubr.bf16.gmra.mrb[0].mxu0 %v528
      %v567 = vpop.f32.mrb[0].mxu0
      %v568 = vadd.f32 %v465, %v567
      %v569 = vpop.f32.mrb[0].mxu0
      %v570 = vpop.f32.mrb[0].mxu0
      %v571 = vadd.f32 %v466, %v570
      %v572 = vpop.f32.mrb[0].mxu0
      %573 = vdwg.mxu0
      %575 = vrot.lane.b32.xlu0 %v459, 96
      %v576 = vpop.permute.xlu0 %575
      %v578 = vsel %vm476, %v459, 0
      %v581 = vsel %vm476, %v576, 0
      %583 = vmatprep.subr.bf16.mxu0 0
      %584 = vmatpush1.bf16.xpose.msra.mxu0 %v581
      %585 = vmatprep.subr.bf16.mxu0 0
      %586 = vmatpush1.bf16.xpose.msra.mxu0 0
      %587 = vmatprep.subr.bf16.mxu0 0
      %588 = vmatpush1.bf16.xpose.msra.mxu0 0
      %589 = vmatprep.subr.bf16.mxu0 0
      %590 = vmatpush1.bf16.xpose.msra.mxu0 0
      %591 = vmatprep.subr.bf16.mxu0 0
      %592 = vmatpush1.bf16.xpose.msra.mxu0 0
      %593 = vmatprep.subr.bf16.mxu0 0
      %594 = vmatpush1.bf16.xpose.msra.mxu0 0
      %595 = vmatprep.subr.bf16.mxu0 0
      %596 = vmatpush1.bf16.xpose.msra.mxu0 0
      %597 = vmatprep.subr.bf16.mxu0 0
      %598 = vmatpush1.bf16.xpose.msra.mxu0 0
      %599 = vmatprep.subr.bf16.mxu0 0
      %600 = vmatpush1.bf16.xpose.msra.mxu0 0
      %601 = vmatprep.subr.bf16.mxu0 0
      %602 = vmatpush1.bf16.xpose.msra.mxu0 0
      %603 = vmatprep.subr.bf16.mxu0 0
      %604 = vmatpush1.bf16.xpose.msra.mxu0 0
      %605 = vmatprep.subr.bf16.mxu0 0
      %606 = vmatpush1.bf16.xpose.msra.mxu0 0
      %607 = vmatprep.subr.bf16.mxu0 0
      %608 = vmatpush1.bf16.xpose.msra.mxu0 0
      %609 = vmatprep.subr.bf16.mxu0 0
      %610 = vmatpush1.bf16.xpose.msra.mxu0 0
      %611 = vmatprep.subr.bf16.mxu0 0
      %612 = vmatpush1.bf16.xpose.msra.mxu0 0
      %613 = vmatprep.subr.bf16.mxu0 0
      %614 = vmatpush1.bf16.xpose.msra.mxu0 0
      %615 = vmatprep.mubr.bf16.mxu0 0
      %616 = vmatmul.mubr.bf16.gmra.mrb[0].mxu0 %v578
      %v617 = vpop.f32.mrb[0].mxu0
      %v618 = vadd.f32 %v465, %v617
      %v619 = vpop.f32.mrb[0].mxu0
      %v620 = vpop.f32.mrb[0].mxu0
      %v621 = vadd.f32 %v466, %v620
      %v622 = vpop.f32.mrb[0].mxu0
      %623 = vdwg.mxu0
      %625 = vrot.lane.b32.xlu0 %v460, 96
      %v626 = vpop.permute.xlu0 %625
      %v628 = vsel %vm476, %v460, 0
      %v631 = vsel %vm476, %v626, 0
      %633 = vmatprep.subr.bf16.mxu0 0
      %634 = vmatpush1.bf16.xpose.msra.mxu0 %v631
      %635 = vmatprep.subr.bf16.mxu0 0
      %636 = vmatpush1.bf16.xpose.msra.mxu0 0
      %637 = vmatprep.subr.bf16.mxu0 0
      %638 = vmatpush1.bf16.xpose.msra.mxu0 0
      %639 = vmatprep.subr.bf16.mxu0 0
      %640 = vmatpush1.bf16.xpose.msra.mxu0 0
      %641 = vmatprep.subr.bf16.mxu0 0
      %642 = vmatpush1.bf16.xpose.msra.mxu0 0
      %643 = vmatprep.subr.bf16.mxu0 0
      %644 = vmatpush1.bf16.xpose.msra.mxu0 0
      %645 = vmatprep.subr.bf16.mxu0 0
      %646 = vmatpush1.bf16.xpose.msra.mxu0 0
      %647 = vmatprep.subr.bf16.mxu0 0
      %648 = vmatpush1.bf16.xpose.msra.mxu0 0
      %649 = vmatprep.subr.bf16.mxu0 0
      %650 = vmatpush1.bf16.xpose.msra.mxu0 0
      %651 = vmatprep.subr.bf16.mxu0 0
      %652 = vmatpush1.bf16.xpose.msra.mxu0 0
      %653 = vmatprep.subr.bf16.mxu0 0
      %654 = vmatpush1.bf16.xpose.msra.mxu0 0
      %655 = vmatprep.subr.bf16.mxu0 0
      %656 = vmatpush1.bf16.xpose.msra.mxu0 0
      %657 = vmatprep.subr.bf16.mxu0 0
      %658 = vmatpush1.bf16.xpose.msra.mxu0 0
      %659 = vmatprep.subr.bf16.mxu0 0
      %660 = vmatpush1.bf16.xpose.msra.mxu0 0
      %661 = vmatprep.subr.bf16.mxu0 0
      %662 = vmatpush1.bf16.xpose.msra.mxu0 0
      %663 = vmatprep.subr.bf16.mxu0 0
      %664 = vmatpush1.bf16.xpose.msra.mxu0 0
      %665 = vmatprep.mubr.bf16.mxu0 0
      %666 = vmatmul.mubr.bf16.gmra.mrb[0].mxu0 %v628
      %v667 = vpop.f32.mrb[0].mxu0
      %v668 = vadd.f32 %v465, %v667
      %v669 = vpop.f32.mrb[0].mxu0
      %v670 = vpop.f32.mrb[0].mxu0
      %v671 = vadd.f32 %v466, %v670
      %v672 = vpop.f32.mrb[0].mxu0
      %673 = vdwg.mxu0
      %675 = vrot.lane.b32.xlu0 %v461, 96
      %v676 = vpop.permute.xlu0 %675
      %v678 = vsel %vm476, %v461, 0
      %v681 = vsel %vm476, %v676, 0
      %683 = vmatprep.subr.bf16.mxu0 0
      %684 = vmatpush1.bf16.xpose.msra.mxu0 %v681
      %685 = vmatprep.subr.bf16.mxu0 0
      %686 = vmatpush1.bf16.xpose.msra.mxu0 0
      %687 = vmatprep.subr.bf16.mxu0 0
      %688 = vmatpush1.bf16.xpose.msra.mxu0 0
      %689 = vmatprep.subr.bf16.mxu0 0
      %690 = vmatpush1.bf16.xpose.msra.mxu0 0
      %691 = vmatprep.subr.bf16.mxu0 0
      %692 = vmatpush1.bf16.xpose.msra.mxu0 0
      %693 = vmatprep.subr.bf16.mxu0 0
      %694 = vmatpush1.bf16.xpose.msra.mxu0 0
      %695 = vmatprep.subr.bf16.mxu0 0
      %696 = vmatpush1.bf16.xpose.msra.mxu0 0
      %697 = vmatprep.subr.bf16.mxu0 0
      %698 = vmatpush1.bf16.xpose.msra.mxu0 0
      %699 = vmatprep.subr.bf16.mxu0 0
      %700 = vmatpush1.bf16.xpose.msra.mxu0 0
      %701 = vmatprep.subr.bf16.mxu0 0
      %702 = vmatpush1.bf16.xpose.msra.mxu0 0
      %703 = vmatprep.subr.bf16.mxu0 0
      %704 = vmatpush1.bf16.xpose.msra.mxu0 0
      %705 = vmatprep.subr.bf16.mxu0 0
      %706 = vmatpush1.bf16.xpose.msra.mxu0 0
      %707 = vmatprep.subr.bf16.mxu0 0
      %708 = vmatpush1.bf16.xpose.msra.mxu0 0
      %709 = vmatprep.subr.bf16.mxu0 0
      %710 = vmatpush1.bf16.xpose.msra.mxu0 0
      %711 = vmatprep.subr.bf16.mxu0 0
      %712 = vmatpush1.bf16.xpose.msra.mxu0 0
      %713 = vmatprep.subr.bf16.mxu0 0
      %714 = vmatpush1.bf16.xpose.msra.mxu0 0
      %715 = vmatprep.mubr.bf16.mxu0 0
      %716 = vmatmul.mubr.bf16.gmra.mrb[0].mxu0 %v678
      %v717 = vpop.f32.mrb[0].mxu0
      %v718 = vadd.f32 %v465, %v717
      %v719 = vpop.f32.mrb[0].mxu0
      %v720 = vpop.f32.mrb[0].mxu0
      %v721 = vadd.f32 %v466, %v720
      %v722 = vpop.f32.mrb[0].mxu0
      %723 = vdwg.mxu0
      %725 = vrot.lane.b32.xlu0 %v462, 96
      %v726 = vpop.permute.xlu0 %725
      %v728 = vsel %vm476, %v462, 0
      %v731 = vsel %vm476, %v726, 0
      %733 = vmatprep.subr.bf16.mxu0 0
      %734 = vmatpush1.bf16.xpose.msra.mxu0 %v731
      %735 = vmatprep.subr.bf16.mxu0 0
      %736 = vmatpush1.bf16.xpose.msra.mxu0 0
      %737 = vmatprep.subr.bf16.mxu0 0
      %738 = vmatpush1.bf16.xpose.msra.mxu0 0
      %739 = vmatprep.subr.bf16.mxu0 0
      %740 = vmatpush1.bf16.xpose.msra.mxu0 0
      %741 = vmatprep.subr.bf16.mxu0 0
      %742 = vmatpush1.bf16.xpose.msra.mxu0 0
      %743 = vmatprep.subr.bf16.mxu0 0
      %744 = vmatpush1.bf16.xpose.msra.mxu0 0
      %745 = vmatprep.subr.bf16.mxu0 0
      %746 = vmatpush1.bf16.xpose.msra.mxu0 0
      %747 = vmatprep.subr.bf16.mxu0 0
      %748 = vmatpush1.bf16.xpose.msra.mxu0 0
      %749 = vmatprep.subr.bf16.mxu0 0
      %750 = vmatpush1.bf16.xpose.msra.mxu0 0
      %751 = vmatprep.subr.bf16.mxu0 0
      %752 = vmatpush1.bf16.xpose.msra.mxu0 0
      %753 = vmatprep.subr.bf16.mxu0 0
      %754 = vmatpush1.bf16.xpose.msra.mxu0 0
      %755 = vmatprep.subr.bf16.mxu0 0
      %756 = vmatpush1.bf16.xpose.msra.mxu0 0
      %757 = vmatprep.subr.bf16.mxu0 0
      %758 = vmatpush1.bf16.xpose.msra.mxu0 0
      %759 = vmatprep.subr.bf16.mxu0 0
      %760 = vmatpush1.bf16.xpose.msra.mxu0 0
      %761 = vmatprep.subr.bf16.mxu0 0
      %762 = vmatpush1.bf16.xpose.msra.mxu0 0
      %763 = vmatprep.subr.bf16.mxu0 0
      %764 = vmatpush1.bf16.xpose.msra.mxu0 0
      %765 = vmatprep.mubr.bf16.mxu0 0
      %766 = vmatmul.mubr.bf16.gmra.mrb[0].mxu0 %v728
      %v767 = vpop.f32.mrb[0].mxu0
      %v768 = vadd.f32 %v465, %v767
      %v769 = vpop.f32.mrb[0].mxu0
      %v770 = vpop.f32.mrb[0].mxu0
      %v771 = vadd.f32 %v466, %v770
      %v772 = vpop.f32.mrb[0].mxu0
      %773 = vdwg.mxu0
      %775 = vrot.lane.b32.xlu0 %v463, 96
      %v776 = vpop.permute.xlu0 %775
      %v778 = vsel %vm476, %v463, 0
      %v781 = vsel %vm476, %v776, 0
      %783 = vmatprep.subr.bf16.mxu0 0
      %784 = vmatpush1.bf16.xpose.msra.mxu0 %v781
      %785 = vmatprep.subr.bf16.mxu0 0
      %786 = vmatpush1.bf16.xpose.msra.mxu0 0
      %787 = vmatprep.subr.bf16.mxu0 0
      %788 = vmatpush1.bf16.xpose.msra.mxu0 0
      %789 = vmatprep.subr.bf16.mxu0 0
      %790 = vmatpush1.bf16.xpose.msra.mxu0 0
      %791 = vmatprep.subr.bf16.mxu0 0
      %792 = vmatpush1.bf16.xpose.msra.mxu0 0
      %793 = vmatprep.subr.bf16.mxu0 0
      %794 = vmatpush1.bf16.xpose.msra.mxu0 0
      %795 = vmatprep.subr.bf16.mxu0 0
      %796 = vmatpush1.bf16.xpose.msra.mxu0 0
      %797 = vmatprep.subr.bf16.mxu0 0
      %798 = vmatpush1.bf16.xpose.msra.mxu0 0
      %799 = vmatprep.subr.bf16.mxu0 0
      %800 = vmatpush1.bf16.xpose.msra.mxu0 0
      %801 = vmatprep.subr.bf16.mxu0 0
      %802 = vmatpush1.bf16.xpose.msra.mxu0 0
      %803 = vmatprep.subr.bf16.mxu0 0
      %804 = vmatpush1.bf16.xpose.msra.mxu0 0
      %805 = vmatprep.subr.bf16.mxu0 0
      %806 = vmatpush1.bf16.xpose.msra.mxu0 0
      %807 = vmatprep.subr.bf16.mxu0 0
      %808 = vmatpush1.bf16.xpose.msra.mxu0 0
      %809 = vmatprep.subr.bf16.mxu0 0
      %810 = vmatpush1.bf16.xpose.msra.mxu0 0
      %811 = vmatprep.subr.bf16.mxu0 0
      %812 = vmatpush1.bf16.xpose.msra.mxu0 0
      %813 = vmatprep.subr.bf16.mxu0 0
      %814 = vmatpush1.bf16.xpose.msra.mxu0 0
      %815 = vmatprep.mubr.bf16.mxu0 0
      %816 = vmatmul.mubr.bf16.gmra.mrb[0].mxu0 %v778
      %v817 = vpop.f32.mrb[0].mxu0
      %v818 = vadd.f32 %v465, %v817
      %v819 = vpop.f32.mrb[0].mxu0
      %v820 = vpop.f32.mrb[0].mxu0
      %v821 = vadd.f32 %v466, %v820
      %v822 = vpop.f32.mrb[0].mxu0
      %823 = vdwg.mxu0
      %825 = vrot.lane.b32.xlu0 %v464, 96
      %v826 = vpop.permute.xlu0 %825
      %v828 = vsel %vm476, %v464, 0
      %v831 = vsel %vm476, %v826, 0
      %833 = vmatprep.subr.bf16.mxu0 0
      %834 = vmatpush1.bf16.xpose.msra.mxu0 %v831
      %835 = vmatprep.subr.bf16.mxu0 0
      %836 = vmatpush1.bf16.xpose.msra.mxu0 0
      %837 = vmatprep.subr.bf16.mxu0 0
      %838 = vmatpush1.bf16.xpose.msra.mxu0 0
      %839 = vmatprep.subr.bf16.mxu0 0
      %840 = vmatpush1.bf16.xpose.msra.mxu0 0
      %841 = vmatprep.subr.bf16.mxu0 0
      %842 = vmatpush1.bf16.xpose.msra.mxu0 0
      %843 = vmatprep.subr.bf16.mxu0 0
      %844 = vmatpush1.bf16.xpose.msra.mxu0 0
      %845 = vmatprep.subr.bf16.mxu0 0
      %846 = vmatpush1.bf16.xpose.msra.mxu0 0
      %847 = vmatprep.subr.bf16.mxu0 0
      %848 = vmatpush1.bf16.xpose.msra.mxu0 0
      %849 = vmatprep.subr.bf16.mxu0 0
      %850 = vmatpush1.bf16.xpose.msra.mxu0 0
      %851 = vmatprep.subr.bf16.mxu0 0
      %852 = vmatpush1.bf16.xpose.msra.mxu0 0
      %853 = vmatprep.subr.bf16.mxu0 0
      %854 = vmatpush1.bf16.xpose.msra.mxu0 0
      %855 = vmatprep.subr.bf16.mxu0 0
      %856 = vmatpush1.bf16.xpose.msra.mxu0 0
      %857 = vmatprep.subr.bf16.mxu0 0
      %858 = vmatpush1.bf16.xpose.msra.mxu0 0
      %859 = vmatprep.subr.bf16.mxu0 0
      %860 = vmatpush1.bf16.xpose.msra.mxu0 0
      %861 = vmatprep.subr.bf16.mxu0 0
      %862 = vmatpush1.bf16.xpose.msra.mxu0 0
      %863 = vmatprep.subr.bf16.mxu0 0
      %864 = vmatpush1.bf16.xpose.msra.mxu0 0
      %865 = vmatprep.mubr.bf16.mxu0 0
      %866 = vmatmul.mubr.bf16.gmra.mrb[0].mxu0 %v828
      %v867 = vpop.f32.mrb[0].mxu0
      %v868 = vadd.f32 %v465, %v867
      %v869 = vpop.f32.mrb[0].mxu0
      %v870 = vpop.f32.mrb[0].mxu0
      %v871 = vadd.f32 %v466, %v870
      %v872 = vpop.f32.mrb[0].mxu0
      %873 = vdwg.mxu0
      %vm874 = vcmask 130048
      %v875 = vsel %vm874, %v518, -inf
      %876 = vmax.xlane.f32.xlu0 %v875
      %v877 = vpop.xlane.xlu0 %876
      %v878 = vsel %vm874, %v521, -inf
      %879 = vmax.xlane.f32.xlu0 %v878
      %v880 = vpop.xlane.xlu0 %879
      %v881 = vsel %vm874, %v568, -inf
      %882 = vmax.xlane.f32.xlu0 %v881
      %v883 = vpop.xlane.xlu0 %882
      %v884 = vsel %vm874, %v571, -inf
      %885 = vmax.xlane.f32.xlu0 %v884
      %v886 = vpop.xlane.xlu0 %885
      %v887 = vsel %vm874, %v618, -inf
      %888 = vmax.xlane.f32.xlu0 %v887
      %v889 = vpop.xlane.xlu0 %888
      %v890 = vsel %vm874, %v621, -inf
      %891 = vmax.xlane.f32.xlu0 %v890
      %v892 = vpop.xlane.xlu0 %891
      %v893 = vsel %vm874, %v668, -inf
      %894 = vmax.xlane.f32.xlu0 %v893
      %v895 = vpop.xlane.xlu0 %894
      %v896 = vsel %vm874, %v671, -inf
      %897 = vmax.xlane.f32.xlu0 %v896
      %v898 = vpop.xlane.xlu0 %897
      %v899 = vsel %vm874, %v718, -inf
      %900 = vmax.xlane.f32.xlu0 %v899
      %v901 = vpop.xlane.xlu0 %900
      %v902 = vsel %vm874, %v721, -inf
      %903 = vmax.xlane.f32.xlu0 %v902
      %v904 = vpop.xlane.xlu0 %903
      %v905 = vsel %vm874, %v768, -inf
      %906 = vmax.xlane.f32.xlu0 %v905
      %v907 = vpop.xlane.xlu0 %906
      %v908 = vsel %vm874, %v771, -inf
      %909 = vmax.xlane.f32.xlu0 %v908
      %v910 = vpop.xlane.xlu0 %909
      %v911 = vsel %vm874, %v818, -inf
      %912 = vmax.xlane.f32.xlu0 %v911
      %v913 = vpop.xlane.xlu0 %912
      %v914 = vsel %vm874, %v821, -inf
      %915 = vmax.xlane.f32.xlu0 %v914
      %v916 = vpop.xlane.xlu0 %915
      %v917 = vsel %vm874, %v868, -inf
      %918 = vmax.xlane.f32.xlu0 %v917
      %v919 = vpop.xlane.xlu0 %918
      %v920 = vsel %vm874, %v871, -inf
      %921 = vmax.xlane.f32.xlu0 %v920
      %v922 = vpop.xlane.xlu0 %921
      %v923 = vsub.f32 %v518, %v877
      %v924 = vsub.f32 %v521, %v880
      %v925 = vsub.f32 %v568, %v883
      %v926 = vsub.f32 %v571, %v886
      %v927 = vsub.f32 %v618, %v889
      %v928 = vsub.f32 %v621, %v892
      %v929 = vsub.f32 %v668, %v895
      %v930 = vsub.f32 %v671, %v898
      %v931 = vsub.f32 %v718, %v901
      %v932 = vsub.f32 %v721, %v904
      %v933 = vsub.f32 %v768, %v907
      %v934 = vsub.f32 %v771, %v910
      %v935 = vsub.f32 %v818, %v913
      %v936 = vsub.f32 %v821, %v916
      %v937 = vsub.f32 %v868, %v919
      %v938 = vsub.f32 %v871, %v922
      %v939 = vmul.f32 %v923, 1.442695
      %v940 = vpow.pop %v939
      %v941 = vmul.f32 %v924, 1.442695
      %v942 = vpow.pop %v941
      %v943 = vmul.f32 %v925, 1.442695
      %v944 = vpow.pop %v943
      %v945 = vmul.f32 %v926, 1.442695
      %v946 = vpow.pop %v945
      %v947 = vmul.f32 %v927, 1.442695
      %v948 = vpow.pop %v947
      %v949 = vmul.f32 %v928, 1.442695
      %v950 = vpow.pop %v949
      %v951 = vmul.f32 %v929, 1.442695
      %v952 = vpow.pop %v951
      %v953 = vmul.f32 %v930, 1.442695
      %v954 = vpow.pop %v953
      %v955 = vmul.f32 %v931, 1.442695
      %v956 = vpow.pop %v955
      %v957 = vmul.f32 %v932, 1.442695
      %v958 = vpow.pop %v957
      %v959 = vmul.f32 %v933, 1.442695
      %v960 = vpow.pop %v959
      %v961 = vmul.f32 %v934, 1.442695
      %v962 = vpow.pop %v961
      %v963 = vmul.f32 %v935, 1.442695
      %v964 = vpow.pop %v963
      %v965 = vmul.f32 %v936, 1.442695
      %v966 = vpow.pop %v965
      %v967 = vmul.f32 %v937, 1.442695
      %v968 = vpow.pop %v967
      %v969 = vmul.f32 %v938, 1.442695
      %v970 = vpow.pop %v969
      %v971 = vsel %vm874, %v940, 0.0
      %972 = vadd.xlane.f32.xlu0 %v971
      %v973 = vpop.xlane.xlu0 %972
      %v974 = vsel %vm874, %v942, 0.0
      %975 = vadd.xlane.f32.xlu0 %v974
      %v976 = vpop.xlane.xlu0 %975
      %v977 = vsel %vm874, %v944, 0.0
      %978 = vadd.xlane.f32.xlu0 %v977
      %v979 = vpop.xlane.xlu0 %978
      %v980 = vsel %vm874, %v946, 0.0
      %981 = vadd.xlane.f32.xlu0 %v980
      %v982 = vpop.xlane.xlu0 %981
      %v983 = vsel %vm874, %v948, 0.0
      %984 = vadd.xlane.f32.xlu0 %v983
      %v985 = vpop.xlane.xlu0 %984
      %v986 = vsel %vm874, %v950, 0.0
      %987 = vadd.xlane.f32.xlu0 %v986
      %v988 = vpop.xlane.xlu0 %987
      %v989 = vsel %vm874, %v952, 0.0
      %990 = vadd.xlane.f32.xlu0 %v989
      %v991 = vpop.xlane.xlu0 %990
      %v992 = vsel %vm874, %v954, 0.0
      %993 = vadd.xlane.f32.xlu0 %v992
      %v994 = vpop.xlane.xlu0 %993
      %v995 = vsel %vm874, %v956, 0.0
      %996 = vadd.xlane.f32.xlu0 %v995
      %v997 = vpop.xlane.xlu0 %996
      %v998 = vsel %vm874, %v958, 0.0
      %999 = vadd.xlane.f32.xlu0 %v998
      %v1000 = vpop.xlane.xlu0 %999
      %v1001 = vsel %vm874, %v960, 0.0
      %1002 = vadd.xlane.f32.xlu0 %v1001
      %v1003 = vpop.xlane.xlu0 %1002
      %v1004 = vsel %vm874, %v962, 0.0
      %1005 = vadd.xlane.f32.xlu0 %v1004
      %v1006 = vpop.xlane.xlu0 %1005
      %v1007 = vsel %vm874, %v964, 0.0
      %1008 = vadd.xlane.f32.xlu0 %v1007
      %v1009 = vpop.xlane.xlu0 %1008
      %v1010 = vsel %vm874, %v966, 0.0
      %1011 = vadd.xlane.f32.xlu0 %v1010
      %v1012 = vpop.xlane.xlu0 %1011
      %v1013 = vsel %vm874, %v968, 0.0
      %1014 = vadd.xlane.f32.xlu0 %v1013
      %v1015 = vpop.xlane.xlu0 %1014
      %v1016 = vsel %vm874, %v970, 0.0
      %1017 = vadd.xlane.f32.xlu0 %v1016
      %v1018 = vpop.xlane.xlu0 %1017
      %v1019 = vrcp.pop %v973
      %v1020 = vrcp.pop %v976
      %v1021 = vrcp.pop %v979
      %v1022 = vrcp.pop %v982
      %v1023 = vrcp.pop %v985
      %v1024 = vrcp.pop %v988
      %v1025 = vrcp.pop %v991
      %v1026 = vrcp.pop %v994
      %v1027 = vrcp.pop %v997
      %v1028 = vrcp.pop %v1000
      %v1029 = vrcp.pop %v1003
      %v1030 = vrcp.pop %v1006
      %v1031 = vrcp.pop %v1009
      %v1032 = vrcp.pop %v1012
      %v1033 = vrcp.pop %v1015
      %v1034 = vrcp.pop %v1018
      %v1035 = vmul.f32 %v940, %v1019
      %v1036 = vmul.f32 %v942, %v1020
      %v1037 = vmul.f32 %v944, %v1021
      %v1038 = vmul.f32 %v946, %v1022
      %v1039 = vmul.f32 %v948, %v1023
      %v1040 = vmul.f32 %v950, %v1024
      %v1041 = vmul.f32 %v952, %v1025
      %v1042 = vmul.f32 %v954, %v1026
      %v1043 = vmul.f32 %v956, %v1027
      %v1044 = vmul.f32 %v958, %v1028
      %v1045 = vmul.f32 %v960, %v1029
      %v1046 = vmul.f32 %v962, %v1030
      %v1047 = vmul.f32 %v964, %v1031
      %v1048 = vmul.f32 %v966, %v1032
      %v1049 = vmul.f32 %v968, %v1033
      %v1050 = vmul.f32 %v970, %v1034
      %v1051 = vpack.c.bf16 %v1036, %v1035
      %v1052 = vpack.c.bf16 %v1038, %v1037
      %v1053 = vpack.c.bf16 %v1040, %v1039
      %v1054 = vpack.c.bf16 %v1042, %v1041
      %v1055 = vpack.c.bf16 %v1044, %v1043
      %v1056 = vpack.c.bf16 %v1046, %v1045
      %v1057 = vpack.c.bf16 %v1048, %v1047
      %v1058 = vpack.c.bf16 %v1050, %v1049
      %1059 = vrot.lane.b32.xlu0 %v457, 64
      %v1060 = vpop.permute.xlu0 %1059
      %v1063 = vsel %vm874, %v1051, 0
      %1065 = vmatprep.subr.bf16.mxu0 0
      %1066 = vmatpush1.bf16.msra.mxu0 %v1060
      %1067 = vmatprep.subr.bf16.mxu0 0
      %1068 = vmatpush1.bf16.msra.mxu0 0
      %1069 = vmatprep.subr.bf16.mxu0 0
      %1070 = vmatpush1.bf16.msra.mxu0 0
      %1071 = vmatprep.subr.bf16.mxu0 0
      %1072 = vmatpush1.bf16.msra.mxu0 0
      %1073 = vmatprep.subr.bf16.mxu0 0
      %1074 = vmatpush1.bf16.msra.mxu0 0
      %1075 = vmatprep.subr.bf16.mxu0 0
      %1076 = vmatpush1.bf16.msra.mxu0 0
      %1077 = vmatprep.subr.bf16.mxu0 0
      %1078 = vmatpush1.bf16.msra.mxu0 0
      %1079 = vmatprep.subr.bf16.mxu0 0
      %1080 = vmatpush1.bf16.msra.mxu0 0
      %1081 = vmatprep.subr.bf16.mxu0 0
      %1082 = vmatpush1.bf16.msra.mxu0 0
      %1083 = vmatprep.subr.bf16.mxu0 0
      %1084 = vmatpush1.bf16.msra.mxu0 0
      %1085 = vmatprep.subr.bf16.mxu0 0
      %1086 = vmatpush1.bf16.msra.mxu0 0
      %1087 = vmatprep.subr.bf16.mxu0 0
      %1088 = vmatpush1.bf16.msra.mxu0 0
      %1089 = vmatprep.subr.bf16.mxu0 0
      %1090 = vmatpush1.bf16.msra.mxu0 0
      %1091 = vmatprep.subr.bf16.mxu0 0
      %1092 = vmatpush1.bf16.msra.mxu0 0
      %1093 = vmatprep.subr.bf16.mxu0 0
      %1094 = vmatpush1.bf16.msra.mxu0 0
      %1095 = vmatprep.subr.bf16.mxu0 0
      %1096 = vmatpush1.bf16.msra.mxu0 0
      %1097 = vmatprep.mubr.bf16.mxu0 0
      %1098 = vmatmul.mubr.bf16.gmra.mrb[0].mxu0 %v1063
      %v1099 = vpop.f32.mrb[0].mxu0
      %v1100 = vadd.f32 0.0, %v1099
      %v1101 = vpop.f32.mrb[0].mxu0
      %v1102 = vpop.f32.mrb[0].mxu0
      %v1103 = vadd.f32 0.0, %v1102
      %v1104 = vpop.f32.mrb[0].mxu0
      %1105 = vdwg.mxu0
      %1106 = vrot.lane.b32.xlu0 %v458, 64
      %v1107 = vpop.permute.xlu0 %1106
      %v1110 = vsel %vm874, %v1052, 0
      %1112 = vmatprep.subr.bf16.mxu0 0
      %1113 = vmatpush1.bf16.msra.mxu0 %v1107
      %1114 = vmatprep.subr.bf16.mxu0 0
      %1115 = vmatpush1.bf16.msra.mxu0 0
      %1116 = vmatprep.subr.bf16.mxu0 0
      %1117 = vmatpush1.bf16.msra.mxu0 0
      %1118 = vmatprep.subr.bf16.mxu0 0
      %1119 = vmatpush1.bf16.msra.mxu0 0
      %1120 = vmatprep.subr.bf16.mxu0 0
      %1121 = vmatpush1.bf16.msra.mxu0 0
      %1122 = vmatprep.subr.bf16.mxu0 0
      %1123 = vmatpush1.bf16.msra.mxu0 0
      %1124 = vmatprep.subr.bf16.mxu0 0
      %1125 = vmatpush1.bf16.msra.mxu0 0
      %1126 = vmatprep.subr.bf16.mxu0 0
      %1127 = vmatpush1.bf16.msra.mxu0 0
      %1128 = vmatprep.subr.bf16.mxu0 0
      %1129 = vmatpush1.bf16.msra.mxu0 0
      %1130 = vmatprep.subr.bf16.mxu0 0
      %1131 = vmatpush1.bf16.msra.mxu0 0
      %1132 = vmatprep.subr.bf16.mxu0 0
      %1133 = vmatpush1.bf16.msra.mxu0 0
      %1134 = vmatprep.subr.bf16.mxu0 0
      %1135 = vmatpush1.bf16.msra.mxu0 0
      %1136 = vmatprep.subr.bf16.mxu0 0
      %1137 = vmatpush1.bf16.msra.mxu0 0
      %1138 = vmatprep.subr.bf16.mxu0 0
      %1139 = vmatpush1.bf16.msra.mxu0 0
      %1140 = vmatprep.subr.bf16.mxu0 0
      %1141 = vmatpush1.bf16.msra.mxu0 0
      %1142 = vmatprep.subr.bf16.mxu0 0
      %1143 = vmatpush1.bf16.msra.mxu0 0
      %1144 = vmatprep.mubr.bf16.mxu0 0
      %1145 = vmatmul.mubr.bf16.gmra.mrb[0].mxu0 %v1110
      %v1146 = vpop.f32.mrb[0].mxu0
      %v1147 = vadd.f32 0.0, %v1146
      %v1148 = vpop.f32.mrb[0].mxu0
      %v1149 = vpop.f32.mrb[0].mxu0
      %v1150 = vadd.f32 0.0, %v1149
      %v1151 = vpop.f32.mrb[0].mxu0
      %1152 = vdwg.mxu0
      %1153 = vrot.lane.b32.xlu0 %v459, 64
      %v1154 = vpop.permute.xlu0 %1153
      %v1157 = vsel %vm874, %v1053, 0
      %1159 = vmatprep.subr.bf16.mxu0 0
      %1160 = vmatpush1.bf16.msra.mxu0 %v1154
      %1161 = vmatprep.subr.bf16.mxu0 0
      %1162 = vmatpush1.bf16.msra.mxu0 0
      %1163 = vmatprep.subr.bf16.mxu0 0
      %1164 = vmatpush1.bf16.msra.mxu0 0
      %1165 = vmatprep.subr.bf16.mxu0 0
      %1166 = vmatpush1.bf16.msra.mxu0 0
      %1167 = vmatprep.subr.bf16.mxu0 0
      %1168 = vmatpush1.bf16.msra.mxu0 0
      %1169 = vmatprep.subr.bf16.mxu0 0
      %1170 = vmatpush1.bf16.msra.mxu0 0
      %1171 = vmatprep.subr.bf16.mxu0 0
      %1172 = vmatpush1.bf16.msra.mxu0 0
      %1173 = vmatprep.subr.bf16.mxu0 0
      %1174 = vmatpush1.bf16.msra.mxu0 0
      %1175 = vmatprep.subr.bf16.mxu0 0
      %1176 = vmatpush1.bf16.msra.mxu0 0
      %1177 = vmatprep.subr.bf16.mxu0 0
      %1178 = vmatpush1.bf16.msra.mxu0 0
      %1179 = vmatprep.subr.bf16.mxu0 0
      %1180 = vmatpush1.bf16.msra.mxu0 0
      %1181 = vmatprep.subr.bf16.mxu0 0
      %1182 = vmatpush1.bf16.msra.mxu0 0
      %1183 = vmatprep.subr.bf16.mxu0 0
      %1184 = vmatpush1.bf16.msra.mxu0 0
      %1185 = vmatprep.subr.bf16.mxu0 0
      %1186 = vmatpush1.bf16.msra.mxu0 0
      %1187 = vmatprep.subr.bf16.mxu0 0
      %1188 = vmatpush1.bf16.msra.mxu0 0
      %1189 = vmatprep.subr.bf16.mxu0 0
      %1190 = vmatpush1.bf16.msra.mxu0 0
      %1191 = vmatprep.mubr.bf16.mxu0 0
      %1192 = vmatmul.mubr.bf16.gmra.mrb[0].mxu0 %v1157
      %v1193 = vpop.f32.mrb[0].mxu0
      %v1194 = vadd.f32 0.0, %v1193
      %v1195 = vpop.f32.mrb[0].mxu0
      %v1196 = vpop.f32.mrb[0].mxu0
      %v1197 = vadd.f32 0.0, %v1196
      %v1198 = vpop.f32.mrb[0].mxu0
      %1199 = vdwg.mxu0
      %1200 = vrot.lane.b32.xlu0 %v460, 64
      %v1201 = vpop.permute.xlu0 %1200
      %v1204 = vsel %vm874, %v1054, 0
      %1206 = vmatprep.subr.bf16.mxu0 0
      %1207 = vmatpush1.bf16.msra.mxu0 %v1201
      %1208 = vmatprep.subr.bf16.mxu0 0
      %1209 = vmatpush1.bf16.msra.mxu0 0
      %1210 = vmatprep.subr.bf16.mxu0 0
      %1211 = vmatpush1.bf16.msra.mxu0 0
      %1212 = vmatprep.subr.bf16.mxu0 0
      %1213 = vmatpush1.bf16.msra.mxu0 0
      %1214 = vmatprep.subr.bf16.mxu0 0
      %1215 = vmatpush1.bf16.msra.mxu0 0
      %1216 = vmatprep.subr.bf16.mxu0 0
      %1217 = vmatpush1.bf16.msra.mxu0 0
      %1218 = vmatprep.subr.bf16.mxu0 0
      %1219 = vmatpush1.bf16.msra.mxu0 0
      %1220 = vmatprep.subr.bf16.mxu0 0
      %1221 = vmatpush1.bf16.msra.mxu0 0
      %1222 = vmatprep.subr.bf16.mxu0 0
      %1223 = vmatpush1.bf16.msra.mxu0 0
      %1224 = vmatprep.subr.bf16.mxu0 0
      %1225 = vmatpush1.bf16.msra.mxu0 0
      %1226 = vmatprep.subr.bf16.mxu0 0
      %1227 = vmatpush1.bf16.msra.mxu0 0
      %1228 = vmatprep.subr.bf16.mxu0 0
      %1229 = vmatpush1.bf16.msra.mxu0 0
      %1230 = vmatprep.subr.bf16.mxu0 0
      %1231 = vmatpush1.bf16.msra.mxu0 0
      %1232 = vmatprep.subr.bf16.mxu0 0
      %1233 = vmatpush1.bf16.msra.mxu0 0
      %1234 = vmatprep.subr.bf16.mxu0 0
      %1235 = vmatpush1.bf16.msra.mxu0 0
      %1236 = vmatprep.subr.bf16.mxu0 0
      %1237 = vmatpush1.bf16.msra.mxu0 0
      %1238 = vmatprep.mubr.bf16.mxu0 0
      %1239 = vmatmul.mubr.bf16.gmra.mrb[0].mxu0 %v1204
      %v1240 = vpop.f32.mrb[0].mxu0
      %v1241 = vadd.f32 0.0, %v1240
      %v1242 = vpop.f32.mrb[0].mxu0
      %v1243 = vpop.f32.mrb[0].mxu0
      %v1244 = vadd.f32 0.0, %v1243
      %v1245 = vpop.f32.mrb[0].mxu0
      %1246 = vdwg.mxu0
      %1247 = vrot.lane.b32.xlu0 %v461, 64
      %v1248 = vpop.permute.xlu0 %1247
      %v1251 = vsel %vm874, %v1055, 0
      %1253 = vmatprep.subr.bf16.mxu0 0
      %1254 = vmatpush1.bf16.msra.mxu0 %v1248
      %1255 = vmatprep.subr.bf16.mxu0 0
      %1256 = vmatpush1.bf16.msra.mxu0 0
      %1257 = vmatprep.subr.bf16.mxu0 0
      %1258 = vmatpush1.bf16.msra.mxu0 0
      %1259 = vmatprep.subr.bf16.mxu0 0
      %1260 = vmatpush1.bf16.msra.mxu0 0
      %1261 = vmatprep.subr.bf16.mxu0 0
      %1262 = vmatpush1.bf16.msra.mxu0 0
      %1263 = vmatprep.subr.bf16.mxu0 0
      %1264 = vmatpush1.bf16.msra.mxu0 0
      %1265 = vmatprep.subr.bf16.mxu0 0
      %1266 = vmatpush1.bf16.msra.mxu0 0
      %1267 = vmatprep.subr.bf16.mxu0 0
      %1268 = vmatpush1.bf16.msra.mxu0 0
      %1269 = vmatprep.subr.bf16.mxu0 0
      %1270 = vmatpush1.bf16.msra.mxu0 0
      %1271 = vmatprep.subr.bf16.mxu0 0
      %1272 = vmatpush1.bf16.msra.mxu0 0
      %1273 = vmatprep.subr.bf16.mxu0 0
      %1274 = vmatpush1.bf16.msra.mxu0 0
      %1275 = vmatprep.subr.bf16.mxu0 0
      %1276 = vmatpush1.bf16.msra.mxu0 0
      %1277 = vmatprep.subr.bf16.mxu0 0
      %1278 = vmatpush1.bf16.msra.mxu0 0
      %1279 = vmatprep.subr.bf16.mxu0 0
      %1280 = vmatpush1.bf16.msra.mxu0 0
      %1281 = vmatprep.subr.bf16.mxu0 0
      %1282 = vmatpush1.bf16.msra.mxu0 0
      %1283 = vmatprep.subr.bf16.mxu0 0
      %1284 = vmatpush1.bf16.msra.mxu0 0
      %1285 = vmatprep.mubr.bf16.mxu0 0
      %1286 = vmatmul.mubr.bf16.gmra.mrb[0].mxu0 %v1251
      %v1287 = vpop.f32.mrb[0].mxu0
      %v1288 = vadd.f32 0.0, %v1287
      %v1289 = vpop.f32.mrb[0].mxu0
      %v1290 = vpop.f32.mrb[0].mxu0
      %v1291 = vadd.f32 0.0, %v1290
      %v1292 = vpop.f32.mrb[0].mxu0
      %1293 = vdwg.mxu0
      %1294 = vrot.lane.b32.xlu0 %v462, 64
      %v1295 = vpop.permute.xlu0 %1294
      %v1298 = vsel %vm874, %v1056, 0
      %1300 = vmatprep.subr.bf16.mxu0 0
      %1301 = vmatpush1.bf16.msra.mxu0 %v1295
      %1302 = vmatprep.subr.bf16.mxu0 0
      %1303 = vmatpush1.bf16.msra.mxu0 0
      %1304 = vmatprep.subr.bf16.mxu0 0
      %1305 = vmatpush1.bf16.msra.mxu0 0
      %1306 = vmatprep.subr.bf16.mxu0 0
      %1307 = vmatpush1.bf16.msra.mxu0 0
      %1308 = vmatprep.subr.bf16.mxu0 0
      %1309 = vmatpush1.bf16.msra.mxu0 0
      %1310 = vmatprep.subr.bf16.mxu0 0
      %1311 = vmatpush1.bf16.msra.mxu0 0
      %1312 = vmatprep.subr.bf16.mxu0 0
      %1313 = vmatpush1.bf16.msra.mxu0 0
      %1314 = vmatprep.subr.bf16.mxu0 0
      %1315 = vmatpush1.bf16.msra.mxu0 0
      %1316 = vmatprep.subr.bf16.mxu0 0
      %1317 = vmatpush1.bf16.msra.mxu0 0
      %1318 = vmatprep.subr.bf16.mxu0 0
      %1319 = vmatpush1.bf16.msra.mxu0 0
      %1320 = vmatprep.subr.bf16.mxu0 0
      %1321 = vmatpush1.bf16.msra.mxu0 0
      %1322 = vmatprep.subr.bf16.mxu0 0
      %1323 = vmatpush1.bf16.msra.mxu0 0
      %1324 = vmatprep.subr.bf16.mxu0 0
      %1325 = vmatpush1.bf16.msra.mxu0 0
      %1326 = vmatprep.subr.bf16.mxu0 0
      %1327 = vmatpush1.bf16.msra.mxu0 0
      %1328 = vmatprep.subr.bf16.mxu0 0
      %1329 = vmatpush1.bf16.msra.mxu0 0
      %1330 = vmatprep.subr.bf16.mxu0 0
      %1331 = vmatpush1.bf16.msra.mxu0 0
      %1332 = vmatprep.mubr.bf16.mxu0 0
      %1333 = vmatmul.mubr.bf16.gmra.mrb[0].mxu0 %v1298
      %v1334 = vpop.f32.mrb[0].mxu0
      %v1335 = vadd.f32 0.0, %v1334
      %v1336 = vpop.f32.mrb[0].mxu0
      %v1337 = vpop.f32.mrb[0].mxu0
      %v1338 = vadd.f32 0.0, %v1337
      %v1339 = vpop.f32.mrb[0].mxu0
      %1340 = vdwg.mxu0
      %1341 = vrot.lane.b32.xlu0 %v463, 64
      %v1342 = vpop.permute.xlu0 %1341
      %v1345 = vsel %vm874, %v1057, 0
      %1347 = vmatprep.subr.bf16.mxu0 0
      %1348 = vmatpush1.bf16.msra.mxu0 %v1342
      %1349 = vmatprep.subr.bf16.mxu0 0
      %1350 = vmatpush1.bf16.msra.mxu0 0
      %1351 = vmatprep.subr.bf16.mxu0 0
      %1352 = vmatpush1.bf16.msra.mxu0 0
      %1353 = vmatprep.subr.bf16.mxu0 0
      %1354 = vmatpush1.bf16.msra.mxu0 0
      %1355 = vmatprep.subr.bf16.mxu0 0
      %1356 = vmatpush1.bf16.msra.mxu0 0
      %1357 = vmatprep.subr.bf16.mxu0 0
      %1358 = vmatpush1.bf16.msra.mxu0 0
      %1359 = vmatprep.subr.bf16.mxu0 0
      %1360 = vmatpush1.bf16.msra.mxu0 0
      %1361 = vmatprep.subr.bf16.mxu0 0
      %1362 = vmatpush1.bf16.msra.mxu0 0
      %1363 = vmatprep.subr.bf16.mxu0 0
      %1364 = vmatpush1.bf16.msra.mxu0 0
      %1365 = vmatprep.subr.bf16.mxu0 0
      %1366 = vmatpush1.bf16.msra.mxu0 0
      %1367 = vmatprep.subr.bf16.mxu0 0
      %1368 = vmatpush1.bf16.msra.mxu0 0
      %1369 = vmatprep.subr.bf16.mxu0 0
      %1370 = vmatpush1.bf16.msra.mxu0 0
      %1371 = vmatprep.subr.bf16.mxu0 0
      %1372 = vmatpush1.bf16.msra.mxu0 0
      %1373 = vmatprep.subr.bf16.mxu0 0
      %1374 = vmatpush1.bf16.msra.mxu0 0
      %1375 = vmatprep.subr.bf16.mxu0 0
      %1376 = vmatpush1.bf16.msra.mxu0 0
      %1377 = vmatprep.subr.bf16.mxu0 0
      %1378 = vmatpush1.bf16.msra.mxu0 0
      %1379 = vmatprep.mubr.bf16.mxu0 0
      %1380 = vmatmul.mubr.bf16.gmra.mrb[0].mxu0 %v1345
      %v1381 = vpop.f32.mrb[0].mxu0
      %v1382 = vadd.f32 0.0, %v1381
      %v1383 = vpop.f32.mrb[0].mxu0
      %v1384 = vpop.f32.mrb[0].mxu0
      %v1385 = vadd.f32 0.0, %v1384
      %v1386 = vpop.f32.mrb[0].mxu0
      %1387 = vdwg.mxu0
      %1388 = vrot.lane.b32.xlu0 %v464, 64
      %v1389 = vpop.permute.xlu0 %1388
      %v1392 = vsel %vm874, %v1058, 0
      %1394 = vmatprep.subr.bf16.mxu0 0
      %1395 = vmatpush1.bf16.msra.mxu0 %v1389
      %1396 = vmatprep.subr.bf16.mxu0 0
      %1397 = vmatpush1.bf16.msra.mxu0 0
      %1398 = vmatprep.subr.bf16.mxu0 0
      %1399 = vmatpush1.bf16.msra.mxu0 0
      %1400 = vmatprep.subr.bf16.mxu0 0
      %1401 = vmatpush1.bf16.msra.mxu0 0
      %1402 = vmatprep.subr.bf16.mxu0 0
      %1403 = vmatpush1.bf16.msra.mxu0 0
      %1404 = vmatprep.subr.bf16.mxu0 0
      %1405 = vmatpush1.bf16.msra.mxu0 0
      %1406 = vmatprep.subr.bf16.mxu0 0
      %1407 = vmatpush1.bf16.msra.mxu0 0
      %1408 = vmatprep.subr.bf16.mxu0 0
      %1409 = vmatpush1.bf16.msra.mxu0 0
      %1410 = vmatprep.subr.bf16.mxu0 0
      %1411 = vmatpush1.bf16.msra.mxu0 0
      %1412 = vmatprep.subr.bf16.mxu0 0
      %1413 = vmatpush1.bf16.msra.mxu0 0
      %1414 = vmatprep.subr.bf16.mxu0 0
      %1415 = vmatpush1.bf16.msra.mxu0 0
      %1416 = vmatprep.subr.bf16.mxu0 0
      %1417 = vmatpush1.bf16.msra.mxu0 0
      %1418 = vmatprep.subr.bf16.mxu0 0
      %1419 = vmatpush1.bf16.msra.mxu0 0
      %1420 = vmatprep.subr.bf16.mxu0 0
      %1421 = vmatpush1.bf16.msra.mxu0 0
      %1422 = vmatprep.subr.bf16.mxu0 0
      %1423 = vmatpush1.bf16.msra.mxu0 0
      %1424 = vmatprep.subr.bf16.mxu0 0
      %1425 = vmatpush1.bf16.msra.mxu0 0
      %1426 = vmatprep.mubr.bf16.mxu0 0
      %1427 = vmatmul.mubr.bf16.gmra.mrb[0].mxu0 %v1392
      %v1428 = vpop.f32.mrb[0].mxu0
      %v1429 = vadd.f32 0.0, %v1428
      %v1430 = vpop.f32.mrb[0].mxu0
      %v1431 = vpop.f32.mrb[0].mxu0
      %v1432 = vadd.f32 0.0, %v1431
      %v1433 = vpop.f32.mrb[0].mxu0
      %1434 = vdwg.mxu0
      %v1435 = vpack.c.bf16 %v1103, %v1100
      %v1436 = vpack.c.bf16 %v1150, %v1147
      %v1437 = vpack.c.bf16 %v1197, %v1194
      %v1438 = vpack.c.bf16 %v1244, %v1241
      %v1439 = vpack.c.bf16 %v1291, %v1288
      %v1440 = vpack.c.bf16 %v1338, %v1335
      %v1441 = vpack.c.bf16 %v1385, %v1382
      %v1442 = vpack.c.bf16 %v1432, %v1429
      %1443 = vst.msk [vmem:[#allocation2] sm:$0xff] %vm476, %v1435
      %1444 = vst.msk [vmem:[#allocation2 + $0x8] sm:$0xff] %vm476, %v1436
      %1445 = vst.msk [vmem:[#allocation2 + $0x10] sm:$0xff] %vm476, %v1437
      %1446 = vst.msk [vmem:[#allocation2 + $0x18] sm:$0xff] %vm476, %v1438
      %1447 = vst.msk [vmem:[#allocation2 + $0x20] sm:$0xff] %vm476, %v1439
      %1448 = vst.msk [vmem:[#allocation2 + $0x28] sm:$0xff] %vm476, %v1440
      %1449 = vst.msk [vmem:[#allocation2 + $0x30] sm:$0xff] %vm476, %v1441
      %1450 = vst.msk [vmem:[#allocation2 + $0x38] sm:$0xff] %vm476, %v1442
      %1451 = vrot.lane.b32.xlu0 %v457, 120
      %v1452 = vpop.permute.xlu0 %1451
      %1453 = vrot.lane.b32.xlu0 %v457, 88
      %v1454 = vpop.permute.xlu0 %1453
      %v1456 = vsel %vm476, %v1452, 0
      %v1459 = vsel %vm476, %v1454, 0
      %1461 = vmatprep.subr.bf16.mxu0 0
      %1462 = vmatpush1.bf16.xpose.msra.mxu0 %v1459
      %1463 = vmatprep.subr.bf16.mxu0 0
      %1464 = vmatpush1.bf16.xpose.msra.mxu0 0
      %1465 = vmatprep.subr.bf16.mxu0 0
      %1466 = vmatpush1.bf16.xpose.msra.mxu0 0
      %1467 = vmatprep.subr.bf16.mxu0 0
      %1468 = vmatpush1.bf16.xpose.msra.mxu0 0
      %1469 = vmatprep.subr.bf16.mxu0 0
      %1470 = vmatpush1.bf16.xpose.msra.mxu0 0
      %1471 = vmatprep.subr.bf16.mxu0 0
      %1472 = vmatpush1.bf16.xpose.msra.mxu0 0
      %1473 = vmatprep.subr.bf16.mxu0 0
      %1474 = vmatpush1.bf16.xpose.msra.mxu0 0
      %1475 = vmatprep.subr.bf16.mxu0 0
      %1476 = vmatpush1.bf16.xpose.msra.mxu0 0
      %1477 = vmatprep.subr.bf16.mxu0 0
      %1478 = vmatpush1.bf16.xpose.msra.mxu0 0
      %1479 = vmatprep.subr.bf16.mxu0 0
      %1480 = vmatpush1.bf16.xpose.msra.mxu0 0
      %1481 = vmatprep.subr.bf16.mxu0 0
      %1482 = vmatpush1.bf16.xpose.msra.mxu0 0
      %1483 = vmatprep.subr.bf16.mxu0 0
      %1484 = vmatpush1.bf16.xpose.msra.mxu0 0
      %1485 = vmatprep.subr.bf16.mxu0 0
      %1486 = vmatpush1.bf16.xpose.msra.mxu0 0
      %1487 = vmatprep.subr.bf16.mxu0 0
      %1488 = vmatpush1.bf16.xpose.msra.mxu0 0
      %1489 = vmatprep.subr.bf16.mxu0 0
      %1490 = vmatpush1.bf16.xpose.msra.mxu0 0
      %1491 = vmatprep.subr.bf16.mxu0 0
      %1492 = vmatpush1.bf16.xpose.msra.mxu0 0
      %1493 = vmatprep.mubr.bf16.mxu0 0
      %1494 = vmatmul.mubr.bf16.gmra.mrb[0].mxu0 %v1456
      %v1495 = vpop.f32.mrb[0].mxu0
      %v1496 = vadd.f32 %v467, %v1495
      %v1497 = vpop.f32.mrb[0].mxu0
      %v1498 = vpop.f32.mrb[0].mxu0
      %v1499 = vadd.f32 %v468, %v1498
      %v1500 = vpop.f32.mrb[0].mxu0
      %1501 = vdwg.mxu0
      %1502 = vrot.lane.b32.xlu0 %v458, 120
      %v1503 = vpop.permute.xlu0 %1502
      %1504 = vrot.lane.b32.xlu0 %v458, 88
      %v1505 = vpop.permute.xlu0 %1504
      %v1507 = vsel %vm476, %v1503, 0
      %v1510 = vsel %vm476, %v1505, 0
      %1512 = vmatprep.subr.bf16.mxu0 0
      %1513 = vmatpush1.bf16.xpose.msra.mxu0 %v1510
      %1514 = vmatprep.subr.bf16.mxu0 0
      %1515 = vmatpush1.bf16.xpose.msra.mxu0 0
      %1516 = vmatprep.subr.bf16.mxu0 0
      %1517 = vmatpush1.bf16.xpose.msra.mxu0 0
      %1518 = vmatprep.subr.bf16.mxu0 0
      %1519 = vmatpush1.bf16.xpose.msra.mxu0 0
      %1520 = vmatprep.subr.bf16.mxu0 0
      %1521 = vmatpush1.bf16.xpose.msra.mxu0 0
      %1522 = vmatprep.subr.bf16.mxu0 0
      %1523 = vmatpush1.bf16.xpose.msra.mxu0 0
      %1524 = vmatprep.subr.bf16.mxu0 0
      %1525 = vmatpush1.bf16.xpose.msra.mxu0 0
      %1526 = vmatprep.subr.bf16.mxu0 0
      %1527 = vmatpush1.bf16.xpose.msra.mxu0 0
      %1528 = vmatprep.subr.bf16.mxu0 0
      %1529 = vmatpush1.bf16.xpose.msra.mxu0 0
      %1530 = vmatprep.subr.bf16.mxu0 0
      %1531 = vmatpush1.bf16.xpose.msra.mxu0 0
      %1532 = vmatprep.subr.bf16.mxu0 0
      %1533 = vmatpush1.bf16.xpose.msra.mxu0 0
      %1534 = vmatprep.subr.bf16.mxu0 0
      %1535 = vmatpush1.bf16.xpose.msra.mxu0 0
      %1536 = vmatprep.subr.bf16.mxu0 0
      %1537 = vmatpush1.bf16.xpose.msra.mxu0 0
      %1538 = vmatprep.subr.bf16.mxu0 0
      %1539 = vmatpush1.bf16.xpose.msra.mxu0 0
      %1540 = vmatprep.subr.bf16.mxu0 0
      %1541 = vmatpush1.bf16.xpose.msra.mxu0 0
      %1542 = vmatprep.subr.bf16.mxu0 0
      %1543 = vmatpush1.bf16.xpose.msra.mxu0 0
      %1544 = vmatprep.mubr.bf16.mxu0 0
      %1545 = vmatmul.mubr.bf16.gmra.mrb[0].mxu0 %v1507
      %v1546 = vpop.f32.mrb[0].mxu0
      %v1547 = vadd.f32 %v467, %v1546
      %v1548 = vpop.f32.mrb[0].mxu0
      %v1549 = vpop.f32.mrb[0].mxu0
      %v1550 = vadd.f32 %v468, %v1549
      %v1551 = vpop.f32.mrb[0].mxu0
      %1552 = vdwg.mxu0
      %1553 = vrot.lane.b32.xlu0 %v459, 120
      %v1554 = vpop.permute.xlu0 %1553
      %1555 = vrot.lane.b32.xlu0 %v459, 88
      %v1556 = vpop.permute.xlu0 %1555
      %v1558 = vsel %vm476, %v1554, 0
      %v1561 = vsel %vm476, %v1556, 0
      %1563 = vmatprep.subr.bf16.mxu0 0
      %1564 = vmatpush1.bf16.xpose.msra.mxu0 %v1561
      %1565 = vmatprep.subr.bf16.mxu0 0
      %1566 = vmatpush1.bf16.xpose.msra.mxu0 0
      %1567 = vmatprep.subr.bf16.mxu0 0
      %1568 = vmatpush1.bf16.xpose.msra.mxu0 0
      %1569 = vmatprep.subr.bf16.mxu0 0
      %1570 = vmatpush1.bf16.xpose.msra.mxu0 0
      %1571 = vmatprep.subr.bf16.mxu0 0
      %1572 = vmatpush1.bf16.xpose.msra.mxu0 0
      %1573 = vmatprep.subr.bf16.mxu0 0
      %1574 = vmatpush1.bf16.xpose.msra.mxu0 0
      %1575 = vmatprep.subr.bf16.mxu0 0
      %1576 = vmatpush1.bf16.xpose.msra.mxu0 0
      %1577 = vmatprep.subr.bf16.mxu0 0
      %1578 = vmatpush1.bf16.xpose.msra.mxu0 0
      %1579 = vmatprep.subr.bf16.mxu0 0
      %1580 = vmatpush1.bf16.xpose.msra.mxu0 0
      %1581 = vmatprep.subr.bf16.mxu0 0
      %1582 = vmatpush1.bf16.xpose.msra.mxu0 0
      %1583 = vmatprep.subr.bf16.mxu0 0
      %1584 = vmatpush1.bf16.xpose.msra.mxu0 0
      %1585 = vmatprep.subr.bf16.mxu0 0
      %1586 = vmatpush1.bf16.xpose.msra.mxu0 0
      %1587 = vmatprep.subr.bf16.mxu0 0
      %1588 = vmatpush1.bf16.xpose.msra.mxu0 0
      %1589 = vmatprep.subr.bf16.mxu0 0
      %1590 = vmatpush1.bf16.xpose.msra.mxu0 0
      %1591 = vmatprep.subr.bf16.mxu0 0
      %1592 = vmatpush1.bf16.xpose.msra.mxu0 0
      %1593 = vmatprep.subr.bf16.mxu0 0
      %1594 = vmatpush1.bf16.xpose.msra.mxu0 0
      %1595 = vmatprep.mubr.bf16.mxu0 0
      %1596 = vmatmul.mubr.bf16.gmra.mrb[0].mxu0 %v1558
      %v1597 = vpop.f32.mrb[0].mxu0
      %v1598 = vadd.f32 %v467, %v1597
      %v1599 = vpop.f32.mrb[0].mxu0
      %v1600 = vpop.f32.mrb[0].mxu0
      %v1601 = vadd.f32 %v468, %v1600
      %v1602 = vpop.f32.mrb[0].mxu0
      %1603 = vdwg.mxu0
      %1604 = vrot.lane.b32.xlu0 %v460, 120
      %v1605 = vpop.permute.xlu0 %1604
      %1606 = vrot.lane.b32.xlu0 %v460, 88
      %v1607 = vpop.permute.xlu0 %1606
      %v1609 = vsel %vm476, %v1605, 0
      %v1612 = vsel %vm476, %v1607, 0
      %1614 = vmatprep.subr.bf16.mxu0 0
      %1615 = vmatpush1.bf16.xpose.msra.mxu0 %v1612
      %1616 = vmatprep.subr.bf16.mxu0 0
      %1617 = vmatpush1.bf16.xpose.msra.mxu0 0
      %1618 = vmatprep.subr.bf16.mxu0 0
      %1619 = vmatpush1.bf16.xpose.msra.mxu0 0
      %1620 = vmatprep.subr.bf16.mxu0 0
      %1621 = vmatpush1.bf16.xpose.msra.mxu0 0
      %1622 = vmatprep.subr.bf16.mxu0 0
      %1623 = vmatpush1.bf16.xpose.msra.mxu0 0
      %1624 = vmatprep.subr.bf16.mxu0 0
      %1625 = vmatpush1.bf16.xpose.msra.mxu0 0
      %1626 = vmatprep.subr.bf16.mxu0 0
      %1627 = vmatpush1.bf16.xpose.msra.mxu0 0
      %1628 = vmatprep.subr.bf16.mxu0 0
      %1629 = vmatpush1.bf16.xpose.msra.mxu0 0
      %1630 = vmatprep.subr.bf16.mxu0 0
      %1631 = vmatpush1.bf16.xpose.msra.mxu0 0
      %1632 = vmatprep.subr.bf16.mxu0 0
      %1633 = vmatpush1.bf16.xpose.msra.mxu0 0
      %1634 = vmatprep.subr.bf16.mxu0 0
      %1635 = vmatpush1.bf16.xpose.msra.mxu0 0
      %1636 = vmatprep.subr.bf16.mxu0 0
      %1637 = vmatpush1.bf16.xpose.msra.mxu0 0
      %1638 = vmatprep.subr.bf16.mxu0 0
      %1639 = vmatpush1.bf16.xpose.msra.mxu0 0
      %1640 = vmatprep.subr.bf16.mxu0 0
      %1641 = vmatpush1.bf16.xpose.msra.mxu0 0
      %1642 = vmatprep.subr.bf16.mxu0 0
      %1643 = vmatpush1.bf16.xpose.msra.mxu0 0
      %1644 = vmatprep.subr.bf16.mxu0 0
      %1645 = vmatpush1.bf16.xpose.msra.mxu0 0
      %1646 = vmatprep.mubr.bf16.mxu0 0
      %1647 = vmatmul.mubr.bf16.gmra.mrb[0].mxu0 %v1609
      %v1648 = vpop.f32.mrb[0].mxu0
      %v1649 = vadd.f32 %v467, %v1648
      %v1650 = vpop.f32.mrb[0].mxu0
      %v1651 = vpop.f32.mrb[0].mxu0
      %v1652 = vadd.f32 %v468, %v1651
      %v1653 = vpop.f32.mrb[0].mxu0
      %1654 = vdwg.mxu0
      %1655 = vrot.lane.b32.xlu0 %v461, 120
      %v1656 = vpop.permute.xlu0 %1655
      %1657 = vrot.lane.b32.xlu0 %v461, 88
      %v1658 = vpop.permute.xlu0 %1657
      %v1660 = vsel %vm476, %v1656, 0
      %v1663 = vsel %vm476, %v1658, 0
      %1665 = vmatprep.subr.bf16.mxu0 0
      %1666 = vmatpush1.bf16.xpose.msra.mxu0 %v1663
      %1667 = vmatprep.subr.bf16.mxu0 0
      %1668 = vmatpush1.bf16.xpose.msra.mxu0 0
      %1669 = vmatprep.subr.bf16.mxu0 0
      %1670 = vmatpush1.bf16.xpose.msra.mxu0 0
      %1671 = vmatprep.subr.bf16.mxu0 0
      %1672 = vmatpush1.bf16.xpose.msra.mxu0 0
      %1673 = vmatprep.subr.bf16.mxu0 0
      %1674 = vmatpush1.bf16.xpose.msra.mxu0 0
      %1675 = vmatprep.subr.bf16.mxu0 0
      %1676 = vmatpush1.bf16.xpose.msra.mxu0 0
      %1677 = vmatprep.subr.bf16.mxu0 0
      %1678 = vmatpush1.bf16.xpose.msra.mxu0 0
      %1679 = vmatprep.subr.bf16.mxu0 0
      %1680 = vmatpush1.bf16.xpose.msra.mxu0 0
      %1681 = vmatprep.subr.bf16.mxu0 0
      %1682 = vmatpush1.bf16.xpose.msra.mxu0 0
      %1683 = vmatprep.subr.bf16.mxu0 0
      %1684 = vmatpush1.bf16.xpose.msra.mxu0 0
      %1685 = vmatprep.subr.bf16.mxu0 0
      %1686 = vmatpush1.bf16.xpose.msra.mxu0 0
      %1687 = vmatprep.subr.bf16.mxu0 0
      %1688 = vmatpush1.bf16.xpose.msra.mxu0 0
      %1689 = vmatprep.subr.bf16.mxu0 0
      %1690 = vmatpush1.bf16.xpose.msra.mxu0 0
      %1691 = vmatprep.subr.bf16.mxu0 0
      %1692 = vmatpush1.bf16.xpose.msra.mxu0 0
      %1693 = vmatprep.subr.bf16.mxu0 0
      %1694 = vmatpush1.bf16.xpose.msra.mxu0 0
      %1695 = vmatprep.subr.bf16.mxu0 0
      %1696 = vmatpush1.bf16.xpose.msra.mxu0 0
      %1697 = vmatprep.mubr.bf16.mxu0 0
      %1698 = vmatmul.mubr.bf16.gmra.mrb[0].mxu0 %v1660
      %v1699 = vpop.f32.mrb[0].mxu0
      %v1700 = vadd.f32 %v467, %v1699
      %v1701 = vpop.f32.mrb[0].mxu0
      %v1702 = vpop.f32.mrb[0].mxu0
      %v1703 = vadd.f32 %v468, %v1702
      %v1704 = vpop.f32.mrb[0].mxu0
      %1705 = vdwg.mxu0
      %1706 = vrot.lane.b32.xlu0 %v462, 120
      %v1707 = vpop.permute.xlu0 %1706
      %1708 = vrot.lane.b32.xlu0 %v462, 88
      %v1709 = vpop.permute.xlu0 %1708
      %v1711 = vsel %vm476, %v1707, 0
      %v1714 = vsel %vm476, %v1709, 0
      %1716 = vmatprep.subr.bf16.mxu0 0
      %1717 = vmatpush1.bf16.xpose.msra.mxu0 %v1714
      %1718 = vmatprep.subr.bf16.mxu0 0
      %1719 = vmatpush1.bf16.xpose.msra.mxu0 0
      %1720 = vmatprep.subr.bf16.mxu0 0
      %1721 = vmatpush1.bf16.xpose.msra.mxu0 0
      %1722 = vmatprep.subr.bf16.mxu0 0
      %1723 = vmatpush1.bf16.xpose.msra.mxu0 0
      %1724 = vmatprep.subr.bf16.mxu0 0
      %1725 = vmatpush1.bf16.xpose.msra.mxu0 0
      %1726 = vmatprep.subr.bf16.mxu0 0
      %1727 = vmatpush1.bf16.xpose.msra.mxu0 0
      %1728 = vmatprep.subr.bf16.mxu0 0
      %1729 = vmatpush1.bf16.xpose.msra.mxu0 0
      %1730 = vmatprep.subr.bf16.mxu0 0
      %1731 = vmatpush1.bf16.xpose.msra.mxu0 0
      %1732 = vmatprep.subr.bf16.mxu0 0
      %1733 = vmatpush1.bf16.xpose.msra.mxu0 0
      %1734 = vmatprep.subr.bf16.mxu0 0
      %1735 = vmatpush1.bf16.xpose.msra.mxu0 0
      %1736 = vmatprep.subr.bf16.mxu0 0
      %1737 = vmatpush1.bf16.xpose.msra.mxu0 0
      %1738 = vmatprep.subr.bf16.mxu0 0
      %1739 = vmatpush1.bf16.xpose.msra.mxu0 0
      %1740 = vmatprep.subr.bf16.mxu0 0
      %1741 = vmatpush1.bf16.xpose.msra.mxu0 0
      %1742 = vmatprep.subr.bf16.mxu0 0
      %1743 = vmatpush1.bf16.xpose.msra.mxu0 0
      %1744 = vmatprep.subr.bf16.mxu0 0
      %1745 = vmatpush1.bf16.xpose.msra.mxu0 0
      %1746 = vmatprep.subr.bf16.mxu0 0
      %1747 = vmatpush1.bf16.xpose.msra.mxu0 0
      %1748 = vmatprep.mubr.bf16.mxu0 0
      %1749 = vmatmul.mubr.bf16.gmra.mrb[0].mxu0 %v1711
      %v1750 = vpop.f32.mrb[0].mxu0
      %v1751 = vadd.f32 %v467, %v1750
      %v1752 = vpop.f32.mrb[0].mxu0
      %v1753 = vpop.f32.mrb[0].mxu0
      %v1754 = vadd.f32 %v468, %v1753
      %v1755 = vpop.f32.mrb[0].mxu0
      %1756 = vdwg.mxu0
      %1757 = vrot.lane.b32.xlu0 %v463, 120
      %v1758 = vpop.permute.xlu0 %1757
      %1759 = vrot.lane.b32.xlu0 %v463, 88
      %v1760 = vpop.permute.xlu0 %1759
      %v1762 = vsel %vm476, %v1758, 0
      %v1765 = vsel %vm476, %v1760, 0
      %1767 = vmatprep.subr.bf16.mxu0 0
      %1768 = vmatpush1.bf16.xpose.msra.mxu0 %v1765
      %1769 = vmatprep.subr.bf16.mxu0 0
      %1770 = vmatpush1.bf16.xpose.msra.mxu0 0
      %1771 = vmatprep.subr.bf16.mxu0 0
      %1772 = vmatpush1.bf16.xpose.msra.mxu0 0
      %1773 = vmatprep.subr.bf16.mxu0 0
      %1774 = vmatpush1.bf16.xpose.msra.mxu0 0
      %1775 = vmatprep.subr.bf16.mxu0 0
      %1776 = vmatpush1.bf16.xpose.msra.mxu0 0
      %1777 = vmatprep.subr.bf16.mxu0 0
      %1778 = vmatpush1.bf16.xpose.msra.mxu0 0
      %1779 = vmatprep.subr.bf16.mxu0 0
      %1780 = vmatpush1.bf16.xpose.msra.mxu0 0
      %1781 = vmatprep.subr.bf16.mxu0 0
      %1782 = vmatpush1.bf16.xpose.msra.mxu0 0
      %1783 = vmatprep.subr.bf16.mxu0 0
      %1784 = vmatpush1.bf16.xpose.msra.mxu0 0
      %1785 = vmatprep.subr.bf16.mxu0 0
      %1786 = vmatpush1.bf16.xpose.msra.mxu0 0
      %1787 = vmatprep.subr.bf16.mxu0 0
      %1788 = vmatpush1.bf16.xpose.msra.mxu0 0
      %1789 = vmatprep.subr.bf16.mxu0 0
      %1790 = vmatpush1.bf16.xpose.msra.mxu0 0
      %1791 = vmatprep.subr.bf16.mxu0 0
      %1792 = vmatpush1.bf16.xpose.msra.mxu0 0
      %1793 = vmatprep.subr.bf16.mxu0 0
      %1794 = vmatpush1.bf16.xpose.msra.mxu0 0
      %1795 = vmatprep.subr.bf16.mxu0 0
      %1796 = vmatpush1.bf16.xpose.msra.mxu0 0
      %1797 = vmatprep.subr.bf16.mxu0 0
      %1798 = vmatpush1.bf16.xpose.msra.mxu0 0
      %1799 = vmatprep.mubr.bf16.mxu0 0
      %1800 = vmatmul.mubr.bf16.gmra.mrb[0].mxu0 %v1762
      %v1801 = vpop.f32.mrb[0].mxu0
      %v1802 = vadd.f32 %v467, %v1801
      %v1803 = vpop.f32.mrb[0].mxu0
      %v1804 = vpop.f32.mrb[0].mxu0
      %v1805 = vadd.f32 %v468, %v1804
      %v1806 = vpop.f32.mrb[0].mxu0
      %1807 = vdwg.mxu0
      %1808 = vrot.lane.b32.xlu0 %v464, 120
      %v1809 = vpop.permute.xlu0 %1808
      %1810 = vrot.lane.b32.xlu0 %v464, 88
      %v1811 = vpop.permute.xlu0 %1810
      %v1813 = vsel %vm476, %v1809, 0
      %v1816 = vsel %vm476, %v1811, 0
      %1818 = vmatprep.subr.bf16.mxu0 0
      %1819 = vmatpush1.bf16.xpose.msra.mxu0 %v1816
      %1820 = vmatprep.subr.bf16.mxu0 0
      %1821 = vmatpush1.bf16.xpose.msra.mxu0 0
      %1822 = vmatprep.subr.bf16.mxu0 0
      %1823 = vmatpush1.bf16.xpose.msra.mxu0 0
      %1824 = vmatprep.subr.bf16.mxu0 0
      %1825 = vmatpush1.bf16.xpose.msra.mxu0 0
      %1826 = vmatprep.subr.bf16.mxu0 0
      %1827 = vmatpush1.bf16.xpose.msra.mxu0 0
      %1828 = vmatprep.subr.bf16.mxu0 0
      %1829 = vmatpush1.bf16.xpose.msra.mxu0 0
      %1830 = vmatprep.subr.bf16.mxu0 0
      %1831 = vmatpush1.bf16.xpose.msra.mxu0 0
      %1832 = vmatprep.subr.bf16.mxu0 0
      %1833 = vmatpush1.bf16.xpose.msra.mxu0 0
      %1834 = vmatprep.subr.bf16.mxu0 0
      %1835 = vmatpush1.bf16.xpose.msra.mxu0 0
      %1836 = vmatprep.subr.bf16.mxu0 0
      %1837 = vmatpush1.bf16.xpose.msra.mxu0 0
      %1838 = vmatprep.subr.bf16.mxu0 0
      %1839 = vmatpush1.bf16.xpose.msra.mxu0 0
      %1840 = vmatprep.subr.bf16.mxu0 0
      %1841 = vmatpush1.bf16.xpose.msra.mxu0 0
      %1842 = vmatprep.subr.bf16.mxu0 0
      %1843 = vmatpush1.bf16.xpose.msra.mxu0 0
      %1844 = vmatprep.subr.bf16.mxu0 0
      %1845 = vmatpush1.bf16.xpose.msra.mxu0 0
      %1846 = vmatprep.subr.bf16.mxu0 0
      %1847 = vmatpush1.bf16.xpose.msra.mxu0 0
      %1848 = vmatprep.subr.bf16.mxu0 0
      %1849 = vmatpush1.bf16.xpose.msra.mxu0 0
      %1850 = vmatprep.mubr.bf16.mxu0 0
      %1851 = vmatmul.mubr.bf16.gmra.mrb[0].mxu0 %v1813
      %v1852 = vpop.f32.mrb[0].mxu0
      %v1853 = vadd.f32 %v467, %v1852
      %v1854 = vpop.f32.mrb[0].mxu0
      %v1855 = vpop.f32.mrb[0].mxu0
      %v1856 = vadd.f32 %v468, %v1855
      %v1857 = vpop.f32.mrb[0].mxu0
      %1858 = vdwg.mxu0
      %v1859 = vsel %vm874, %v1496, -inf
      %1860 = vmax.xlane.f32.xlu0 %v1859
      %v1861 = vpop.xlane.xlu0 %1860
      %v1862 = vsel %vm874, %v1499, -inf
      %1863 = vmax.xlane.f32.xlu0 %v1862
      %v1864 = vpop.xlane.xlu0 %1863
      %v1865 = vsel %vm874, %v1547, -inf
      %1866 = vmax.xlane.f32.xlu0 %v1865
      %v1867 = vpop.xlane.xlu0 %1866
      %v1868 = vsel %vm874, %v1550, -inf
      %1869 = vmax.xlane.f32.xlu0 %v1868
      %v1870 = vpop.xlane.xlu0 %1869
      %v1871 = vsel %vm874, %v1598, -inf
      %1872 = vmax.xlane.f32.xlu0 %v1871
      %v1873 = vpop.xlane.xlu0 %1872
      %v1874 = vsel %vm874, %v1601, -inf
      %1875 = vmax.xlane.f32.xlu0 %v1874
      %v1876 = vpop.xlane.xlu0 %1875
      %v1877 = vsel %vm874, %v1649, -inf
      %1878 = vmax.xlane.f32.xlu0 %v1877
      %v1879 = vpop.xlane.xlu0 %1878
      %v1880 = vsel %vm874, %v1652, -inf
      %1881 = vmax.xlane.f32.xlu0 %v1880
      %v1882 = vpop.xlane.xlu0 %1881
      %v1883 = vsel %vm874, %v1700, -inf
      %1884 = vmax.xlane.f32.xlu0 %v1883
      %v1885 = vpop.xlane.xlu0 %1884
      %v1886 = vsel %vm874, %v1703, -inf
      %1887 = vmax.xlane.f32.xlu0 %v1886
      %v1888 = vpop.xlane.xlu0 %1887
      %v1889 = vsel %vm874, %v1751, -inf
      %1890 = vmax.xlane.f32.xlu0 %v1889
      %v1891 = vpop.xlane.xlu0 %1890
      %v1892 = vsel %vm874, %v1754, -inf
      %1893 = vmax.xlane.f32.xlu0 %v1892
      %v1894 = vpop.xlane.xlu0 %1893
      %v1895 = vsel %vm874, %v1802, -inf
      %1896 = vmax.xlane.f32.xlu0 %v1895
      %v1897 = vpop.xlane.xlu0 %1896
      %v1898 = vsel %vm874, %v1805, -inf
      %1899 = vmax.xlane.f32.xlu0 %v1898
      %v1900 = vpop.xlane.xlu0 %1899
      %v1901 = vsel %vm874, %v1853, -inf
      %1902 = vmax.xlane.f32.xlu0 %v1901
      %v1903 = vpop.xlane.xlu0 %1902
      %v1904 = vsel %vm874, %v1856, -inf
      %1905 = vmax.xlane.f32.xlu0 %v1904
      %v1906 = vpop.xlane.xlu0 %1905
      %v1907 = vsub.f32 %v1496, %v1861
      %v1908 = vsub.f32 %v1499, %v1864
      %v1909 = vsub.f32 %v1547, %v1867
      %v1910 = vsub.f32 %v1550, %v1870
      %v1911 = vsub.f32 %v1598, %v1873
      %v1912 = vsub.f32 %v1601, %v1876
      %v1913 = vsub.f32 %v1649, %v1879
      %v1914 = vsub.f32 %v1652, %v1882
      %v1915 = vsub.f32 %v1700, %v1885
      %v1916 = vsub.f32 %v1703, %v1888
      %v1917 = vsub.f32 %v1751, %v1891
      %v1918 = vsub.f32 %v1754, %v1894
      %v1919 = vsub.f32 %v1802, %v1897
      %v1920 = vsub.f32 %v1805, %v1900
      %v1921 = vsub.f32 %v1853, %v1903
      %v1922 = vsub.f32 %v1856, %v1906
      %v1923 = vmul.f32 %v1907, 1.442695
      %v1924 = vpow.pop %v1923
      %v1925 = vmul.f32 %v1908, 1.442695
      %v1926 = vpow.pop %v1925
      %v1927 = vmul.f32 %v1909, 1.442695
      %v1928 = vpow.pop %v1927
      %v1929 = vmul.f32 %v1910, 1.442695
      %v1930 = vpow.pop %v1929
      %v1931 = vmul.f32 %v1911, 1.442695
      %v1932 = vpow.pop %v1931
      %v1933 = vmul.f32 %v1912, 1.442695
      %v1934 = vpow.pop %v1933
      %v1935 = vmul.f32 %v1913, 1.442695
      %v1936 = vpow.pop %v1935
      %v1937 = vmul.f32 %v1914, 1.442695
      %v1938 = vpow.pop %v1937
      %v1939 = vmul.f32 %v1915, 1.442695
      %v1940 = vpow.pop %v1939
      %v1941 = vmul.f32 %v1916, 1.442695
      %v1942 = vpow.pop %v1941
      %v1943 = vmul.f32 %v1917, 1.442695
      %v1944 = vpow.pop %v1943
      %v1945 = vmul.f32 %v1918, 1.442695
      %v1946 = vpow.pop %v1945
      %v1947 = vmul.f32 %v1919, 1.442695
      %v1948 = vpow.pop %v1947
      %v1949 = vmul.f32 %v1920, 1.442695
      %v1950 = vpow.pop %v1949
      %v1951 = vmul.f32 %v1921, 1.442695
      %v1952 = vpow.pop %v1951
      %v1953 = vmul.f32 %v1922, 1.442695
      %v1954 = vpow.pop %v1953
      %v1955 = vsel %vm874, %v1924, 0.0
      %1956 = vadd.xlane.f32.xlu0 %v1955
      %v1957 = vpop.xlane.xlu0 %1956
      %v1958 = vsel %vm874, %v1926, 0.0
      %1959 = vadd.xlane.f32.xlu0 %v1958
      %v1960 = vpop.xlane.xlu0 %1959
      %v1961 = vsel %vm874, %v1928, 0.0
      %1962 = vadd.xlane.f32.xlu0 %v1961
      %v1963 = vpop.xlane.xlu0 %1962
      %v1964 = vsel %vm874, %v1930, 0.0
      %1965 = vadd.xlane.f32.xlu0 %v1964
      %v1966 = vpop.xlane.xlu0 %1965
      %v1967 = vsel %vm874, %v1932, 0.0
      %1968 = vadd.xlane.f32.xlu0 %v1967
      %v1969 = vpop.xlane.xlu0 %1968
      %v1970 = vsel %vm874, %v1934, 0.0
      %1971 = vadd.xlane.f32.xlu0 %v1970
      %v1972 = vpop.xlane.xlu0 %1971
      %v1973 = vsel %vm874, %v1936, 0.0
      %1974 = vadd.xlane.f32.xlu0 %v1973
      %v1975 = vpop.xlane.xlu0 %1974
      %v1976 = vsel %vm874, %v1938, 0.0
      %1977 = vadd.xlane.f32.xlu0 %v1976
      %v1978 = vpop.xlane.xlu0 %1977
      %v1979 = vsel %vm874, %v1940, 0.0
      %1980 = vadd.xlane.f32.xlu0 %v1979
      %v1981 = vpop.xlane.xlu0 %1980
      %v1982 = vsel %vm874, %v1942, 0.0
      %1983 = vadd.xlane.f32.xlu0 %v1982
      %v1984 = vpop.xlane.xlu0 %1983
      %v1985 = vsel %vm874, %v1944, 0.0
      %1986 = vadd.xlane.f32.xlu0 %v1985
      %v1987 = vpop.xlane.xlu0 %1986
      %v1988 = vsel %vm874, %v1946, 0.0
      %1989 = vadd.xlane.f32.xlu0 %v1988
      %v1990 = vpop.xlane.xlu0 %1989
      %v1991 = vsel %vm874, %v1948, 0.0
      %1992 = vadd.xlane.f32.xlu0 %v1991
      %v1993 = vpop.xlane.xlu0 %1992
      %v1994 = vsel %vm874, %v1950, 0.0
      %1995 = vadd.xlane.f32.xlu0 %v1994
      %v1996 = vpop.xlane.xlu0 %1995
      %v1997 = vsel %vm874, %v1952, 0.0
      %1998 = vadd.xlane.f32.xlu0 %v1997
      %v1999 = vpop.xlane.xlu0 %1998
      %v2000 = vsel %vm874, %v1954, 0.0
      %2001 = vadd.xlane.f32.xlu0 %v2000
      %v2002 = vpop.xlane.xlu0 %2001
      %v2003 = vrcp.pop %v1957
      %v2004 = vrcp.pop %v1960
      %v2005 = vrcp.pop %v1963
      %v2006 = vrcp.pop %v1966
      %v2007 = vrcp.pop %v1969
      %v2008 = vrcp.pop %v1972
      %v2009 = vrcp.pop %v1975
      %v2010 = vrcp.pop %v1978
      %v2011 = vrcp.pop %v1981
      %v2012 = vrcp.pop %v1984
      %v2013 = vrcp.pop %v1987
      %v2014 = vrcp.pop %v1990
      %v2015 = vrcp.pop %v1993
      %v2016 = vrcp.pop %v1996
      %v2017 = vrcp.pop %v1999
      %v2018 = vrcp.pop %v2002
      %v2019 = vmul.f32 %v1924, %v2003
      %v2020 = vmul.f32 %v1926, %v2004
      %v2021 = vmul.f32 %v1928, %v2005
      %v2022 = vmul.f32 %v1930, %v2006
      %v2023 = vmul.f32 %v1932, %v2007
      %v2024 = vmul.f32 %v1934, %v2008
      %v2025 = vmul.f32 %v1936, %v2009
      %v2026 = vmul.f32 %v1938, %v2010
      %v2027 = vmul.f32 %v1940, %v2011
      %v2028 = vmul.f32 %v1942, %v2012
      %v2029 = vmul.f32 %v1944, %v2013
      %v2030 = vmul.f32 %v1946, %v2014
      %v2031 = vmul.f32 %v1948, %v2015
      %v2032 = vmul.f32 %v1950, %v2016
      %v2033 = vmul.f32 %v1952, %v2017
      %v2034 = vmul.f32 %v1954, %v2018
      %v2035 = vpack.c.bf16 %v2020, %v2019
      %v2036 = vpack.c.bf16 %v2022, %v2021
      %v2037 = vpack.c.bf16 %v2024, %v2023
      %v2038 = vpack.c.bf16 %v2026, %v2025
      %v2039 = vpack.c.bf16 %v2028, %v2027
      %v2040 = vpack.c.bf16 %v2030, %v2029
      %v2041 = vpack.c.bf16 %v2032, %v2031
      %v2042 = vpack.c.bf16 %v2034, %v2033
      %2043 = vrot.lane.b32.xlu0 %v457, 56
      %v2044 = vpop.permute.xlu0 %2043
      %v2047 = vsel %vm874, %v2035, 0
      %2049 = vmatprep.subr.bf16.mxu0 0
      %2050 = vmatpush1.bf16.msra.mxu0 %v2044
      %2051 = vmatprep.subr.bf16.mxu0 0
      %2052 = vmatpush1.bf16.msra.mxu0 0
      %2053 = vmatprep.subr.bf16.mxu0 0
      %2054 = vmatpush1.bf16.msra.mxu0 0
      %2055 = vmatprep.subr.bf16.mxu0 0
      %2056 = vmatpush1.bf16.msra.mxu0 0
      %2057 = vmatprep.subr.bf16.mxu0 0
      %2058 = vmatpush1.bf16.msra.mxu0 0
      %2059 = vmatprep.subr.bf16.mxu0 0
      %2060 = vmatpush1.bf16.msra.mxu0 0
      %2061 = vmatprep.subr.bf16.mxu0 0
      %2062 = vmatpush1.bf16.msra.mxu0 0
      %2063 = vmatprep.subr.bf16.mxu0 0
      %2064 = vmatpush1.bf16.msra.mxu0 0
      %2065 = vmatprep.subr.bf16.mxu0 0
      %2066 = vmatpush1.bf16.msra.mxu0 0
      %2067 = vmatprep.subr.bf16.mxu0 0
      %2068 = vmatpush1.bf16.msra.mxu0 0
      %2069 = vmatprep.subr.bf16.mxu0 0
      %2070 = vmatpush1.bf16.msra.mxu0 0
      %2071 = vmatprep.subr.bf16.mxu0 0
      %2072 = vmatpush1.bf16.msra.mxu0 0
      %2073 = vmatprep.subr.bf16.mxu0 0
      %2074 = vmatpush1.bf16.msra.mxu0 0
      %2075 = vmatprep.subr.bf16.mxu0 0
      %2076 = vmatpush1.bf16.msra.mxu0 0
      %2077 = vmatprep.subr.bf16.mxu0 0
      %2078 = vmatpush1.bf16.msra.mxu0 0
      %2079 = vmatprep.subr.bf16.mxu0 0
      %2080 = vmatpush1.bf16.msra.mxu0 0
      %2081 = vmatprep.mubr.bf16.mxu0 0
      %2082 = vmatmul.mubr.bf16.gmra.mrb[0].mxu0 %v2047
      %v2083 = vpop.f32.mrb[0].mxu0
      %v2084 = vadd.f32 0.0, %v2083
      %v2085 = vpop.f32.mrb[0].mxu0
      %v2086 = vpop.f32.mrb[0].mxu0
      %v2087 = vadd.f32 0.0, %v2086
      %v2088 = vpop.f32.mrb[0].mxu0
      %2089 = vdwg.mxu0
      %2090 = vrot.lane.b32.xlu0 %v458, 56
      %v2091 = vpop.permute.xlu0 %2090
      %v2094 = vsel %vm874, %v2036, 0
      %2096 = vmatprep.subr.bf16.mxu0 0
      %2097 = vmatpush1.bf16.msra.mxu0 %v2091
      %2098 = vmatprep.subr.bf16.mxu0 0
      %2099 = vmatpush1.bf16.msra.mxu0 0
      %2100 = vmatprep.subr.bf16.mxu0 0
      %2101 = vmatpush1.bf16.msra.mxu0 0
      %2102 = vmatprep.subr.bf16.mxu0 0
      %2103 = vmatpush1.bf16.msra.mxu0 0
      %2104 = vmatprep.subr.bf16.mxu0 0
      %2105 = vmatpush1.bf16.msra.mxu0 0
      %2106 = vmatprep.subr.bf16.mxu0 0
      %2107 = vmatpush1.bf16.msra.mxu0 0
      %2108 = vmatprep.subr.bf16.mxu0 0
      %2109 = vmatpush1.bf16.msra.mxu0 0
      %2110 = vmatprep.subr.bf16.mxu0 0
      %2111 = vmatpush1.bf16.msra.mxu0 0
      %2112 = vmatprep.subr.bf16.mxu0 0
      %2113 = vmatpush1.bf16.msra.mxu0 0
      %2114 = vmatprep.subr.bf16.mxu0 0
      %2115 = vmatpush1.bf16.msra.mxu0 0
      %2116 = vmatprep.subr.bf16.mxu0 0
      %2117 = vmatpush1.bf16.msra.mxu0 0
      %2118 = vmatprep.subr.bf16.mxu0 0
      %2119 = vmatpush1.bf16.msra.mxu0 0
      %2120 = vmatprep.subr.bf16.mxu0 0
      %2121 = vmatpush1.bf16.msra.mxu0 0
      %2122 = vmatprep.subr.bf16.mxu0 0
      %2123 = vmatpush1.bf16.msra.mxu0 0
      %2124 = vmatprep.subr.bf16.mxu0 0
      %2125 = vmatpush1.bf16.msra.mxu0 0
      %2126 = vmatprep.subr.bf16.mxu0 0
      %2127 = vmatpush1.bf16.msra.mxu0 0
      %2128 = vmatprep.mubr.bf16.mxu0 0
      %2129 = vmatmul.mubr.bf16.gmra.mrb[0].mxu0 %v2094
      %v2130 = vpop.f32.mrb[0].mxu0
      %v2131 = vadd.f32 0.0, %v2130
      %v2132 = vpop.f32.mrb[0].mxu0
      %v2133 = vpop.f32.mrb[0].mxu0
      %v2134 = vadd.f32 0.0, %v2133
      %v2135 = vpop.f32.mrb[0].mxu0
      %2136 = vdwg.mxu0
      %2137 = vrot.lane.b32.xlu0 %v459, 56
      %v2138 = vpop.permute.xlu0 %2137
      %v2141 = vsel %vm874, %v2037, 0
      %2143 = vmatprep.subr.bf16.mxu0 0
      %2144 = vmatpush1.bf16.msra.mxu0 %v2138
      %2145 = vmatprep.subr.bf16.mxu0 0
      %2146 = vmatpush1.bf16.msra.mxu0 0
      %2147 = vmatprep.subr.bf16.mxu0 0
      %2148 = vmatpush1.bf16.msra.mxu0 0
      %2149 = vmatprep.subr.bf16.mxu0 0
      %2150 = vmatpush1.bf16.msra.mxu0 0
      %2151 = vmatprep.subr.bf16.mxu0 0
      %2152 = vmatpush1.bf16.msra.mxu0 0
      %2153 = vmatprep.subr.bf16.mxu0 0
      %2154 = vmatpush1.bf16.msra.mxu0 0
      %2155 = vmatprep.subr.bf16.mxu0 0
      %2156 = vmatpush1.bf16.msra.mxu0 0
      %2157 = vmatprep.subr.bf16.mxu0 0
      %2158 = vmatpush1.bf16.msra.mxu0 0
      %2159 = vmatprep.subr.bf16.mxu0 0
      %2160 = vmatpush1.bf16.msra.mxu0 0
      %2161 = vmatprep.subr.bf16.mxu0 0
      %2162 = vmatpush1.bf16.msra.mxu0 0
      %2163 = vmatprep.subr.bf16.mxu0 0
      %2164 = vmatpush1.bf16.msra.mxu0 0
      %2165 = vmatprep.subr.bf16.mxu0 0
      %2166 = vmatpush1.bf16.msra.mxu0 0
      %2167 = vmatprep.subr.bf16.mxu0 0
      %2168 = vmatpush1.bf16.msra.mxu0 0
      %2169 = vmatprep.subr.bf16.mxu0 0
      %2170 = vmatpush1.bf16.msra.mxu0 0
      %2171 = vmatprep.subr.bf16.mxu0 0
      %2172 = vmatpush1.bf16.msra.mxu0 0
      %2173 = vmatprep.subr.bf16.mxu0 0
      %2174 = vmatpush1.bf16.msra.mxu0 0
      %2175 = vmatprep.mubr.bf16.mxu0 0
      %2176 = vmatmul.mubr.bf16.gmra.mrb[0].mxu0 %v2141
      %v2177 = vpop.f32.mrb[0].mxu0
      %v2178 = vadd.f32 0.0, %v2177
      %v2179 = vpop.f32.mrb[0].mxu0
      %v2180 = vpop.f32.mrb[0].mxu0
      %v2181 = vadd.f32 0.0, %v2180
      %v2182 = vpop.f32.mrb[0].mxu0
      %2183 = vdwg.mxu0
      %2184 = vrot.lane.b32.xlu0 %v460, 56
      %v2185 = vpop.permute.xlu0 %2184
      %v2188 = vsel %vm874, %v2038, 0
      %2190 = vmatprep.subr.bf16.mxu0 0
      %2191 = vmatpush1.bf16.msra.mxu0 %v2185
      %2192 = vmatprep.subr.bf16.mxu0 0
      %2193 = vmatpush1.bf16.msra.mxu0 0
      %2194 = vmatprep.subr.bf16.mxu0 0
      %2195 = vmatpush1.bf16.msra.mxu0 0
      %2196 = vmatprep.subr.bf16.mxu0 0
      %2197 = vmatpush1.bf16.msra.mxu0 0
      %2198 = vmatprep.subr.bf16.mxu0 0
      %2199 = vmatpush1.bf16.msra.mxu0 0
      %2200 = vmatprep.subr.bf16.mxu0 0
      %2201 = vmatpush1.bf16.msra.mxu0 0
      %2202 = vmatprep.subr.bf16.mxu0 0
      %2203 = vmatpush1.bf16.msra.mxu0 0
      %2204 = vmatprep.subr.bf16.mxu0 0
      %2205 = vmatpush1.bf16.msra.mxu0 0
      %2206 = vmatprep.subr.bf16.mxu0 0
      %2207 = vmatpush1.bf16.msra.mxu0 0
      %2208 = vmatprep.subr.bf16.mxu0 0
      %2209 = vmatpush1.bf16.msra.mxu0 0
      %2210 = vmatprep.subr.bf16.mxu0 0
      %2211 = vmatpush1.bf16.msra.mxu0 0
      %2212 = vmatprep.subr.bf16.mxu0 0
      %2213 = vmatpush1.bf16.msra.mxu0 0
      %2214 = vmatprep.subr.bf16.mxu0 0
      %2215 = vmatpush1.bf16.msra.mxu0 0
      %2216 = vmatprep.subr.bf16.mxu0 0
      %2217 = vmatpush1.bf16.msra.mxu0 0
      %2218 = vmatprep.subr.bf16.mxu0 0
      %2219 = vmatpush1.bf16.msra.mxu0 0
      %2220 = vmatprep.subr.bf16.mxu0 0
      %2221 = vmatpush1.bf16.msra.mxu0 0
      %2222 = vmatprep.mubr.bf16.mxu0 0
      %2223 = vmatmul.mubr.bf16.gmra.mrb[0].mxu0 %v2188
      %v2224 = vpop.f32.mrb[0].mxu0
      %v2225 = vadd.f32 0.0, %v2224
      %v2226 = vpop.f32.mrb[0].mxu0
      %v2227 = vpop.f32.mrb[0].mxu0
      %v2228 = vadd.f32 0.0, %v2227
      %v2229 = vpop.f32.mrb[0].mxu0
      %2230 = vdwg.mxu0
      %2231 = vrot.lane.b32.xlu0 %v461, 56
      %v2232 = vpop.permute.xlu0 %2231
      %v2235 = vsel %vm874, %v2039, 0
      %2237 = vmatprep.subr.bf16.mxu0 0
      %2238 = vmatpush1.bf16.msra.mxu0 %v2232
      %2239 = vmatprep.subr.bf16.mxu0 0
      %2240 = vmatpush1.bf16.msra.mxu0 0
      %2241 = vmatprep.subr.bf16.mxu0 0
      %2242 = vmatpush1.bf16.msra.mxu0 0
      %2243 = vmatprep.subr.bf16.mxu0 0
      %2244 = vmatpush1.bf16.msra.mxu0 0
      %2245 = vmatprep.subr.bf16.mxu0 0
      %2246 = vmatpush1.bf16.msra.mxu0 0
      %2247 = vmatprep.subr.bf16.mxu0 0
      %2248 = vmatpush1.bf16.msra.mxu0 0
      %2249 = vmatprep.subr.bf16.mxu0 0
      %2250 = vmatpush1.bf16.msra.mxu0 0
      %2251 = vmatprep.subr.bf16.mxu0 0
      %2252 = vmatpush1.bf16.msra.mxu0 0
      %2253 = vmatprep.subr.bf16.mxu0 0
      %2254 = vmatpush1.bf16.msra.mxu0 0
      %2255 = vmatprep.subr.bf16.mxu0 0
      %2256 = vmatpush1.bf16.msra.mxu0 0
      %2257 = vmatprep.subr.bf16.mxu0 0
      %2258 = vmatpush1.bf16.msra.mxu0 0
      %2259 = vmatprep.subr.bf16.mxu0 0
      %2260 = vmatpush1.bf16.msra.mxu0 0
      %2261 = vmatprep.subr.bf16.mxu0 0
      %2262 = vmatpush1.bf16.msra.mxu0 0
      %2263 = vmatprep.subr.bf16.mxu0 0
      %2264 = vmatpush1.bf16.msra.mxu0 0
      %2265 = vmatprep.subr.bf16.mxu0 0
      %2266 = vmatpush1.bf16.msra.mxu0 0
      %2267 = vmatprep.subr.bf16.mxu0 0
      %2268 = vmatpush1.bf16.msra.mxu0 0
      %2269 = vmatprep.mubr.bf16.mxu0 0
      %2270 = vmatmul.mubr.bf16.gmra.mrb[0].mxu0 %v2235
      %v2271 = vpop.f32.mrb[0].mxu0
      %v2272 = vadd.f32 0.0, %v2271
      %v2273 = vpop.f32.mrb[0].mxu0
      %v2274 = vpop.f32.mrb[0].mxu0
      %v2275 = vadd.f32 0.0, %v2274
      %v2276 = vpop.f32.mrb[0].mxu0
      %2277 = vdwg.mxu0
      %2278 = vrot.lane.b32.xlu0 %v462, 56
      %v2279 = vpop.permute.xlu0 %2278
      %v2282 = vsel %vm874, %v2040, 0
      %2284 = vmatprep.subr.bf16.mxu0 0
      %2285 = vmatpush1.bf16.msra.mxu0 %v2279
      %2286 = vmatprep.subr.bf16.mxu0 0
      %2287 = vmatpush1.bf16.msra.mxu0 0
      %2288 = vmatprep.subr.bf16.mxu0 0
      %2289 = vmatpush1.bf16.msra.mxu0 0
      %2290 = vmatprep.subr.bf16.mxu0 0
      %2291 = vmatpush1.bf16.msra.mxu0 0
      %2292 = vmatprep.subr.bf16.mxu0 0
      %2293 = vmatpush1.bf16.msra.mxu0 0
      %2294 = vmatprep.subr.bf16.mxu0 0
      %2295 = vmatpush1.bf16.msra.mxu0 0
      %2296 = vmatprep.subr.bf16.mxu0 0
      %2297 = vmatpush1.bf16.msra.mxu0 0
      %2298 = vmatprep.subr.bf16.mxu0 0
      %2299 = vmatpush1.bf16.msra.mxu0 0
      %2300 = vmatprep.subr.bf16.mxu0 0
      %2301 = vmatpush1.bf16.msra.mxu0 0
      %2302 = vmatprep.subr.bf16.mxu0 0
      %2303 = vmatpush1.bf16.msra.mxu0 0
      %2304 = vmatprep.subr.bf16.mxu0 0
      %2305 = vmatpush1.bf16.msra.mxu0 0
      %2306 = vmatprep.subr.bf16.mxu0 0
      %2307 = vmatpush1.bf16.msra.mxu0 0
      %2308 = vmatprep.subr.bf16.mxu0 0
      %2309 = vmatpush1.bf16.msra.mxu0 0
      %2310 = vmatprep.subr.bf16.mxu0 0
      %2311 = vmatpush1.bf16.msra.mxu0 0
      %2312 = vmatprep.subr.bf16.mxu0 0
      %2313 = vmatpush1.bf16.msra.mxu0 0
      %2314 = vmatprep.subr.bf16.mxu0 0
      %2315 = vmatpush1.bf16.msra.mxu0 0
      %2316 = vmatprep.mubr.bf16.mxu0 0
      %2317 = vmatmul.mubr.bf16.gmra.mrb[0].mxu0 %v2282
      %v2318 = vpop.f32.mrb[0].mxu0
      %v2319 = vadd.f32 0.0, %v2318
      %v2320 = vpop.f32.mrb[0].mxu0
      %v2321 = vpop.f32.mrb[0].mxu0
      %v2322 = vadd.f32 0.0, %v2321
      %v2323 = vpop.f32.mrb[0].mxu0
      %2324 = vdwg.mxu0
      %2325 = vrot.lane.b32.xlu0 %v463, 56
      %v2326 = vpop.permute.xlu0 %2325
      %v2329 = vsel %vm874, %v2041, 0
      %2331 = vmatprep.subr.bf16.mxu0 0
      %2332 = vmatpush1.bf16.msra.mxu0 %v2326
      %2333 = vmatprep.subr.bf16.mxu0 0
      %2334 = vmatpush1.bf16.msra.mxu0 0
      %2335 = vmatprep.subr.bf16.mxu0 0
      %2336 = vmatpush1.bf16.msra.mxu0 0
      %2337 = vmatprep.subr.bf16.mxu0 0
      %2338 = vmatpush1.bf16.msra.mxu0 0
      %2339 = vmatprep.subr.bf16.mxu0 0
      %2340 = vmatpush1.bf16.msra.mxu0 0
      %2341 = vmatprep.subr.bf16.mxu0 0
      %2342 = vmatpush1.bf16.msra.mxu0 0
      %2343 = vmatprep.subr.bf16.mxu0 0
      %2344 = vmatpush1.bf16.msra.mxu0 0
      %2345 = vmatprep.subr.bf16.mxu0 0
      %2346 = vmatpush1.bf16.msra.mxu0 0
      %2347 = vmatprep.subr.bf16.mxu0 0
      %2348 = vmatpush1.bf16.msra.mxu0 0
      %2349 = vmatprep.subr.bf16.mxu0 0
      %2350 = vmatpush1.bf16.msra.mxu0 0
      %2351 = vmatprep.subr.bf16.mxu0 0
      %2352 = vmatpush1.bf16.msra.mxu0 0
      %2353 = vmatprep.subr.bf16.mxu0 0
      %2354 = vmatpush1.bf16.msra.mxu0 0
      %2355 = vmatprep.subr.bf16.mxu0 0
      %2356 = vmatpush1.bf16.msra.mxu0 0
      %2357 = vmatprep.subr.bf16.mxu0 0
      %2358 = vmatpush1.bf16.msra.mxu0 0
      %2359 = vmatprep.subr.bf16.mxu0 0
      %2360 = vmatpush1.bf16.msra.mxu0 0
      %2361 = vmatprep.subr.bf16.mxu0 0
      %2362 = vmatpush1.bf16.msra.mxu0 0
      %2363 = vmatprep.mubr.bf16.mxu0 0
      %2364 = vmatmul.mubr.bf16.gmra.mrb[0].mxu0 %v2329
      %v2365 = vpop.f32.mrb[0].mxu0
      %v2366 = vadd.f32 0.0, %v2365
      %v2367 = vpop.f32.mrb[0].mxu0
      %v2368 = vpop.f32.mrb[0].mxu0
      %v2369 = vadd.f32 0.0, %v2368
      %v2370 = vpop.f32.mrb[0].mxu0
      %2371 = vdwg.mxu0
      %2372 = vrot.lane.b32.xlu0 %v464, 56
      %v2373 = vpop.permute.xlu0 %2372
      %v2376 = vsel %vm874, %v2042, 0
      %2378 = vmatprep.subr.bf16.mxu0 0
      %2379 = vmatpush1.bf16.msra.mxu0 %v2373
      %2380 = vmatprep.subr.bf16.mxu0 0
      %2381 = vmatpush1.bf16.msra.mxu0 0
      %2382 = vmatprep.subr.bf16.mxu0 0
      %2383 = vmatpush1.bf16.msra.mxu0 0
      %2384 = vmatprep.subr.bf16.mxu0 0
      %2385 = vmatpush1.bf16.msra.mxu0 0
      %2386 = vmatprep.subr.bf16.mxu0 0
      %2387 = vmatpush1.bf16.msra.mxu0 0
      %2388 = vmatprep.subr.bf16.mxu0 0
      %2389 = vmatpush1.bf16.msra.mxu0 0
      %2390 = vmatprep.subr.bf16.mxu0 0
      %2391 = vmatpush1.bf16.msra.mxu0 0
      %2392 = vmatprep.subr.bf16.mxu0 0
      %2393 = vmatpush1.bf16.msra.mxu0 0
      %2394 = vmatprep.subr.bf16.mxu0 0
      %2395 = vmatpush1.bf16.msra.mxu0 0
      %2396 = vmatprep.subr.bf16.mxu0 0
      %2397 = vmatpush1.bf16.msra.mxu0 0
      %2398 = vmatprep.subr.bf16.mxu0 0
      %2399 = vmatpush1.bf16.msra.mxu0 0
      %2400 = vmatprep.subr.bf16.mxu0 0
      %2401 = vmatpush1.bf16.msra.mxu0 0
      %2402 = vmatprep.subr.bf16.mxu0 0
      %2403 = vmatpush1.bf16.msra.mxu0 0
      %2404 = vmatprep.subr.bf16.mxu0 0
      %2405 = vmatpush1.bf16.msra.mxu0 0
      %2406 = vmatprep.subr.bf16.mxu0 0
      %2407 = vmatpush1.bf16.msra.mxu0 0
      %2408 = vmatprep.subr.bf16.mxu0 0
      %2409 = vmatpush1.bf16.msra.mxu0 0
      %2410 = vmatprep.mubr.bf16.mxu0 0
      %2411 = vmatmul.mubr.bf16.gmra.mrb[0].mxu0 %v2376
      %v2412 = vpop.f32.mrb[0].mxu0
      %v2413 = vadd.f32 0.0, %v2412
      %v2414 = vpop.f32.mrb[0].mxu0
      %v2415 = vpop.f32.mrb[0].mxu0
      %v2416 = vadd.f32 0.0, %v2415
      %v2417 = vpop.f32.mrb[0].mxu0
      %2418 = vdwg.mxu0
      %v2419 = vpack.c.bf16 %v2087, %v2084
      %v2420 = vpack.c.bf16 %v2134, %v2131
      %v2421 = vpack.c.bf16 %v2181, %v2178
      %v2422 = vpack.c.bf16 %v2228, %v2225
      %v2423 = vpack.c.bf16 %v2275, %v2272
      %v2424 = vpack.c.bf16 %v2322, %v2319
      %v2425 = vpack.c.bf16 %v2369, %v2366
      %v2426 = vpack.c.bf16 %v2416, %v2413
      %2435 = vrot.lane.b32.xlu0 %v2419, 8
      %v2436 = vpop.permute.xlu0 %2435
      %2437 = vrot.lane.b32.xlu0 %v2420, 8
      %v2438 = vpop.permute.xlu0 %2437
      %2439 = vrot.lane.b32.xlu0 %v2421, 8
      %v2440 = vpop.permute.xlu0 %2439
      %2441 = vrot.lane.b32.xlu0 %v2422, 8
      %v2442 = vpop.permute.xlu0 %2441
      %2443 = vrot.lane.b32.xlu0 %v2423, 8
      %v2444 = vpop.permute.xlu0 %2443
      %2445 = vrot.lane.b32.xlu0 %v2424, 8
      %v2446 = vpop.permute.xlu0 %2445
      %2447 = vrot.lane.b32.xlu0 %v2425, 8
      %v2448 = vpop.permute.xlu0 %2447
      %2449 = vrot.lane.b32.xlu0 %v2426, 8
      %v2450 = vpop.permute.xlu0 %2449
      %vm2459 = vcmask 130112
      %2460 = vst.msk [vmem:[#allocation2] sm:$0xff] %vm2459, %v2436
      %2461 = vst.msk [vmem:[#allocation2 + $0x8] sm:$0xff] %vm2459, %v2438
      %2462 = vst.msk [vmem:[#allocation2 + $0x10] sm:$0xff] %vm2459, %v2440
      %2463 = vst.msk [vmem:[#allocation2 + $0x18] sm:$0xff] %vm2459, %v2442
      %2464 = vst.msk [vmem:[#allocation2 + $0x20] sm:$0xff] %vm2459, %v2444
      %2465 = vst.msk [vmem:[#allocation2 + $0x28] sm:$0xff] %vm2459, %v2446
      %2466 = vst.msk [vmem:[#allocation2 + $0x30] sm:$0xff] %vm2459, %v2448
      %2467 = vst.msk [vmem:[#allocation2 + $0x38] sm:$0xff] %vm2459, %v2450
      %2468 = vrot.lane.b32.xlu0 %v457, 112
      %v2469 = vpop.permute.xlu0 %2468
      %2470 = vrot.lane.b32.xlu0 %v457, 80
      %v2471 = vpop.permute.xlu0 %2470
      %v2473 = vsel %vm476, %v2469, 0
      %v2476 = vsel %vm476, %v2471, 0
      %2478 = vmatprep.subr.bf16.mxu0 0
      %2479 = vmatpush1.bf16.xpose.msra.mxu0 %v2476
      %2480 = vmatprep.subr.bf16.mxu0 0
      %2481 = vmatpush1.bf16.xpose.msra.mxu0 0
      %2482 = vmatprep.subr.bf16.mxu0 0
      %2483 = vmatpush1.bf16.xpose.msra.mxu0 0
      %2484 = vmatprep.subr.bf16.mxu0 0
      %2485 = vmatpush1.bf16.xpose.msra.mxu0 0
      %2486 = vmatprep.subr.bf16.mxu0 0
      %2487 = vmatpush1.bf16.xpose.msra.mxu0 0
      %2488 = vmatprep.subr.bf16.mxu0 0
      %2489 = vmatpush1.bf16.xpose.msra.mxu0 0
      %2490 = vmatprep.subr.bf16.mxu0 0
      %2491 = vmatpush1.bf16.xpose.msra.mxu0 0
      %2492 = vmatprep.subr.bf16.mxu0 0
      %2493 = vmatpush1.bf16.xpose.msra.mxu0 0
      %2494 = vmatprep.subr.bf16.mxu0 0
      %2495 = vmatpush1.bf16.xpose.msra.mxu0 0
      %2496 = vmatprep.subr.bf16.mxu0 0
      %2497 = vmatpush1.bf16.xpose.msra.mxu0 0
      %2498 = vmatprep.subr.bf16.mxu0 0
      %2499 = vmatpush1.bf16.xpose.msra.mxu0 0
      %2500 = vmatprep.subr.bf16.mxu0 0
      %2501 = vmatpush1.bf16.xpose.msra.mxu0 0
      %2502 = vmatprep.subr.bf16.mxu0 0
      %2503 = vmatpush1.bf16.xpose.msra.mxu0 0
      %2504 = vmatprep.subr.bf16.mxu0 0
      %2505 = vmatpush1.bf16.xpose.msra.mxu0 0
      %2506 = vmatprep.subr.bf16.mxu0 0
      %2507 = vmatpush1.bf16.xpose.msra.mxu0 0
      %2508 = vmatprep.subr.bf16.mxu0 0
      %2509 = vmatpush1.bf16.xpose.msra.mxu0 0
      %2510 = vmatprep.mubr.bf16.mxu0 0
      %2511 = vmatmul.mubr.bf16.gmra.mrb[0].mxu0 %v2473
      %v2512 = vpop.f32.mrb[0].mxu0
      %v2513 = vadd.f32 %v469, %v2512
      %v2514 = vpop.f32.mrb[0].mxu0
      %v2515 = vpop.f32.mrb[0].mxu0
      %v2516 = vadd.f32 %v470, %v2515
      %v2517 = vpop.f32.mrb[0].mxu0
      %2518 = vdwg.mxu0
      %2519 = vrot.lane.b32.xlu0 %v458, 112
      %v2520 = vpop.permute.xlu0 %2519
      %2521 = vrot.lane.b32.xlu0 %v458, 80
      %v2522 = vpop.permute.xlu0 %2521
      %v2524 = vsel %vm476, %v2520, 0
      %v2527 = vsel %vm476, %v2522, 0
      %2529 = vmatprep.subr.bf16.mxu0 0
      %2530 = vmatpush1.bf16.xpose.msra.mxu0 %v2527
      %2531 = vmatprep.subr.bf16.mxu0 0
      %2532 = vmatpush1.bf16.xpose.msra.mxu0 0
      %2533 = vmatprep.subr.bf16.mxu0 0
      %2534 = vmatpush1.bf16.xpose.msra.mxu0 0
      %2535 = vmatprep.subr.bf16.mxu0 0
      %2536 = vmatpush1.bf16.xpose.msra.mxu0 0
      %2537 = vmatprep.subr.bf16.mxu0 0
      %2538 = vmatpush1.bf16.xpose.msra.mxu0 0
      %2539 = vmatprep.subr.bf16.mxu0 0
      %2540 = vmatpush1.bf16.xpose.msra.mxu0 0
      %2541 = vmatprep.subr.bf16.mxu0 0
      %2542 = vmatpush1.bf16.xpose.msra.mxu0 0
      %2543 = vmatprep.subr.bf16.mxu0 0
      %2544 = vmatpush1.bf16.xpose.msra.mxu0 0
      %2545 = vmatprep.subr.bf16.mxu0 0
      %2546 = vmatpush1.bf16.xpose.msra.mxu0 0
      %2547 = vmatprep.subr.bf16.mxu0 0
      %2548 = vmatpush1.bf16.xpose.msra.mxu0 0
      %2549 = vmatprep.subr.bf16.mxu0 0
      %2550 = vmatpush1.bf16.xpose.msra.mxu0 0
      %2551 = vmatprep.subr.bf16.mxu0 0
      %2552 = vmatpush1.bf16.xpose.msra.mxu0 0
      %2553 = vmatprep.subr.bf16.mxu0 0
      %2554 = vmatpush1.bf16.xpose.msra.mxu0 0
      %2555 = vmatprep.subr.bf16.mxu0 0
      %2556 = vmatpush1.bf16.xpose.msra.mxu0 0
      %2557 = vmatprep.subr.bf16.mxu0 0
      %2558 = vmatpush1.bf16.xpose.msra.mxu0 0
      %2559 = vmatprep.subr.bf16.mxu0 0
      %2560 = vmatpush1.bf16.xpose.msra.mxu0 0
      %2561 = vmatprep.mubr.bf16.mxu0 0
      %2562 = vmatmul.mubr.bf16.gmra.mrb[0].mxu0 %v2524
      %v2563 = vpop.f32.mrb[0].mxu0
      %v2564 = vadd.f32 %v469, %v2563
      %v2565 = vpop.f32.mrb[0].mxu0
      %v2566 = vpop.f32.mrb[0].mxu0
      %v2567 = vadd.f32 %v470, %v2566
      %v2568 = vpop.f32.mrb[0].mxu0
      %2569 = vdwg.mxu0
      %2570 = vrot.lane.b32.xlu0 %v459, 112
      %v2571 = vpop.permute.xlu0 %2570
      %2572 = vrot.lane.b32.xlu0 %v459, 80
      %v2573 = vpop.permute.xlu0 %2572
      %v2575 = vsel %vm476, %v2571, 0
      %v2578 = vsel %vm476, %v2573, 0
      %2580 = vmatprep.subr.bf16.mxu0 0
      %2581 = vmatpush1.bf16.xpose.msra.mxu0 %v2578
      %2582 = vmatprep.subr.bf16.mxu0 0
      %2583 = vmatpush1.bf16.xpose.msra.mxu0 0
      %2584 = vmatprep.subr.bf16.mxu0 0
      %2585 = vmatpush1.bf16.xpose.msra.mxu0 0
      %2586 = vmatprep.subr.bf16.mxu0 0
      %2587 = vmatpush1.bf16.xpose.msra.mxu0 0
      %2588 = vmatprep.subr.bf16.mxu0 0
      %2589 = vmatpush1.bf16.xpose.msra.mxu0 0
      %2590 = vmatprep.subr.bf16.mxu0 0
      %2591 = vmatpush1.bf16.xpose.msra.mxu0 0
      %2592 = vmatprep.subr.bf16.mxu0 0
      %2593 = vmatpush1.bf16.xpose.msra.mxu0 0
      %2594 = vmatprep.subr.bf16.mxu0 0
      %2595 = vmatpush1.bf16.xpose.msra.mxu0 0
      %2596 = vmatprep.subr.bf16.mxu0 0
      %2597 = vmatpush1.bf16.xpose.msra.mxu0 0
      %2598 = vmatprep.subr.bf16.mxu0 0
      %2599 = vmatpush1.bf16.xpose.msra.mxu0 0
      %2600 = vmatprep.subr.bf16.mxu0 0
      %2601 = vmatpush1.bf16.xpose.msra.mxu0 0
      %2602 = vmatprep.subr.bf16.mxu0 0
      %2603 = vmatpush1.bf16.xpose.msra.mxu0 0
      %2604 = vmatprep.subr.bf16.mxu0 0
      %2605 = vmatpush1.bf16.xpose.msra.mxu0 0
      %2606 = vmatprep.subr.bf16.mxu0 0
      %2607 = vmatpush1.bf16.xpose.msra.mxu0 0
      %2608 = vmatprep.subr.bf16.mxu0 0
      %2609 = vmatpush1.bf16.xpose.msra.mxu0 0
      %2610 = vmatprep.subr.bf16.mxu0 0
      %2611 = vmatpush1.bf16.xpose.msra.mxu0 0
      %2612 = vmatprep.mubr.bf16.mxu0 0
      %2613 = vmatmul.mubr.bf16.gmra.mrb[0].mxu0 %v2575
      %v2614 = vpop.f32.mrb[0].mxu0
      %v2615 = vadd.f32 %v469, %v2614
      %v2616 = vpop.f32.mrb[0].mxu0
      %v2617 = vpop.f32.mrb[0].mxu0
      %v2618 = vadd.f32 %v470, %v2617
      %v2619 = vpop.f32.mrb[0].mxu0
      %2620 = vdwg.mxu0
      %2621 = vrot.lane.b32.xlu0 %v460, 112
      %v2622 = vpop.permute.xlu0 %2621
      %2623 = vrot.lane.b32.xlu0 %v460, 80
      %v2624 = vpop.permute.xlu0 %2623
      %v2626 = vsel %vm476, %v2622, 0
      %v2629 = vsel %vm476, %v2624, 0
      %2631 = vmatprep.subr.bf16.mxu0 0
      %2632 = vmatpush1.bf16.xpose.msra.mxu0 %v2629
      %2633 = vmatprep.subr.bf16.mxu0 0
      %2634 = vmatpush1.bf16.xpose.msra.mxu0 0
      %2635 = vmatprep.subr.bf16.mxu0 0
      %2636 = vmatpush1.bf16.xpose.msra.mxu0 0
      %2637 = vmatprep.subr.bf16.mxu0 0
      %2638 = vmatpush1.bf16.xpose.msra.mxu0 0
      %2639 = vmatprep.subr.bf16.mxu0 0
      %2640 = vmatpush1.bf16.xpose.msra.mxu0 0
      %2641 = vmatprep.subr.bf16.mxu0 0
      %2642 = vmatpush1.bf16.xpose.msra.mxu0 0
      %2643 = vmatprep.subr.bf16.mxu0 0
      %2644 = vmatpush1.bf16.xpose.msra.mxu0 0
      %2645 = vmatprep.subr.bf16.mxu0 0
      %2646 = vmatpush1.bf16.xpose.msra.mxu0 0
      %2647 = vmatprep.subr.bf16.mxu0 0
      %2648 = vmatpush1.bf16.xpose.msra.mxu0 0
      %2649 = vmatprep.subr.bf16.mxu0 0
      %2650 = vmatpush1.bf16.xpose.msra.mxu0 0
      %2651 = vmatprep.subr.bf16.mxu0 0
      %2652 = vmatpush1.bf16.xpose.msra.mxu0 0
      %2653 = vmatprep.subr.bf16.mxu0 0
      %2654 = vmatpush1.bf16.xpose.msra.mxu0 0
      %2655 = vmatprep.subr.bf16.mxu0 0
      %2656 = vmatpush1.bf16.xpose.msra.mxu0 0
      %2657 = vmatprep.subr.bf16.mxu0 0
      %2658 = vmatpush1.bf16.xpose.msra.mxu0 0
      %2659 = vmatprep.subr.bf16.mxu0 0
      %2660 = vmatpush1.bf16.xpose.msra.mxu0 0
      %2661 = vmatprep.subr.bf16.mxu0 0
      %2662 = vmatpush1.bf16.xpose.msra.mxu0 0
      %2663 = vmatprep.mubr.bf16.mxu0 0
      %2664 = vmatmul.mubr.bf16.gmra.mrb[0].mxu0 %v2626
      %v2665 = vpop.f32.mrb[0].mxu0
      %v2666 = vadd.f32 %v469, %v2665
      %v2667 = vpop.f32.mrb[0].mxu0
      %v2668 = vpop.f32.mrb[0].mxu0
      %v2669 = vadd.f32 %v470, %v2668
      %v2670 = vpop.f32.mrb[0].mxu0
      %2671 = vdwg.mxu0
      %2672 = vrot.lane.b32.xlu0 %v461, 112
      %v2673 = vpop.permute.xlu0 %2672
      %2674 = vrot.lane.b32.xlu0 %v461, 80
      %v2675 = vpop.permute.xlu0 %2674
      %v2677 = vsel %vm476, %v2673, 0
      %v2680 = vsel %vm476, %v2675, 0
      %2682 = vmatprep.subr.bf16.mxu0 0
      %2683 = vmatpush1.bf16.xpose.msra.mxu0 %v2680
      %2684 = vmatprep.subr.bf16.mxu0 0
      %2685 = vmatpush1.bf16.xpose.msra.mxu0 0
      %2686 = vmatprep.subr.bf16.mxu0 0
      %2687 = vmatpush1.bf16.xpose.msra.mxu0 0
      %2688 = vmatprep.subr.bf16.mxu0 0
      %2689 = vmatpush1.bf16.xpose.msra.mxu0 0
      %2690 = vmatprep.subr.bf16.mxu0 0
      %2691 = vmatpush1.bf16.xpose.msra.mxu0 0
      %2692 = vmatprep.subr.bf16.mxu0 0
      %2693 = vmatpush1.bf16.xpose.msra.mxu0 0
      %2694 = vmatprep.subr.bf16.mxu0 0
      %2695 = vmatpush1.bf16.xpose.msra.mxu0 0
      %2696 = vmatprep.subr.bf16.mxu0 0
      %2697 = vmatpush1.bf16.xpose.msra.mxu0 0
      %2698 = vmatprep.subr.bf16.mxu0 0
      %2699 = vmatpush1.bf16.xpose.msra.mxu0 0
      %2700 = vmatprep.subr.bf16.mxu0 0
      %2701 = vmatpush1.bf16.xpose.msra.mxu0 0
      %2702 = vmatprep.subr.bf16.mxu0 0
      %2703 = vmatpush1.bf16.xpose.msra.mxu0 0
      %2704 = vmatprep.subr.bf16.mxu0 0
      %2705 = vmatpush1.bf16.xpose.msra.mxu0 0
      %2706 = vmatprep.subr.bf16.mxu0 0
      %2707 = vmatpush1.bf16.xpose.msra.mxu0 0
      %2708 = vmatprep.subr.bf16.mxu0 0
      %2709 = vmatpush1.bf16.xpose.msra.mxu0 0
      %2710 = vmatprep.subr.bf16.mxu0 0
      %2711 = vmatpush1.bf16.xpose.msra.mxu0 0
      %2712 = vmatprep.subr.bf16.mxu0 0
      %2713 = vmatpush1.bf16.xpose.msra.mxu0 0
      %2714 = vmatprep.mubr.bf16.mxu0 0
      %2715 = vmatmul.mubr.bf16.gmra.mrb[0].mxu0 %v2677
      %v2716 = vpop.f32.mrb[0].mxu0
      %v2717 = vadd.f32 %v469, %v2716
      %v2718 = vpop.f32.mrb[0].mxu0
      %v2719 = vpop.f32.mrb[0].mxu0
      %v2720 = vadd.f32 %v470, %v2719
      %v2721 = vpop.f32.mrb[0].mxu0
      %2722 = vdwg.mxu0
      %2723 = vrot.lane.b32.xlu0 %v462, 112
      %v2724 = vpop.permute.xlu0 %2723
      %2725 = vrot.lane.b32.xlu0 %v462, 80
      %v2726 = vpop.permute.xlu0 %2725
      %v2728 = vsel %vm476, %v2724, 0
      %v2731 = vsel %vm476, %v2726, 0
      %2733 = vmatprep.subr.bf16.mxu0 0
      %2734 = vmatpush1.bf16.xpose.msra.mxu0 %v2731
      %2735 = vmatprep.subr.bf16.mxu0 0
      %2736 = vmatpush1.bf16.xpose.msra.mxu0 0
      %2737 = vmatprep.subr.bf16.mxu0 0
      %2738 = vmatpush1.bf16.xpose.msra.mxu0 0
      %2739 = vmatprep.subr.bf16.mxu0 0
      %2740 = vmatpush1.bf16.xpose.msra.mxu0 0
      %2741 = vmatprep.subr.bf16.mxu0 0
      %2742 = vmatpush1.bf16.xpose.msra.mxu0 0
      %2743 = vmatprep.subr.bf16.mxu0 0
      %2744 = vmatpush1.bf16.xpose.msra.mxu0 0
      %2745 = vmatprep.subr.bf16.mxu0 0
      %2746 = vmatpush1.bf16.xpose.msra.mxu0 0
      %2747 = vmatprep.subr.bf16.mxu0 0
      %2748 = vmatpush1.bf16.xpose.msra.mxu0 0
      %2749 = vmatprep.subr.bf16.mxu0 0
      %2750 = vmatpush1.bf16.xpose.msra.mxu0 0
      %2751 = vmatprep.subr.bf16.mxu0 0
      %2752 = vmatpush1.bf16.xpose.msra.mxu0 0
      %2753 = vmatprep.subr.bf16.mxu0 0
      %2754 = vmatpush1.bf16.xpose.msra.mxu0 0
      %2755 = vmatprep.subr.bf16.mxu0 0
      %2756 = vmatpush1.bf16.xpose.msra.mxu0 0
      %2757 = vmatprep.subr.bf16.mxu0 0
      %2758 = vmatpush1.bf16.xpose.msra.mxu0 0
      %2759 = vmatprep.subr.bf16.mxu0 0
      %2760 = vmatpush1.bf16.xpose.msra.mxu0 0
      %2761 = vmatprep.subr.bf16.mxu0 0
      %2762 = vmatpush1.bf16.xpose.msra.mxu0 0
      %2763 = vmatprep.subr.bf16.mxu0 0
      %2764 = vmatpush1.bf16.xpose.msra.mxu0 0
      %2765 = vmatprep.mubr.bf16.mxu0 0
      %2766 = vmatmul.mubr.bf16.gmra.mrb[0].mxu0 %v2728
      %v2767 = vpop.f32.mrb[0].mxu0
      %v2768 = vadd.f32 %v469, %v2767
      %v2769 = vpop.f32.mrb[0].mxu0
      %v2770 = vpop.f32.mrb[0].mxu0
      %v2771 = vadd.f32 %v470, %v2770
      %v2772 = vpop.f32.mrb[0].mxu0
      %2773 = vdwg.mxu0
      %2774 = vrot.lane.b32.xlu0 %v463, 112
      %v2775 = vpop.permute.xlu0 %2774
      %2776 = vrot.lane.b32.xlu0 %v463, 80
      %v2777 = vpop.permute.xlu0 %2776
      %v2779 = vsel %vm476, %v2775, 0
      %v2782 = vsel %vm476, %v2777, 0
      %2784 = vmatprep.subr.bf16.mxu0 0
      %2785 = vmatpush1.bf16.xpose.msra.mxu0 %v2782
      %2786 = vmatprep.subr.bf16.mxu0 0
      %2787 = vmatpush1.bf16.xpose.msra.mxu0 0
      %2788 = vmatprep.subr.bf16.mxu0 0
      %2789 = vmatpush1.bf16.xpose.msra.mxu0 0
      %2790 = vmatprep.subr.bf16.mxu0 0
      %2791 = vmatpush1.bf16.xpose.msra.mxu0 0
      %2792 = vmatprep.subr.bf16.mxu0 0
      %2793 = vmatpush1.bf16.xpose.msra.mxu0 0
      %2794 = vmatprep.subr.bf16.mxu0 0
      %2795 = vmatpush1.bf16.xpose.msra.mxu0 0
      %2796 = vmatprep.subr.bf16.mxu0 0
      %2797 = vmatpush1.bf16.xpose.msra.mxu0 0
      %2798 = vmatprep.subr.bf16.mxu0 0
      %2799 = vmatpush1.bf16.xpose.msra.mxu0 0
      %2800 = vmatprep.subr.bf16.mxu0 0
      %2801 = vmatpush1.bf16.xpose.msra.mxu0 0
      %2802 = vmatprep.subr.bf16.mxu0 0
      %2803 = vmatpush1.bf16.xpose.msra.mxu0 0
      %2804 = vmatprep.subr.bf16.mxu0 0
      %2805 = vmatpush1.bf16.xpose.msra.mxu0 0
      %2806 = vmatprep.subr.bf16.mxu0 0
      %2807 = vmatpush1.bf16.xpose.msra.mxu0 0
      %2808 = vmatprep.subr.bf16.mxu0 0
      %2809 = vmatpush1.bf16.xpose.msra.mxu0 0
      %2810 = vmatprep.subr.bf16.mxu0 0
      %2811 = vmatpush1.bf16.xpose.msra.mxu0 0
      %2812 = vmatprep.subr.bf16.mxu0 0
      %2813 = vmatpush1.bf16.xpose.msra.mxu0 0
      %2814 = vmatprep.subr.bf16.mxu0 0
      %2815 = vmatpush1.bf16.xpose.msra.mxu0 0
      %2816 = vmatprep.mubr.bf16.mxu0 0
      %2817 = vmatmul.mubr.bf16.gmra.mrb[0].mxu0 %v2779
      %v2818 = vpop.f32.mrb[0].mxu0
      %v2819 = vadd.f32 %v469, %v2818
      %v2820 = vpop.f32.mrb[0].mxu0
      %v2821 = vpop.f32.mrb[0].mxu0
      %v2822 = vadd.f32 %v470, %v2821
      %v2823 = vpop.f32.mrb[0].mxu0
      %2824 = vdwg.mxu0
      %2825 = vrot.lane.b32.xlu0 %v464, 112
      %v2826 = vpop.permute.xlu0 %2825
      %2827 = vrot.lane.b32.xlu0 %v464, 80
      %v2828 = vpop.permute.xlu0 %2827
      %v2830 = vsel %vm476, %v2826, 0
      %v2833 = vsel %vm476, %v2828, 0
      %2835 = vmatprep.subr.bf16.mxu0 0
      %2836 = vmatpush1.bf16.xpose.msra.mxu0 %v2833
      %2837 = vmatprep.subr.bf16.mxu0 0
      %2838 = vmatpush1.bf16.xpose.msra.mxu0 0
      %2839 = vmatprep.subr.bf16.mxu0 0
      %2840 = vmatpush1.bf16.xpose.msra.mxu0 0
      %2841 = vmatprep.subr.bf16.mxu0 0
      %2842 = vmatpush1.bf16.xpose.msra.mxu0 0
      %2843 = vmatprep.subr.bf16.mxu0 0
      %2844 = vmatpush1.bf16.xpose.msra.mxu0 0
      %2845 = vmatprep.subr.bf16.mxu0 0
      %2846 = vmatpush1.bf16.xpose.msra.mxu0 0
      %2847 = vmatprep.subr.bf16.mxu0 0
      %2848 = vmatpush1.bf16.xpose.msra.mxu0 0
      %2849 = vmatprep.subr.bf16.mxu0 0
      %2850 = vmatpush1.bf16.xpose.msra.mxu0 0
      %2851 = vmatprep.subr.bf16.mxu0 0
      %2852 = vmatpush1.bf16.xpose.msra.mxu0 0
      %2853 = vmatprep.subr.bf16.mxu0 0
      %2854 = vmatpush1.bf16.xpose.msra.mxu0 0
      %2855 = vmatprep.subr.bf16.mxu0 0
      %2856 = vmatpush1.bf16.xpose.msra.mxu0 0
      %2857 = vmatprep.subr.bf16.mxu0 0
      %2858 = vmatpush1.bf16.xpose.msra.mxu0 0
      %2859 = vmatprep.subr.bf16.mxu0 0
      %2860 = vmatpush1.bf16.xpose.msra.mxu0 0
      %2861 = vmatprep.subr.bf16.mxu0 0
      %2862 = vmatpush1.bf16.xpose.msra.mxu0 0
      %2863 = vmatprep.subr.bf16.mxu0 0
      %2864 = vmatpush1.bf16.xpose.msra.mxu0 0
      %2865 = vmatprep.subr.bf16.mxu0 0
      %2866 = vmatpush1.bf16.xpose.msra.mxu0 0
      %2867 = vmatprep.mubr.bf16.mxu0 0
      %2868 = vmatmul.mubr.bf16.gmra.mrb[0].mxu0 %v2830
      %v2869 = vpop.f32.mrb[0].mxu0
      %v2870 = vadd.f32 %v469, %v2869
      %v2871 = vpop.f32.mrb[0].mxu0
      %v2872 = vpop.f32.mrb[0].mxu0
      %v2873 = vadd.f32 %v470, %v2872
      %v2874 = vpop.f32.mrb[0].mxu0
      %2875 = vdwg.mxu0
      %v2876 = vsel %vm874, %v2513, -inf
      %2877 = vmax.xlane.f32.xlu0 %v2876
      %v2878 = vpop.xlane.xlu0 %2877
      %v2879 = vsel %vm874, %v2516, -inf
      %2880 = vmax.xlane.f32.xlu0 %v2879
      %v2881 = vpop.xlane.xlu0 %2880
      %v2882 = vsel %vm874, %v2564, -inf
      %2883 = vmax.xlane.f32.xlu0 %v2882
      %v2884 = vpop.xlane.xlu0 %2883
      %v2885 = vsel %vm874, %v2567, -inf
      %2886 = vmax.xlane.f32.xlu0 %v2885
      %v2887 = vpop.xlane.xlu0 %2886
      %v2888 = vsel %vm874, %v2615, -inf
      %2889 = vmax.xlane.f32.xlu0 %v2888
      %v2890 = vpop.xlane.xlu0 %2889
      %v2891 = vsel %vm874, %v2618, -inf
      %2892 = vmax.xlane.f32.xlu0 %v2891
      %v2893 = vpop.xlane.xlu0 %2892
      %v2894 = vsel %vm874, %v2666, -inf
      %2895 = vmax.xlane.f32.xlu0 %v2894
      %v2896 = vpop.xlane.xlu0 %2895
      %v2897 = vsel %vm874, %v2669, -inf
      %2898 = vmax.xlane.f32.xlu0 %v2897
      %v2899 = vpop.xlane.xlu0 %2898
      %v2900 = vsel %vm874, %v2717, -inf
      %2901 = vmax.xlane.f32.xlu0 %v2900
      %v2902 = vpop.xlane.xlu0 %2901
      %v2903 = vsel %vm874, %v2720, -inf
      %2904 = vmax.xlane.f32.xlu0 %v2903
      %v2905 = vpop.xlane.xlu0 %2904
      %v2906 = vsel %vm874, %v2768, -inf
      %2907 = vmax.xlane.f32.xlu0 %v2906
      %v2908 = vpop.xlane.xlu0 %2907
      %v2909 = vsel %vm874, %v2771, -inf
      %2910 = vmax.xlane.f32.xlu0 %v2909
      %v2911 = vpop.xlane.xlu0 %2910
      %v2912 = vsel %vm874, %v2819, -inf
      %2913 = vmax.xlane.f32.xlu0 %v2912
      %v2914 = vpop.xlane.xlu0 %2913
      %v2915 = vsel %vm874, %v2822, -inf
      %2916 = vmax.xlane.f32.xlu0 %v2915
      %v2917 = vpop.xlane.xlu0 %2916
      %v2918 = vsel %vm874, %v2870, -inf
      %2919 = vmax.xlane.f32.xlu0 %v2918
      %v2920 = vpop.xlane.xlu0 %2919
      %v2921 = vsel %vm874, %v2873, -inf
      %2922 = vmax.xlane.f32.xlu0 %v2921
      %v2923 = vpop.xlane.xlu0 %2922
      %v2924 = vsub.f32 %v2513, %v2878
      %v2925 = vsub.f32 %v2516, %v2881
      %v2926 = vsub.f32 %v2564, %v2884
      %v2927 = vsub.f32 %v2567, %v2887
      %v2928 = vsub.f32 %v2615, %v2890
      %v2929 = vsub.f32 %v2618, %v2893
      %v2930 = vsub.f32 %v2666, %v2896
      %v2931 = vsub.f32 %v2669, %v2899
      %v2932 = vsub.f32 %v2717, %v2902
      %v2933 = vsub.f32 %v2720, %v2905
      %v2934 = vsub.f32 %v2768, %v2908
      %v2935 = vsub.f32 %v2771, %v2911
      %v2936 = vsub.f32 %v2819, %v2914
      %v2937 = vsub.f32 %v2822, %v2917
      %v2938 = vsub.f32 %v2870, %v2920
      %v2939 = vsub.f32 %v2873, %v2923
      %v2940 = vmul.f32 %v2924, 1.442695
      %v2941 = vpow.pop %v2940
      %v2942 = vmul.f32 %v2925, 1.442695
      %v2943 = vpow.pop %v2942
      %v2944 = vmul.f32 %v2926, 1.442695
      %v2945 = vpow.pop %v2944
      %v2946 = vmul.f32 %v2927, 1.442695
      %v2947 = vpow.pop %v2946
      %v2948 = vmul.f32 %v2928, 1.442695
      %v2949 = vpow.pop %v2948
      %v2950 = vmul.f32 %v2929, 1.442695
      %v2951 = vpow.pop %v2950
      %v2952 = vmul.f32 %v2930, 1.442695
      %v2953 = vpow.pop %v2952
      %v2954 = vmul.f32 %v2931, 1.442695
      %v2955 = vpow.pop %v2954
      %v2956 = vmul.f32 %v2932, 1.442695
      %v2957 = vpow.pop %v2956
      %v2958 = vmul.f32 %v2933, 1.442695
      %v2959 = vpow.pop %v2958
      %v2960 = vmul.f32 %v2934, 1.442695
      %v2961 = vpow.pop %v2960
      %v2962 = vmul.f32 %v2935, 1.442695
      %v2963 = vpow.pop %v2962
      %v2964 = vmul.f32 %v2936, 1.442695
      %v2965 = vpow.pop %v2964
      %v2966 = vmul.f32 %v2937, 1.442695
      %v2967 = vpow.pop %v2966
      %v2968 = vmul.f32 %v2938, 1.442695
      %v2969 = vpow.pop %v2968
      %v2970 = vmul.f32 %v2939, 1.442695
      %v2971 = vpow.pop %v2970
      %v2972 = vsel %vm874, %v2941, 0.0
      %2973 = vadd.xlane.f32.xlu0 %v2972
      %v2974 = vpop.xlane.xlu0 %2973
      %v2975 = vsel %vm874, %v2943, 0.0
      %2976 = vadd.xlane.f32.xlu0 %v2975
      %v2977 = vpop.xlane.xlu0 %2976
      %v2978 = vsel %vm874, %v2945, 0.0
      %2979 = vadd.xlane.f32.xlu0 %v2978
      %v2980 = vpop.xlane.xlu0 %2979
      %v2981 = vsel %vm874, %v2947, 0.0
      %2982 = vadd.xlane.f32.xlu0 %v2981
      %v2983 = vpop.xlane.xlu0 %2982
      %v2984 = vsel %vm874, %v2949, 0.0
      %2985 = vadd.xlane.f32.xlu0 %v2984
      %v2986 = vpop.xlane.xlu0 %2985
      %v2987 = vsel %vm874, %v2951, 0.0
      %2988 = vadd.xlane.f32.xlu0 %v2987
      %v2989 = vpop.xlane.xlu0 %2988
      %v2990 = vsel %vm874, %v2953, 0.0
      %2991 = vadd.xlane.f32.xlu0 %v2990
      %v2992 = vpop.xlane.xlu0 %2991
      %v2993 = vsel %vm874, %v2955, 0.0
      %2994 = vadd.xlane.f32.xlu0 %v2993
      %v2995 = vpop.xlane.xlu0 %2994
      %v2996 = vsel %vm874, %v2957, 0.0
      %2997 = vadd.xlane.f32.xlu0 %v2996
      %v2998 = vpop.xlane.xlu0 %2997
      %v2999 = vsel %vm874, %v2959, 0.0
      %3000 = vadd.xlane.f32.xlu0 %v2999
      %v3001 = vpop.xlane.xlu0 %3000
      %v3002 = vsel %vm874, %v2961, 0.0
      %3003 = vadd.xlane.f32.xlu0 %v3002
      %v3004 = vpop.xlane.xlu0 %3003
      %v3005 = vsel %vm874, %v2963, 0.0
      %3006 = vadd.xlane.f32.xlu0 %v3005
      %v3007 = vpop.xlane.xlu0 %3006
      %v3008 = vsel %vm874, %v2965, 0.0
      %3009 = vadd.xlane.f32.xlu0 %v3008
      %v3010 = vpop.xlane.xlu0 %3009
      %v3011 = vsel %vm874, %v2967, 0.0
      %3012 = vadd.xlane.f32.xlu0 %v3011
      %v3013 = vpop.xlane.xlu0 %3012
      %v3014 = vsel %vm874, %v2969, 0.0
      %3015 = vadd.xlane.f32.xlu0 %v3014
      %v3016 = vpop.xlane.xlu0 %3015
      %v3017 = vsel %vm874, %v2971, 0.0
      %3018 = vadd.xlane.f32.xlu0 %v3017
      %v3019 = vpop.xlane.xlu0 %3018
      %v3020 = vrcp.pop %v2974
      %v3021 = vrcp.pop %v2977
      %v3022 = vrcp.pop %v2980
      %v3023 = vrcp.pop %v2983
      %v3024 = vrcp.pop %v2986
      %v3025 = vrcp.pop %v2989
      %v3026 = vrcp.pop %v2992
      %v3027 = vrcp.pop %v2995
      %v3028 = vrcp.pop %v2998
      %v3029 = vrcp.pop %v3001
      %v3030 = vrcp.pop %v3004
      %v3031 = vrcp.pop %v3007
      %v3032 = vrcp.pop %v3010
      %v3033 = vrcp.pop %v3013
      %v3034 = vrcp.pop %v3016
      %v3035 = vrcp.pop %v3019
      %v3036 = vmul.f32 %v2941, %v3020
      %v3037 = vmul.f32 %v2943, %v3021
      %v3038 = vmul.f32 %v2945, %v3022
      %v3039 = vmul.f32 %v2947, %v3023
      %v3040 = vmul.f32 %v2949, %v3024
      %v3041 = vmul.f32 %v2951, %v3025
      %v3042 = vmul.f32 %v2953, %v3026
      %v3043 = vmul.f32 %v2955, %v3027
      %v3044 = vmul.f32 %v2957, %v3028
      %v3045 = vmul.f32 %v2959, %v3029
      %v3046 = vmul.f32 %v2961, %v3030
      %v3047 = vmul.f32 %v2963, %v3031
      %v3048 = vmul.f32 %v2965, %v3032
      %v3049 = vmul.f32 %v2967, %v3033
      %v3050 = vmul.f32 %v2969, %v3034
      %v3051 = vmul.f32 %v2971, %v3035
      %v3052 = vpack.c.bf16 %v3037, %v3036
      %v3053 = vpack.c.bf16 %v3039, %v3038
      %v3054 = vpack.c.bf16 %v3041, %v3040
      %v3055 = vpack.c.bf16 %v3043, %v3042
      %v3056 = vpack.c.bf16 %v3045, %v3044
      %v3057 = vpack.c.bf16 %v3047, %v3046
      %v3058 = vpack.c.bf16 %v3049, %v3048
      %v3059 = vpack.c.bf16 %v3051, %v3050
      %3060 = vrot.lane.b32.xlu0 %v457, 48
      %v3061 = vpop.permute.xlu0 %3060
      %v3064 = vsel %vm874, %v3052, 0
      %3066 = vmatprep.subr.bf16.mxu0 0
      %3067 = vmatpush1.bf16.msra.mxu0 %v3061
      %3068 = vmatprep.subr.bf16.mxu0 0
      %3069 = vmatpush1.bf16.msra.mxu0 0
      %3070 = vmatprep.subr.bf16.mxu0 0
      %3071 = vmatpush1.bf16.msra.mxu0 0
      %3072 = vmatprep.subr.bf16.mxu0 0
      %3073 = vmatpush1.bf16.msra.mxu0 0
      %3074 = vmatprep.subr.bf16.mxu0 0
      %3075 = vmatpush1.bf16.msra.mxu0 0
      %3076 = vmatprep.subr.bf16.mxu0 0
      %3077 = vmatpush1.bf16.msra.mxu0 0
      %3078 = vmatprep.subr.bf16.mxu0 0
      %3079 = vmatpush1.bf16.msra.mxu0 0
      %3080 = vmatprep.subr.bf16.mxu0 0
      %3081 = vmatpush1.bf16.msra.mxu0 0
      %3082 = vmatprep.subr.bf16.mxu0 0
      %3083 = vmatpush1.bf16.msra.mxu0 0
      %3084 = vmatprep.subr.bf16.mxu0 0
      %3085 = vmatpush1.bf16.msra.mxu0 0
      %3086 = vmatprep.subr.bf16.mxu0 0
      %3087 = vmatpush1.bf16.msra.mxu0 0
      %3088 = vmatprep.subr.bf16.mxu0 0
      %3089 = vmatpush1.bf16.msra.mxu0 0
      %3090 = vmatprep.subr.bf16.mxu0 0
      %3091 = vmatpush1.bf16.msra.mxu0 0
      %3092 = vmatprep.subr.bf16.mxu0 0
      %3093 = vmatpush1.bf16.msra.mxu0 0
      %3094 = vmatprep.subr.bf16.mxu0 0
      %3095 = vmatpush1.bf16.msra.mxu0 0
      %3096 = vmatprep.subr.bf16.mxu0 0
      %3097 = vmatpush1.bf16.msra.mxu0 0
      %3098 = vmatprep.mubr.bf16.mxu0 0
      %3099 = vmatmul.mubr.bf16.gmra.mrb[0].mxu0 %v3064
      %v3100 = vpop.f32.mrb[0].mxu0
      %v3101 = vadd.f32 0.0, %v3100
      %v3102 = vpop.f32.mrb[0].mxu0
      %v3103 = vpop.f32.mrb[0].mxu0
      %v3104 = vadd.f32 0.0, %v3103
      %v3105 = vpop.f32.mrb[0].mxu0
      %3106 = vdwg.mxu0
      %3107 = vrot.lane.b32.xlu0 %v458, 48
      %v3108 = vpop.permute.xlu0 %3107
      %v3111 = vsel %vm874, %v3053, 0
      %3113 = vmatprep.subr.bf16.mxu0 0
      %3114 = vmatpush1.bf16.msra.mxu0 %v3108
      %3115 = vmatprep.subr.bf16.mxu0 0
      %3116 = vmatpush1.bf16.msra.mxu0 0
      %3117 = vmatprep.subr.bf16.mxu0 0
      %3118 = vmatpush1.bf16.msra.mxu0 0
      %3119 = vmatprep.subr.bf16.mxu0 0
      %3120 = vmatpush1.bf16.msra.mxu0 0
      %3121 = vmatprep.subr.bf16.mxu0 0
      %3122 = vmatpush1.bf16.msra.mxu0 0
      %3123 = vmatprep.subr.bf16.mxu0 0
      %3124 = vmatpush1.bf16.msra.mxu0 0
      %3125 = vmatprep.subr.bf16.mxu0 0
      %3126 = vmatpush1.bf16.msra.mxu0 0
      %3127 = vmatprep.subr.bf16.mxu0 0
      %3128 = vmatpush1.bf16.msra.mxu0 0
      %3129 = vmatprep.subr.bf16.mxu0 0
      %3130 = vmatpush1.bf16.msra.mxu0 0
      %3131 = vmatprep.subr.bf16.mxu0 0
      %3132 = vmatpush1.bf16.msra.mxu0 0
      %3133 = vmatprep.subr.bf16.mxu0 0
      %3134 = vmatpush1.bf16.msra.mxu0 0
      %3135 = vmatprep.subr.bf16.mxu0 0
      %3136 = vmatpush1.bf16.msra.mxu0 0
      %3137 = vmatprep.subr.bf16.mxu0 0
      %3138 = vmatpush1.bf16.msra.mxu0 0
      %3139 = vmatprep.subr.bf16.mxu0 0
      %3140 = vmatpush1.bf16.msra.mxu0 0
      %3141 = vmatprep.subr.bf16.mxu0 0
      %3142 = vmatpush1.bf16.msra.mxu0 0
      %3143 = vmatprep.subr.bf16.mxu0 0
      %3144 = vmatpush1.bf16.msra.mxu0 0
      %3145 = vmatprep.mubr.bf16.mxu0 0
      %3146 = vmatmul.mubr.bf16.gmra.mrb[0].mxu0 %v3111
      %v3147 = vpop.f32.mrb[0].mxu0
      %v3148 = vadd.f32 0.0, %v3147
      %v3149 = vpop.f32.mrb[0].mxu0
      %v3150 = vpop.f32.mrb[0].mxu0
      %v3151 = vadd.f32 0.0, %v3150
      %v3152 = vpop.f32.mrb[0].mxu0
      %3153 = vdwg.mxu0
      %3154 = vrot.lane.b32.xlu0 %v459, 48
      %v3155 = vpop.permute.xlu0 %3154
      %v3158 = vsel %vm874, %v3054, 0
      %3160 = vmatprep.subr.bf16.mxu0 0
      %3161 = vmatpush1.bf16.msra.mxu0 %v3155
      %3162 = vmatprep.subr.bf16.mxu0 0
      %3163 = vmatpush1.bf16.msra.mxu0 0
      %3164 = vmatprep.subr.bf16.mxu0 0
      %3165 = vmatpush1.bf16.msra.mxu0 0
      %3166 = vmatprep.subr.bf16.mxu0 0
      %3167 = vmatpush1.bf16.msra.mxu0 0
      %3168 = vmatprep.subr.bf16.mxu0 0
      %3169 = vmatpush1.bf16.msra.mxu0 0
      %3170 = vmatprep.subr.bf16.mxu0 0
      %3171 = vmatpush1.bf16.msra.mxu0 0
      %3172 = vmatprep.subr.bf16.mxu0 0
      %3173 = vmatpush1.bf16.msra.mxu0 0
      %3174 = vmatprep.subr.bf16.mxu0 0
      %3175 = vmatpush1.bf16.msra.mxu0 0
      %3176 = vmatprep.subr.bf16.mxu0 0
      %3177 = vmatpush1.bf16.msra.mxu0 0
      %3178 = vmatprep.subr.bf16.mxu0 0
      %3179 = vmatpush1.bf16.msra.mxu0 0
      %3180 = vmatprep.subr.bf16.mxu0 0
      %3181 = vmatpush1.bf16.msra.mxu0 0
      %3182 = vmatprep.subr.bf16.mxu0 0
      %3183 = vmatpush1.bf16.msra.mxu0 0
      %3184 = vmatprep.subr.bf16.mxu0 0
      %3185 = vmatpush1.bf16.msra.mxu0 0
      %3186 = vmatprep.subr.bf16.mxu0 0
      %3187 = vmatpush1.bf16.msra.mxu0 0
      %3188 = vmatprep.subr.bf16.mxu0 0
      %3189 = vmatpush1.bf16.msra.mxu0 0
      %3190 = vmatprep.subr.bf16.mxu0 0
      %3191 = vmatpush1.bf16.msra.mxu0 0
      %3192 = vmatprep.mubr.bf16.mxu0 0
      %3193 = vmatmul.mubr.bf16.gmra.mrb[0].mxu0 %v3158
      %v3194 = vpop.f32.mrb[0].mxu0
      %v3195 = vadd.f32 0.0, %v3194
      %v3196 = vpop.f32.mrb[0].mxu0
      %v3197 = vpop.f32.mrb[0].mxu0
      %v3198 = vadd.f32 0.0, %v3197
      %v3199 = vpop.f32.mrb[0].mxu0
      %3200 = vdwg.mxu0
      %3201 = vrot.lane.b32.xlu0 %v460, 48
      %v3202 = vpop.permute.xlu0 %3201
      %v3205 = vsel %vm874, %v3055, 0
      %3207 = vmatprep.subr.bf16.mxu0 0
      %3208 = vmatpush1.bf16.msra.mxu0 %v3202
      %3209 = vmatprep.subr.bf16.mxu0 0
      %3210 = vmatpush1.bf16.msra.mxu0 0
      %3211 = vmatprep.subr.bf16.mxu0 0
      %3212 = vmatpush1.bf16.msra.mxu0 0
      %3213 = vmatprep.subr.bf16.mxu0 0
      %3214 = vmatpush1.bf16.msra.mxu0 0
      %3215 = vmatprep.subr.bf16.mxu0 0
      %3216 = vmatpush1.bf16.msra.mxu0 0
      %3217 = vmatprep.subr.bf16.mxu0 0
      %3218 = vmatpush1.bf16.msra.mxu0 0
      %3219 = vmatprep.subr.bf16.mxu0 0
      %3220 = vmatpush1.bf16.msra.mxu0 0
      %3221 = vmatprep.subr.bf16.mxu0 0
      %3222 = vmatpush1.bf16.msra.mxu0 0
      %3223 = vmatprep.subr.bf16.mxu0 0
      %3224 = vmatpush1.bf16.msra.mxu0 0
      %3225 = vmatprep.subr.bf16.mxu0 0
      %3226 = vmatpush1.bf16.msra.mxu0 0
      %3227 = vmatprep.subr.bf16.mxu0 0
      %3228 = vmatpush1.bf16.msra.mxu0 0
      %3229 = vmatprep.subr.bf16.mxu0 0
      %3230 = vmatpush1.bf16.msra.mxu0 0
      %3231 = vmatprep.subr.bf16.mxu0 0
      %3232 = vmatpush1.bf16.msra.mxu0 0
      %3233 = vmatprep.subr.bf16.mxu0 0
      %3234 = vmatpush1.bf16.msra.mxu0 0
      %3235 = vmatprep.subr.bf16.mxu0 0
      %3236 = vmatpush1.bf16.msra.mxu0 0
      %3237 = vmatprep.subr.bf16.mxu0 0
      %3238 = vmatpush1.bf16.msra.mxu0 0
      %3239 = vmatprep.mubr.bf16.mxu0 0
      %3240 = vmatmul.mubr.bf16.gmra.mrb[0].mxu0 %v3205
      %v3241 = vpop.f32.mrb[0].mxu0
      %v3242 = vadd.f32 0.0, %v3241
      %v3243 = vpop.f32.mrb[0].mxu0
      %v3244 = vpop.f32.mrb[0].mxu0
      %v3245 = vadd.f32 0.0, %v3244
      %v3246 = vpop.f32.mrb[0].mxu0
      %3247 = vdwg.mxu0
      %3248 = vrot.lane.b32.xlu0 %v461, 48
      %v3249 = vpop.permute.xlu0 %3248
      %v3252 = vsel %vm874, %v3056, 0
      %3254 = vmatprep.subr.bf16.mxu0 0
      %3255 = vmatpush1.bf16.msra.mxu0 %v3249
      %3256 = vmatprep.subr.bf16.mxu0 0
      %3257 = vmatpush1.bf16.msra.mxu0 0
      %3258 = vmatprep.subr.bf16.mxu0 0
      %3259 = vmatpush1.bf16.msra.mxu0 0
      %3260 = vmatprep.subr.bf16.mxu0 0
      %3261 = vmatpush1.bf16.msra.mxu0 0
      %3262 = vmatprep.subr.bf16.mxu0 0
      %3263 = vmatpush1.bf16.msra.mxu0 0
      %3264 = vmatprep.subr.bf16.mxu0 0
      %3265 = vmatpush1.bf16.msra.mxu0 0
      %3266 = vmatprep.subr.bf16.mxu0 0
      %3267 = vmatpush1.bf16.msra.mxu0 0
      %3268 = vmatprep.subr.bf16.mxu0 0
      %3269 = vmatpush1.bf16.msra.mxu0 0
      %3270 = vmatprep.subr.bf16.mxu0 0
      %3271 = vmatpush1.bf16.msra.mxu0 0
      %3272 = vmatprep.subr.bf16.mxu0 0
      %3273 = vmatpush1.bf16.msra.mxu0 0
      %3274 = vmatprep.subr.bf16.mxu0 0
      %3275 = vmatpush1.bf16.msra.mxu0 0
      %3276 = vmatprep.subr.bf16.mxu0 0
      %3277 = vmatpush1.bf16.msra.mxu0 0
      %3278 = vmatprep.subr.bf16.mxu0 0
      %3279 = vmatpush1.bf16.msra.mxu0 0
      %3280 = vmatprep.subr.bf16.mxu0 0
      %3281 = vmatpush1.bf16.msra.mxu0 0
      %3282 = vmatprep.subr.bf16.mxu0 0
      %3283 = vmatpush1.bf16.msra.mxu0 0
      %3284 = vmatprep.subr.bf16.mxu0 0
      %3285 = vmatpush1.bf16.msra.mxu0 0
      %3286 = vmatprep.mubr.bf16.mxu0 0
      %3287 = vmatmul.mubr.bf16.gmra.mrb[0].mxu0 %v3252
      %v3288 = vpop.f32.mrb[0].mxu0
      %v3289 = vadd.f32 0.0, %v3288
      %v3290 = vpop.f32.mrb[0].mxu0
      %v3291 = vpop.f32.mrb[0].mxu0
      %v3292 = vadd.f32 0.0, %v3291
      %v3293 = vpop.f32.mrb[0].mxu0
      %3294 = vdwg.mxu0
      %3295 = vrot.lane.b32.xlu0 %v462, 48
      %v3296 = vpop.permute.xlu0 %3295
      %v3299 = vsel %vm874, %v3057, 0
      %3301 = vmatprep.subr.bf16.mxu0 0
      %3302 = vmatpush1.bf16.msra.mxu0 %v3296
      %3303 = vmatprep.subr.bf16.mxu0 0
      %3304 = vmatpush1.bf16.msra.mxu0 0
      %3305 = vmatprep.subr.bf16.mxu0 0
      %3306 = vmatpush1.bf16.msra.mxu0 0
      %3307 = vmatprep.subr.bf16.mxu0 0
      %3308 = vmatpush1.bf16.msra.mxu0 0
      %3309 = vmatprep.subr.bf16.mxu0 0
      %3310 = vmatpush1.bf16.msra.mxu0 0
      %3311 = vmatprep.subr.bf16.mxu0 0
      %3312 = vmatpush1.bf16.msra.mxu0 0
      %3313 = vmatprep.subr.bf16.mxu0 0
      %3314 = vmatpush1.bf16.msra.mxu0 0
      %3315 = vmatprep.subr.bf16.mxu0 0
      %3316 = vmatpush1.bf16.msra.mxu0 0
      %3317 = vmatprep.subr.bf16.mxu0 0
      %3318 = vmatpush1.bf16.msra.mxu0 0
      %3319 = vmatprep.subr.bf16.mxu0 0
      %3320 = vmatpush1.bf16.msra.mxu0 0
      %3321 = vmatprep.subr.bf16.mxu0 0
      %3322 = vmatpush1.bf16.msra.mxu0 0
      %3323 = vmatprep.subr.bf16.mxu0 0
      %3324 = vmatpush1.bf16.msra.mxu0 0
      %3325 = vmatprep.subr.bf16.mxu0 0
      %3326 = vmatpush1.bf16.msra.mxu0 0
      %3327 = vmatprep.subr.bf16.mxu0 0
      %3328 = vmatpush1.bf16.msra.mxu0 0
      %3329 = vmatprep.subr.bf16.mxu0 0
      %3330 = vmatpush1.bf16.msra.mxu0 0
      %3331 = vmatprep.subr.bf16.mxu0 0
      %3332 = vmatpush1.bf16.msra.mxu0 0
      %3333 = vmatprep.mubr.bf16.mxu0 0
      %3334 = vmatmul.mubr.bf16.gmra.mrb[0].mxu0 %v3299
      %v3335 = vpop.f32.mrb[0].mxu0
      %v3336 = vadd.f32 0.0, %v3335
      %v3337 = vpop.f32.mrb[0].mxu0
      %v3338 = vpop.f32.mrb[0].mxu0
      %v3339 = vadd.f32 0.0, %v3338
      %v3340 = vpop.f32.mrb[0].mxu0
      %3341 = vdwg.mxu0
      %3342 = vrot.lane.b32.xlu0 %v463, 48
      %v3343 = vpop.permute.xlu0 %3342
      %v3346 = vsel %vm874, %v3058, 0
      %3348 = vmatprep.subr.bf16.mxu0 0
      %3349 = vmatpush1.bf16.msra.mxu0 %v3343
      %3350 = vmatprep.subr.bf16.mxu0 0
      %3351 = vmatpush1.bf16.msra.mxu0 0
      %3352 = vmatprep.subr.bf16.mxu0 0
      %3353 = vmatpush1.bf16.msra.mxu0 0
      %3354 = vmatprep.subr.bf16.mxu0 0
      %3355 = vmatpush1.bf16.msra.mxu0 0
      %3356 = vmatprep.subr.bf16.mxu0 0
      %3357 = vmatpush1.bf16.msra.mxu0 0
      %3358 = vmatprep.subr.bf16.mxu0 0
      %3359 = vmatpush1.bf16.msra.mxu0 0
      %3360 = vmatprep.subr.bf16.mxu0 0
      %3361 = vmatpush1.bf16.msra.mxu0 0
      %3362 = vmatprep.subr.bf16.mxu0 0
      %3363 = vmatpush1.bf16.msra.mxu0 0
      %3364 = vmatprep.subr.bf16.mxu0 0
      %3365 = vmatpush1.bf16.msra.mxu0 0
      %3366 = vmatprep.subr.bf16.mxu0 0
      %3367 = vmatpush1.bf16.msra.mxu0 0
      %3368 = vmatprep.subr.bf16.mxu0 0
      %3369 = vmatpush1.bf16.msra.mxu0 0
      %3370 = vmatprep.subr.bf16.mxu0 0
      %3371 = vmatpush1.bf16.msra.mxu0 0
      %3372 = vmatprep.subr.bf16.mxu0 0
      %3373 = vmatpush1.bf16.msra.mxu0 0
      %3374 = vmatprep.subr.bf16.mxu0 0
      %3375 = vmatpush1.bf16.msra.mxu0 0
      %3376 = vmatprep.subr.bf16.mxu0 0
      %3377 = vmatpush1.bf16.msra.mxu0 0
      %3378 = vmatprep.subr.bf16.mxu0 0
      %3379 = vmatpush1.bf16.msra.mxu0 0
      %3380 = vmatprep.mubr.bf16.mxu0 0
      %3381 = vmatmul.mubr.bf16.gmra.mrb[0].mxu0 %v3346
      %v3382 = vpop.f32.mrb[0].mxu0
      %v3383 = vadd.f32 0.0, %v3382
      %v3384 = vpop.f32.mrb[0].mxu0
      %v3385 = vpop.f32.mrb[0].mxu0
      %v3386 = vadd.f32 0.0, %v3385
      %v3387 = vpop.f32.mrb[0].mxu0
      %3388 = vdwg.mxu0
      %3389 = vrot.lane.b32.xlu0 %v464, 48
      %v3390 = vpop.permute.xlu0 %3389
      %v3393 = vsel %vm874, %v3059, 0
      %3395 = vmatprep.subr.bf16.mxu0 0
      %3396 = vmatpush1.bf16.msra.mxu0 %v3390
      %3397 = vmatprep.subr.bf16.mxu0 0
      %3398 = vmatpush1.bf16.msra.mxu0 0
      %3399 = vmatprep.subr.bf16.mxu0 0
      %3400 = vmatpush1.bf16.msra.mxu0 0
      %3401 = vmatprep.subr.bf16.mxu0 0
      %3402 = vmatpush1.bf16.msra.mxu0 0
      %3403 = vmatprep.subr.bf16.mxu0 0
      %3404 = vmatpush1.bf16.msra.mxu0 0
      %3405 = vmatprep.subr.bf16.mxu0 0
      %3406 = vmatpush1.bf16.msra.mxu0 0
      %3407 = vmatprep.subr.bf16.mxu0 0
      %3408 = vmatpush1.bf16.msra.mxu0 0
      %3409 = vmatprep.subr.bf16.mxu0 0
      %3410 = vmatpush1.bf16.msra.mxu0 0
      %3411 = vmatprep.subr.bf16.mxu0 0
      %3412 = vmatpush1.bf16.msra.mxu0 0
      %3413 = vmatprep.subr.bf16.mxu0 0
      %3414 = vmatpush1.bf16.msra.mxu0 0
      %3415 = vmatprep.subr.bf16.mxu0 0
      %3416 = vmatpush1.bf16.msra.mxu0 0
      %3417 = vmatprep.subr.bf16.mxu0 0
      %3418 = vmatpush1.bf16.msra.mxu0 0
      %3419 = vmatprep.subr.bf16.mxu0 0
      %3420 = vmatpush1.bf16.msra.mxu0 0
      %3421 = vmatprep.subr.bf16.mxu0 0
      %3422 = vmatpush1.bf16.msra.mxu0 0
      %3423 = vmatprep.subr.bf16.mxu0 0
      %3424 = vmatpush1.bf16.msra.mxu0 0
      %3425 = vmatprep.subr.bf16.mxu0 0
      %3426 = vmatpush1.bf16.msra.mxu0 0
      %3427 = vmatprep.mubr.bf16.mxu0 0
      %3428 = vmatmul.mubr.bf16.gmra.mrb[0].mxu0 %v3393
      %v3429 = vpop.f32.mrb[0].mxu0
      %v3430 = vadd.f32 0.0, %v3429
      %v3431 = vpop.f32.mrb[0].mxu0
      %v3432 = vpop.f32.mrb[0].mxu0
      %v3433 = vadd.f32 0.0, %v3432
      %v3434 = vpop.f32.mrb[0].mxu0
      %3435 = vdwg.mxu0
      %v3436 = vpack.c.bf16 %v3104, %v3101
      %v3437 = vpack.c.bf16 %v3151, %v3148
      %v3438 = vpack.c.bf16 %v3198, %v3195
      %v3439 = vpack.c.bf16 %v3245, %v3242
      %v3440 = vpack.c.bf16 %v3292, %v3289
      %v3441 = vpack.c.bf16 %v3339, %v3336
      %v3442 = vpack.c.bf16 %v3386, %v3383
      %v3443 = vpack.c.bf16 %v3433, %v3430
      %3452 = vrot.lane.b32.xlu0 %v3436, 16
      %v3453 = vpop.permute.xlu0 %3452
      %3454 = vrot.lane.b32.xlu0 %v3437, 16
      %v3455 = vpop.permute.xlu0 %3454
      %3456 = vrot.lane.b32.xlu0 %v3438, 16
      %v3457 = vpop.permute.xlu0 %3456
      %3458 = vrot.lane.b32.xlu0 %v3439, 16
      %v3459 = vpop.permute.xlu0 %3458
      %3460 = vrot.lane.b32.xlu0 %v3440, 16
      %v3461 = vpop.permute.xlu0 %3460
      %3462 = vrot.lane.b32.xlu0 %v3441, 16
      %v3463 = vpop.permute.xlu0 %3462
      %3464 = vrot.lane.b32.xlu0 %v3442, 16
      %v3465 = vpop.permute.xlu0 %3464
      %3466 = vrot.lane.b32.xlu0 %v3443, 16
      %v3467 = vpop.permute.xlu0 %3466
      %vm3476 = vcmask 195712
      %3477 = vst.msk [vmem:[#allocation2] sm:$0xff] %vm3476, %v3453
      %3478 = vst.msk [vmem:[#allocation2 + $0x8] sm:$0xff] %vm3476, %v3455
      %3479 = vst.msk [vmem:[#allocation2 + $0x10] sm:$0xff] %vm3476, %v3457
      %3480 = vst.msk [vmem:[#allocation2 + $0x18] sm:$0xff] %vm3476, %v3459
      %3481 = vst.msk [vmem:[#allocation2 + $0x20] sm:$0xff] %vm3476, %v3461
      %3482 = vst.msk [vmem:[#allocation2 + $0x28] sm:$0xff] %vm3476, %v3463
      %3483 = vst.msk [vmem:[#allocation2 + $0x30] sm:$0xff] %vm3476, %v3465
      %3484 = vst.msk [vmem:[#allocation2 + $0x38] sm:$0xff] %vm3476, %v3467
      %3485 = vrot.lane.b32.xlu0 %v457, 104
      %v3486 = vpop.permute.xlu0 %3485
      %3487 = vrot.lane.b32.xlu0 %v457, 72
      %v3488 = vpop.permute.xlu0 %3487
      %v3490 = vsel %vm476, %v3486, 0
      %v3493 = vsel %vm476, %v3488, 0
      %3495 = vmatprep.subr.bf16.mxu0 0
      %3496 = vmatpush1.bf16.xpose.msra.mxu0 %v3493
      %3497 = vmatprep.subr.bf16.mxu0 0
      %3498 = vmatpush1.bf16.xpose.msra.mxu0 0
      %3499 = vmatprep.subr.bf16.mxu0 0
      %3500 = vmatpush1.bf16.xpose.msra.mxu0 0
      %3501 = vmatprep.subr.bf16.mxu0 0
      %3502 = vmatpush1.bf16.xpose.msra.mxu0 0
      %3503 = vmatprep.subr.bf16.mxu0 0
      %3504 = vmatpush1.bf16.xpose.msra.mxu0 0
      %3505 = vmatprep.subr.bf16.mxu0 0
      %3506 = vmatpush1.bf16.xpose.msra.mxu0 0
      %3507 = vmatprep.subr.bf16.mxu0 0
      %3508 = vmatpush1.bf16.xpose.msra.mxu0 0
      %3509 = vmatprep.subr.bf16.mxu0 0
      %3510 = vmatpush1.bf16.xpose.msra.mxu0 0
      %3511 = vmatprep.subr.bf16.mxu0 0
      %3512 = vmatpush1.bf16.xpose.msra.mxu0 0
      %3513 = vmatprep.subr.bf16.mxu0 0
      %3514 = vmatpush1.bf16.xpose.msra.mxu0 0
      %3515 = vmatprep.subr.bf16.mxu0 0
      %3516 = vmatpush1.bf16.xpose.msra.mxu0 0
      %3517 = vmatprep.subr.bf16.mxu0 0
      %3518 = vmatpush1.bf16.xpose.msra.mxu0 0
      %3519 = vmatprep.subr.bf16.mxu0 0
      %3520 = vmatpush1.bf16.xpose.msra.mxu0 0
      %3521 = vmatprep.subr.bf16.mxu0 0
      %3522 = vmatpush1.bf16.xpose.msra.mxu0 0
      %3523 = vmatprep.subr.bf16.mxu0 0
      %3524 = vmatpush1.bf16.xpose.msra.mxu0 0
      %3525 = vmatprep.subr.bf16.mxu0 0
      %3526 = vmatpush1.bf16.xpose.msra.mxu0 0
      %3527 = vmatprep.mubr.bf16.mxu0 0
      %3528 = vmatmul.mubr.bf16.gmra.mrb[0].mxu0 %v3490
      %v3529 = vpop.f32.mrb[0].mxu0
      %v3530 = vadd.f32 %v471, %v3529
      %v3531 = vpop.f32.mrb[0].mxu0
      %v3532 = vpop.f32.mrb[0].mxu0
      %v3533 = vadd.f32 %v472, %v3532
      %v3534 = vpop.f32.mrb[0].mxu0
      %3535 = vdwg.mxu0
      %3536 = vrot.lane.b32.xlu0 %v458, 104
      %v3537 = vpop.permute.xlu0 %3536
      %3538 = vrot.lane.b32.xlu0 %v458, 72
      %v3539 = vpop.permute.xlu0 %3538
      %v3541 = vsel %vm476, %v3537, 0
      %v3544 = vsel %vm476, %v3539, 0
      %3546 = vmatprep.subr.bf16.mxu0 0
      %3547 = vmatpush1.bf16.xpose.msra.mxu0 %v3544
      %3548 = vmatprep.subr.bf16.mxu0 0
      %3549 = vmatpush1.bf16.xpose.msra.mxu0 0
      %3550 = vmatprep.subr.bf16.mxu0 0
      %3551 = vmatpush1.bf16.xpose.msra.mxu0 0
      %3552 = vmatprep.subr.bf16.mxu0 0
      %3553 = vmatpush1.bf16.xpose.msra.mxu0 0
      %3554 = vmatprep.subr.bf16.mxu0 0
      %3555 = vmatpush1.bf16.xpose.msra.mxu0 0
      %3556 = vmatprep.subr.bf16.mxu0 0
      %3557 = vmatpush1.bf16.xpose.msra.mxu0 0
      %3558 = vmatprep.subr.bf16.mxu0 0
      %3559 = vmatpush1.bf16.xpose.msra.mxu0 0
      %3560 = vmatprep.subr.bf16.mxu0 0
      %3561 = vmatpush1.bf16.xpose.msra.mxu0 0
      %3562 = vmatprep.subr.bf16.mxu0 0
      %3563 = vmatpush1.bf16.xpose.msra.mxu0 0
      %3564 = vmatprep.subr.bf16.mxu0 0
      %3565 = vmatpush1.bf16.xpose.msra.mxu0 0
      %3566 = vmatprep.subr.bf16.mxu0 0
      %3567 = vmatpush1.bf16.xpose.msra.mxu0 0
      %3568 = vmatprep.subr.bf16.mxu0 0
      %3569 = vmatpush1.bf16.xpose.msra.mxu0 0
      %3570 = vmatprep.subr.bf16.mxu0 0
      %3571 = vmatpush1.bf16.xpose.msra.mxu0 0
      %3572 = vmatprep.subr.bf16.mxu0 0
      %3573 = vmatpush1.bf16.xpose.msra.mxu0 0
      %3574 = vmatprep.subr.bf16.mxu0 0
      %3575 = vmatpush1.bf16.xpose.msra.mxu0 0
      %3576 = vmatprep.subr.bf16.mxu0 0
      %3577 = vmatpush1.bf16.xpose.msra.mxu0 0
      %3578 = vmatprep.mubr.bf16.mxu0 0
      %3579 = vmatmul.mubr.bf16.gmra.mrb[0].mxu0 %v3541
      %v3580 = vpop.f32.mrb[0].mxu0
      %v3581 = vadd.f32 %v471, %v3580
      %v3582 = vpop.f32.mrb[0].mxu0
      %v3583 = vpop.f32.mrb[0].mxu0
      %v3584 = vadd.f32 %v472, %v3583
      %v3585 = vpop.f32.mrb[0].mxu0
      %3586 = vdwg.mxu0
      %3587 = vrot.lane.b32.xlu0 %v459, 104
      %v3588 = vpop.permute.xlu0 %3587
      %3589 = vrot.lane.b32.xlu0 %v459, 72
      %v3590 = vpop.permute.xlu0 %3589
      %v3592 = vsel %vm476, %v3588, 0
      %v3595 = vsel %vm476, %v3590, 0
      %3597 = vmatprep.subr.bf16.mxu0 0
      %3598 = vmatpush1.bf16.xpose.msra.mxu0 %v3595
      %3599 = vmatprep.subr.bf16.mxu0 0
      %3600 = vmatpush1.bf16.xpose.msra.mxu0 0
      %3601 = vmatprep.subr.bf16.mxu0 0
      %3602 = vmatpush1.bf16.xpose.msra.mxu0 0
      %3603 = vmatprep.subr.bf16.mxu0 0
      %3604 = vmatpush1.bf16.xpose.msra.mxu0 0
      %3605 = vmatprep.subr.bf16.mxu0 0
      %3606 = vmatpush1.bf16.xpose.msra.mxu0 0
      %3607 = vmatprep.subr.bf16.mxu0 0
      %3608 = vmatpush1.bf16.xpose.msra.mxu0 0
      %3609 = vmatprep.subr.bf16.mxu0 0
      %3610 = vmatpush1.bf16.xpose.msra.mxu0 0
      %3611 = vmatprep.subr.bf16.mxu0 0
      %3612 = vmatpush1.bf16.xpose.msra.mxu0 0
      %3613 = vmatprep.subr.bf16.mxu0 0
      %3614 = vmatpush1.bf16.xpose.msra.mxu0 0
      %3615 = vmatprep.subr.bf16.mxu0 0
      %3616 = vmatpush1.bf16.xpose.msra.mxu0 0
      %3617 = vmatprep.subr.bf16.mxu0 0
      %3618 = vmatpush1.bf16.xpose.msra.mxu0 0
      %3619 = vmatprep.subr.bf16.mxu0 0
      %3620 = vmatpush1.bf16.xpose.msra.mxu0 0
      %3621 = vmatprep.subr.bf16.mxu0 0
      %3622 = vmatpush1.bf16.xpose.msra.mxu0 0
      %3623 = vmatprep.subr.bf16.mxu0 0
      %3624 = vmatpush1.bf16.xpose.msra.mxu0 0
      %3625 = vmatprep.subr.bf16.mxu0 0
      %3626 = vmatpush1.bf16.xpose.msra.mxu0 0
      %3627 = vmatprep.subr.bf16.mxu0 0
      %3628 = vmatpush1.bf16.xpose.msra.mxu0 0
      %3629 = vmatprep.mubr.bf16.mxu0 0
      %3630 = vmatmul.mubr.bf16.gmra.mrb[0].mxu0 %v3592
      %v3631 = vpop.f32.mrb[0].mxu0
      %v3632 = vadd.f32 %v471, %v3631
      %v3633 = vpop.f32.mrb[0].mxu0
      %v3634 = vpop.f32.mrb[0].mxu0
      %v3635 = vadd.f32 %v472, %v3634
      %v3636 = vpop.f32.mrb[0].mxu0
      %3637 = vdwg.mxu0
      %3638 = vrot.lane.b32.xlu0 %v460, 104
      %v3639 = vpop.permute.xlu0 %3638
      %3640 = vrot.lane.b32.xlu0 %v460, 72
      %v3641 = vpop.permute.xlu0 %3640
      %v3643 = vsel %vm476, %v3639, 0
      %v3646 = vsel %vm476, %v3641, 0
      %3648 = vmatprep.subr.bf16.mxu0 0
      %3649 = vmatpush1.bf16.xpose.msra.mxu0 %v3646
      %3650 = vmatprep.subr.bf16.mxu0 0
      %3651 = vmatpush1.bf16.xpose.msra.mxu0 0
      %3652 = vmatprep.subr.bf16.mxu0 0
      %3653 = vmatpush1.bf16.xpose.msra.mxu0 0
      %3654 = vmatprep.subr.bf16.mxu0 0
      %3655 = vmatpush1.bf16.xpose.msra.mxu0 0
      %3656 = vmatprep.subr.bf16.mxu0 0
      %3657 = vmatpush1.bf16.xpose.msra.mxu0 0
      %3658 = vmatprep.subr.bf16.mxu0 0
      %3659 = vmatpush1.bf16.xpose.msra.mxu0 0
      %3660 = vmatprep.subr.bf16.mxu0 0
      %3661 = vmatpush1.bf16.xpose.msra.mxu0 0
      %3662 = vmatprep.subr.bf16.mxu0 0
      %3663 = vmatpush1.bf16.xpose.msra.mxu0 0
      %3664 = vmatprep.subr.bf16.mxu0 0
      %3665 = vmatpush1.bf16.xpose.msra.mxu0 0
      %3666 = vmatprep.subr.bf16.mxu0 0
      %3667 = vmatpush1.bf16.xpose.msra.mxu0 0
      %3668 = vmatprep.subr.bf16.mxu0 0
      %3669 = vmatpush1.bf16.xpose.msra.mxu0 0
      %3670 = vmatprep.subr.bf16.mxu0 0
      %3671 = vmatpush1.bf16.xpose.msra.mxu0 0
      %3672 = vmatprep.subr.bf16.mxu0 0
      %3673 = vmatpush1.bf16.xpose.msra.mxu0 0
      %3674 = vmatprep.subr.bf16.mxu0 0
      %3675 = vmatpush1.bf16.xpose.msra.mxu0 0
      %3676 = vmatprep.subr.bf16.mxu0 0
      %3677 = vmatpush1.bf16.xpose.msra.mxu0 0
      %3678 = vmatprep.subr.bf16.mxu0 0
      %3679 = vmatpush1.bf16.xpose.msra.mxu0 0
      %3680 = vmatprep.mubr.bf16.mxu0 0
      %3681 = vmatmul.mubr.bf16.gmra.mrb[0].mxu0 %v3643
      %v3682 = vpop.f32.mrb[0].mxu0
      %v3683 = vadd.f32 %v471, %v3682
      %v3684 = vpop.f32.mrb[0].mxu0
      %v3685 = vpop.f32.mrb[0].mxu0
      %v3686 = vadd.f32 %v472, %v3685
      %v3687 = vpop.f32.mrb[0].mxu0
      %3688 = vdwg.mxu0
      %3689 = vrot.lane.b32.xlu0 %v461, 104
      %v3690 = vpop.permute.xlu0 %3689
      %3691 = vrot.lane.b32.xlu0 %v461, 72
      %v3692 = vpop.permute.xlu0 %3691
      %v3694 = vsel %vm476, %v3690, 0
      %v3697 = vsel %vm476, %v3692, 0
      %3699 = vmatprep.subr.bf16.mxu0 0
      %3700 = vmatpush1.bf16.xpose.msra.mxu0 %v3697
      %3701 = vmatprep.subr.bf16.mxu0 0
      %3702 = vmatpush1.bf16.xpose.msra.mxu0 0
      %3703 = vmatprep.subr.bf16.mxu0 0
      %3704 = vmatpush1.bf16.xpose.msra.mxu0 0
      %3705 = vmatprep.subr.bf16.mxu0 0
      %3706 = vmatpush1.bf16.xpose.msra.mxu0 0
      %3707 = vmatprep.subr.bf16.mxu0 0
      %3708 = vmatpush1.bf16.xpose.msra.mxu0 0
      %3709 = vmatprep.subr.bf16.mxu0 0
      %3710 = vmatpush1.bf16.xpose.msra.mxu0 0
      %3711 = vmatprep.subr.bf16.mxu0 0
      %3712 = vmatpush1.bf16.xpose.msra.mxu0 0
      %3713 = vmatprep.subr.bf16.mxu0 0
      %3714 = vmatpush1.bf16.xpose.msra.mxu0 0
      %3715 = vmatprep.subr.bf16.mxu0 0
      %3716 = vmatpush1.bf16.xpose.msra.mxu0 0
      %3717 = vmatprep.subr.bf16.mxu0 0
      %3718 = vmatpush1.bf16.xpose.msra.mxu0 0
      %3719 = vmatprep.subr.bf16.mxu0 0
      %3720 = vmatpush1.bf16.xpose.msra.mxu0 0
      %3721 = vmatprep.subr.bf16.mxu0 0
      %3722 = vmatpush1.bf16.xpose.msra.mxu0 0
      %3723 = vmatprep.subr.bf16.mxu0 0
      %3724 = vmatpush1.bf16.xpose.msra.mxu0 0
      %3725 = vmatprep.subr.bf16.mxu0 0
      %3726 = vmatpush1.bf16.xpose.msra.mxu0 0
      %3727 = vmatprep.subr.bf16.mxu0 0
      %3728 = vmatpush1.bf16.xpose.msra.mxu0 0
      %3729 = vmatprep.subr.bf16.mxu0 0
      %3730 = vmatpush1.bf16.xpose.msra.mxu0 0
      %3731 = vmatprep.mubr.bf16.mxu0 0
      %3732 = vmatmul.mubr.bf16.gmra.mrb[0].mxu0 %v3694
      %v3733 = vpop.f32.mrb[0].mxu0
      %v3734 = vadd.f32 %v471, %v3733
      %v3735 = vpop.f32.mrb[0].mxu0
      %v3736 = vpop.f32.mrb[0].mxu0
      %v3737 = vadd.f32 %v472, %v3736
      %v3738 = vpop.f32.mrb[0].mxu0
      %3739 = vdwg.mxu0
      %3740 = vrot.lane.b32.xlu0 %v462, 104
      %v3741 = vpop.permute.xlu0 %3740
      %3742 = vrot.lane.b32.xlu0 %v462, 72
      %v3743 = vpop.permute.xlu0 %3742
      %v3745 = vsel %vm476, %v3741, 0
      %v3748 = vsel %vm476, %v3743, 0
      %3750 = vmatprep.subr.bf16.mxu0 0
      %3751 = vmatpush1.bf16.xpose.msra.mxu0 %v3748
      %3752 = vmatprep.subr.bf16.mxu0 0
      %3753 = vmatpush1.bf16.xpose.msra.mxu0 0
      %3754 = vmatprep.subr.bf16.mxu0 0
      %3755 = vmatpush1.bf16.xpose.msra.mxu0 0
      %3756 = vmatprep.subr.bf16.mxu0 0
      %3757 = vmatpush1.bf16.xpose.msra.mxu0 0
      %3758 = vmatprep.subr.bf16.mxu0 0
      %3759 = vmatpush1.bf16.xpose.msra.mxu0 0
      %3760 = vmatprep.subr.bf16.mxu0 0
      %3761 = vmatpush1.bf16.xpose.msra.mxu0 0
      %3762 = vmatprep.subr.bf16.mxu0 0
      %3763 = vmatpush1.bf16.xpose.msra.mxu0 0
      %3764 = vmatprep.subr.bf16.mxu0 0
      %3765 = vmatpush1.bf16.xpose.msra.mxu0 0
      %3766 = vmatprep.subr.bf16.mxu0 0
      %3767 = vmatpush1.bf16.xpose.msra.mxu0 0
      %3768 = vmatprep.subr.bf16.mxu0 0
      %3769 = vmatpush1.bf16.xpose.msra.mxu0 0
      %3770 = vmatprep.subr.bf16.mxu0 0
      %3771 = vmatpush1.bf16.xpose.msra.mxu0 0
      %3772 = vmatprep.subr.bf16.mxu0 0
      %3773 = vmatpush1.bf16.xpose.msra.mxu0 0
      %3774 = vmatprep.subr.bf16.mxu0 0
      %3775 = vmatpush1.bf16.xpose.msra.mxu0 0
      %3776 = vmatprep.subr.bf16.mxu0 0
      %3777 = vmatpush1.bf16.xpose.msra.mxu0 0
      %3778 = vmatprep.subr.bf16.mxu0 0
      %3779 = vmatpush1.bf16.xpose.msra.mxu0 0
      %3780 = vmatprep.subr.bf16.mxu0 0
      %3781 = vmatpush1.bf16.xpose.msra.mxu0 0
      %3782 = vmatprep.mubr.bf16.mxu0 0
      %3783 = vmatmul.mubr.bf16.gmra.mrb[0].mxu0 %v3745
      %v3784 = vpop.f32.mrb[0].mxu0
      %v3785 = vadd.f32 %v471, %v3784
      %v3786 = vpop.f32.mrb[0].mxu0
      %v3787 = vpop.f32.mrb[0].mxu0
      %v3788 = vadd.f32 %v472, %v3787
      %v3789 = vpop.f32.mrb[0].mxu0
      %3790 = vdwg.mxu0
      %3791 = vrot.lane.b32.xlu0 %v463, 104
      %v3792 = vpop.permute.xlu0 %3791
      %3793 = vrot.lane.b32.xlu0 %v463, 72
      %v3794 = vpop.permute.xlu0 %3793
      %v3796 = vsel %vm476, %v3792, 0
      %v3799 = vsel %vm476, %v3794, 0
      %3801 = vmatprep.subr.bf16.mxu0 0
      %3802 = vmatpush1.bf16.xpose.msra.mxu0 %v3799
      %3803 = vmatprep.subr.bf16.mxu0 0
      %3804 = vmatpush1.bf16.xpose.msra.mxu0 0
      %3805 = vmatprep.subr.bf16.mxu0 0
      %3806 = vmatpush1.bf16.xpose.msra.mxu0 0
      %3807 = vmatprep.subr.bf16.mxu0 0
      %3808 = vmatpush1.bf16.xpose.msra.mxu0 0
      %3809 = vmatprep.subr.bf16.mxu0 0
      %3810 = vmatpush1.bf16.xpose.msra.mxu0 0
      %3811 = vmatprep.subr.bf16.mxu0 0
      %3812 = vmatpush1.bf16.xpose.msra.mxu0 0
      %3813 = vmatprep.subr.bf16.mxu0 0
      %3814 = vmatpush1.bf16.xpose.msra.mxu0 0
      %3815 = vmatprep.subr.bf16.mxu0 0
      %3816 = vmatpush1.bf16.xpose.msra.mxu0 0
      %3817 = vmatprep.subr.bf16.mxu0 0
      %3818 = vmatpush1.bf16.xpose.msra.mxu0 0
      %3819 = vmatprep.subr.bf16.mxu0 0
      %3820 = vmatpush1.bf16.xpose.msra.mxu0 0
      %3821 = vmatprep.subr.bf16.mxu0 0
      %3822 = vmatpush1.bf16.xpose.msra.mxu0 0
      %3823 = vmatprep.subr.bf16.mxu0 0
      %3824 = vmatpush1.bf16.xpose.msra.mxu0 0
      %3825 = vmatprep.subr.bf16.mxu0 0
      %3826 = vmatpush1.bf16.xpose.msra.mxu0 0
      %3827 = vmatprep.subr.bf16.mxu0 0
      %3828 = vmatpush1.bf16.xpose.msra.mxu0 0
      %3829 = vmatprep.subr.bf16.mxu0 0
      %3830 = vmatpush1.bf16.xpose.msra.mxu0 0
      %3831 = vmatprep.subr.bf16.mxu0 0
      %3832 = vmatpush1.bf16.xpose.msra.mxu0 0
      %3833 = vmatprep.mubr.bf16.mxu0 0
      %3834 = vmatmul.mubr.bf16.gmra.mrb[0].mxu0 %v3796
      %v3835 = vpop.f32.mrb[0].mxu0
      %v3836 = vadd.f32 %v471, %v3835
      %v3837 = vpop.f32.mrb[0].mxu0
      %v3838 = vpop.f32.mrb[0].mxu0
      %v3839 = vadd.f32 %v472, %v3838
      %v3840 = vpop.f32.mrb[0].mxu0
      %3841 = vdwg.mxu0
      %3842 = vrot.lane.b32.xlu0 %v464, 104
      %v3843 = vpop.permute.xlu0 %3842
      %3844 = vrot.lane.b32.xlu0 %v464, 72
      %v3845 = vpop.permute.xlu0 %3844
      %v3847 = vsel %vm476, %v3843, 0
      %v3850 = vsel %vm476, %v3845, 0
      %3852 = vmatprep.subr.bf16.mxu0 0
      %3853 = vmatpush1.bf16.xpose.msra.mxu0 %v3850
      %3854 = vmatprep.subr.bf16.mxu0 0
      %3855 = vmatpush1.bf16.xpose.msra.mxu0 0
      %3856 = vmatprep.subr.bf16.mxu0 0
      %3857 = vmatpush1.bf16.xpose.msra.mxu0 0
      %3858 = vmatprep.subr.bf16.mxu0 0
      %3859 = vmatpush1.bf16.xpose.msra.mxu0 0
      %3860 = vmatprep.subr.bf16.mxu0 0
      %3861 = vmatpush1.bf16.xpose.msra.mxu0 0
      %3862 = vmatprep.subr.bf16.mxu0 0
      %3863 = vmatpush1.bf16.xpose.msra.mxu0 0
      %3864 = vmatprep.subr.bf16.mxu0 0
      %3865 = vmatpush1.bf16.xpose.msra.mxu0 0
      %3866 = vmatprep.subr.bf16.mxu0 0
      %3867 = vmatpush1.bf16.xpose.msra.mxu0 0
      %3868 = vmatprep.subr.bf16.mxu0 0
      %3869 = vmatpush1.bf16.xpose.msra.mxu0 0
      %3870 = vmatprep.subr.bf16.mxu0 0
      %3871 = vmatpush1.bf16.xpose.msra.mxu0 0
      %3872 = vmatprep.subr.bf16.mxu0 0
      %3873 = vmatpush1.bf16.xpose.msra.mxu0 0
      %3874 = vmatprep.subr.bf16.mxu0 0
      %3875 = vmatpush1.bf16.xpose.msra.mxu0 0
      %3876 = vmatprep.subr.bf16.mxu0 0
      %3877 = vmatpush1.bf16.xpose.msra.mxu0 0
      %3878 = vmatprep.subr.bf16.mxu0 0
      %3879 = vmatpush1.bf16.xpose.msra.mxu0 0
      %3880 = vmatprep.subr.bf16.mxu0 0
      %3881 = vmatpush1.bf16.xpose.msra.mxu0 0
      %3882 = vmatprep.subr.bf16.mxu0 0
      %3883 = vmatpush1.bf16.xpose.msra.mxu0 0
      %3884 = vmatprep.mubr.bf16.mxu0 0
      %3885 = vmatmul.mubr.bf16.gmra.mrb[0].mxu0 %v3847
      %v3886 = vpop.f32.mrb[0].mxu0
      %v3887 = vadd.f32 %v471, %v3886
      %v3888 = vpop.f32.mrb[0].mxu0
      %v3889 = vpop.f32.mrb[0].mxu0
      %v3890 = vadd.f32 %v472, %v3889
      %v3891 = vpop.f32.mrb[0].mxu0
      %3892 = vdwg.mxu0
      %v3893 = vsel %vm874, %v3530, -inf
      %3894 = vmax.xlane.f32.xlu0 %v3893
      %v3895 = vpop.xlane.xlu0 %3894
      %v3896 = vsel %vm874, %v3533, -inf
      %3897 = vmax.xlane.f32.xlu0 %v3896
      %v3898 = vpop.xlane.xlu0 %3897
      %v3899 = vsel %vm874, %v3581, -inf
      %3900 = vmax.xlane.f32.xlu0 %v3899
      %v3901 = vpop.xlane.xlu0 %3900
      %v3902 = vsel %vm874, %v3584, -inf
      %3903 = vmax.xlane.f32.xlu0 %v3902
      %v3904 = vpop.xlane.xlu0 %3903
      %v3905 = vsel %vm874, %v3632, -inf
      %3906 = vmax.xlane.f32.xlu0 %v3905
      %v3907 = vpop.xlane.xlu0 %3906
      %v3908 = vsel %vm874, %v3635, -inf
      %3909 = vmax.xlane.f32.xlu0 %v3908
      %v3910 = vpop.xlane.xlu0 %3909
      %v3911 = vsel %vm874, %v3683, -inf
      %3912 = vmax.xlane.f32.xlu0 %v3911
      %v3913 = vpop.xlane.xlu0 %3912
      %v3914 = vsel %vm874, %v3686, -inf
      %3915 = vmax.xlane.f32.xlu0 %v3914
      %v3916 = vpop.xlane.xlu0 %3915
      %v3917 = vsel %vm874, %v3734, -inf
      %3918 = vmax.xlane.f32.xlu0 %v3917
      %v3919 = vpop.xlane.xlu0 %3918
      %v3920 = vsel %vm874, %v3737, -inf
      %3921 = vmax.xlane.f32.xlu0 %v3920
      %v3922 = vpop.xlane.xlu0 %3921
      %v3923 = vsel %vm874, %v3785, -inf
      %3924 = vmax.xlane.f32.xlu0 %v3923
      %v3925 = vpop.xlane.xlu0 %3924
      %v3926 = vsel %vm874, %v3788, -inf
      %3927 = vmax.xlane.f32.xlu0 %v3926
      %v3928 = vpop.xlane.xlu0 %3927
      %v3929 = vsel %vm874, %v3836, -inf
      %3930 = vmax.xlane.f32.xlu0 %v3929
      %v3931 = vpop.xlane.xlu0 %3930
      %v3932 = vsel %vm874, %v3839, -inf
      %3933 = vmax.xlane.f32.xlu0 %v3932
      %v3934 = vpop.xlane.xlu0 %3933
      %v3935 = vsel %vm874, %v3887, -inf
      %3936 = vmax.xlane.f32.xlu0 %v3935
      %v3937 = vpop.xlane.xlu0 %3936
      %v3938 = vsel %vm874, %v3890, -inf
      %3939 = vmax.xlane.f32.xlu0 %v3938
      %v3940 = vpop.xlane.xlu0 %3939
      %v3941 = vsub.f32 %v3530, %v3895
      %v3942 = vsub.f32 %v3533, %v3898
      %v3943 = vsub.f32 %v3581, %v3901
      %v3944 = vsub.f32 %v3584, %v3904
      %v3945 = vsub.f32 %v3632, %v3907
      %v3946 = vsub.f32 %v3635, %v3910
      %v3947 = vsub.f32 %v3683, %v3913
      %v3948 = vsub.f32 %v3686, %v3916
      %v3949 = vsub.f32 %v3734, %v3919
      %v3950 = vsub.f32 %v3737, %v3922
      %v3951 = vsub.f32 %v3785, %v3925
      %v3952 = vsub.f32 %v3788, %v3928
      %v3953 = vsub.f32 %v3836, %v3931
      %v3954 = vsub.f32 %v3839, %v3934
      %v3955 = vsub.f32 %v3887, %v3937
      %v3956 = vsub.f32 %v3890, %v3940
      %v3957 = vmul.f32 %v3941, 1.442695
      %v3958 = vpow.pop %v3957
      %v3959 = vmul.f32 %v3942, 1.442695
      %v3960 = vpow.pop %v3959
      %v3961 = vmul.f32 %v3943, 1.442695
      %v3962 = vpow.pop %v3961
      %v3963 = vmul.f32 %v3944, 1.442695
      %v3964 = vpow.pop %v3963
      %v3965 = vmul.f32 %v3945, 1.442695
      %v3966 = vpow.pop %v3965
      %v3967 = vmul.f32 %v3946, 1.442695
      %v3968 = vpow.pop %v3967
      %v3969 = vmul.f32 %v3947, 1.442695
      %v3970 = vpow.pop %v3969
      %v3971 = vmul.f32 %v3948, 1.442695
      %v3972 = vpow.pop %v3971
      %v3973 = vmul.f32 %v3949, 1.442695
      %v3974 = vpow.pop %v3973
      %v3975 = vmul.f32 %v3950, 1.442695
      %v3976 = vpow.pop %v3975
      %v3977 = vmul.f32 %v3951, 1.442695
      %v3978 = vpow.pop %v3977
      %v3979 = vmul.f32 %v3952, 1.442695
      %v3980 = vpow.pop %v3979
      %v3981 = vmul.f32 %v3953, 1.442695
      %v3982 = vpow.pop %v3981
      %v3983 = vmul.f32 %v3954, 1.442695
      %v3984 = vpow.pop %v3983
      %v3985 = vmul.f32 %v3955, 1.442695
      %v3986 = vpow.pop %v3985
      %v3987 = vmul.f32 %v3956, 1.442695
      %v3988 = vpow.pop %v3987
      %v3989 = vsel %vm874, %v3958, 0.0
      %3990 = vadd.xlane.f32.xlu0 %v3989
      %v3991 = vpop.xlane.xlu0 %3990
      %v3992 = vsel %vm874, %v3960, 0.0
      %3993 = vadd.xlane.f32.xlu0 %v3992
      %v3994 = vpop.xlane.xlu0 %3993
      %v3995 = vsel %vm874, %v3962, 0.0
      %3996 = vadd.xlane.f32.xlu0 %v3995
      %v3997 = vpop.xlane.xlu0 %3996
      %v3998 = vsel %vm874, %v3964, 0.0
      %3999 = vadd.xlane.f32.xlu0 %v3998
      %v4000 = vpop.xlane.xlu0 %3999
      %v4001 = vsel %vm874, %v3966, 0.0
      %4002 = vadd.xlane.f32.xlu0 %v4001
      %v4003 = vpop.xlane.xlu0 %4002
      %v4004 = vsel %vm874, %v3968, 0.0
      %4005 = vadd.xlane.f32.xlu0 %v4004
      %v4006 = vpop.xlane.xlu0 %4005
      %v4007 = vsel %vm874, %v3970, 0.0
      %4008 = vadd.xlane.f32.xlu0 %v4007
      %v4009 = vpop.xlane.xlu0 %4008
      %v4010 = vsel %vm874, %v3972, 0.0
      %4011 = vadd.xlane.f32.xlu0 %v4010
      %v4012 = vpop.xlane.xlu0 %4011
      %v4013 = vsel %vm874, %v3974, 0.0
      %4014 = vadd.xlane.f32.xlu0 %v4013
      %v4015 = vpop.xlane.xlu0 %4014
      %v4016 = vsel %vm874, %v3976, 0.0
      %4017 = vadd.xlane.f32.xlu0 %v4016
      %v4018 = vpop.xlane.xlu0 %4017
      %v4019 = vsel %vm874, %v3978, 0.0
      %4020 = vadd.xlane.f32.xlu0 %v4019
      %v4021 = vpop.xlane.xlu0 %4020
      %v4022 = vsel %vm874, %v3980, 0.0
      %4023 = vadd.xlane.f32.xlu0 %v4022
      %v4024 = vpop.xlane.xlu0 %4023
      %v4025 = vsel %vm874, %v3982, 0.0
      %4026 = vadd.xlane.f32.xlu0 %v4025
      %v4027 = vpop.xlane.xlu0 %4026
      %v4028 = vsel %vm874, %v3984, 0.0
      %4029 = vadd.xlane.f32.xlu0 %v4028
      %v4030 = vpop.xlane.xlu0 %4029
      %v4031 = vsel %vm874, %v3986, 0.0
      %4032 = vadd.xlane.f32.xlu0 %v4031
      %v4033 = vpop.xlane.xlu0 %4032
      %v4034 = vsel %vm874, %v3988, 0.0
      %4035 = vadd.xlane.f32.xlu0 %v4034
      %v4036 = vpop.xlane.xlu0 %4035
      %v4037 = vrcp.pop %v3991
      %v4038 = vrcp.pop %v3994
      %v4039 = vrcp.pop %v3997
      %v4040 = vrcp.pop %v4000
      %v4041 = vrcp.pop %v4003
      %v4042 = vrcp.pop %v4006
      %v4043 = vrcp.pop %v4009
      %v4044 = vrcp.pop %v4012
      %v4045 = vrcp.pop %v4015
      %v4046 = vrcp.pop %v4018
      %v4047 = vrcp.pop %v4021
      %v4048 = vrcp.pop %v4024
      %v4049 = vrcp.pop %v4027
      %v4050 = vrcp.pop %v4030
      %v4051 = vrcp.pop %v4033
      %v4052 = vrcp.pop %v4036
      %v4053 = vmul.f32 %v3958, %v4037
      %v4054 = vmul.f32 %v3960, %v4038
      %v4055 = vmul.f32 %v3962, %v4039
      %v4056 = vmul.f32 %v3964, %v4040
      %v4057 = vmul.f32 %v3966, %v4041
      %v4058 = vmul.f32 %v3968, %v4042
      %v4059 = vmul.f32 %v3970, %v4043
      %v4060 = vmul.f32 %v3972, %v4044
      %v4061 = vmul.f32 %v3974, %v4045
      %v4062 = vmul.f32 %v3976, %v4046
      %v4063 = vmul.f32 %v3978, %v4047
      %v4064 = vmul.f32 %v3980, %v4048
      %v4065 = vmul.f32 %v3982, %v4049
      %v4066 = vmul.f32 %v3984, %v4050
      %v4067 = vmul.f32 %v3986, %v4051
      %v4068 = vmul.f32 %v3988, %v4052
      %v4069 = vpack.c.bf16 %v4054, %v4053
      %v4070 = vpack.c.bf16 %v4056, %v4055
      %v4071 = vpack.c.bf16 %v4058, %v4057
      %v4072 = vpack.c.bf16 %v4060, %v4059
      %v4073 = vpack.c.bf16 %v4062, %v4061
      %v4074 = vpack.c.bf16 %v4064, %v4063
      %v4075 = vpack.c.bf16 %v4066, %v4065
      %v4076 = vpack.c.bf16 %v4068, %v4067
      %4077 = vrot.lane.b32.xlu0 %v457, 40
      %v4078 = vpop.permute.xlu0 %4077
      %v4081 = vsel %vm874, %v4069, 0
      %4083 = vmatprep.subr.bf16.mxu0 0
      %4084 = vmatpush1.bf16.msra.mxu0 %v4078
      %4085 = vmatprep.subr.bf16.mxu0 0
      %4086 = vmatpush1.bf16.msra.mxu0 0
      %4087 = vmatprep.subr.bf16.mxu0 0
      %4088 = vmatpush1.bf16.msra.mxu0 0
      %4089 = vmatprep.subr.bf16.mxu0 0
      %4090 = vmatpush1.bf16.msra.mxu0 0
      %4091 = vmatprep.subr.bf16.mxu0 0
      %4092 = vmatpush1.bf16.msra.mxu0 0
      %4093 = vmatprep.subr.bf16.mxu0 0
      %4094 = vmatpush1.bf16.msra.mxu0 0
      %4095 = vmatprep.subr.bf16.mxu0 0
      %4096 = vmatpush1.bf16.msra.mxu0 0
      %4097 = vmatprep.subr.bf16.mxu0 0
      %4098 = vmatpush1.bf16.msra.mxu0 0
      %4099 = vmatprep.subr.bf16.mxu0 0
      %4100 = vmatpush1.bf16.msra.mxu0 0
      %4101 = vmatprep.subr.bf16.mxu0 0
      %4102 = vmatpush1.bf16.msra.mxu0 0
      %4103 = vmatprep.subr.bf16.mxu0 0
      %4104 = vmatpush1.bf16.msra.mxu0 0
      %4105 = vmatprep.subr.bf16.mxu0 0
      %4106 = vmatpush1.bf16.msra.mxu0 0
      %4107 = vmatprep.subr.bf16.mxu0 0
      %4108 = vmatpush1.bf16.msra.mxu0 0
      %4109 = vmatprep.subr.bf16.mxu0 0
      %4110 = vmatpush1.bf16.msra.mxu0 0
      %4111 = vmatprep.subr.bf16.mxu0 0
      %4112 = vmatpush1.bf16.msra.mxu0 0
      %4113 = vmatprep.subr.bf16.mxu0 0
      %4114 = vmatpush1.bf16.msra.mxu0 0
      %4115 = vmatprep.mubr.bf16.mxu0 0
      %4116 = vmatmul.mubr.bf16.gmra.mrb[0].mxu0 %v4081
      %v4117 = vpop.f32.mrb[0].mxu0
      %v4118 = vadd.f32 0.0, %v4117
      %v4119 = vpop.f32.mrb[0].mxu0
      %v4120 = vpop.f32.mrb[0].mxu0
      %v4121 = vadd.f32 0.0, %v4120
      %v4122 = vpop.f32.mrb[0].mxu0
      %4123 = vdwg.mxu0
      %4124 = vrot.lane.b32.xlu0 %v458, 40
      %v4125 = vpop.permute.xlu0 %4124
      %v4128 = vsel %vm874, %v4070, 0
      %4130 = vmatprep.subr.bf16.mxu0 0
      %4131 = vmatpush1.bf16.msra.mxu0 %v4125
      %4132 = vmatprep.subr.bf16.mxu0 0
      %4133 = vmatpush1.bf16.msra.mxu0 0
      %4134 = vmatprep.subr.bf16.mxu0 0
      %4135 = vmatpush1.bf16.msra.mxu0 0
      %4136 = vmatprep.subr.bf16.mxu0 0
      %4137 = vmatpush1.bf16.msra.mxu0 0
      %4138 = vmatprep.subr.bf16.mxu0 0
      %4139 = vmatpush1.bf16.msra.mxu0 0
      %4140 = vmatprep.subr.bf16.mxu0 0
      %4141 = vmatpush1.bf16.msra.mxu0 0
      %4142 = vmatprep.subr.bf16.mxu0 0
      %4143 = vmatpush1.bf16.msra.mxu0 0
      %4144 = vmatprep.subr.bf16.mxu0 0
      %4145 = vmatpush1.bf16.msra.mxu0 0
      %4146 = vmatprep.subr.bf16.mxu0 0
      %4147 = vmatpush1.bf16.msra.mxu0 0
      %4148 = vmatprep.subr.bf16.mxu0 0
      %4149 = vmatpush1.bf16.msra.mxu0 0
      %4150 = vmatprep.subr.bf16.mxu0 0
      %4151 = vmatpush1.bf16.msra.mxu0 0
      %4152 = vmatprep.subr.bf16.mxu0 0
      %4153 = vmatpush1.bf16.msra.mxu0 0
      %4154 = vmatprep.subr.bf16.mxu0 0
      %4155 = vmatpush1.bf16.msra.mxu0 0
      %4156 = vmatprep.subr.bf16.mxu0 0
      %4157 = vmatpush1.bf16.msra.mxu0 0
      %4158 = vmatprep.subr.bf16.mxu0 0
      %4159 = vmatpush1.bf16.msra.mxu0 0
      %4160 = vmatprep.subr.bf16.mxu0 0
      %4161 = vmatpush1.bf16.msra.mxu0 0
      %4162 = vmatprep.mubr.bf16.mxu0 0
      %4163 = vmatmul.mubr.bf16.gmra.mrb[0].mxu0 %v4128
      %v4164 = vpop.f32.mrb[0].mxu0
      %v4165 = vadd.f32 0.0, %v4164
      %v4166 = vpop.f32.mrb[0].mxu0
      %v4167 = vpop.f32.mrb[0].mxu0
      %v4168 = vadd.f32 0.0, %v4167
      %v4169 = vpop.f32.mrb[0].mxu0
      %4170 = vdwg.mxu0
      %4171 = vrot.lane.b32.xlu0 %v459, 40
      %v4172 = vpop.permute.xlu0 %4171
      %v4175 = vsel %vm874, %v4071, 0
      %4177 = vmatprep.subr.bf16.mxu0 0
      %4178 = vmatpush1.bf16.msra.mxu0 %v4172
      %4179 = vmatprep.subr.bf16.mxu0 0
      %4180 = vmatpush1.bf16.msra.mxu0 0
      %4181 = vmatprep.subr.bf16.mxu0 0
      %4182 = vmatpush1.bf16.msra.mxu0 0
      %4183 = vmatprep.subr.bf16.mxu0 0
      %4184 = vmatpush1.bf16.msra.mxu0 0
      %4185 = vmatprep.subr.bf16.mxu0 0
      %4186 = vmatpush1.bf16.msra.mxu0 0
      %4187 = vmatprep.subr.bf16.mxu0 0
      %4188 = vmatpush1.bf16.msra.mxu0 0
      %4189 = vmatprep.subr.bf16.mxu0 0
      %4190 = vmatpush1.bf16.msra.mxu0 0
      %4191 = vmatprep.subr.bf16.mxu0 0
      %4192 = vmatpush1.bf16.msra.mxu0 0
      %4193 = vmatprep.subr.bf16.mxu0 0
      %4194 = vmatpush1.bf16.msra.mxu0 0
      %4195 = vmatprep.subr.bf16.mxu0 0
      %4196 = vmatpush1.bf16.msra.mxu0 0
      %4197 = vmatprep.subr.bf16.mxu0 0
      %4198 = vmatpush1.bf16.msra.mxu0 0
      %4199 = vmatprep.subr.bf16.mxu0 0
      %4200 = vmatpush1.bf16.msra.mxu0 0
      %4201 = vmatprep.subr.bf16.mxu0 0
      %4202 = vmatpush1.bf16.msra.mxu0 0
      %4203 = vmatprep.subr.bf16.mxu0 0
      %4204 = vmatpush1.bf16.msra.mxu0 0
      %4205 = vmatprep.subr.bf16.mxu0 0
      %4206 = vmatpush1.bf16.msra.mxu0 0
      %4207 = vmatprep.subr.bf16.mxu0 0
      %4208 = vmatpush1.bf16.msra.mxu0 0
      %4209 = vmatprep.mubr.bf16.mxu0 0
      %4210 = vmatmul.mubr.bf16.gmra.mrb[0].mxu0 %v4175
      %v4211 = vpop.f32.mrb[0].mxu0
      %v4212 = vadd.f32 0.0, %v4211
      %v4213 = vpop.f32.mrb[0].mxu0
      %v4214 = vpop.f32.mrb[0].mxu0
      %v4215 = vadd.f32 0.0, %v4214
      %v4216 = vpop.f32.mrb[0].mxu0
      %4217 = vdwg.mxu0
      %4218 = vrot.lane.b32.xlu0 %v460, 40
      %v4219 = vpop.permute.xlu0 %4218
      %v4222 = vsel %vm874, %v4072, 0
      %4224 = vmatprep.subr.bf16.mxu0 0
      %4225 = vmatpush1.bf16.msra.mxu0 %v4219
      %4226 = vmatprep.subr.bf16.mxu0 0
      %4227 = vmatpush1.bf16.msra.mxu0 0
      %4228 = vmatprep.subr.bf16.mxu0 0
      %4229 = vmatpush1.bf16.msra.mxu0 0
      %4230 = vmatprep.subr.bf16.mxu0 0
      %4231 = vmatpush1.bf16.msra.mxu0 0
      %4232 = vmatprep.subr.bf16.mxu0 0
      %4233 = vmatpush1.bf16.msra.mxu0 0
      %4234 = vmatprep.subr.bf16.mxu0 0
      %4235 = vmatpush1.bf16.msra.mxu0 0
      %4236 = vmatprep.subr.bf16.mxu0 0
      %4237 = vmatpush1.bf16.msra.mxu0 0
      %4238 = vmatprep.subr.bf16.mxu0 0
      %4239 = vmatpush1.bf16.msra.mxu0 0
      %4240 = vmatprep.subr.bf16.mxu0 0
      %4241 = vmatpush1.bf16.msra.mxu0 0
      %4242 = vmatprep.subr.bf16.mxu0 0
      %4243 = vmatpush1.bf16.msra.mxu0 0
      %4244 = vmatprep.subr.bf16.mxu0 0
      %4245 = vmatpush1.bf16.msra.mxu0 0
      %4246 = vmatprep.subr.bf16.mxu0 0
      %4247 = vmatpush1.bf16.msra.mxu0 0
      %4248 = vmatprep.subr.bf16.mxu0 0
      %4249 = vmatpush1.bf16.msra.mxu0 0
      %4250 = vmatprep.subr.bf16.mxu0 0
      %4251 = vmatpush1.bf16.msra.mxu0 0
      %4252 = vmatprep.subr.bf16.mxu0 0
      %4253 = vmatpush1.bf16.msra.mxu0 0
      %4254 = vmatprep.subr.bf16.mxu0 0
      %4255 = vmatpush1.bf16.msra.mxu0 0
      %4256 = vmatprep.mubr.bf16.mxu0 0
      %4257 = vmatmul.mubr.bf16.gmra.mrb[0].mxu0 %v4222
      %v4258 = vpop.f32.mrb[0].mxu0
      %v4259 = vadd.f32 0.0, %v4258
      %v4260 = vpop.f32.mrb[0].mxu0
      %v4261 = vpop.f32.mrb[0].mxu0
      %v4262 = vadd.f32 0.0, %v4261
      %v4263 = vpop.f32.mrb[0].mxu0
      %4264 = vdwg.mxu0
      %4265 = vrot.lane.b32.xlu0 %v461, 40
      %v4266 = vpop.permute.xlu0 %4265
      %v4269 = vsel %vm874, %v4073, 0
      %4271 = vmatprep.subr.bf16.mxu0 0
      %4272 = vmatpush1.bf16.msra.mxu0 %v4266
      %4273 = vmatprep.subr.bf16.mxu0 0
      %4274 = vmatpush1.bf16.msra.mxu0 0
      %4275 = vmatprep.subr.bf16.mxu0 0
      %4276 = vmatpush1.bf16.msra.mxu0 0
      %4277 = vmatprep.subr.bf16.mxu0 0
      %4278 = vmatpush1.bf16.msra.mxu0 0
      %4279 = vmatprep.subr.bf16.mxu0 0
      %4280 = vmatpush1.bf16.msra.mxu0 0
      %4281 = vmatprep.subr.bf16.mxu0 0
      %4282 = vmatpush1.bf16.msra.mxu0 0
      %4283 = vmatprep.subr.bf16.mxu0 0
      %4284 = vmatpush1.bf16.msra.mxu0 0
      %4285 = vmatprep.subr.bf16.mxu0 0
      %4286 = vmatpush1.bf16.msra.mxu0 0
      %4287 = vmatprep.subr.bf16.mxu0 0
      %4288 = vmatpush1.bf16.msra.mxu0 0
      %4289 = vmatprep.subr.bf16.mxu0 0
      %4290 = vmatpush1.bf16.msra.mxu0 0
      %4291 = vmatprep.subr.bf16.mxu0 0
      %4292 = vmatpush1.bf16.msra.mxu0 0
      %4293 = vmatprep.subr.bf16.mxu0 0
      %4294 = vmatpush1.bf16.msra.mxu0 0
      %4295 = vmatprep.subr.bf16.mxu0 0
      %4296 = vmatpush1.bf16.msra.mxu0 0
      %4297 = vmatprep.subr.bf16.mxu0 0
      %4298 = vmatpush1.bf16.msra.mxu0 0
      %4299 = vmatprep.subr.bf16.mxu0 0
      %4300 = vmatpush1.bf16.msra.mxu0 0
      %4301 = vmatprep.subr.bf16.mxu0 0
      %4302 = vmatpush1.bf16.msra.mxu0 0
      %4303 = vmatprep.mubr.bf16.mxu0 0
      %4304 = vmatmul.mubr.bf16.gmra.mrb[0].mxu0 %v4269
      %v4305 = vpop.f32.mrb[0].mxu0
      %v4306 = vadd.f32 0.0, %v4305
      %v4307 = vpop.f32.mrb[0].mxu0
      %v4308 = vpop.f32.mrb[0].mxu0
      %v4309 = vadd.f32 0.0, %v4308
      %v4310 = vpop.f32.mrb[0].mxu0
      %4311 = vdwg.mxu0
      %4312 = vrot.lane.b32.xlu0 %v462, 40
      %v4313 = vpop.permute.xlu0 %4312
      %v4316 = vsel %vm874, %v4074, 0
      %4318 = vmatprep.subr.bf16.mxu0 0
      %4319 = vmatpush1.bf16.msra.mxu0 %v4313
      %4320 = vmatprep.subr.bf16.mxu0 0
      %4321 = vmatpush1.bf16.msra.mxu0 0
      %4322 = vmatprep.subr.bf16.mxu0 0
      %4323 = vmatpush1.bf16.msra.mxu0 0
      %4324 = vmatprep.subr.bf16.mxu0 0
      %4325 = vmatpush1.bf16.msra.mxu0 0
      %4326 = vmatprep.subr.bf16.mxu0 0
      %4327 = vmatpush1.bf16.msra.mxu0 0
      %4328 = vmatprep.subr.bf16.mxu0 0
      %4329 = vmatpush1.bf16.msra.mxu0 0
      %4330 = vmatprep.subr.bf16.mxu0 0
      %4331 = vmatpush1.bf16.msra.mxu0 0
      %4332 = vmatprep.subr.bf16.mxu0 0
      %4333 = vmatpush1.bf16.msra.mxu0 0
      %4334 = vmatprep.subr.bf16.mxu0 0
      %4335 = vmatpush1.bf16.msra.mxu0 0
      %4336 = vmatprep.subr.bf16.mxu0 0
      %4337 = vmatpush1.bf16.msra.mxu0 0
      %4338 = vmatprep.subr.bf16.mxu0 0
      %4339 = vmatpush1.bf16.msra.mxu0 0
      %4340 = vmatprep.subr.bf16.mxu0 0
      %4341 = vmatpush1.bf16.msra.mxu0 0
      %4342 = vmatprep.subr.bf16.mxu0 0
      %4343 = vmatpush1.bf16.msra.mxu0 0
      %4344 = vmatprep.subr.bf16.mxu0 0
      %4345 = vmatpush1.bf16.msra.mxu0 0
      %4346 = vmatprep.subr.bf16.mxu0 0
      %4347 = vmatpush1.bf16.msra.mxu0 0
      %4348 = vmatprep.subr.bf16.mxu0 0
      %4349 = vmatpush1.bf16.msra.mxu0 0
      %4350 = vmatprep.mubr.bf16.mxu0 0
      %4351 = vmatmul.mubr.bf16.gmra.mrb[0].mxu0 %v4316
      %v4352 = vpop.f32.mrb[0].mxu0
      %v4353 = vadd.f32 0.0, %v4352
      %v4354 = vpop.f32.mrb[0].mxu0
      %v4355 = vpop.f32.mrb[0].mxu0
      %v4356 = vadd.f32 0.0, %v4355
      %v4357 = vpop.f32.mrb[0].mxu0
      %4358 = vdwg.mxu0
      %4359 = vrot.lane.b32.xlu0 %v463, 40
      %v4360 = vpop.permute.xlu0 %4359
      %v4363 = vsel %vm874, %v4075, 0
      %4365 = vmatprep.subr.bf16.mxu0 0
      %4366 = vmatpush1.bf16.msra.mxu0 %v4360
      %4367 = vmatprep.subr.bf16.mxu0 0
      %4368 = vmatpush1.bf16.msra.mxu0 0
      %4369 = vmatprep.subr.bf16.mxu0 0
      %4370 = vmatpush1.bf16.msra.mxu0 0
      %4371 = vmatprep.subr.bf16.mxu0 0
      %4372 = vmatpush1.bf16.msra.mxu0 0
      %4373 = vmatprep.subr.bf16.mxu0 0
      %4374 = vmatpush1.bf16.msra.mxu0 0
      %4375 = vmatprep.subr.bf16.mxu0 0
      %4376 = vmatpush1.bf16.msra.mxu0 0
      %4377 = vmatprep.subr.bf16.mxu0 0
      %4378 = vmatpush1.bf16.msra.mxu0 0
      %4379 = vmatprep.subr.bf16.mxu0 0
      %4380 = vmatpush1.bf16.msra.mxu0 0
      %4381 = vmatprep.subr.bf16.mxu0 0
      %4382 = vmatpush1.bf16.msra.mxu0 0
      %4383 = vmatprep.subr.bf16.mxu0 0
      %4384 = vmatpush1.bf16.msra.mxu0 0
      %4385 = vmatprep.subr.bf16.mxu0 0
      %4386 = vmatpush1.bf16.msra.mxu0 0
      %4387 = vmatprep.subr.bf16.mxu0 0
      %4388 = vmatpush1.bf16.msra.mxu0 0
      %4389 = vmatprep.subr.bf16.mxu0 0
      %4390 = vmatpush1.bf16.msra.mxu0 0
      %4391 = vmatprep.subr.bf16.mxu0 0
      %4392 = vmatpush1.bf16.msra.mxu0 0
      %4393 = vmatprep.subr.bf16.mxu0 0
      %4394 = vmatpush1.bf16.msra.mxu0 0
      %4395 = vmatprep.subr.bf16.mxu0 0
      %4396 = vmatpush1.bf16.msra.mxu0 0
      %4397 = vmatprep.mubr.bf16.mxu0 0
      %4398 = vmatmul.mubr.bf16.gmra.mrb[0].mxu0 %v4363
      %v4399 = vpop.f32.mrb[0].mxu0
      %v4400 = vadd.f32 0.0, %v4399
      %v4401 = vpop.f32.mrb[0].mxu0
      %v4402 = vpop.f32.mrb[0].mxu0
      %v4403 = vadd.f32 0.0, %v4402
      %v4404 = vpop.f32.mrb[0].mxu0
      %4405 = vdwg.mxu0
      %4406 = vrot.lane.b32.xlu0 %v464, 40
      %v4407 = vpop.permute.xlu0 %4406
      %v4410 = vsel %vm874, %v4076, 0
      %4412 = vmatprep.subr.bf16.mxu0 0
      %4413 = vmatpush1.bf16.msra.mxu0 %v4407
      %4414 = vmatprep.subr.bf16.mxu0 0
      %4415 = vmatpush1.bf16.msra.mxu0 0
      %4416 = vmatprep.subr.bf16.mxu0 0
      %4417 = vmatpush1.bf16.msra.mxu0 0
      %4418 = vmatprep.subr.bf16.mxu0 0
      %4419 = vmatpush1.bf16.msra.mxu0 0
      %4420 = vmatprep.subr.bf16.mxu0 0
      %4421 = vmatpush1.bf16.msra.mxu0 0
      %4422 = vmatprep.subr.bf16.mxu0 0
      %4423 = vmatpush1.bf16.msra.mxu0 0
      %4424 = vmatprep.subr.bf16.mxu0 0
      %4425 = vmatpush1.bf16.msra.mxu0 0
      %4426 = vmatprep.subr.bf16.mxu0 0
      %4427 = vmatpush1.bf16.msra.mxu0 0
      %4428 = vmatprep.subr.bf16.mxu0 0
      %4429 = vmatpush1.bf16.msra.mxu0 0
      %4430 = vmatprep.subr.bf16.mxu0 0
      %4431 = vmatpush1.bf16.msra.mxu0 0
      %4432 = vmatprep.subr.bf16.mxu0 0
      %4433 = vmatpush1.bf16.msra.mxu0 0
      %4434 = vmatprep.subr.bf16.mxu0 0
      %4435 = vmatpush1.bf16.msra.mxu0 0
      %4436 = vmatprep.subr.bf16.mxu0 0
      %4437 = vmatpush1.bf16.msra.mxu0 0
      %4438 = vmatprep.subr.bf16.mxu0 0
      %4439 = vmatpush1.bf16.msra.mxu0 0
      %4440 = vmatprep.subr.bf16.mxu0 0
      %4441 = vmatpush1.bf16.msra.mxu0 0
      %4442 = vmatprep.subr.bf16.mxu0 0
      %4443 = vmatpush1.bf16.msra.mxu0 0
      %4444 = vmatprep.mubr.bf16.mxu0 0
      %4445 = vmatmul.mubr.bf16.gmra.mrb[0].mxu0 %v4410
      %v4446 = vpop.f32.mrb[0].mxu0
      %v4447 = vadd.f32 0.0, %v4446
      %v4448 = vpop.f32.mrb[0].mxu0
      %v4449 = vpop.f32.mrb[0].mxu0
      %v4450 = vadd.f32 0.0, %v4449
      %v4451 = vpop.f32.mrb[0].mxu0
      %4452 = vdwg.mxu0
      %v4453 = vpack.c.bf16 %v4121, %v4118
      %v4454 = vpack.c.bf16 %v4168, %v4165
      %v4455 = vpack.c.bf16 %v4215, %v4212
      %v4456 = vpack.c.bf16 %v4262, %v4259
      %v4457 = vpack.c.bf16 %v4309, %v4306
      %v4458 = vpack.c.bf16 %v4356, %v4353
      %v4459 = vpack.c.bf16 %v4403, %v4400
      %v4460 = vpack.c.bf16 %v4450, %v4447
      %4469 = vrot.lane.b32.xlu0 %v4453, 24
      %v4470 = vpop.permute.xlu0 %4469
      %4471 = vrot.lane.b32.xlu0 %v4454, 24
      %v4472 = vpop.permute.xlu0 %4471
      %4473 = vrot.lane.b32.xlu0 %v4455, 24
      %v4474 = vpop.permute.xlu0 %4473
      %4475 = vrot.lane.b32.xlu0 %v4456, 24
      %v4476 = vpop.permute.xlu0 %4475
      %4477 = vrot.lane.b32.xlu0 %v4457, 24
      %v4478 = vpop.permute.xlu0 %4477
      %4479 = vrot.lane.b32.xlu0 %v4458, 24
      %v4480 = vpop.permute.xlu0 %4479
      %4481 = vrot.lane.b32.xlu0 %v4459, 24
      %v4482 = vpop.permute.xlu0 %4481
      %4483 = vrot.lane.b32.xlu0 %v4460, 24
      %v4484 = vpop.permute.xlu0 %4483
      %vm4493 = vcmask 261312
      %4494 = vst.msk [vmem:[#allocation2] sm:$0xff] %vm4493, %v4470
      %4495 = vst.msk [vmem:[#allocation2 + $0x8] sm:$0xff] %vm4493, %v4472
      %4496 = vst.msk [vmem:[#allocation2 + $0x10] sm:$0xff] %vm4493, %v4474
      %4497 = vst.msk [vmem:[#allocation2 + $0x18] sm:$0xff] %vm4493, %v4476
      %4498 = vst.msk [vmem:[#allocation2 + $0x20] sm:$0xff] %vm4493, %v4478
      %4499 = vst.msk [vmem:[#allocation2 + $0x28] sm:$0xff] %vm4493, %v4480
      %4500 = vst.msk [vmem:[#allocation2 + $0x30] sm:$0xff] %vm4493, %v4482
      %4501 = vst.msk [vmem:[#allocation2 + $0x38] sm:$0xff] %vm4493, %v4484
      %v4502 = vld [vmem:[#allocation2] sm:$0xff]
      %v4503 = vld [vmem:[#allocation2 + $0x8] sm:$0xff]
      %v4504 = vld [vmem:[#allocation2 + $0x10] sm:$0xff]
      %v4505 = vld [vmem:[#allocation2 + $0x18] sm:$0xff]
      %v4506 = vld [vmem:[#allocation2 + $0x20] sm:$0xff]
      %v4507 = vld [vmem:[#allocation2 + $0x28] sm:$0xff]
      %v4508 = vld [vmem:[#allocation2 + $0x30] sm:$0xff]
      %v4509 = vld [vmem:[#allocation2 + $0x38] sm:$0xff]
      %v4510 = vld [vmem:[%s4] sm:$0xf]
      %v4511 = vld [vmem:[%s4 + $0x4] sm:$0xf]
      %v4512 = vld [vmem:[%s4 + $0x8] sm:$0xf]
      %v4513 = vld [vmem:[%s4 + $0xc] sm:$0xf]
      %v4514 = vld [vmem:[%s5] sm:$0x1]
      %v4516 = vlaneseq
      %v4517 = vshrl.u32 %v4516, 7
      %v4518 = vsub.s32 0, %v4517
      %v4519 = vrot.slane %v4514, %v4518
      %v4525 = vunpack.c.l.b16 %v4510
      %v4526 = vunpack.c.l.b16 %v4511
      %v4527 = vunpack.c.l.b16 %v4512
      %v4528 = vunpack.c.l.b16 %v4513
      %v4529 = vpack.c.b16 %v4526, %v4525
      %v4530 = vpack.c.b16 %v4528, %v4527
      %v4534 = vsel %vm335, %v4502, 0
      %v4537 = vsel %vm335, %v4503, 0
      %v4540 = vsel %vm335, %v4504, 0
      %v4543 = vsel %vm335, %v4505, 0
      %v4546 = vsel %vm335, %v4506, 0
      %v4549 = vsel %vm335, %v4507, 0
      %v4552 = vsel %vm335, %v4508, 0
      %v4555 = vsel %vm335, %v4509, 0
      %4557 = vmatprep.subr.bf16.mxu0 0
      %4558 = vmatpush1.bf16.msra.mxu0 %v4529
      %4559 = vmatprep.subr.bf16.mxu0 0
      %4560 = vmatpush1.bf16.msra.mxu0 %v4530
      %4561 = vmatprep.subr.bf16.mxu0 0
      %4562 = vmatpush1.bf16.msra.mxu0 0
      %4563 = vmatprep.subr.bf16.mxu0 0
      %4564 = vmatpush1.bf16.msra.mxu0 0
      %4565 = vmatprep.subr.bf16.mxu0 0
      %4566 = vmatpush1.bf16.msra.mxu0 0
      %4567 = vmatprep.subr.bf16.mxu0 0
      %4568 = vmatpush1.bf16.msra.mxu0 0
      %4569 = vmatprep.subr.bf16.mxu0 0
      %4570 = vmatpush1.bf16.msra.mxu0 0
      %4571 = vmatprep.subr.bf16.mxu0 0
      %4572 = vmatpush1.bf16.msra.mxu0 0
      %4573 = vmatprep.subr.bf16.mxu0 0
      %4574 = vmatpush1.bf16.msra.mxu0 0
      %4575 = vmatprep.subr.bf16.mxu0 0
      %4576 = vmatpush1.bf16.msra.mxu0 0
      %4577 = vmatprep.subr.bf16.mxu0 0
      %4578 = vmatpush1.bf16.msra.mxu0 0
      %4579 = vmatprep.subr.bf16.mxu0 0
      %4580 = vmatpush1.bf16.msra.mxu0 0
      %4581 = vmatprep.subr.bf16.mxu0 0
      %4582 = vmatpush1.bf16.msra.mxu0 0
      %4583 = vmatprep.subr.bf16.mxu0 0
      %4584 = vmatpush1.bf16.msra.mxu0 0
      %4585 = vmatprep.subr.bf16.mxu0 0
      %4586 = vmatpush1.bf16.msra.mxu0 0
      %4587 = vmatprep.subr.bf16.mxu0 0
      %4588 = vmatpush1.bf16.msra.mxu0 0
      %4589 = vmatprep.mubr.bf16.mxu0 0
      %4590 = vmatmul.mubr.bf16.gmra.mrb[0].mxu0 %v4534
      %v4591 = vpop.f32.mrb[0].mxu0
      %v4592 = vadd.f32 %v4519, %v4591
      %v4593 = vpop.f32.mrb[0].mxu0
      %v4594 = vpop.f32.mrb[0].mxu0
      %v4595 = vadd.f32 %v4519, %v4594
      %v4596 = vpop.f32.mrb[0].mxu0
      %4597 = vmatprep.mubr.bf16.mxu0 0
      %4598 = vmatmul.mubr.bf16.gmra.mrb[0].mxu0 %v4537
      %v4599 = vpop.f32.mrb[0].mxu0
      %v4600 = vadd.f32 %v4519, %v4599
      %v4601 = vpop.f32.mrb[0].mxu0
      %v4602 = vpop.f32.mrb[0].mxu0
      %v4603 = vadd.f32 %v4519, %v4602
      %v4604 = vpop.f32.mrb[0].mxu0
      %4605 = vmatprep.mubr.bf16.mxu0 0
      %4606 = vmatmul.mubr.bf16.gmra.mrb[0].mxu0 %v4540
      %v4607 = vpop.f32.mrb[0].mxu0
      %v4608 = vadd.f32 %v4519, %v4607
      %v4609 = vpop.f32.mrb[0].mxu0
      %v4610 = vpop.f32.mrb[0].mxu0
      %v4611 = vadd.f32 %v4519, %v4610
      %v4612 = vpop.f32.mrb[0].mxu0
      %4613 = vmatprep.mubr.bf16.mxu0 0
      %4614 = vmatmul.mubr.bf16.gmra.mrb[0].mxu0 %v4543
      %v4615 = vpop.f32.mrb[0].mxu0
      %v4616 = vadd.f32 %v4519, %v4615
      %v4617 = vpop.f32.mrb[0].mxu0
      %v4618 = vpop.f32.mrb[0].mxu0
      %v4619 = vadd.f32 %v4519, %v4618
      %v4620 = vpop.f32.mrb[0].mxu0
      %4621 = vmatprep.mubr.bf16.mxu0 0
      %4622 = vmatmul.mubr.bf16.gmra.mrb[0].mxu0 %v4546
      %v4623 = vpop.f32.mrb[0].mxu0
      %v4624 = vadd.f32 %v4519, %v4623
      %v4625 = vpop.f32.mrb[0].mxu0
      %v4626 = vpop.f32.mrb[0].mxu0
      %v4627 = vadd.f32 %v4519, %v4626
      %v4628 = vpop.f32.mrb[0].mxu0
      %4629 = vmatprep.mubr.bf16.mxu0 0
      %4630 = vmatmul.mubr.bf16.gmra.mrb[0].mxu0 %v4549
      %v4631 = vpop.f32.mrb[0].mxu0
      %v4632 = vadd.f32 %v4519, %v4631
      %v4633 = vpop.f32.mrb[0].mxu0
      %v4634 = vpop.f32.mrb[0].mxu0
      %v4635 = vadd.f32 %v4519, %v4634
      %v4636 = vpop.f32.mrb[0].mxu0
      %4637 = vmatprep.mubr.bf16.mxu0 0
      %4638 = vmatmul.mubr.bf16.gmra.mrb[0].mxu0 %v4552
      %v4639 = vpop.f32.mrb[0].mxu0
      %v4640 = vadd.f32 %v4519, %v4639
      %v4641 = vpop.f32.mrb[0].mxu0
      %v4642 = vpop.f32.mrb[0].mxu0
      %v4643 = vadd.f32 %v4519, %v4642
      %v4644 = vpop.f32.mrb[0].mxu0
      %4645 = vmatprep.mubr.bf16.mxu0 0
      %4646 = vmatmul.mubr.bf16.gmra.mrb[0].mxu0 %v4555
      %v4647 = vpop.f32.mrb[0].mxu0
      %v4648 = vadd.f32 %v4519, %v4647
      %v4649 = vpop.f32.mrb[0].mxu0
      %v4650 = vpop.f32.mrb[0].mxu0
      %v4651 = vadd.f32 %v4519, %v4650
      %v4652 = vpop.f32.mrb[0].mxu0
      %4653 = vdwg.mxu0
      %4654 = vst.msk [vmem:[%s253] sm:$0xff] %vm335, %v4592
      %4655 = vst.msk [vmem:[%s253 + $0x8] sm:$0xff] %vm335, %v4595
      %4656 = vst.msk [vmem:[%s253 + $0x10] sm:$0xff] %vm335, %v4600
      %4657 = vst.msk [vmem:[%s253 + $0x18] sm:$0xff] %vm335, %v4603
      %4658 = vst.msk [vmem:[%s253 + $0x20] sm:$0xff] %vm335, %v4608
      %4659 = vst.msk [vmem:[%s253 + $0x28] sm:$0xff] %vm335, %v4611
      %4660 = vst.msk [vmem:[%s253 + $0x30] sm:$0xff] %vm335, %v4616
      %4661 = vst.msk [vmem:[%s253 + $0x38] sm:$0xff] %vm335, %v4619
      %4662 = vst.msk [vmem:[%s253 + $0x40] sm:$0xff] %vm335, %v4624
      %4663 = vst.msk [vmem:[%s253 + $0x48] sm:$0xff] %vm335, %v4627
      %4664 = vst.msk [vmem:[%s253 + $0x50] sm:$0xff] %vm335, %v4632
      %4665 = vst.msk [vmem:[%s253 + $0x58] sm:$0xff] %vm335, %v4635
      %4666 = vst.msk [vmem:[%s253 + $0x60] sm:$0xff] %vm335, %v4640
      %4667 = vst.msk [vmem:[%s253 + $0x68] sm:$0xff] %vm335, %v4643
      %4668 = vst.msk [vmem:[%s253 + $0x70] sm:$0xff] %vm335, %v4648
      %4669 = vst.msk [vmem:[%s253 + $0x78] sm:$0xff] %vm335, %v4651
      %s4670 = smul.u32 16, %s17
      %p4671 = scmp.lt.s32.totalorder %s4670, 31
      %s4672 = scalar_select %p4671, %s4670, 31
      %s4673 = smul.addr %s4672, 8
      %s4674 = scalar_lea.vmem %s6, %s4673
      // Predicated region
      $region45: #{tpu_custom_call.1} parent=43 // pred_check
        %p4675 = pneg %p166
      $region46: #{tpu_custom_call.1} parent=43 // pred_check_branch
        %4677 = sbr.rel (%p4675) target = $region48
      $region47: #{tpu_custom_call.1} parent=43 // pred_region
        %s4678 = smul.u32 16, %s17
      $region48: #{tpu_custom_call.1} parent=43 // pred_fallthru
        _
    $region44: #{tpu_custom_call.1} parent=5 // pred_fallthru
      _
    %p4679 = scmp.le.s32.totalorder 2, %s12
    // Predicated region
    $region49: #{tpu_custom_call.1} parent=5 // pred_check
      %p4680 = pneg %p4679
    $region50: #{tpu_custom_call.1} parent=5 // pred_check_branch
      %4682 = sbr.rel (%p4680) target = $region52
    $region51: #{tpu_custom_call.1} parent=5 // pred_region
      %s4683 = ssub.s32 %s12, 2
      // Predicated region
      $region53: #{tpu_custom_call.1} parent=51 // pred_check
        %p4684 = pneg %p172
      $region54: #{tpu_custom_call.1} parent=51 // pred_check_branch
        %4686 = sbr.rel (%p4684) target = $region56
      $region55: #{tpu_custom_call.1} parent=51 // pred_region
        %s4687 = smul.u32 16, %s18
        %p4688 = scmp.lt.s32.totalorder %s4687, 31
        %s4689 = scalar_select %p4688, %s4687, 31
        %s4690 = smul.addr %s4689, 8
        %s4691 = scalar_lea.vmem %s6, %s4690
      $region56: #{tpu_custom_call.1} parent=51 // pred_fallthru
        _
    $region52: #{tpu_custom_call.1} parent=5 // pred_fallthru
      _
  $region6: #{tpu_custom_call.1} parent=0 // loop_footer
    %s16 = sadd.s32 1, %s12
  $region7: #{tpu_custom_call.1} parent=0 // loop_footer_branch
    %11 = sbr.rel target = $region3
  $region8: #{tpu_custom_call.1} parent=0 // loop_exit
    _

// kernel: tpu_custom_call.1
$region0: #{tpu_custom_call.1}
  #allocation0 [shape = 'u32[]', space=smem, size = 0x4, offset = 0x4, fixed_abs, tag = 'smem constant byte address 0x4 - core index']
  #allocation1 [shape = 'u32[144,128]{1,0:T(1,128)}', space=vmem, size = 0x12000, scoped, tag = 'internal scratch']
  #allocation2 [shape = 'bf16[128,32]{1,0:T(16,128)(2,1)}', space=vmem, size = 0x8000, scoped, tag = 'scratch operand']
  %s0 = inlined_call_operand.vmem [shape: bf16[256,32], index: 0, kind: input, shape index: {}]
  %s1 = inlined_call_operand.vmem [shape: bf16[32,96], index: 1, kind: input, shape index: {}]
  %s2 = inlined_call_operand.vmem [shape: f32[1,96], index: 2, kind: input, shape index: {}]
  %s3 = inlined_call_operand.vmem [shape: f32[4,16,16], index: 3, kind: input, shape index: {}]
  %s4 = inlined_call_operand.vmem [shape: bf16[32,32], index: 4, kind: input, shape index: {}]
  %s5 = inlined_call_operand.vmem [shape: f32[1,32], index: 5, kind: input, shape index: {}]
  %s6 = inlined_call_operand.vmem [shape: f32[256,32], index: 6, kind: output, shape index: {}]
  %s7 = sld [smem:[#allocation0]]
  $region57: #{tpu_custom_call.1} parent=0
    _
  %s9 = ssub.s32 1, %s7
  %s10 = scalar_select 0, %s9, %s7
  loop: start=0, step=1, limit=4
  $region2: #{tpu_custom_call.1} parent=0 // loop_pre_header
    _
  $region3: #{tpu_custom_call.1} parent=0 // loop_header
    %s12 = sphi 0, %s16
    %p13 = scmp.ge.s32.totalorder %s12, 4
    %s22 = sphi 0, %s24
    %s25 = sphi 0, %s22
    %s26 = sphi 0, %s25
    %s42 = sphi 0, %s26
    %s46 = sphi 0, %s46
    %s48 = sphi 0, %s46
    %s49 = sphi 0, %s48
    %s63 = sphi 0, %s49
    %s67 = sphi 0, %s67
    %s69 = sphi 0, %s67
    %s70 = sphi 0, %s69
    %s84 = sphi 0, %s70
    %s88 = sphi 0, %s88
    %s90 = sphi 0, %s88
    %s91 = sphi 0, %s90
    %s105 = sphi 0, %s91
    %s109 = sphi 0, %s109
    %s111 = sphi 0, %s109
    %s112 = sphi 0, %s111
    %s126 = sphi 0, %s112
    %s130 = sphi 0, %s130
    %s132 = sphi 0, %s130
    %s133 = sphi 0, %s132
    %s147 = sphi 0, %s133
    %s153 = sphi 0, %s155
    %s156 = sphi 0, %s153
    %s157 = sphi 0, %s156
    %s173 = sphi 0, %s157
  $region4: #{tpu_custom_call.1} parent=0 // loop_header_branch
    %15 = sbr.rel (%p13) target = $region8
  $region5: #{tpu_custom_call.1} parent=0 // loop_body
    %s17 = ssub.s32 %s12, 1
    %s18 = ssub.s32 %s12, 2
    %s19 = sadd.s32 %s12, 1
    %s20 = ssub.s32 %s12, %s19
    %p21 = scmp.eq.s32.totalorder %s20, 0
    %s23 = sadd.s32 %s22, 1
    %s24 = scalar_select %p21, %s22, %s23
    %p27 = pneg %p21
    %p28 = scmp.eq.s32.totalorder %s12, 1
    %p29 = por %p27, %p28
    %p30 = scmp.ne.s32.totalorder %s22, %s25
    %p31 = scmp.eq.s32.totalorder %s12, 0
    %p32 = por %p30, %p31
    %p33 = scmp.ne.s32.totalorder %s22, %s25
    %p34 = scmp.eq.s32.totalorder %s17, 1
    %p35 = por %p33, %p34
    %p36 = scmp.ne.s32.totalorder %s25, %s26
    %p37 = scmp.eq.s32.totalorder %s17, 0
    %p38 = por %p36, %p37
    %p39 = scmp.ne.s32.totalorder %s25, %s26
    %p40 = scmp.eq.s32.totalorder %s18, 1
    %p41 = por %p39, %p40
    %p43 = scmp.ne.s32.totalorder %s26, %s42
    %p44 = scmp.eq.s32.totalorder %s18, 0
    %p45 = por %p43, %p44
    %s47 = sadd.s32 %s46, 1
    %p50 = scmp.eq.s32.totalorder %s12, 1
    %p51 = scmp.ne.s32.totalorder %s46, %s48
    %p52 = scmp.eq.s32.totalorder %s12, 0
    %p53 = por %p51, %p52
    %p54 = scmp.ne.s32.totalorder %s46, %s48
    %p55 = scmp.eq.s32.totalorder %s17, 1
    %p56 = por %p54, %p55
    %p57 = scmp.ne.s32.totalorder %s48, %s49
    %p58 = scmp.eq.s32.totalorder %s17, 0
    %p59 = por %p57, %p58
    %p60 = scmp.ne.s32.totalorder %s48, %s49
    %p61 = scmp.eq.s32.totalorder %s18, 1
    %p62 = por %p60, %p61
    %p64 = scmp.ne.s32.totalorder %s49, %s63
    %p65 = scmp.eq.s32.totalorder %s18, 0
    %p66 = por %p64, %p65
    %s68 = sadd.s32 %s67, 1
    %p71 = scmp.eq.s32.totalorder %s12, 1
    %p72 = scmp.ne.s32.totalorder %s67, %s69
    %p73 = scmp.eq.s32.totalorder %s12, 0
    %p74 = por %p72, %p73
    %p75 = scmp.ne.s32.totalorder %s67, %s69
    %p76 = scmp.eq.s32.totalorder %s17, 1
    %p77 = por %p75, %p76
    %p78 = scmp.ne.s32.totalorder %s69, %s70
    %p79 = scmp.eq.s32.totalorder %s17, 0
    %p80 = por %p78, %p79
    %p81 = scmp.ne.s32.totalorder %s69, %s70
    %p82 = scmp.eq.s32.totalorder %s18, 1
    %p83 = por %p81, %p82
    %p85 = scmp.ne.s32.totalorder %s70, %s84
    %p86 = scmp.eq.s32.totalorder %s18, 0
    %p87 = por %p85, %p86
    %s89 = sadd.s32 %s88, 1
    %p92 = scmp.eq.s32.totalorder %s12, 1
    %p93 = scmp.ne.s32.totalorder %s88, %s90
    %p94 = scmp.eq.s32.totalorder %s12, 0
    %p95 = por %p93, %p94
    %p96 = scmp.ne.s32.totalorder %s88, %s90
    %p97 = scmp.eq.s32.totalorder %s17, 1
    %p98 = por %p96, %p97
    %p99 = scmp.ne.s32.totalorder %s90, %s91
    %p100 = scmp.eq.s32.totalorder %s17, 0
    %p101 = por %p99, %p100
    %p102 = scmp.ne.s32.totalorder %s90, %s91
    %p103 = scmp.eq.s32.totalorder %s18, 1
    %p104 = por %p102, %p103
    %p106 = scmp.ne.s32.totalorder %s91, %s105
    %p107 = scmp.eq.s32.totalorder %s18, 0
    %p108 = por %p106, %p107
    %s110 = sadd.s32 %s109, 1
    %p113 = scmp.eq.s32.totalorder %s12, 1
    %p114 = scmp.ne.s32.totalorder %s109, %s111
    %p115 = scmp.eq.s32.totalorder %s12, 0
    %p116 = por %p114, %p115
    %p117 = scmp.ne.s32.totalorder %s109, %s111
    %p118 = scmp.eq.s32.totalorder %s17, 1
    %p119 = por %p117, %p118
    %p120 = scmp.ne.s32.totalorder %s111, %s112
    %p121 = scmp.eq.s32.totalorder %s17, 0
    %p122 = por %p120, %p121
    %p123 = scmp.ne.s32.totalorder %s111, %s112
    %p124 = scmp.eq.s32.totalorder %s18, 1
    %p125 = por %p123, %p124
    %p127 = scmp.ne.s32.totalorder %s112, %s126
    %p128 = scmp.eq.s32.totalorder %s18, 0
    %p129 = por %p127, %p128
    %s131 = sadd.s32 %s130, 1
    %p134 = scmp.eq.s32.totalorder %s12, 1
    %p135 = scmp.ne.s32.totalorder %s130, %s132
    %p136 = scmp.eq.s32.totalorder %s12, 0
    %p137 = por %p135, %p136
    %p138 = scmp.ne.s32.totalorder %s130, %s132
    %p139 = scmp.eq.s32.totalorder %s17, 1
    %p140 = por %p138, %p139
    %p141 = scmp.ne.s32.totalorder %s132, %s133
    %p142 = scmp.eq.s32.totalorder %s17, 0
    %p143 = por %p141, %p142
    %p144 = scmp.ne.s32.totalorder %s132, %s133
    %p145 = scmp.eq.s32.totalorder %s18, 1
    %p146 = por %p144, %p145
    %p148 = scmp.ne.s32.totalorder %s133, %s147
    %p149 = scmp.eq.s32.totalorder %s18, 0
    %p150 = por %p148, %p149
    %s151 = ssub.s32 %s12, %s19
    %p152 = scmp.eq.s32.totalorder %s151, 0
    %s154 = sadd.s32 %s153, 1
    %s155 = scalar_select %p152, %s153, %s154
    %p158 = pneg %p152
    %p159 = scmp.eq.s32.totalorder %s12, 1
    %p160 = por %p158, %p159
    %p161 = scmp.ne.s32.totalorder %s153, %s156
    %p162 = scmp.eq.s32.totalorder %s12, 0
    %p163 = por %p161, %p162
    %p164 = scmp.ne.s32.totalorder %s153, %s156
    %p165 = scmp.eq.s32.totalorder %s17, 1
    %p166 = por %p164, %p165
    %p167 = scmp.ne.s32.totalorder %s156, %s157
    %p168 = scmp.eq.s32.totalorder %s17, 0
    %p169 = por %p167, %p168
    %p170 = scmp.ne.s32.totalorder %s156, %s157
    %p171 = scmp.eq.s32.totalorder %s18, 1
    %p172 = por %p170, %p171
    %p174 = scmp.ne.s32.totalorder %s157, %s173
    %p175 = scmp.eq.s32.totalorder %s18, 0
    %p176 = por %p174, %p175
    %p177 = scmp.le.s32.totalorder 1, %s12
    %p178 = scmp.lt.s32.totalorder %s12, 3
    %p179 = pnand %p177, %p178
    %p180 = pneg %p179
    // Predicated region
    $region9: #{tpu_custom_call.1} parent=5 // pred_check
      _
    $region10: #{tpu_custom_call.1} parent=5 // pred_check_branch
      %182 = sbr.rel (%p179) target = $region12
    $region11: #{tpu_custom_call.1} parent=5 // pred_region
      %s183 = ssub.s32 %s12, 1
      // Predicated region
      $region13: #{tpu_custom_call.1} parent=11 // pred_check
        %p184 = pneg %p59
      $region14: #{tpu_custom_call.1} parent=11 // pred_check_branch
        %186 = sbr.rel (%p184) target = $region16
      $region15: #{tpu_custom_call.1} parent=11 // pred_region
        _
      $region16: #{tpu_custom_call.1} parent=11 // pred_fallthru
        _
      // Predicated region
      $region17: #{tpu_custom_call.1} parent=11 // pred_check
        %p187 = pneg %p80
      $region18: #{tpu_custom_call.1} parent=11 // pred_check_branch
        %189 = sbr.rel (%p187) target = $region20
      $region19: #{tpu_custom_call.1} parent=11 // pred_region
        _
      $region20: #{tpu_custom_call.1} parent=11 // pred_fallthru
        _
      // Predicated region
      $region21: #{tpu_custom_call.1} parent=11 // pred_check
        %p190 = pneg %p101
      $region22: #{tpu_custom_call.1} parent=11 // pred_check_branch
        %192 = sbr.rel (%p190) target = $region24
      $region23: #{tpu_custom_call.1} parent=11 // pred_region
        _
      $region24: #{tpu_custom_call.1} parent=11 // pred_fallthru
        _
      // Predicated region
      $region25: #{tpu_custom_call.1} parent=11 // pred_check
        %p193 = pneg %p122
      $region26: #{tpu_custom_call.1} parent=11 // pred_check_branch
        %195 = sbr.rel (%p193) target = $region28
      $region27: #{tpu_custom_call.1} parent=11 // pred_region
        _
      $region28: #{tpu_custom_call.1} parent=11 // pred_fallthru
        _
      // Predicated region
      $region29: #{tpu_custom_call.1} parent=11 // pred_check
        %p196 = pneg %p143
      $region30: #{tpu_custom_call.1} parent=11 // pred_check_branch
        %198 = sbr.rel (%p196) target = $region32
      $region31: #{tpu_custom_call.1} parent=11 // pred_region
        _
      $region32: #{tpu_custom_call.1} parent=11 // pred_fallthru
        _
    $region12: #{tpu_custom_call.1} parent=5 // pred_fallthru
      _
    %p199 = scmp.lt.s32.totalorder %s12, 2
    // Predicated region
    $region33: #{tpu_custom_call.1} parent=5 // pred_check
      %p200 = pneg %p199
    $region34: #{tpu_custom_call.1} parent=5 // pred_check_branch
      %202 = sbr.rel (%p200) target = $region36
    $region35: #{tpu_custom_call.1} parent=5 // pred_region
      // Predicated region
      $region37: #{tpu_custom_call.1} parent=35 // pred_check
        %p203 = pneg %p32
      $region38: #{tpu_custom_call.1} parent=35 // pred_check_branch
        %205 = sbr.rel (%p203) target = $region40
      $region39: #{tpu_custom_call.1} parent=35 // pred_region
        %s206 = smul.u32 16, %s12
        %p207 = scmp.lt.s32.totalorder %s206, 31
        %s208 = scalar_select %p207, %s206, 31
        %s209 = smul.addr %s208, 4
        %s210 = scalar_lea.vmem %s0, %s209
        %s211 = smul.u32 16, %s12
      $region40: #{tpu_custom_call.1} parent=35 // pred_fallthru
        _
    $region36: #{tpu_custom_call.1} parent=5 // pred_fallthru
      _
    %p212 = scmp.le.s32.totalorder 1, %s12
    %p213 = scmp.lt.s32.totalorder %s12, 3
    %p214 = pnand %p212, %p213
    %p215 = pneg %p214
    // Predicated region
    $region41: #{tpu_custom_call.1} parent=5 // pred_check
      _
    $region42: #{tpu_custom_call.1} parent=5 // pred_check_branch
      %217 = sbr.rel (%p214) target = $region44
    $region43: #{tpu_custom_call.1} parent=5 // pred_region
      %s218 = ssub.s32 %s12, 1
      %s219 = smul.u32 16, %s17
      %p220 = scmp.lt.s32.totalorder %s219, 31
      %s221 = scalar_select %p220, %s219, 31
      %s222 = smul.addr %s221, 4
      %s223 = scalar_lea.vmem %s0, %s222
      %p224 = pneg %p38
      %p225 = pneg %p35
      %p226 = pneg %p59
      %p227 = pneg %p56
      %p228 = pneg %p80
      %p229 = pneg %p77
      %p230 = pneg %p101
      %p231 = pneg %p98
      %p232 = pneg %p122
      %p233 = pneg %p119
      %p234 = pneg %p143
      %p235 = pneg %p140
      %p236 = pneg %p169
      %p237 = pneg %p166
      %s238 = smul.u32 16, %s17
      %p239 = scmp.lt.s32.totalorder %s238, 31
      %s240 = scalar_select %p239, %s238, 31
      %s241 = smul.addr %s240, 8
      %s242 = scalar_lea.vmem %s6, %s241
      %s243 = smul.u32 16, %s17
      %p244 = scmp.lt.s32.totalorder %s243, 31
      %s245 = scalar_select %p244, %s243, 31
      %s246 = smul.addr %s245, 4
      %s247 = scalar_lea.vmem %s0, %s246
      %s248 = smul.u32 16, %s17
      %s249 = smul.u32 16, %s17
      %p250 = scmp.lt.s32.totalorder %s249, 31
      %s251 = scalar_select %p250, %s249, 31
      %s252 = smul.addr %s251, 8
      %s253 = scalar_lea.vmem %s6, %s252
      %s254 = smul.u32 16, %s17
      %v256 = vld [vmem:[%s247] sm:$0xf]
      %v257 = vld [vmem:[%s247 + $0x4] sm:$0xf]
      %v258 = vld [vmem:[%s247 + $0x8] sm:$0xf]
      %v259 = vld [vmem:[%s247 + $0xc] sm:$0xf]
      %v260 = vld [vmem:[%s247 + $0x10] sm:$0xf]
      %v261 = vld [vmem:[%s247 + $0x14] sm:$0xf]
      %v262 = vld [vmem:[%s247 + $0x18] sm:$0xf]
      %v263 = vld [vmem:[%s247 + $0x1c] sm:$0xf]
      %v264 = vld [vmem:[%s247 + $0x20] sm:$0xf]
      %v265 = vld [vmem:[%s247 + $0x24] sm:$0xf]
      %v266 = vld [vmem:[%s247 + $0x28] sm:$0xf]
      %v267 = vld [vmem:[%s247 + $0x2c] sm:$0xf]
      %v268 = vld [vmem:[%s247 + $0x30] sm:$0xf]
      %v269 = vld [vmem:[%s247 + $0x34] sm:$0xf]
      %v270 = vld [vmem:[%s247 + $0x38] sm:$0xf]
      %v271 = vld [vmem:[%s247 + $0x3c] sm:$0xf]
      %v272 = vld [vmem:[%s1] sm:$0xf]
      %v273 = vld [vmem:[%s1 + $0x4] sm:$0xf]
      %v274 = vld [vmem:[%s1 + $0x8] sm:$0xf]
      %v275 = vld [vmem:[%s1 + $0xc] sm:$0xf]
      %v276 = vld [vmem:[%s2] sm:$0x1]
      %v278 = vlaneseq
      %v279 = vshrl.u32 %v278, 7
      %v280 = vsub.s32 0, %v279
      %v281 = vrot.slane %v276, %v280
      %v299 = vunpack.c.l.b16 %v256
      %v300 = vunpack.c.l.b16 %v257
      %v301 = vunpack.c.l.b16 %v258
      %v302 = vunpack.c.l.b16 %v259
      %v303 = vunpack.c.l.b16 %v260
      %v304 = vunpack.c.l.b16 %v261
      %v305 = vunpack.c.l.b16 %v262
      %v306 = vunpack.c.l.b16 %v263
      %v307 = vunpack.c.l.b16 %v264
      %v308 = vunpack.c.l.b16 %v265
      %v309 = vunpack.c.l.b16 %v266
      %v310 = vunpack.c.l.b16 %v267
      %v311 = vunpack.c.l.b16 %v268
      %v312 = vunpack.c.l.b16 %v269
      %v313 = vunpack.c.l.b16 %v270
      %v314 = vunpack.c.l.b16 %v271
      %v315 = vpack.c.b16 %v300, %v299
      %v316 = vpack.c.b16 %v302, %v301
      %v317 = vpack.c.b16 %v304, %v303
      %v318 = vpack.c.b16 %v306, %v305
      %v319 = vpack.c.b16 %v308, %v307
      %v320 = vpack.c.b16 %v310, %v309
      %v321 = vpack.c.b16 %v312, %v311
      %v322 = vpack.c.b16 %v314, %v313
      %v327 = vunpack.c.l.b16 %v272
      %v328 = vunpack.c.l.b16 %v273
      %v329 = vunpack.c.l.b16 %v274
      %v330 = vunpack.c.l.b16 %v275
      %v331 = vpack.c.b16 %v328, %v327
      %v332 = vpack.c.b16 %v330, %v329
      %vm335 = vcmask 261120
      %v337 = vsel %vm335, %v315, 0
      %v340 = vsel %vm335, %v316, 0
      %v343 = vsel %vm335, %v317, 0
      %v346 = vsel %vm335, %v318, 0
      %v349 = vsel %vm335, %v319, 0
      %v352 = vsel %vm335, %v320, 0
      %v355 = vsel %vm335, %v321, 0
      %v358 = vsel %vm335, %v322, 0
      %360 = vmatprep.subr.bf16.mxu0 0
      %361 = vmatpush1.bf16.msra.mxu0 %v331
      %362 = vmatprep.subr.bf16.mxu0 0
      %363 = vmatpush1.bf16.msra.mxu0 %v332
      %364 = vmatprep.subr.bf16.mxu0 0
      %365 = vmatpush1.bf16.msra.mxu0 0
      %366 = vmatprep.subr.bf16.mxu0 0
      %367 = vmatpush1.bf16.msra.mxu0 0
      %368 = vmatprep.subr.bf16.mxu0 0
      %369 = vmatpush1.bf16.msra.mxu0 0
      %370 = vmatprep.subr.bf16.mxu0 0
      %371 = vmatpush1.bf16.msra.mxu0 0
      %372 = vmatprep.subr.bf16.mxu0 0
      %373 = vmatpush1.bf16.msra.mxu0 0
      %374 = vmatprep.subr.bf16.mxu0 0
      %375 = vmatpush1.bf16.msra.mxu0 0
      %376 = vmatprep.subr.bf16.mxu0 0
      %377 = vmatpush1.bf16.msra.mxu0 0
      %378 = vmatprep.subr.bf16.mxu0 0
      %379 = vmatpush1.bf16.msra.mxu0 0
      %380 = vmatprep.subr.bf16.mxu0 0
      %381 = vmatpush1.bf16.msra.mxu0 0
      %382 = vmatprep.subr.bf16.mxu0 0
      %383 = vmatpush1.bf16.msra.mxu0 0
      %384 = vmatprep.subr.bf16.mxu0 0
      %385 = vmatpush1.bf16.msra.mxu0 0
      %386 = vmatprep.subr.bf16.mxu0 0
      %387 = vmatpush1.bf16.msra.mxu0 0
      %388 = vmatprep.subr.bf16.mxu0 0
      %389 = vmatpush1.bf16.msra.mxu0 0
      %390 = vmatprep.subr.bf16.mxu0 0
      %391 = vmatpush1.bf16.msra.mxu0 0
      %392 = vmatprep.mubr.bf16.mxu0 0
      %393 = vmatmul.mubr.bf16.gmra.mrb[0].mxu0 %v337
      %v394 = vpop.f32.mrb[0].mxu0
      %v395 = vadd.f32 %v281, %v394
      %v396 = vpop.f32.mrb[0].mxu0
      %v397 = vpop.f32.mrb[0].mxu0
      %v398 = vadd.f32 %v281, %v397
      %v399 = vpop.f32.mrb[0].mxu0
      %400 = vmatprep.mubr.bf16.mxu0 0
      %401 = vmatmul.mubr.bf16.gmra.mrb[0].mxu0 %v340
      %v402 = vpop.f32.mrb[0].mxu0
      %v403 = vadd.f32 %v281, %v402
      %v404 = vpop.f32.mrb[0].mxu0
      %v405 = vpop.f32.mrb[0].mxu0
      %v406 = vadd.f32 %v281, %v405
      %v407 = vpop.f32.mrb[0].mxu0
      %408 = vmatprep.mubr.bf16.mxu0 0
      %409 = vmatmul.mubr.bf16.gmra.mrb[0].mxu0 %v343
      %v410 = vpop.f32.mrb[0].mxu0
      %v411 = vadd.f32 %v281, %v410
      %v412 = vpop.f32.mrb[0].mxu0
      %v413 = vpop.f32.mrb[0].mxu0
      %v414 = vadd.f32 %v281, %v413
      %v415 = vpop.f32.mrb[0].mxu0
      %416 = vmatprep.mubr.bf16.mxu0 0
      %417 = vmatmul.mubr.bf16.gmra.mrb[0].mxu0 %v346
      %v418 = vpop.f32.mrb[0].mxu0
      %v419 = vadd.f32 %v281, %v418
      %v420 = vpop.f32.mrb[0].mxu0
      %v421 = vpop.f32.mrb[0].mxu0
      %v422 = vadd.f32 %v281, %v421
      %v423 = vpop.f32.mrb[0].mxu0
      %424 = vmatprep.mubr.bf16.mxu0 0
      %425 = vmatmul.mubr.bf16.gmra.mrb[0].mxu0 %v349
      %v426 = vpop.f32.mrb[0].mxu0
      %v427 = vadd.f32 %v281, %v426
      %v428 = vpop.f32.mrb[0].mxu0
      %v429 = vpop.f32.mrb[0].mxu0
      %v430 = vadd.f32 %v281, %v429
      %v431 = vpop.f32.mrb[0].mxu0
      %432 = vmatprep.mubr.bf16.mxu0 0
      %433 = vmatmul.mubr.bf16.gmra.mrb[0].mxu0 %v352
      %v434 = vpop.f32.mrb[0].mxu0
      %v435 = vadd.f32 %v281, %v434
      %v436 = vpop.f32.mrb[0].mxu0
      %v437 = vpop.f32.mrb[0].mxu0
      %v438 = vadd.f32 %v281, %v437
      %v439 = vpop.f32.mrb[0].mxu0
      %440 = vmatprep.mubr.bf16.mxu0 0
      %441 = vmatmul.mubr.bf16.gmra.mrb[0].mxu0 %v355
      %v442 = vpop.f32.mrb[0].mxu0
      %v443 = vadd.f32 %v281, %v442
      %v444 = vpop.f32.mrb[0].mxu0
      %v445 = vpop.f32.mrb[0].mxu0
      %v446 = vadd.f32 %v281, %v445
      %v447 = vpop.f32.mrb[0].mxu0
      %448 = vmatprep.mubr.bf16.mxu0 0
      %449 = vmatmul.mubr.bf16.gmra.mrb[0].mxu0 %v358
      %v450 = vpop.f32.mrb[0].mxu0
      %v451 = vadd.f32 %v281, %v450
      %v452 = vpop.f32.mrb[0].mxu0
      %v453 = vpop.f32.mrb[0].mxu0
      %v454 = vadd.f32 %v281, %v453
      %v455 = vpop.f32.mrb[0].mxu0
      %456 = vdwg.mxu0
      %v457 = vpack.c.bf16 %v398, %v395
      %v458 = vpack.c.bf16 %v406, %v403
      %v459 = vpack.c.bf16 %v414, %v411
      %v460 = vpack.c.bf16 %v422, %v419
      %v461 = vpack.c.bf16 %v430, %v427
      %v462 = vpack.c.bf16 %v438, %v435
      %v463 = vpack.c.bf16 %v446, %v443
      %v464 = vpack.c.bf16 %v454, %v451
      %v465 = vld [vmem:[%s3] sm:$0xff]
      %v466 = vld [vmem:[%s3 + $0x8] sm:$0xff]
      %v467 = vld [vmem:[%s3 + $0x10] sm:$0xff]
      %v468 = vld [vmem:[%s3 + $0x18] sm:$0xff]
      %v469 = vld [vmem:[%s3 + $0x20] sm:$0xff]
      %v470 = vld [vmem:[%s3 + $0x28] sm:$0xff]
      %v471 = vld [vmem:[%s3 + $0x30] sm:$0xff]
      %v472 = vld [vmem:[%s3 + $0x38] sm:$0xff]
      %474 = vrot.lane.b32.xlu0 %v457, 96
      %v475 = vpop.permute.xlu0 %474
      %vm476 = vcmask 64512
      %v478 = vsel %vm476, %v457, 0
      %v481 = vsel %vm476, %v475, 0
      %483 = vmatprep.subr.bf16.mxu0 0
      %484 = vmatpush1.bf16.xpose.msra.mxu0 %v481
      %485 = vmatprep.subr.bf16.mxu0 0
      %486 = vmatpush1.bf16.xpose.msra.mxu0 0
      %487 = vmatprep.subr.bf16.mxu0 0
      %488 = vmatpush1.bf16.xpose.msra.mxu0 0
      %489 = vmatprep.subr.bf16.mxu0 0
      %490 = vmatpush1.bf16.xpose.msra.mxu0 0
      %491 = vmatprep.subr.bf16.mxu0 0
      %492 = vmatpush1.bf16.xpose.msra.mxu0 0
      %493 = vmatprep.subr.bf16.mxu0 0
      %494 = vmatpush1.bf16.xpose.msra.mxu0 0
      %495 = vmatprep.subr.bf16.mxu0 0
      %496 = vmatpush1.bf16.xpose.msra.mxu0 0
      %497 = vmatprep.subr.bf16.mxu0 0
      %498 = vmatpush1.bf16.xpose.msra.mxu0 0
      %499 = vmatprep.subr.bf16.mxu0 0
      %500 = vmatpush1.bf16.xpose.msra.mxu0 0
      %501 = vmatprep.subr.bf16.mxu0 0
      %502 = vmatpush1.bf16.xpose.msra.mxu0 0
      %503 = vmatprep.subr.bf16.mxu0 0
      %504 = vmatpush1.bf16.xpose.msra.mxu0 0
      %505 = vmatprep.subr.bf16.mxu0 0
      %506 = vmatpush1.bf16.xpose.msra.mxu0 0
      %507 = vmatprep.subr.bf16.mxu0 0
      %508 = vmatpush1.bf16.xpose.msra.mxu0 0
      %509 = vmatprep.subr.bf16.mxu0 0
      %510 = vmatpush1.bf16.xpose.msra.mxu0 0
      %511 = vmatprep.subr.bf16.mxu0 0
      %512 = vmatpush1.bf16.xpose.msra.mxu0 0
      %513 = vmatprep.subr.bf16.mxu0 0
      %514 = vmatpush1.bf16.xpose.msra.mxu0 0
      %515 = vmatprep.mubr.bf16.mxu0 0
      %516 = vmatmul.mubr.bf16.gmra.mrb[0].mxu0 %v478
      %v517 = vpop.f32.mrb[0].mxu0
      %v518 = vadd.f32 %v465, %v517
      %v519 = vpop.f32.mrb[0].mxu0
      %v520 = vpop.f32.mrb[0].mxu0
      %v521 = vadd.f32 %v466, %v520
      %v522 = vpop.f32.mrb[0].mxu0
      %523 = vdwg.mxu0
      %525 = vrot.lane.b32.xlu0 %v458, 96
      %v526 = vpop.permute.xlu0 %525
      %v528 = vsel %vm476, %v458, 0
      %v531 = vsel %vm476, %v526, 0
      %533 = vmatprep.subr.bf16.mxu0 0
      %534 = vmatpush1.bf16.xpose.msra.mxu0 %v531
      %535 = vmatprep.subr.bf16.mxu0 0
      %536 = vmatpush1.bf16.xpose.msra.mxu0 0
      %537 = vmatprep.subr.bf16.mxu0 0
      %538 = vmatpush1.bf16.xpose.msra.mxu0 0
      %539 = vmatprep.subr.bf16.mxu0 0
      %540 = vmatpush1.bf16.xpose.msra.mxu0 0
      %541 = vmatprep.subr.bf16.mxu0 0
      %542 = vmatpush1.bf16.xpose.msra.mxu0 0
      %543 = vmatprep.subr.bf16.mxu0 0
      %544 = vmatpush1.bf16.xpose.msra.mxu0 0
      %545 = vmatprep.subr.bf16.mxu0 0
      %546 = vmatpush1.bf16.xpose.msra.mxu0 0
      %547 = vmatprep.subr.bf16.mxu0 0
      %548 = vmatpush1.bf16.xpose.msra.mxu0 0
      %549 = vmatprep.subr.bf16.mxu0 0
      %550 = vmatpush1.bf16.xpose.msra.mxu0 0
      %551 = vmatprep.subr.bf16.mxu0 0
      %552 = vmatpush1.bf16.xpose.msra.mxu0 0
      %553 = vmatprep.subr.bf16.mxu0 0
      %554 = vmatpush1.bf16.xpose.msra.mxu0 0
      %555 = vmatprep.subr.bf16.mxu0 0
      %556 = vmatpush1.bf16.xpose.msra.mxu0 0
      %557 = vmatprep.subr.bf16.mxu0 0
      %558 = vmatpush1.bf16.xpose.msra.mxu0 0
      %559 = vmatprep.subr.bf16.mxu0 0
      %560 = vmatpush1.bf16.xpose.msra.mxu0 0
      %561 = vmatprep.subr.bf16.mxu0 0
      %562 = vmatpush1.bf16.xpose.msra.mxu0 0
      %563 = vmatprep.subr.bf16.mxu0 0
      %564 = vmatpush1.bf16.xpose.msra.mxu0 0
      %565 = vmatprep.mubr.bf16.mxu0 0
      %566 = vmatmul.mubr.bf16.gmra.mrb[0].mxu0 %v528
      %v567 = vpop.f32.mrb[0].mxu0
      %v568 = vadd.f32 %v465, %v567
      %v569 = vpop.f32.mrb[0].mxu0
      %v570 = vpop.f32.mrb[0].mxu0
      %v571 = vadd.f32 %v466, %v570
      %v572 = vpop.f32.mrb[0].mxu0
      %573 = vdwg.mxu0
      %575 = vrot.lane.b32.xlu0 %v459, 96
      %v576 = vpop.permute.xlu0 %575
      %v578 = vsel %vm476, %v459, 0
      %v581 = vsel %vm476, %v576, 0
      %583 = vmatprep.subr.bf16.mxu0 0
      %584 = vmatpush1.bf16.xpose.msra.mxu0 %v581
      %585 = vmatprep.subr.bf16.mxu0 0
      %586 = vmatpush1.bf16.xpose.msra.mxu0 0
      %587 = vmatprep.subr.bf16.mxu0 0
      %588 = vmatpush1.bf16.xpose.msra.mxu0 0
      %589 = vmatprep.subr.bf16.mxu0 0
      %590 = vmatpush1.bf16.xpose.msra.mxu0 0
      %591 = vmatprep.subr.bf16.mxu0 0
      %592 = vmatpush1.bf16.xpose.msra.mxu0 0
      %593 = vmatprep.subr.bf16.mxu0 0
      %594 = vmatpush1.bf16.xpose.msra.mxu0 0
      %595 = vmatprep.subr.bf16.mxu0 0
      %596 = vmatpush1.bf16.xpose.msra.mxu0 0
      %597 = vmatprep.subr.bf16.mxu0 0
      %598 = vmatpush1.bf16.xpose.msra.mxu0 0
      %599 = vmatprep.subr.bf16.mxu0 0
      %600 = vmatpush1.bf16.xpose.msra.mxu0 0
      %601 = vmatprep.subr.bf16.mxu0 0
      %602 = vmatpush1.bf16.xpose.msra.mxu0 0
      %603 = vmatprep.subr.bf16.mxu0 0
      %604 = vmatpush1.bf16.xpose.msra.mxu0 0
      %605 = vmatprep.subr.bf16.mxu0 0
      %606 = vmatpush1.bf16.xpose.msra.mxu0 0
      %607 = vmatprep.subr.bf16.mxu0 0
      %608 = vmatpush1.bf16.xpose.msra.mxu0 0
      %609 = vmatprep.subr.bf16.mxu0 0
      %610 = vmatpush1.bf16.xpose.msra.mxu0 0
      %611 = vmatprep.subr.bf16.mxu0 0
      %612 = vmatpush1.bf16.xpose.msra.mxu0 0
      %613 = vmatprep.subr.bf16.mxu0 0
      %614 = vmatpush1.bf16.xpose.msra.mxu0 0
      %615 = vmatprep.mubr.bf16.mxu0 0
      %616 = vmatmul.mubr.bf16.gmra.mrb[0].mxu0 %v578
      %v617 = vpop.f32.mrb[0].mxu0
      %v618 = vadd.f32 %v465, %v617
      %v619 = vpop.f32.mrb[0].mxu0
      %v620 = vpop.f32.mrb[0].mxu0
      %v621 = vadd.f32 %v466, %v620
      %v622 = vpop.f32.mrb[0].mxu0
      %623 = vdwg.mxu0
      %625 = vrot.lane.b32.xlu0 %v460, 96
      %v626 = vpop.permute.xlu0 %625
      %v628 = vsel %vm476, %v460, 0
      %v631 = vsel %vm476, %v626, 0
      %633 = vmatprep.subr.bf16.mxu0 0
      %634 = vmatpush1.bf16.xpose.msra.mxu0 %v631
      %635 = vmatprep.subr.bf16.mxu0 0
      %636 = vmatpush1.bf16.xpose.msra.mxu0 0
      %637 = vmatprep.subr.bf16.mxu0 0
      %638 = vmatpush1.bf16.xpose.msra.mxu0 0
      %639 = vmatprep.subr.bf16.mxu0 0
      %640 = vmatpush1.bf16.xpose.msra.mxu0 0
      %641 = vmatprep.subr.bf16.mxu0 0
      %642 = vmatpush1.bf16.xpose.msra.mxu0 0
      %643 = vmatprep.subr.bf16.mxu0 0
      %644 = vmatpush1.bf16.xpose.msra.mxu0 0
      %645 = vmatprep.subr.bf16.mxu0 0
      %646 = vmatpush1.bf16.xpose.msra.mxu0 0
      %647 = vmatprep.subr.bf16.mxu0 0
      %648 = vmatpush1.bf16.xpose.msra.mxu0 0
      %649 = vmatprep.subr.bf16.mxu0 0
      %650 = vmatpush1.bf16.xpose.msra.mxu0 0
      %651 = vmatprep.subr.bf16.mxu0 0
      %652 = vmatpush1.bf16.xpose.msra.mxu0 0
      %653 = vmatprep.subr.bf16.mxu0 0
      %654 = vmatpush1.bf16.xpose.msra.mxu0 0
      %655 = vmatprep.subr.bf16.mxu0 0
      %656 = vmatpush1.bf16.xpose.msra.mxu0 0
      %657 = vmatprep.subr.bf16.mxu0 0
      %658 = vmatpush1.bf16.xpose.msra.mxu0 0
      %659 = vmatprep.subr.bf16.mxu0 0
      %660 = vmatpush1.bf16.xpose.msra.mxu0 0
      %661 = vmatprep.subr.bf16.mxu0 0
      %662 = vmatpush1.bf16.xpose.msra.mxu0 0
      %663 = vmatprep.subr.bf16.mxu0 0
      %664 = vmatpush1.bf16.xpose.msra.mxu0 0
      %665 = vmatprep.mubr.bf16.mxu0 0
      %666 = vmatmul.mubr.bf16.gmra.mrb[0].mxu0 %v628
      %v667 = vpop.f32.mrb[0].mxu0
      %v668 = vadd.f32 %v465, %v667
      %v669 = vpop.f32.mrb[0].mxu0
      %v670 = vpop.f32.mrb[0].mxu0
      %v671 = vadd.f32 %v466, %v670
      %v672 = vpop.f32.mrb[0].mxu0
      %673 = vdwg.mxu0
      %675 = vrot.lane.b32.xlu0 %v461, 96
      %v676 = vpop.permute.xlu0 %675
      %v678 = vsel %vm476, %v461, 0
      %v681 = vsel %vm476, %v676, 0
      %683 = vmatprep.subr.bf16.mxu0 0
      %684 = vmatpush1.bf16.xpose.msra.mxu0 %v681
      %685 = vmatprep.subr.bf16.mxu0 0
      %686 = vmatpush1.bf16.xpose.msra.mxu0 0
      %687 = vmatprep.subr.bf16.mxu0 0
      %688 = vmatpush1.bf16.xpose.msra.mxu0 0
      %689 = vmatprep.subr.bf16.mxu0 0
      %690 = vmatpush1.bf16.xpose.msra.mxu0 0
      %691 = vmatprep.subr.bf16.mxu0 0
      %692 = vmatpush1.bf16.xpose.msra.mxu0 0
      %693 = vmatprep.subr.bf16.mxu0 0
      %694 = vmatpush1.bf16.xpose.msra.mxu0 0
      %695 = vmatprep.subr.bf16.mxu0 0
      %696 = vmatpush1.bf16.xpose.msra.mxu0 0
      %697 = vmatprep.subr.bf16.mxu0 0
      %698 = vmatpush1.bf16.xpose.msra.mxu0 0
      %699 = vmatprep.subr.bf16.mxu0 0
      %700 = vmatpush1.bf16.xpose.msra.mxu0 0
      %701 = vmatprep.subr.bf16.mxu0 0
      %702 = vmatpush1.bf16.xpose.msra.mxu0 0
      %703 = vmatprep.subr.bf16.mxu0 0
      %704 = vmatpush1.bf16.xpose.msra.mxu0 0
      %705 = vmatprep.subr.bf16.mxu0 0
      %706 = vmatpush1.bf16.xpose.msra.mxu0 0
      %707 = vmatprep.subr.bf16.mxu0 0
      %708 = vmatpush1.bf16.xpose.msra.mxu0 0
      %709 = vmatprep.subr.bf16.mxu0 0
      %710 = vmatpush1.bf16.xpose.msra.mxu0 0
      %711 = vmatprep.subr.bf16.mxu0 0
      %712 = vmatpush1.bf16.xpose.msra.mxu0 0
      %713 = vmatprep.subr.bf16.mxu0 0
      %714 = vmatpush1.bf16.xpose.msra.mxu0 0
      %715 = vmatprep.mubr.bf16.mxu0 0
      %716 = vmatmul.mubr.bf16.gmra.mrb[0].mxu0 %v678
      %v717 = vpop.f32.mrb[0].mxu0
      %v718 = vadd.f32 %v465, %v717
      %v719 = vpop.f32.mrb[0].mxu0
      %v720 = vpop.f32.mrb[0].mxu0
      %v721 = vadd.f32 %v466, %v720
      %v722 = vpop.f32.mrb[0].mxu0
      %723 = vdwg.mxu0
      %725 = vrot.lane.b32.xlu0 %v462, 96
      %v726 = vpop.permute.xlu0 %725
      %v728 = vsel %vm476, %v462, 0
      %v731 = vsel %vm476, %v726, 0
      %733 = vmatprep.subr.bf16.mxu0 0
      %734 = vmatpush1.bf16.xpose.msra.mxu0 %v731
      %735 = vmatprep.subr.bf16.mxu0 0
      %736 = vmatpush1.bf16.xpose.msra.mxu0 0
      %737 = vmatprep.subr.bf16.mxu0 0
      %738 = vmatpush1.bf16.xpose.msra.mxu0 0
      %739 = vmatprep.subr.bf16.mxu0 0
      %740 = vmatpush1.bf16.xpose.msra.mxu0 0
      %741 = vmatprep.subr.bf16.mxu0 0
      %742 = vmatpush1.bf16.xpose.msra.mxu0 0
      %743 = vmatprep.subr.bf16.mxu0 0
      %744 = vmatpush1.bf16.xpose.msra.mxu0 0
      %745 = vmatprep.subr.bf16.mxu0 0
      %746 = vmatpush1.bf16.xpose.msra.mxu0 0
      %747 = vmatprep.subr.bf16.mxu0 0
      %748 = vmatpush1.bf16.xpose.msra.mxu0 0
      %749 = vmatprep.subr.bf16.mxu0 0
      %750 = vmatpush1.bf16.xpose.msra.mxu0 0
      %751 = vmatprep.subr.bf16.mxu0 0
      %752 = vmatpush1.bf16.xpose.msra.mxu0 0
      %753 = vmatprep.subr.bf16.mxu0 0
      %754 = vmatpush1.bf16.xpose.msra.mxu0 0
      %755 = vmatprep.subr.bf16.mxu0 0
      %756 = vmatpush1.bf16.xpose.msra.mxu0 0
      %757 = vmatprep.subr.bf16.mxu0 0
      %758 = vmatpush1.bf16.xpose.msra.mxu0 0
      %759 = vmatprep.subr.bf16.mxu0 0
      %760 = vmatpush1.bf16.xpose.msra.mxu0 0
      %761 = vmatprep.subr.bf16.mxu0 0
      %762 = vmatpush1.bf16.xpose.msra.mxu0 0
      %763 = vmatprep.subr.bf16.mxu0 0
      %764 = vmatpush1.bf16.xpose.msra.mxu0 0
      %765 = vmatprep.mubr.bf16.mxu0 0
      %766 = vmatmul.mubr.bf16.gmra.mrb[0].mxu0 %v728
      %v767 = vpop.f32.mrb[0].mxu0
      %v768 = vadd.f32 %v465, %v767
      %v769 = vpop.f32.mrb[0].mxu0
      %v770 = vpop.f32.mrb[0].mxu0
      %v771 = vadd.f32 %v466, %v770
      %v772 = vpop.f32.mrb[0].mxu0
      %773 = vdwg.mxu0
      %775 = vrot.lane.b32.xlu0 %v463, 96
      %v776 = vpop.permute.xlu0 %775
      %v778 = vsel %vm476, %v463, 0
      %v781 = vsel %vm476, %v776, 0
      %783 = vmatprep.subr.bf16.mxu0 0
      %784 = vmatpush1.bf16.xpose.msra.mxu0 %v781
      %785 = vmatprep.subr.bf16.mxu0 0
      %786 = vmatpush1.bf16.xpose.msra.mxu0 0
      %787 = vmatprep.subr.bf16.mxu0 0
      %788 = vmatpush1.bf16.xpose.msra.mxu0 0
      %789 = vmatprep.subr.bf16.mxu0 0
      %790 = vmatpush1.bf16.xpose.msra.mxu0 0
      %791 = vmatprep.subr.bf16.mxu0 0
      %792 = vmatpush1.bf16.xpose.msra.mxu0 0
      %793 = vmatprep.subr.bf16.mxu0 0
      %794 = vmatpush1.bf16.xpose.msra.mxu0 0
      %795 = vmatprep.subr.bf16.mxu0 0
      %796 = vmatpush1.bf16.xpose.msra.mxu0 0
      %797 = vmatprep.subr.bf16.mxu0 0
      %798 = vmatpush1.bf16.xpose.msra.mxu0 0
      %799 = vmatprep.subr.bf16.mxu0 0
      %800 = vmatpush1.bf16.xpose.msra.mxu0 0
      %801 = vmatprep.subr.bf16.mxu0 0
      %802 = vmatpush1.bf16.xpose.msra.mxu0 0
      %803 = vmatprep.subr.bf16.mxu0 0
      %804 = vmatpush1.bf16.xpose.msra.mxu0 0
      %805 = vmatprep.subr.bf16.mxu0 0
      %806 = vmatpush1.bf16.xpose.msra.mxu0 0
      %807 = vmatprep.subr.bf16.mxu0 0
      %808 = vmatpush1.bf16.xpose.msra.mxu0 0
      %809 = vmatprep.subr.bf16.mxu0 0
      %810 = vmatpush1.bf16.xpose.msra.mxu0 0
      %811 = vmatprep.subr.bf16.mxu0 0
      %812 = vmatpush1.bf16.xpose.msra.mxu0 0
      %813 = vmatprep.subr.bf16.mxu0 0
      %814 = vmatpush1.bf16.xpose.msra.mxu0 0
      %815 = vmatprep.mubr.bf16.mxu0 0
      %816 = vmatmul.mubr.bf16.gmra.mrb[0].mxu0 %v778
      %v817 = vpop.f32.mrb[0].mxu0
      %v818 = vadd.f32 %v465, %v817
      %v819 = vpop.f32.mrb[0].mxu0
      %v820 = vpop.f32.mrb[0].mxu0
      %v821 = vadd.f32 %v466, %v820
      %v822 = vpop.f32.mrb[0].mxu0
      %823 = vdwg.mxu0
      %825 = vrot.lane.b32.xlu0 %v464, 96
      %v826 = vpop.permute.xlu0 %825
      %v828 = vsel %vm476, %v464, 0
      %v831 = vsel %vm476, %v826, 0
      %833 = vmatprep.subr.bf16.mxu0 0
      %834 = vmatpush1.bf16.xpose.msra.mxu0 %v831
      %835 = vmatprep.subr.bf16.mxu0 0
      %836 = vmatpush1.bf16.xpose.msra.mxu0 0
      %837 = vmatprep.subr.bf16.mxu0 0
      %838 = vmatpush1.bf16.xpose.msra.mxu0 0
      %839 = vmatprep.subr.bf16.mxu0 0
      %840 = vmatpush1.bf16.xpose.msra.mxu0 0
      %841 = vmatprep.subr.bf16.mxu0 0
      %842 = vmatpush1.bf16.xpose.msra.mxu0 0
      %843 = vmatprep.subr.bf16.mxu0 0
      %844 = vmatpush1.bf16.xpose.msra.mxu0 0
      %845 = vmatprep.subr.bf16.mxu0 0
      %846 = vmatpush1.bf16.xpose.msra.mxu0 0
      %847 = vmatprep.subr.bf16.mxu0 0
      %848 = vmatpush1.bf16.xpose.msra.mxu0 0
      %849 = vmatprep.subr.bf16.mxu0 0
      %850 = vmatpush1.bf16.xpose.msra.mxu0 0
      %851 = vmatprep.subr.bf16.mxu0 0
      %852 = vmatpush1.bf16.xpose.msra.mxu0 0
      %853 = vmatprep.subr.bf16.mxu0 0
      %854 = vmatpush1.bf16.xpose.msra.mxu0 0
      %855 = vmatprep.subr.bf16.mxu0 0
      %856 = vmatpush1.bf16.xpose.msra.mxu0 0
      %857 = vmatprep.subr.bf16.mxu0 0
      %858 = vmatpush1.bf16.xpose.msra.mxu0 0
      %859 = vmatprep.subr.bf16.mxu0 0
      %860 = vmatpush1.bf16.xpose.msra.mxu0 0
      %861 = vmatprep.subr.bf16.mxu0 0
      %862 = vmatpush1.bf16.xpose.msra.mxu0 0
      %863 = vmatprep.subr.bf16.mxu0 0
      %864 = vmatpush1.bf16.xpose.msra.mxu0 0
      %865 = vmatprep.mubr.bf16.mxu0 0
      %866 = vmatmul.mubr.bf16.gmra.mrb[0].mxu0 %v828
      %v867 = vpop.f32.mrb[0].mxu0
      %v868 = vadd.f32 %v465, %v867
      %v869 = vpop.f32.mrb[0].mxu0
      %v870 = vpop.f32.mrb[0].mxu0
      %v871 = vadd.f32 %v466, %v870
      %v872 = vpop.f32.mrb[0].mxu0
      %873 = vdwg.mxu0
      %vm874 = vcmask 130048
      %v875 = vsel %vm874, %v518, -inf
      %876 = vmax.xlane.f32.xlu0 %v875
      %v877 = vpop.xlane.xlu0 %876
      %v878 = vsel %vm874, %v521, -inf
      %879 = vmax.xlane.f32.xlu0 %v878
      %v880 = vpop.xlane.xlu0 %879
      %v881 = vsel %vm874, %v568, -inf
      %882 = vmax.xlane.f32.xlu0 %v881
      %v883 = vpop.xlane.xlu0 %882
      %v884 = vsel %vm874, %v571, -inf
      %885 = vmax.xlane.f32.xlu0 %v884
      %v886 = vpop.xlane.xlu0 %885
      %v887 = vsel %vm874, %v618, -inf
      %888 = vmax.xlane.f32.xlu0 %v887
      %v889 = vpop.xlane.xlu0 %888
      %v890 = vsel %vm874, %v621, -inf
      %891 = vmax.xlane.f32.xlu0 %v890
      %v892 = vpop.xlane.xlu0 %891
      %v893 = vsel %vm874, %v668, -inf
      %894 = vmax.xlane.f32.xlu0 %v893
      %v895 = vpop.xlane.xlu0 %894
      %v896 = vsel %vm874, %v671, -inf
      %897 = vmax.xlane.f32.xlu0 %v896
      %v898 = vpop.xlane.xlu0 %897
      %v899 = vsel %vm874, %v718, -inf
      %900 = vmax.xlane.f32.xlu0 %v899
      %v901 = vpop.xlane.xlu0 %900
      %v902 = vsel %vm874, %v721, -inf
      %903 = vmax.xlane.f32.xlu0 %v902
      %v904 = vpop.xlane.xlu0 %903
      %v905 = vsel %vm874, %v768, -inf
      %906 = vmax.xlane.f32.xlu0 %v905
      %v907 = vpop.xlane.xlu0 %906
      %v908 = vsel %vm874, %v771, -inf
      %909 = vmax.xlane.f32.xlu0 %v908
      %v910 = vpop.xlane.xlu0 %909
      %v911 = vsel %vm874, %v818, -inf
      %912 = vmax.xlane.f32.xlu0 %v911
      %v913 = vpop.xlane.xlu0 %912
      %v914 = vsel %vm874, %v821, -inf
      %915 = vmax.xlane.f32.xlu0 %v914
      %v916 = vpop.xlane.xlu0 %915
      %v917 = vsel %vm874, %v868, -inf
      %918 = vmax.xlane.f32.xlu0 %v917
      %v919 = vpop.xlane.xlu0 %918
      %v920 = vsel %vm874, %v871, -inf
      %921 = vmax.xlane.f32.xlu0 %v920
      %v922 = vpop.xlane.xlu0 %921
      %v923 = vsub.f32 %v518, %v877
      %v924 = vsub.f32 %v521, %v880
      %v925 = vsub.f32 %v568, %v883
      %v926 = vsub.f32 %v571, %v886
      %v927 = vsub.f32 %v618, %v889
      %v928 = vsub.f32 %v621, %v892
      %v929 = vsub.f32 %v668, %v895
      %v930 = vsub.f32 %v671, %v898
      %v931 = vsub.f32 %v718, %v901
      %v932 = vsub.f32 %v721, %v904
      %v933 = vsub.f32 %v768, %v907
      %v934 = vsub.f32 %v771, %v910
      %v935 = vsub.f32 %v818, %v913
      %v936 = vsub.f32 %v821, %v916
      %v937 = vsub.f32 %v868, %v919
      %v938 = vsub.f32 %v871, %v922
      %v939 = vmul.f32 %v923, 1.442695
      %v940 = vpow.pop %v939
      %v941 = vmul.f32 %v924, 1.442695
      %v942 = vpow.pop %v941
      %v943 = vmul.f32 %v925, 1.442695
      %v944 = vpow.pop %v943
      %v945 = vmul.f32 %v926, 1.442695
      %v946 = vpow.pop %v945
      %v947 = vmul.f32 %v927, 1.442695
      %v948 = vpow.pop %v947
      %v949 = vmul.f32 %v928, 1.442695
      %v950 = vpow.pop %v949
      %v951 = vmul.f32 %v929, 1.442695
      %v952 = vpow.pop %v951
      %v953 = vmul.f32 %v930, 1.442695
      %v954 = vpow.pop %v953
      %v955 = vmul.f32 %v931, 1.442695
      %v956 = vpow.pop %v955
      %v957 = vmul.f32 %v932, 1.442695
      %v958 = vpow.pop %v957
      %v959 = vmul.f32 %v933, 1.442695
      %v960 = vpow.pop %v959
      %v961 = vmul.f32 %v934, 1.442695
      %v962 = vpow.pop %v961
      %v963 = vmul.f32 %v935, 1.442695
      %v964 = vpow.pop %v963
      %v965 = vmul.f32 %v936, 1.442695
      %v966 = vpow.pop %v965
      %v967 = vmul.f32 %v937, 1.442695
      %v968 = vpow.pop %v967
      %v969 = vmul.f32 %v938, 1.442695
      %v970 = vpow.pop %v969
      %v971 = vsel %vm874, %v940, 0.0
      %972 = vadd.xlane.f32.xlu0 %v971
      %v973 = vpop.xlane.xlu0 %972
      %v974 = vsel %vm874, %v942, 0.0
      %975 = vadd.xlane.f32.xlu0 %v974
      %v976 = vpop.xlane.xlu0 %975
      %v977 = vsel %vm874, %v944, 0.0
      %978 = vadd.xlane.f32.xlu0 %v977
      %v979 = vpop.xlane.xlu0 %978
      %v980 = vsel %vm874, %v946, 0.0
      %981 = vadd.xlane.f32.xlu0 %v980
      %v982 = vpop.xlane.xlu0 %981
      %v983 = vsel %vm874, %v948, 0.0
      %984 = vadd.xlane.f32.xlu0 %v983
      %v985 = vpop.xlane.xlu0 %984
      %v986 = vsel %vm874, %v950, 0.0
      %987 = vadd.xlane.f32.xlu0 %v986
      %v988 = vpop.xlane.xlu0 %987
      %v989 = vsel %vm874, %v952, 0.0
      %990 = vadd.xlane.f32.xlu0 %v989
      %v991 = vpop.xlane.xlu0 %990
      %v992 = vsel %vm874, %v954, 0.0
      %993 = vadd.xlane.f32.xlu0 %v992
      %v994 = vpop.xlane.xlu0 %993
      %v995 = vsel %vm874, %v956, 0.0
      %996 = vadd.xlane.f32.xlu0 %v995
      %v997 = vpop.xlane.xlu0 %996
      %v998 = vsel %vm874, %v958, 0.0
      %999 = vadd.xlane.f32.xlu0 %v998
      %v1000 = vpop.xlane.xlu0 %999
      %v1001 = vsel %vm874, %v960, 0.0
      %1002 = vadd.xlane.f32.xlu0 %v1001
      %v1003 = vpop.xlane.xlu0 %1002
      %v1004 = vsel %vm874, %v962, 0.0
      %1005 = vadd.xlane.f32.xlu0 %v1004
      %v1006 = vpop.xlane.xlu0 %1005
      %v1007 = vsel %vm874, %v964, 0.0
      %1008 = vadd.xlane.f32.xlu0 %v1007
      %v1009 = vpop.xlane.xlu0 %1008
      %v1010 = vsel %vm874, %v966, 0.0
      %1011 = vadd.xlane.f32.xlu0 %v1010
      %v1012 = vpop.xlane.xlu0 %1011
      %v1013 = vsel %vm874, %v968, 0.0
      %1014 = vadd.xlane.f32.xlu0 %v1013
      %v1015 = vpop.xlane.xlu0 %1014
      %v1016 = vsel %vm874, %v970, 0.0
      %1017 = vadd.xlane.f32.xlu0 %v1016
      %v1018 = vpop.xlane.xlu0 %1017
      %v1019 = vrcp.pop %v973
      %v1020 = vrcp.pop %v976
      %v1021 = vrcp.pop %v979
      %v1022 = vrcp.pop %v982
      %v1023 = vrcp.pop %v985
      %v1024 = vrcp.pop %v988
      %v1025 = vrcp.pop %v991
      %v1026 = vrcp.pop %v994
      %v1027 = vrcp.pop %v997
      %v1028 = vrcp.pop %v1000
      %v1029 = vrcp.pop %v1003
      %v1030 = vrcp.pop %v1006
      %v1031 = vrcp.pop %v1009
      %v1032 = vrcp.pop %v1012
      %v1033 = vrcp.pop %v1015
      %v1034 = vrcp.pop %v1018
      %v1035 = vmul.f32 %v940, %v1019
      %v1036 = vmul.f32 %v942, %v1020
      %v1037 = vmul.f32 %v944, %v1021
      %v1038 = vmul.f32 %v946, %v1022
      %v1039 = vmul.f32 %v948, %v1023
      %v1040 = vmul.f32 %v950, %v1024
      %v1041 = vmul.f32 %v952, %v1025
      %v1042 = vmul.f32 %v954, %v1026
      %v1043 = vmul.f32 %v956, %v1027
      %v1044 = vmul.f32 %v958, %v1028
      %v1045 = vmul.f32 %v960, %v1029
      %v1046 = vmul.f32 %v962, %v1030
      %v1047 = vmul.f32 %v964, %v1031
      %v1048 = vmul.f32 %v966, %v1032
      %v1049 = vmul.f32 %v968, %v1033
      %v1050 = vmul.f32 %v970, %v1034
      %v1051 = vpack.c.bf16 %v1036, %v1035
      %v1052 = vpack.c.bf16 %v1038, %v1037
      %v1053 = vpack.c.bf16 %v1040, %v1039
      %v1054 = vpack.c.bf16 %v1042, %v1041
      %v1055 = vpack.c.bf16 %v1044, %v1043
      %v1056 = vpack.c.bf16 %v1046, %v1045
      %v1057 = vpack.c.bf16 %v1048, %v1047
      %v1058 = vpack.c.bf16 %v1050, %v1049
      %1059 = vrot.lane.b32.xlu0 %v457, 64
      %v1060 = vpop.permute.xlu0 %1059
      %v1063 = vsel %vm874, %v1051, 0
      %1065 = vmatprep.subr.bf16.mxu0 0
      %1066 = vmatpush1.bf16.msra.mxu0 %v1060
      %1067 = vmatprep.subr.bf16.mxu0 0
      %1068 = vmatpush1.bf16.msra.mxu0 0
      %1069 = vmatprep.subr.bf16.mxu0 0
      %1070 = vmatpush1.bf16.msra.mxu0 0
      %1071 = vmatprep.subr.bf16.mxu0 0
      %1072 = vmatpush1.bf16.msra.mxu0 0
      %1073 = vmatprep.subr.bf16.mxu0 0
      %1074 = vmatpush1.bf16.msra.mxu0 0
      %1075 = vmatprep.subr.bf16.mxu0 0
      %1076 = vmatpush1.bf16.msra.mxu0 0
      %1077 = vmatprep.subr.bf16.mxu0 0
      %1078 = vmatpush1.bf16.msra.mxu0 0
      %1079 = vmatprep.subr.bf16.mxu0 0
      %1080 = vmatpush1.bf16.msra.mxu0 0
      %1081 = vmatprep.subr.bf16.mxu0 0
      %1082 = vmatpush1.bf16.msra.mxu0 0
      %1083 = vmatprep.subr.bf16.mxu0 0
      %1084 = vmatpush1.bf16.msra.mxu0 0
      %1085 = vmatprep.subr.bf16.mxu0 0
      %1086 = vmatpush1.bf16.msra.mxu0 0
      %1087 = vmatprep.subr.bf16.mxu0 0
      %1088 = vmatpush1.bf16.msra.mxu0 0
      %1089 = vmatprep.subr.bf16.mxu0 0
      %1090 = vmatpush1.bf16.msra.mxu0 0
      %1091 = vmatprep.subr.bf16.mxu0 0
      %1092 = vmatpush1.bf16.msra.mxu0 0
      %1093 = vmatprep.subr.bf16.mxu0 0
      %1094 = vmatpush1.bf16.msra.mxu0 0
      %1095 = vmatprep.subr.bf16.mxu0 0
      %1096 = vmatpush1.bf16.msra.mxu0 0
      %1097 = vmatprep.mubr.bf16.mxu0 0
      %1098 = vmatmul.mubr.bf16.gmra.mrb[0].mxu0 %v1063
      %v1099 = vpop.f32.mrb[0].mxu0
      %v1100 = vadd.f32 0.0, %v1099
      %v1101 = vpop.f32.mrb[0].mxu0
      %v1102 = vpop.f32.mrb[0].mxu0
      %v1103 = vadd.f32 0.0, %v1102
      %v1104 = vpop.f32.mrb[0].mxu0
      %1105 = vdwg.mxu0
      %1106 = vrot.lane.b32.xlu0 %v458, 64
      %v1107 = vpop.permute.xlu0 %1106
      %v1110 = vsel %vm874, %v1052, 0
      %1112 = vmatprep.subr.bf16.mxu0 0
      %1113 = vmatpush1.bf16.msra.mxu0 %v1107
      %1114 = vmatprep.subr.bf16.mxu0 0
      %1115 = vmatpush1.bf16.msra.mxu0 0
      %1116 = vmatprep.subr.bf16.mxu0 0
      %1117 = vmatpush1.bf16.msra.mxu0 0
      %1118 = vmatprep.subr.bf16.mxu0 0
      %1119 = vmatpush1.bf16.msra.mxu0 0
      %1120 = vmatprep.subr.bf16.mxu0 0
      %1121 = vmatpush1.bf16.msra.mxu0 0
      %1122 = vmatprep.subr.bf16.mxu0 0
      %1123 = vmatpush1.bf16.msra.mxu0 0
      %1124 = vmatprep.subr.bf16.mxu0 0
      %1125 = vmatpush1.bf16.msra.mxu0 0
      %1126 = vmatprep.subr.bf16.mxu0 0
      %1127 = vmatpush1.bf16.msra.mxu0 0
      %1128 = vmatprep.subr.bf16.mxu0 0
      %1129 = vmatpush1.bf16.msra.mxu0 0
      %1130 = vmatprep.subr.bf16.mxu0 0
      %1131 = vmatpush1.bf16.msra.mxu0 0
      %1132 = vmatprep.subr.bf16.mxu0 0
      %1133 = vmatpush1.bf16.msra.mxu0 0
      %1134 = vmatprep.subr.bf16.mxu0 0
      %1135 = vmatpush1.bf16.msra.mxu0 0
      %1136 = vmatprep.subr.bf16.mxu0 0
      %1137 = vmatpush1.bf16.msra.mxu0 0
      %1138 = vmatprep.subr.bf16.mxu0 0
      %1139 = vmatpush1.bf16.msra.mxu0 0
      %1140 = vmatprep.subr.bf16.mxu0 0
      %1141 = vmatpush1.bf16.msra.mxu0 0
      %1142 = vmatprep.subr.bf16.mxu0 0
      %1143 = vmatpush1.bf16.msra.mxu0 0
      %1144 = vmatprep.mubr.bf16.mxu0 0
      %1145 = vmatmul.mubr.bf16.gmra.mrb[0].mxu0 %v1110
      %v1146 = vpop.f32.mrb[0].mxu0
      %v1147 = vadd.f32 0.0, %v1146
      %v1148 = vpop.f32.mrb[0].mxu0
      %v1149 = vpop.f32.mrb[0].mxu0
      %v1150 = vadd.f32 0.0, %v1149
      %v1151 = vpop.f32.mrb[0].mxu0
      %1152 = vdwg.mxu0
      %1153 = vrot.lane.b32.xlu0 %v459, 64
      %v1154 = vpop.permute.xlu0 %1153
      %v1157 = vsel %vm874, %v1053, 0
      %1159 = vmatprep.subr.bf16.mxu0 0
      %1160 = vmatpush1.bf16.msra.mxu0 %v1154
      %1161 = vmatprep.subr.bf16.mxu0 0
      %1162 = vmatpush1.bf16.msra.mxu0 0
      %1163 = vmatprep.subr.bf16.mxu0 0
      %1164 = vmatpush1.bf16.msra.mxu0 0
      %1165 = vmatprep.subr.bf16.mxu0 0
      %1166 = vmatpush1.bf16.msra.mxu0 0
      %1167 = vmatprep.subr.bf16.mxu0 0
      %1168 = vmatpush1.bf16.msra.mxu0 0
      %1169 = vmatprep.subr.bf16.mxu0 0
      %1170 = vmatpush1.bf16.msra.mxu0 0
      %1171 = vmatprep.subr.bf16.mxu0 0
      %1172 = vmatpush1.bf16.msra.mxu0 0
      %1173 = vmatprep.subr.bf16.mxu0 0
      %1174 = vmatpush1.bf16.msra.mxu0 0
      %1175 = vmatprep.subr.bf16.mxu0 0
      %1176 = vmatpush1.bf16.msra.mxu0 0
      %1177 = vmatprep.subr.bf16.mxu0 0
      %1178 = vmatpush1.bf16.msra.mxu0 0
      %1179 = vmatprep.subr.bf16.mxu0 0
      %1180 = vmatpush1.bf16.msra.mxu0 0
      %1181 = vmatprep.subr.bf16.mxu0 0
      %1182 = vmatpush1.bf16.msra.mxu0 0
      %1183 = vmatprep.subr.bf16.mxu0 0
      %1184 = vmatpush1.bf16.msra.mxu0 0
      %1185 = vmatprep.subr.bf16.mxu0 0
      %1186 = vmatpush1.bf16.msra.mxu0 0
      %1187 = vmatprep.subr.bf16.mxu0 0
      %1188 = vmatpush1.bf16.msra.mxu0 0
      %1189 = vmatprep.subr.bf16.mxu0 0
      %1190 = vmatpush1.bf16.msra.mxu0 0
      %1191 = vmatprep.mubr.bf16.mxu0 0
      %1192 = vmatmul.mubr.bf16.gmra.mrb[0].mxu0 %v1157
      %v1193 = vpop.f32.mrb[0].mxu0
      %v1194 = vadd.f32 0.0, %v1193
      %v1195 = vpop.f32.mrb[0].mxu0
      %v1196 = vpop.f32.mrb[0].mxu0
      %v1197 = vadd.f32 0.0, %v1196
      %v1198 = vpop.f32.mrb[0].mxu0
      %1199 = vdwg.mxu0
      %1200 = vrot.lane.b32.xlu0 %v460, 64
      %v1201 = vpop.permute.xlu0 %1200
      %v1204 = vsel %vm874, %v1054, 0
      %1206 = vmatprep.subr.bf16.mxu0 0
      %1207 = vmatpush1.bf16.msra.mxu0 %v1201
      %1208 = vmatprep.subr.bf16.mxu0 0
      %1209 = vmatpush1.bf16.msra.mxu0 0
      %1210 = vmatprep.subr.bf16.mxu0 0
      %1211 = vmatpush1.bf16.msra.mxu0 0
      %1212 = vmatprep.subr.bf16.mxu0 0
      %1213 = vmatpush1.bf16.msra.mxu0 0
      %1214 = vmatprep.subr.bf16.mxu0 0
      %1215 = vmatpush1.bf16.msra.mxu0 0
      %1216 = vmatprep.subr.bf16.mxu0 0
      %1217 = vmatpush1.bf16.msra.mxu0 0
      %1218 = vmatprep.subr.bf16.mxu0 0
      %1219 = vmatpush1.bf16.msra.mxu0 0
      %1220 = vmatprep.subr.bf16.mxu0 0
      %1221 = vmatpush1.bf16.msra.mxu0 0
      %1222 = vmatprep.subr.bf16.mxu0 0
      %1223 = vmatpush1.bf16.msra.mxu0 0
      %1224 = vmatprep.subr.bf16.mxu0 0
      %1225 = vmatpush1.bf16.msra.mxu0 0
      %1226 = vmatprep.subr.bf16.mxu0 0
      %1227 = vmatpush1.bf16.msra.mxu0 0
      %1228 = vmatprep.subr.bf16.mxu0 0
      %1229 = vmatpush1.bf16.msra.mxu0 0
      %1230 = vmatprep.subr.bf16.mxu0 0
      %1231 = vmatpush1.bf16.msra.mxu0 0
      %1232 = vmatprep.subr.bf16.mxu0 0
      %1233 = vmatpush1.bf16.msra.mxu0 0
      %1234 = vmatprep.subr.bf16.mxu0 0
      %1235 = vmatpush1.bf16.msra.mxu0 0
      %1236 = vmatprep.subr.bf16.mxu0 0
      %1237 = vmatpush1.bf16.msra.mxu0 0
      %1238 = vmatprep.mubr.bf16.mxu0 0
      %1239 = vmatmul.mubr.bf16.gmra.mrb[0].mxu0 %v1204
      %v1240 = vpop.f32.mrb[0].mxu0
      %v1241 = vadd.f32 0.0, %v1240
      %v1242 = vpop.f32.mrb[0].mxu0
      %v1243 = vpop.f32.mrb[0].mxu0
      %v1244 = vadd.f32 0.0, %v1243
      %v1245 = vpop.f32.mrb[0].mxu0
      %1246 = vdwg.mxu0
      %1247 = vrot.lane.b32.xlu0 %v461, 64
      %v1248 = vpop.permute.xlu0 %1247
      %v1251 = vsel %vm874, %v1055, 0
      %1253 = vmatprep.subr.bf16.mxu0 0
      %1254 = vmatpush1.bf16.msra.mxu0 %v1248
      %1255 = vmatprep.subr.bf16.mxu0 0
      %1256 = vmatpush1.bf16.msra.mxu0 0
      %1257 = vmatprep.subr.bf16.mxu0 0
      %1258 = vmatpush1.bf16.msra.mxu0 0
      %1259 = vmatprep.subr.bf16.mxu0 0
      %1260 = vmatpush1.bf16.msra.mxu0 0
      %1261 = vmatprep.subr.bf16.mxu0 0
      %1262 = vmatpush1.bf16.msra.mxu0 0
      %1263 = vmatprep.subr.bf16.mxu0 0
      %1264 = vmatpush1.bf16.msra.mxu0 0
      %1265 = vmatprep.subr.bf16.mxu0 0
      %1266 = vmatpush1.bf16.msra.mxu0 0
      %1267 = vmatprep.subr.bf16.mxu0 0
      %1268 = vmatpush1.bf16.msra.mxu0 0
      %1269 = vmatprep.subr.bf16.mxu0 0
      %1270 = vmatpush1.bf16.msra.mxu0 0
      %1271 = vmatprep.subr.bf16.mxu0 0
      %1272 = vmatpush1.bf16.msra.mxu0 0
      %1273 = vmatprep.subr.bf16.mxu0 0
      %1274 = vmatpush1.bf16.msra.mxu0 0
      %1275 = vmatprep.subr.bf16.mxu0 0
      %1276 = vmatpush1.bf16.msra.mxu0 0
      %1277 = vmatprep.subr.bf16.mxu0 0
      %1278 = vmatpush1.bf16.msra.mxu0 0
      %1279 = vmatprep.subr.bf16.mxu0 0
      %1280 = vmatpush1.bf16.msra.mxu0 0
      %1281 = vmatprep.subr.bf16.mxu0 0
      %1282 = vmatpush1.bf16.msra.mxu0 0
      %1283 = vmatprep.subr.bf16.mxu0 0
      %1284 = vmatpush1.bf16.msra.mxu0 0
      %1285 = vmatprep.mubr.bf16.mxu0 0
      %1286 = vmatmul.mubr.bf16.gmra.mrb[0].mxu0 %v1251
      %v1287 = vpop.f32.mrb[0].mxu0
      %v1288 = vadd.f32 0.0, %v1287
      %v1289 = vpop.f32.mrb[0].mxu0
      %v1290 = vpop.f32.mrb[0].mxu0
      %v1291 = vadd.f32 0.0, %v1290
      %v1292 = vpop.f32.mrb[0].mxu0
      %1293 = vdwg.mxu0
      %1294 = vrot.lane.b32.xlu0 %v462, 64
      %v1295 = vpop.permute.xlu0 %1294
      %v1298 = vsel %vm874, %v1056, 0
      %1300 = vmatprep.subr.bf16.mxu0 0
      %1301 = vmatpush1.bf16.msra.mxu0 %v1295
      %1302 = vmatprep.subr.bf16.mxu0 0
      %1303 = vmatpush1.bf16.msra.mxu0 0
      %1304 = vmatprep.subr.bf16.mxu0 0
      %1305 = vmatpush1.bf16.msra.mxu0 0
      %1306 = vmatprep.subr.bf16.mxu0 0
      %1307 = vmatpush1.bf16.msra.mxu0 0
      %1308 = vmatprep.subr.bf16.mxu0 0
      %1309 = vmatpush1.bf16.msra.mxu0 0
      %1310 = vmatprep.subr.bf16.mxu0 0
      %1311 = vmatpush1.bf16.msra.mxu0 0
      %1312 = vmatprep.subr.bf16.mxu0 0
      %1313 = vmatpush1.bf16.msra.mxu0 0
      %1314 = vmatprep.subr.bf16.mxu0 0
      %1315 = vmatpush1.bf16.msra.mxu0 0
      %1316 = vmatprep.subr.bf16.mxu0 0
      %1317 = vmatpush1.bf16.msra.mxu0 0
      %1318 = vmatprep.subr.bf16.mxu0 0
      %1319 = vmatpush1.bf16.msra.mxu0 0
      %1320 = vmatprep.subr.bf16.mxu0 0
      %1321 = vmatpush1.bf16.msra.mxu0 0
      %1322 = vmatprep.subr.bf16.mxu0 0
      %1323 = vmatpush1.bf16.msra.mxu0 0
      %1324 = vmatprep.subr.bf16.mxu0 0
      %1325 = vmatpush1.bf16.msra.mxu0 0
      %1326 = vmatprep.subr.bf16.mxu0 0
      %1327 = vmatpush1.bf16.msra.mxu0 0
      %1328 = vmatprep.subr.bf16.mxu0 0
      %1329 = vmatpush1.bf16.msra.mxu0 0
      %1330 = vmatprep.subr.bf16.mxu0 0
      %1331 = vmatpush1.bf16.msra.mxu0 0
      %1332 = vmatprep.mubr.bf16.mxu0 0
      %1333 = vmatmul.mubr.bf16.gmra.mrb[0].mxu0 %v1298
      %v1334 = vpop.f32.mrb[0].mxu0
      %v1335 = vadd.f32 0.0, %v1334
      %v1336 = vpop.f32.mrb[0].mxu0
      %v1337 = vpop.f32.mrb[0].mxu0
      %v1338 = vadd.f32 0.0, %v1337
      %v1339 = vpop.f32.mrb[0].mxu0
      %1340 = vdwg.mxu0
      %1341 = vrot.lane.b32.xlu0 %v463, 64
      %v1342 = vpop.permute.xlu0 %1341
      %v1345 = vsel %vm874, %v1057, 0
      %1347 = vmatprep.subr.bf16.mxu0 0
      %1348 = vmatpush1.bf16.msra.mxu0 %v1342
      %1349 = vmatprep.subr.bf16.mxu0 0
      %1350 = vmatpush1.bf16.msra.mxu0 0
      %1351 = vmatprep.subr.bf16.mxu0 0
      %1352 = vmatpush1.bf16.msra.mxu0 0
      %1353 = vmatprep.subr.bf16.mxu0 0
      %1354 = vmatpush1.bf16.msra.mxu0 0
      %1355 = vmatprep.subr.bf16.mxu0 0
      %1356 = vmatpush1.bf16.msra.mxu0 0
      %1357 = vmatprep.subr.bf16.mxu0 0
      %1358 = vmatpush1.bf16.msra.mxu0 0
      %1359 = vmatprep.subr.bf16.mxu0 0
      %1360 = vmatpush1.bf16.msra.mxu0 0
      %1361 = vmatprep.subr.bf16.mxu0 0
      %1362 = vmatpush1.bf16.msra.mxu0 0
      %1363 = vmatprep.subr.bf16.mxu0 0
      %1364 = vmatpush1.bf16.msra.mxu0 0
      %1365 = vmatprep.subr.bf16.mxu0 0
      %1366 = vmatpush1.bf16.msra.mxu0 0
      %1367 = vmatprep.subr.bf16.mxu0 0
      %1368 = vmatpush1.bf16.msra.mxu0 0
      %1369 = vmatprep.subr.bf16.mxu0 0
      %1370 = vmatpush1.bf16.msra.mxu0 0
      %1371 = vmatprep.subr.bf16.mxu0 0
      %1372 = vmatpush1.bf16.msra.mxu0 0
      %1373 = vmatprep.subr.bf16.mxu0 0
      %1374 = vmatpush1.bf16.msra.mxu0 0
      %1375 = vmatprep.subr.bf16.mxu0 0
      %1376 = vmatpush1.bf16.msra.mxu0 0
      %1377 = vmatprep.subr.bf16.mxu0 0
      %1378 = vmatpush1.bf16.msra.mxu0 0
      %1379 = vmatprep.mubr.bf16.mxu0 0
      %1380 = vmatmul.mubr.bf16.gmra.mrb[0].mxu0 %v1345
      %v1381 = vpop.f32.mrb[0].mxu0
      %v1382 = vadd.f32 0.0, %v1381
      %v1383 = vpop.f32.mrb[0].mxu0
      %v1384 = vpop.f32.mrb[0].mxu0
      %v1385 = vadd.f32 0.0, %v1384
      %v1386 = vpop.f32.mrb[0].mxu0
      %1387 = vdwg.mxu0
      %1388 = vrot.lane.b32.xlu0 %v464, 64
      %v1389 = vpop.permute.xlu0 %1388
      %v1392 = vsel %vm874, %v1058, 0
      %1394 = vmatprep.subr.bf16.mxu0 0
      %1395 = vmatpush1.bf16.msra.mxu0 %v1389
      %1396 = vmatprep.subr.bf16.mxu0 0
      %1397 = vmatpush1.bf16.msra.mxu0 0
      %1398 = vmatprep.subr.bf16.mxu0 0
      %1399 = vmatpush1.bf16.msra.mxu0 0
      %1400 = vmatprep.subr.bf16.mxu0 0
      %1401 = vmatpush1.bf16.msra.mxu0 0
      %1402 = vmatprep.subr.bf16.mxu0 0
      %1403 = vmatpush1.bf16.msra.mxu0 0
      %1404 = vmatprep.subr.bf16.mxu0 0
      %1405 = vmatpush1.bf16.msra.mxu0 0
      %1406 = vmatprep.subr.bf16.mxu0 0
      %1407 = vmatpush1.bf16.msra.mxu0 0
      %1408 = vmatprep.subr.bf16.mxu0 0
      %1409 = vmatpush1.bf16.msra.mxu0 0
      %1410 = vmatprep.subr.bf16.mxu0 0
      %1411 = vmatpush1.bf16.msra.mxu0 0
      %1412 = vmatprep.subr.bf16.mxu0 0
      %1413 = vmatpush1.bf16.msra.mxu0 0
      %1414 = vmatprep.subr.bf16.mxu0 0
      %1415 = vmatpush1.bf16.msra.mxu0 0
      %1416 = vmatprep.subr.bf16.mxu0 0
      %1417 = vmatpush1.bf16.msra.mxu0 0
      %1418 = vmatprep.subr.bf16.mxu0 0
      %1419 = vmatpush1.bf16.msra.mxu0 0
      %1420 = vmatprep.subr.bf16.mxu0 0
      %1421 = vmatpush1.bf16.msra.mxu0 0
      %1422 = vmatprep.subr.bf16.mxu0 0
      %1423 = vmatpush1.bf16.msra.mxu0 0
      %1424 = vmatprep.subr.bf16.mxu0 0
      %1425 = vmatpush1.bf16.msra.mxu0 0
      %1426 = vmatprep.mubr.bf16.mxu0 0
      %1427 = vmatmul.mubr.bf16.gmra.mrb[0].mxu0 %v1392
      %v1428 = vpop.f32.mrb[0].mxu0
      %v1429 = vadd.f32 0.0, %v1428
      %v1430 = vpop.f32.mrb[0].mxu0
      %v1431 = vpop.f32.mrb[0].mxu0
      %v1432 = vadd.f32 0.0, %v1431
      %v1433 = vpop.f32.mrb[0].mxu0
      %1434 = vdwg.mxu0
      %v1435 = vpack.c.bf16 %v1103, %v1100
      %v1436 = vpack.c.bf16 %v1150, %v1147
      %v1437 = vpack.c.bf16 %v1197, %v1194
      %v1438 = vpack.c.bf16 %v1244, %v1241
      %v1439 = vpack.c.bf16 %v1291, %v1288
      %v1440 = vpack.c.bf16 %v1338, %v1335
      %v1441 = vpack.c.bf16 %v1385, %v1382
      %v1442 = vpack.c.bf16 %v1432, %v1429
      %1443 = vst.msk [vmem:[#allocation2] sm:$0xff] %vm476, %v1435
      %1444 = vst.msk [vmem:[#allocation2 + $0x8] sm:$0xff] %vm476, %v1436
      %1445 = vst.msk [vmem:[#allocation2 + $0x10] sm:$0xff] %vm476, %v1437
      %1446 = vst.msk [vmem:[#allocation2 + $0x18] sm:$0xff] %vm476, %v1438
      %1447 = vst.msk [vmem:[#allocation2 + $0x20] sm:$0xff] %vm476, %v1439
      %1448 = vst.msk [vmem:[#allocation2 + $0x28] sm:$0xff] %vm476, %v1440
      %1449 = vst.msk [vmem:[#allocation2 + $0x30] sm:$0xff] %vm476, %v1441
      %1450 = vst.msk [vmem:[#allocation2 + $0x38] sm:$0xff] %vm476, %v1442
      %1451 = vrot.lane.b32.xlu0 %v457, 120
      %v1452 = vpop.permute.xlu0 %1451
      %1453 = vrot.lane.b32.xlu0 %v457, 88
      %v1454 = vpop.permute.xlu0 %1453
      %v1456 = vsel %vm476, %v1452, 0
      %v1459 = vsel %vm476, %v1454, 0
      %1461 = vmatprep.subr.bf16.mxu0 0
      %1462 = vmatpush1.bf16.xpose.msra.mxu0 %v1459
      %1463 = vmatprep.subr.bf16.mxu0 0
      %1464 = vmatpush1.bf16.xpose.msra.mxu0 0
      %1465 = vmatprep.subr.bf16.mxu0 0
      %1466 = vmatpush1.bf16.xpose.msra.mxu0 0
      %1467 = vmatprep.subr.bf16.mxu0 0
      %1468 = vmatpush1.bf16.xpose.msra.mxu0 0
      %1469 = vmatprep.subr.bf16.mxu0 0
      %1470 = vmatpush1.bf16.xpose.msra.mxu0 0
      %1471 = vmatprep.subr.bf16.mxu0 0
      %1472 = vmatpush1.bf16.xpose.msra.mxu0 0
      %1473 = vmatprep.subr.bf16.mxu0 0
      %1474 = vmatpush1.bf16.xpose.msra.mxu0 0
      %1475 = vmatprep.subr.bf16.mxu0 0
      %1476 = vmatpush1.bf16.xpose.msra.mxu0 0
      %1477 = vmatprep.subr.bf16.mxu0 0
      %1478 = vmatpush1.bf16.xpose.msra.mxu0 0
      %1479 = vmatprep.subr.bf16.mxu0 0
      %1480 = vmatpush1.bf16.xpose.msra.mxu0 0
      %1481 = vmatprep.subr.bf16.mxu0 0
      %1482 = vmatpush1.bf16.xpose.msra.mxu0 0
      %1483 = vmatprep.subr.bf16.mxu0 0
      %1484 = vmatpush1.bf16.xpose.msra.mxu0 0
      %1485 = vmatprep.subr.bf16.mxu0 0
      %1486 = vmatpush1.bf16.xpose.msra.mxu0 0
      %1487 = vmatprep.subr.bf16.mxu0 0
      %1488 = vmatpush1.bf16.xpose.msra.mxu0 0
      %1489 = vmatprep.subr.bf16.mxu0 0
      %1490 = vmatpush1.bf16.xpose.msra.mxu0 0
      %1491 = vmatprep.subr.bf16.mxu0 0
      %1492 = vmatpush1.bf16.xpose.msra.mxu0 0
      %1493 = vmatprep.mubr.bf16.mxu0 0
      %1494 = vmatmul.mubr.bf16.gmra.mrb[0].mxu0 %v1456
      %v1495 = vpop.f32.mrb[0].mxu0
      %v1496 = vadd.f32 %v467, %v1495
      %v1497 = vpop.f32.mrb[0].mxu0
      %v1498 = vpop.f32.mrb[0].mxu0
      %v1499 = vadd.f32 %v468, %v1498
      %v1500 = vpop.f32.mrb[0].mxu0
      %1501 = vdwg.mxu0
      %1502 = vrot.lane.b32.xlu0 %v458, 120
      %v1503 = vpop.permute.xlu0 %1502
      %1504 = vrot.lane.b32.xlu0 %v458, 88
      %v1505 = vpop.permute.xlu0 %1504
      %v1507 = vsel %vm476, %v1503, 0
      %v1510 = vsel %vm476, %v1505, 0
      %1512 = vmatprep.subr.bf16.mxu0 0
      %1513 = vmatpush1.bf16.xpose.msra.mxu0 %v1510
      %1514 = vmatprep.subr.bf16.mxu0 0
      %1515 = vmatpush1.bf16.xpose.msra.mxu0 0
      %1516 = vmatprep.subr.bf16.mxu0 0
      %1517 = vmatpush1.bf16.xpose.msra.mxu0 0
      %1518 = vmatprep.subr.bf16.mxu0 0
      %1519 = vmatpush1.bf16.xpose.msra.mxu0 0
      %1520 = vmatprep.subr.bf16.mxu0 0
      %1521 = vmatpush1.bf16.xpose.msra.mxu0 0
      %1522 = vmatprep.subr.bf16.mxu0 0
      %1523 = vmatpush1.bf16.xpose.msra.mxu0 0
      %1524 = vmatprep.subr.bf16.mxu0 0
      %1525 = vmatpush1.bf16.xpose.msra.mxu0 0
      %1526 = vmatprep.subr.bf16.mxu0 0
      %1527 = vmatpush1.bf16.xpose.msra.mxu0 0
      %1528 = vmatprep.subr.bf16.mxu0 0
      %1529 = vmatpush1.bf16.xpose.msra.mxu0 0
      %1530 = vmatprep.subr.bf16.mxu0 0
      %1531 = vmatpush1.bf16.xpose.msra.mxu0 0
      %1532 = vmatprep.subr.bf16.mxu0 0
      %1533 = vmatpush1.bf16.xpose.msra.mxu0 0
      %1534 = vmatprep.subr.bf16.mxu0 0
      %1535 = vmatpush1.bf16.xpose.msra.mxu0 0
      %1536 = vmatprep.subr.bf16.mxu0 0
      %1537 = vmatpush1.bf16.xpose.msra.mxu0 0
      %1538 = vmatprep.subr.bf16.mxu0 0
      %1539 = vmatpush1.bf16.xpose.msra.mxu0 0
      %1540 = vmatprep.subr.bf16.mxu0 0
      %1541 = vmatpush1.bf16.xpose.msra.mxu0 0
      %1542 = vmatprep.subr.bf16.mxu0 0
      %1543 = vmatpush1.bf16.xpose.msra.mxu0 0
      %1544 = vmatprep.mubr.bf16.mxu0 0
      %1545 = vmatmul.mubr.bf16.gmra.mrb[0].mxu0 %v1507
      %v1546 = vpop.f32.mrb[0].mxu0
      %v1547 = vadd.f32 %v467, %v1546
      %v1548 = vpop.f32.mrb[0].mxu0
      %v1549 = vpop.f32.mrb[0].mxu0
      %v1550 = vadd.f32 %v468, %v1549
      %v1551 = vpop.f32.mrb[0].mxu0
      %1552 = vdwg.mxu0
      %1553 = vrot.lane.b32.xlu0 %v459, 120
      %v1554 = vpop.permute.xlu0 %1553
      %1555 = vrot.lane.b32.xlu0 %v459, 88
      %v1556 = vpop.permute.xlu0 %1555
      %v1558 = vsel %vm476, %v1554, 0
      %v1561 = vsel %vm476, %v1556, 0
      %1563 = vmatprep.subr.bf16.mxu0 0
      %1564 = vmatpush1.bf16.xpose.msra.mxu0 %v1561
      %1565 = vmatprep.subr.bf16.mxu0 0
      %1566 = vmatpush1.bf16.xpose.msra.mxu0 0
      %1567 = vmatprep.subr.bf16.mxu0 0
      %1568 = vmatpush1.bf16.xpose.msra.mxu0 0
      %1569 = vmatprep.subr.bf16.mxu0 0
      %1570 = vmatpush1.bf16.xpose.msra.mxu0 0
      %1571 = vmatprep.subr.bf16.mxu0 0
      %1572 = vmatpush1.bf16.xpose.msra.mxu0 0
      %1573 = vmatprep.subr.bf16.mxu0 0
      %1574 = vmatpush1.bf16.xpose.msra.mxu0 0
      %1575 = vmatprep.subr.bf16.mxu0 0
      %1576 = vmatpush1.bf16.xpose.msra.mxu0 0
      %1577 = vmatprep.subr.bf16.mxu0 0
      %1578 = vmatpush1.bf16.xpose.msra.mxu0 0
      %1579 = vmatprep.subr.bf16.mxu0 0
      %1580 = vmatpush1.bf16.xpose.msra.mxu0 0
      %1581 = vmatprep.subr.bf16.mxu0 0
      %1582 = vmatpush1.bf16.xpose.msra.mxu0 0
      %1583 = vmatprep.subr.bf16.mxu0 0
      %1584 = vmatpush1.bf16.xpose.msra.mxu0 0
      %1585 = vmatprep.subr.bf16.mxu0 0
      %1586 = vmatpush1.bf16.xpose.msra.mxu0 0
      %1587 = vmatprep.subr.bf16.mxu0 0
      %1588 = vmatpush1.bf16.xpose.msra.mxu0 0
      %1589 = vmatprep.subr.bf16.mxu0 0
      %1590 = vmatpush1.bf16.xpose.msra.mxu0 0
      %1591 = vmatprep.subr.bf16.mxu0 0
      %1592 = vmatpush1.bf16.xpose.msra.mxu0 0
      %1593 = vmatprep.subr.bf16.mxu0 0
      %1594 = vmatpush1.bf16.xpose.msra.mxu0 0
      %1595 = vmatprep.mubr.bf16.mxu0 0
      %1596 = vmatmul.mubr.bf16.gmra.mrb[0].mxu0 %v1558
      %v1597 = vpop.f32.mrb[0].mxu0
      %v1598 = vadd.f32 %v467, %v1597
      %v1599 = vpop.f32.mrb[0].mxu0
      %v1600 = vpop.f32.mrb[0].mxu0
      %v1601 = vadd.f32 %v468, %v1600
      %v1602 = vpop.f32.mrb[0].mxu0
      %1603 = vdwg.mxu0
      %1604 = vrot.lane.b32.xlu0 %v460, 120
      %v1605 = vpop.permute.xlu0 %1604
      %1606 = vrot.lane.b32.xlu0 %v460, 88
      %v1607 = vpop.permute.xlu0 %1606
      %v1609 = vsel %vm476, %v1605, 0
      %v1612 = vsel %vm476, %v1607, 0
      %1614 = vmatprep.subr.bf16.mxu0 0
      %1615 = vmatpush1.bf16.xpose.msra.mxu0 %v1612
      %1616 = vmatprep.subr.bf16.mxu0 0
      %1617 = vmatpush1.bf16.xpose.msra.mxu0 0
      %1618 = vmatprep.subr.bf16.mxu0 0
      %1619 = vmatpush1.bf16.xpose.msra.mxu0 0
      %1620 = vmatprep.subr.bf16.mxu0 0
      %1621 = vmatpush1.bf16.xpose.msra.mxu0 0
      %1622 = vmatprep.subr.bf16.mxu0 0
      %1623 = vmatpush1.bf16.xpose.msra.mxu0 0
      %1624 = vmatprep.subr.bf16.mxu0 0
      %1625 = vmatpush1.bf16.xpose.msra.mxu0 0
      %1626 = vmatprep.subr.bf16.mxu0 0
      %1627 = vmatpush1.bf16.xpose.msra.mxu0 0
      %1628 = vmatprep.subr.bf16.mxu0 0
      %1629 = vmatpush1.bf16.xpose.msra.mxu0 0
      %1630 = vmatprep.subr.bf16.mxu0 0
      %1631 = vmatpush1.bf16.xpose.msra.mxu0 0
      %1632 = vmatprep.subr.bf16.mxu0 0
      %1633 = vmatpush1.bf16.xpose.msra.mxu0 0
      %1634 = vmatprep.subr.bf16.mxu0 0
      %1635 = vmatpush1.bf16.xpose.msra.mxu0 0
      %1636 = vmatprep.subr.bf16.mxu0 0
      %1637 = vmatpush1.bf16.xpose.msra.mxu0 0
      %1638 = vmatprep.subr.bf16.mxu0 0
      %1639 = vmatpush1.bf16.xpose.msra.mxu0 0
      %1640 = vmatprep.subr.bf16.mxu0 0
      %1641 = vmatpush1.bf16.xpose.msra.mxu0 0
      %1642 = vmatprep.subr.bf16.mxu0 0
      %1643 = vmatpush1.bf16.xpose.msra.mxu0 0
      %1644 = vmatprep.subr.bf16.mxu0 0
      %1645 = vmatpush1.bf16.xpose.msra.mxu0 0
      %1646 = vmatprep.mubr.bf16.mxu0 0
      %1647 = vmatmul.mubr.bf16.gmra.mrb[0].mxu0 %v1609
      %v1648 = vpop.f32.mrb[0].mxu0
      %v1649 = vadd.f32 %v467, %v1648
      %v1650 = vpop.f32.mrb[0].mxu0
      %v1651 = vpop.f32.mrb[0].mxu0
      %v1652 = vadd.f32 %v468, %v1651
      %v1653 = vpop.f32.mrb[0].mxu0
      %1654 = vdwg.mxu0
      %1655 = vrot.lane.b32.xlu0 %v461, 120
      %v1656 = vpop.permute.xlu0 %1655
      %1657 = vrot.lane.b32.xlu0 %v461, 88
      %v1658 = vpop.permute.xlu0 %1657
      %v1660 = vsel %vm476, %v1656, 0
      %v1663 = vsel %vm476, %v1658, 0
      %1665 = vmatprep.subr.bf16.mxu0 0
      %1666 = vmatpush1.bf16.xpose.msra.mxu0 %v1663
      %1667 = vmatprep.subr.bf16.mxu0 0
      %1668 = vmatpush1.bf16.xpose.msra.mxu0 0
      %1669 = vmatprep.subr.bf16.mxu0 0
      %1670 = vmatpush1.bf16.xpose.msra.mxu0 0
      %1671 = vmatprep.subr.bf16.mxu0 0
      %1672 = vmatpush1.bf16.xpose.msra.mxu0 0
      %1673 = vmatprep.subr.bf16.mxu0 0
      %1674 = vmatpush1.bf16.xpose.msra.mxu0 0
      %1675 = vmatprep.subr.bf16.mxu0 0
      %1676 = vmatpush1.bf16.xpose.msra.mxu0 0
      %1677 = vmatprep.subr.bf16.mxu0 0
      %1678 = vmatpush1.bf16.xpose.msra.mxu0 0
      %1679 = vmatprep.subr.bf16.mxu0 0
      %1680 = vmatpush1.bf16.xpose.msra.mxu0 0
      %1681 = vmatprep.subr.bf16.mxu0 0
      %1682 = vmatpush1.bf16.xpose.msra.mxu0 0
      %1683 = vmatprep.subr.bf16.mxu0 0
      %1684 = vmatpush1.bf16.xpose.msra.mxu0 0
      %1685 = vmatprep.subr.bf16.mxu0 0
      %1686 = vmatpush1.bf16.xpose.msra.mxu0 0
      %1687 = vmatprep.subr.bf16.mxu0 0
      %1688 = vmatpush1.bf16.xpose.msra.mxu0 0
      %1689 = vmatprep.subr.bf16.mxu0 0
      %1690 = vmatpush1.bf16.xpose.msra.mxu0 0
      %1691 = vmatprep.subr.bf16.mxu0 0
      %1692 = vmatpush1.bf16.xpose.msra.mxu0 0
      %1693 = vmatprep.subr.bf16.mxu0 0
      %1694 = vmatpush1.bf16.xpose.msra.mxu0 0
      %1695 = vmatprep.subr.bf16.mxu0 0
      %1696 = vmatpush1.bf16.xpose.msra.mxu0 0
      %1697 = vmatprep.mubr.bf16.mxu0 0
      %1698 = vmatmul.mubr.bf16.gmra.mrb[0].mxu0 %v1660
      %v1699 = vpop.f32.mrb[0].mxu0
      %v1700 = vadd.f32 %v467, %v1699
      %v1701 = vpop.f32.mrb[0].mxu0
      %v1702 = vpop.f32.mrb[0].mxu0
      %v1703 = vadd.f32 %v468, %v1702
      %v1704 = vpop.f32.mrb[0].mxu0
      %1705 = vdwg.mxu0
      %1706 = vrot.lane.b32.xlu0 %v462, 120
      %v1707 = vpop.permute.xlu0 %1706
      %1708 = vrot.lane.b32.xlu0 %v462, 88
      %v1709 = vpop.permute.xlu0 %1708
      %v1711 = vsel %vm476, %v1707, 0
      %v1714 = vsel %vm476, %v1709, 0
      %1716 = vmatprep.subr.bf16.mxu0 0
      %1717 = vmatpush1.bf16.xpose.msra.mxu0 %v1714
      %1718 = vmatprep.subr.bf16.mxu0 0
      %1719 = vmatpush1.bf16.xpose.msra.mxu0 0
      %1720 = vmatprep.subr.bf16.mxu0 0
      %1721 = vmatpush1.bf16.xpose.msra.mxu0 0
      %1722 = vmatprep.subr.bf16.mxu0 0
      %1723 = vmatpush1.bf16.xpose.msra.mxu0 0
      %1724 = vmatprep.subr.bf16.mxu0 0
      %1725 = vmatpush1.bf16.xpose.msra.mxu0 0
      %1726 = vmatprep.subr.bf16.mxu0 0
      %1727 = vmatpush1.bf16.xpose.msra.mxu0 0
      %1728 = vmatprep.subr.bf16.mxu0 0
      %1729 = vmatpush1.bf16.xpose.msra.mxu0 0
      %1730 = vmatprep.subr.bf16.mxu0 0
      %1731 = vmatpush1.bf16.xpose.msra.mxu0 0
      %1732 = vmatprep.subr.bf16.mxu0 0
      %1733 = vmatpush1.bf16.xpose.msra.mxu0 0
      %1734 = vmatprep.subr.bf16.mxu0 0
      %1735 = vmatpush1.bf16.xpose.msra.mxu0 0
      %1736 = vmatprep.subr.bf16.mxu0 0
      %1737 = vmatpush1.bf16.xpose.msra.mxu0 0
      %1738 = vmatprep.subr.bf16.mxu0 0
      %1739 = vmatpush1.bf16.xpose.msra.mxu0 0
      %1740 = vmatprep.subr.bf16.mxu0 0
      %1741 = vmatpush1.bf16.xpose.msra.mxu0 0
      %1742 = vmatprep.subr.bf16.mxu0 0
      %1743 = vmatpush1.bf16.xpose.msra.mxu0 0
      %1744 = vmatprep.subr.bf16.mxu0 0
      %1745 = vmatpush1.bf16.xpose.msra.mxu0 0
      %1746 = vmatprep.subr.bf16.mxu0 0
      %1747 = vmatpush1.bf16.xpose.msra.mxu0 0
      %1748 = vmatprep.mubr.bf16.mxu0 0
      %1749 = vmatmul.mubr.bf16.gmra.mrb[0].mxu0 %v1711
      %v1750 = vpop.f32.mrb[0].mxu0
      %v1751 = vadd.f32 %v467, %v1750
      %v1752 = vpop.f32.mrb[0].mxu0
      %v1753 = vpop.f32.mrb[0].mxu0
      %v1754 = vadd.f32 %v468, %v1753
      %v1755 = vpop.f32.mrb[0].mxu0
      %1756 = vdwg.mxu0
      %1757 = vrot.lane.b32.xlu0 %v463, 120
      %v1758 = vpop.permute.xlu0 %1757
      %1759 = vrot.lane.b32.xlu0 %v463, 88
      %v1760 = vpop.permute.xlu0 %1759
      %v1762 = vsel %vm476, %v1758, 0
      %v1765 = vsel %vm476, %v1760, 0
      %1767 = vmatprep.subr.bf16.mxu0 0
      %1768 = vmatpush1.bf16.xpose.msra.mxu0 %v1765
      %1769 = vmatprep.subr.bf16.mxu0 0
      %1770 = vmatpush1.bf16.xpose.msra.mxu0 0
      %1771 = vmatprep.subr.bf16.mxu0 0
      %1772 = vmatpush1.bf16.xpose.msra.mxu0 0
      %1773 = vmatprep.subr.bf16.mxu0 0
      %1774 = vmatpush1.bf16.xpose.msra.mxu0 0
      %1775 = vmatprep.subr.bf16.mxu0 0
      %1776 = vmatpush1.bf16.xpose.msra.mxu0 0
      %1777 = vmatprep.subr.bf16.mxu0 0
      %1778 = vmatpush1.bf16.xpose.msra.mxu0 0
      %1779 = vmatprep.subr.bf16.mxu0 0
      %1780 = vmatpush1.bf16.xpose.msra.mxu0 0
      %1781 = vmatprep.subr.bf16.mxu0 0
      %1782 = vmatpush1.bf16.xpose.msra.mxu0 0
      %1783 = vmatprep.subr.bf16.mxu0 0
      %1784 = vmatpush1.bf16.xpose.msra.mxu0 0
      %1785 = vmatprep.subr.bf16.mxu0 0
      %1786 = vmatpush1.bf16.xpose.msra.mxu0 0
      %1787 = vmatprep.subr.bf16.mxu0 0
      %1788 = vmatpush1.bf16.xpose.msra.mxu0 0
      %1789 = vmatprep.subr.bf16.mxu0 0
      %1790 = vmatpush1.bf16.xpose.msra.mxu0 0
      %1791 = vmatprep.subr.bf16.mxu0 0
      %1792 = vmatpush1.bf16.xpose.msra.mxu0 0
      %1793 = vmatprep.subr.bf16.mxu0 0
      %1794 = vmatpush1.bf16.xpose.msra.mxu0 0
      %1795 = vmatprep.subr.bf16.mxu0 0
      %1796 = vmatpush1.bf16.xpose.msra.mxu0 0
      %1797 = vmatprep.subr.bf16.mxu0 0
      %1798 = vmatpush1.bf16.xpose.msra.mxu0 0
      %1799 = vmatprep.mubr.bf16.mxu0 0
      %1800 = vmatmul.mubr.bf16.gmra.mrb[0].mxu0 %v1762
      %v1801 = vpop.f32.mrb[0].mxu0
      %v1802 = vadd.f32 %v467, %v1801
      %v1803 = vpop.f32.mrb[0].mxu0
      %v1804 = vpop.f32.mrb[0].mxu0
      %v1805 = vadd.f32 %v468, %v1804
      %v1806 = vpop.f32.mrb[0].mxu0
      %1807 = vdwg.mxu0
      %1808 = vrot.lane.b32.xlu0 %v464, 120
      %v1809 = vpop.permute.xlu0 %1808
      %1810 = vrot.lane.b32.xlu0 %v464, 88
      %v1811 = vpop.permute.xlu0 %1810
      %v1813 = vsel %vm476, %v1809, 0
      %v1816 = vsel %vm476, %v1811, 0
      %1818 = vmatprep.subr.bf16.mxu0 0
      %1819 = vmatpush1.bf16.xpose.msra.mxu0 %v1816
      %1820 = vmatprep.subr.bf16.mxu0 0
      %1821 = vmatpush1.bf16.xpose.msra.mxu0 0
      %1822 = vmatprep.subr.bf16.mxu0 0
      %1823 = vmatpush1.bf16.xpose.msra.mxu0 0
      %1824 = vmatprep.subr.bf16.mxu0 0
      %1825 = vmatpush1.bf16.xpose.msra.mxu0 0
      %1826 = vmatprep.subr.bf16.mxu0 0
      %1827 = vmatpush1.bf16.xpose.msra.mxu0 0
      %1828 = vmatprep.subr.bf16.mxu0 0
      %1829 = vmatpush1.bf16.xpose.msra.mxu0 0
      %1830 = vmatprep.subr.bf16.mxu0 0
      %1831 = vmatpush1.bf16.xpose.msra.mxu0 0
      %1832 = vmatprep.subr.bf16.mxu0 0
      %1833 = vmatpush1.bf16.xpose.msra.mxu0 0
      %1834 = vmatprep.subr.bf16.mxu0 0
      %1835 = vmatpush1.bf16.xpose.msra.mxu0 0
      %1836 = vmatprep.subr.bf16.mxu0 0
      %1837 = vmatpush1.bf16.xpose.msra.mxu0 0
      %1838 = vmatprep.subr.bf16.mxu0 0
      %1839 = vmatpush1.bf16.xpose.msra.mxu0 0
      %1840 = vmatprep.subr.bf16.mxu0 0
      %1841 = vmatpush1.bf16.xpose.msra.mxu0 0
      %1842 = vmatprep.subr.bf16.mxu0 0
      %1843 = vmatpush1.bf16.xpose.msra.mxu0 0
      %1844 = vmatprep.subr.bf16.mxu0 0
      %1845 = vmatpush1.bf16.xpose.msra.mxu0 0
      %1846 = vmatprep.subr.bf16.mxu0 0
      %1847 = vmatpush1.bf16.xpose.msra.mxu0 0
      %1848 = vmatprep.subr.bf16.mxu0 0
      %1849 = vmatpush1.bf16.xpose.msra.mxu0 0
      %1850 = vmatprep.mubr.bf16.mxu0 0
      %1851 = vmatmul.mubr.bf16.gmra.mrb[0].mxu0 %v1813
      %v1852 = vpop.f32.mrb[0].mxu0
      %v1853 = vadd.f32 %v467, %v1852
      %v1854 = vpop.f32.mrb[0].mxu0
      %v1855 = vpop.f32.mrb[0].mxu0
      %v1856 = vadd.f32 %v468, %v1855
      %v1857 = vpop.f32.mrb[0].mxu0
      %1858 = vdwg.mxu0
      %v1859 = vsel %vm874, %v1496, -inf
      %1860 = vmax.xlane.f32.xlu0 %v1859
      %v1861 = vpop.xlane.xlu0 %1860
      %v1862 = vsel %vm874, %v1499, -inf
      %1863 = vmax.xlane.f32.xlu0 %v1862
      %v1864 = vpop.xlane.xlu0 %1863
      %v1865 = vsel %vm874, %v1547, -inf
      %1866 = vmax.xlane.f32.xlu0 %v1865
      %v1867 = vpop.xlane.xlu0 %1866
      %v1868 = vsel %vm874, %v1550, -inf
      %1869 = vmax.xlane.f32.xlu0 %v1868
      %v1870 = vpop.xlane.xlu0 %1869
      %v1871 = vsel %vm874, %v1598, -inf
      %1872 = vmax.xlane.f32.xlu0 %v1871
      %v1873 = vpop.xlane.xlu0 %1872
      %v1874 = vsel %vm874, %v1601, -inf
      %1875 = vmax.xlane.f32.xlu0 %v1874
      %v1876 = vpop.xlane.xlu0 %1875
      %v1877 = vsel %vm874, %v1649, -inf
      %1878 = vmax.xlane.f32.xlu0 %v1877
      %v1879 = vpop.xlane.xlu0 %1878
      %v1880 = vsel %vm874, %v1652, -inf
      %1881 = vmax.xlane.f32.xlu0 %v1880
      %v1882 = vpop.xlane.xlu0 %1881
      %v1883 = vsel %vm874, %v1700, -inf
      %1884 = vmax.xlane.f32.xlu0 %v1883
      %v1885 = vpop.xlane.xlu0 %1884
      %v1886 = vsel %vm874, %v1703, -inf
      %1887 = vmax.xlane.f32.xlu0 %v1886
      %v1888 = vpop.xlane.xlu0 %1887
      %v1889 = vsel %vm874, %v1751, -inf
      %1890 = vmax.xlane.f32.xlu0 %v1889
      %v1891 = vpop.xlane.xlu0 %1890
      %v1892 = vsel %vm874, %v1754, -inf
      %1893 = vmax.xlane.f32.xlu0 %v1892
      %v1894 = vpop.xlane.xlu0 %1893
      %v1895 = vsel %vm874, %v1802, -inf
      %1896 = vmax.xlane.f32.xlu0 %v1895
      %v1897 = vpop.xlane.xlu0 %1896
      %v1898 = vsel %vm874, %v1805, -inf
      %1899 = vmax.xlane.f32.xlu0 %v1898
      %v1900 = vpop.xlane.xlu0 %1899
      %v1901 = vsel %vm874, %v1853, -inf
      %1902 = vmax.xlane.f32.xlu0 %v1901
      %v1903 = vpop.xlane.xlu0 %1902
      %v1904 = vsel %vm874, %v1856, -inf
      %1905 = vmax.xlane.f32.xlu0 %v1904
      %v1906 = vpop.xlane.xlu0 %1905
      %v1907 = vsub.f32 %v1496, %v1861
      %v1908 = vsub.f32 %v1499, %v1864
      %v1909 = vsub.f32 %v1547, %v1867
      %v1910 = vsub.f32 %v1550, %v1870
      %v1911 = vsub.f32 %v1598, %v1873
      %v1912 = vsub.f32 %v1601, %v1876
      %v1913 = vsub.f32 %v1649, %v1879
      %v1914 = vsub.f32 %v1652, %v1882
      %v1915 = vsub.f32 %v1700, %v1885
      %v1916 = vsub.f32 %v1703, %v1888
      %v1917 = vsub.f32 %v1751, %v1891
      %v1918 = vsub.f32 %v1754, %v1894
      %v1919 = vsub.f32 %v1802, %v1897
      %v1920 = vsub.f32 %v1805, %v1900
      %v1921 = vsub.f32 %v1853, %v1903
      %v1922 = vsub.f32 %v1856, %v1906
      %v1923 = vmul.f32 %v1907, 1.442695
      %v1924 = vpow.pop %v1923
      %v1925 = vmul.f32 %v1908, 1.442695
      %v1926 = vpow.pop %v1925
      %v1927 = vmul.f32 %v1909, 1.442695
      %v1928 = vpow.pop %v1927
      %v1929 = vmul.f32 %v1910, 1.442695
      %v1930 = vpow.pop %v1929
      %v1931 = vmul.f32 %v1911, 1.442695
      %v1932 = vpow.pop %v1931
      %v1933 = vmul.f32 %v1912, 1.442695
      %v1934 = vpow.pop %v1933
      %v1935 = vmul.f32 %v1913, 1.442695
      %v1936 = vpow.pop %v1935
      %v1937 = vmul.f32 %v1914, 1.442695
      %v1938 = vpow.pop %v1937
      %v1939 = vmul.f32 %v1915, 1.442695
      %v1940 = vpow.pop %v1939
      %v1941 = vmul.f32 %v1916, 1.442695
      %v1942 = vpow.pop %v1941
      %v1943 = vmul.f32 %v1917, 1.442695
      %v1944 = vpow.pop %v1943
      %v1945 = vmul.f32 %v1918, 1.442695
      %v1946 = vpow.pop %v1945
      %v1947 = vmul.f32 %v1919, 1.442695
      %v1948 = vpow.pop %v1947
      %v1949 = vmul.f32 %v1920, 1.442695
      %v1950 = vpow.pop %v1949
      %v1951 = vmul.f32 %v1921, 1.442695
      %v1952 = vpow.pop %v1951
      %v1953 = vmul.f32 %v1922, 1.442695
      %v1954 = vpow.pop %v1953
      %v1955 = vsel %vm874, %v1924, 0.0
      %1956 = vadd.xlane.f32.xlu0 %v1955
      %v1957 = vpop.xlane.xlu0 %1956
      %v1958 = vsel %vm874, %v1926, 0.0
      %1959 = vadd.xlane.f32.xlu0 %v1958
      %v1960 = vpop.xlane.xlu0 %1959
      %v1961 = vsel %vm874, %v1928, 0.0
      %1962 = vadd.xlane.f32.xlu0 %v1961
      %v1963 = vpop.xlane.xlu0 %1962
      %v1964 = vsel %vm874, %v1930, 0.0
      %1965 = vadd.xlane.f32.xlu0 %v1964
      %v1966 = vpop.xlane.xlu0 %1965
      %v1967 = vsel %vm874, %v1932, 0.0
      %1968 = vadd.xlane.f32.xlu0 %v1967
      %v1969 = vpop.xlane.xlu0 %1968
      %v1970 = vsel %vm874, %v1934, 0.0
      %1971 = vadd.xlane.f32.xlu0 %v1970
      %v1972 = vpop.xlane.xlu0 %1971
      %v1973 = vsel %vm874, %v1936, 0.0
      %1974 = vadd.xlane.f32.xlu0 %v1973
      %v1975 = vpop.xlane.xlu0 %1974
      %v1976 = vsel %vm874, %v1938, 0.0
      %1977 = vadd.xlane.f32.xlu0 %v1976
      %v1978 = vpop.xlane.xlu0 %1977
      %v1979 = vsel %vm874, %v1940, 0.0
      %1980 = vadd.xlane.f32.xlu0 %v1979
      %v1981 = vpop.xlane.xlu0 %1980
      %v1982 = vsel %vm874, %v1942, 0.0
      %1983 = vadd.xlane.f32.xlu0 %v1982
      %v1984 = vpop.xlane.xlu0 %1983
      %v1985 = vsel %vm874, %v1944, 0.0
      %1986 = vadd.xlane.f32.xlu0 %v1985
      %v1987 = vpop.xlane.xlu0 %1986
      %v1988 = vsel %vm874, %v1946, 0.0
      %1989 = vadd.xlane.f32.xlu0 %v1988
      %v1990 = vpop.xlane.xlu0 %1989
      %v1991 = vsel %vm874, %v1948, 0.0
      %1992 = vadd.xlane.f32.xlu0 %v1991
      %v1993 = vpop.xlane.xlu0 %1992
      %v1994 = vsel %vm874, %v1950, 0.0
      %1995 = vadd.xlane.f32.xlu0 %v1994
      %v1996 = vpop.xlane.xlu0 %1995
      %v1997 = vsel %vm874, %v1952, 0.0
      %1998 = vadd.xlane.f32.xlu0 %v1997
      %v1999 = vpop.xlane.xlu0 %1998
      %v2000 = vsel %vm874, %v1954, 0.0
      %2001 = vadd.xlane.f32.xlu0 %v2000
      %v2002 = vpop.xlane.xlu0 %2001
      %v2003 = vrcp.pop %v1957
      %v2004 = vrcp.pop %v1960
      %v2005 = vrcp.pop %v1963
      %v2006 = vrcp.pop %v1966
      %v2007 = vrcp.pop %v1969
      %v2008 = vrcp.pop %v1972
      %v2009 = vrcp.pop %v1975
      %v2010 = vrcp.pop %v1978
      %v2011 = vrcp.pop %v1981
      %v2012 = vrcp.pop %v1984
      %v2013 = vrcp.pop %v1987
      %v2014 = vrcp.pop %v1990
      %v2015 = vrcp.pop %v1993
      %v2016 = vrcp.pop %v1996
      %v2017 = vrcp.pop %v1999
      %v2018 = vrcp.pop %v2002
      %v2019 = vmul.f32 %v1924, %v2003
      %v2020 = vmul.f32 %v1926, %v2004
      %v2021 = vmul.f32 %v1928, %v2005
      %v2022 = vmul.f32 %v1930, %v2006
      %v2023 = vmul.f32 %v1932, %v2007
      %v2024 = vmul.f32 %v1934, %v2008
      %v2025 = vmul.f32 %v1936, %v2009
      %v2026 = vmul.f32 %v1938, %v2010
      %v2027 = vmul.f32 %v1940, %v2011
      %v2028 = vmul.f32 %v1942, %v2012
      %v2029 = vmul.f32 %v1944, %v2013
      %v2030 = vmul.f32 %v1946, %v2014
      %v2031 = vmul.f32 %v1948, %v2015
      %v2032 = vmul.f32 %v1950, %v2016
      %v2033 = vmul.f32 %v1952, %v2017
      %v2034 = vmul.f32 %v1954, %v2018
      %v2035 = vpack.c.bf16 %v2020, %v2019
      %v2036 = vpack.c.bf16 %v2022, %v2021
      %v2037 = vpack.c.bf16 %v2024, %v2023
      %v2038 = vpack.c.bf16 %v2026, %v2025
      %v2039 = vpack.c.bf16 %v2028, %v2027
      %v2040 = vpack.c.bf16 %v2030, %v2029
      %v2041 = vpack.c.bf16 %v2032, %v2031
      %v2042 = vpack.c.bf16 %v2034, %v2033
      %2043 = vrot.lane.b32.xlu0 %v457, 56
      %v2044 = vpop.permute.xlu0 %2043
      %v2047 = vsel %vm874, %v2035, 0
      %2049 = vmatprep.subr.bf16.mxu0 0
      %2050 = vmatpush1.bf16.msra.mxu0 %v2044
      %2051 = vmatprep.subr.bf16.mxu0 0
      %2052 = vmatpush1.bf16.msra.mxu0 0
      %2053 = vmatprep.subr.bf16.mxu0 0
      %2054 = vmatpush1.bf16.msra.mxu0 0
      %2055 = vmatprep.subr.bf16.mxu0 0
      %2056 = vmatpush1.bf16.msra.mxu0 0
      %2057 = vmatprep.subr.bf16.mxu0 0
      %2058 = vmatpush1.bf16.msra.mxu0 0
      %2059 = vmatprep.subr.bf16.mxu0 0
      %2060 = vmatpush1.bf16.msra.mxu0 0
      %2061 = vmatprep.subr.bf16.mxu0 0
      %2062 = vmatpush1.bf16.msra.mxu0 0
      %2063 = vmatprep.subr.bf16.mxu0 0
      %2064 = vmatpush1.bf16.msra.mxu0 0
      %2065 = vmatprep.subr.bf16.mxu0 0
      %2066 = vmatpush1.bf16.msra.mxu0 0
      %2067 = vmatprep.subr.bf16.mxu0 0
      %2068 = vmatpush1.bf16.msra.mxu0 0
      %2069 = vmatprep.subr.bf16.mxu0 0
      %2070 = vmatpush1.bf16.msra.mxu0 0
      %2071 = vmatprep.subr.bf16.mxu0 0
      %2072 = vmatpush1.bf16.msra.mxu0 0
      %2073 = vmatprep.subr.bf16.mxu0 0
      %2074 = vmatpush1.bf16.msra.mxu0 0
      %2075 = vmatprep.subr.bf16.mxu0 0
      %2076 = vmatpush1.bf16.msra.mxu0 0
      %2077 = vmatprep.subr.bf16.mxu0 0
      %2078 = vmatpush1.bf16.msra.mxu0 0
      %2079 = vmatprep.subr.bf16.mxu0 0
      %2080 = vmatpush1.bf16.msra.mxu0 0
      %2081 = vmatprep.mubr.bf16.mxu0 0
      %2082 = vmatmul.mubr.bf16.gmra.mrb[0].mxu0 %v2047
      %v2083 = vpop.f32.mrb[0].mxu0
      %v2084 = vadd.f32 0.0, %v2083
      %v2085 = vpop.f32.mrb[0].mxu0
      %v2086 = vpop.f32.mrb[0].mxu0
      %v2087 = vadd.f32 0.0, %v2086
      %v2088 = vpop.f32.mrb[0].mxu0
      %2089 = vdwg.mxu0
      %2090 = vrot.lane.b32.xlu0 %v458, 56
      %v2091 = vpop.permute.xlu0 %2090
      %v2094 = vsel %vm874, %v2036, 0
      %2096 = vmatprep.subr.bf16.mxu0 0
      %2097 = vmatpush1.bf16.msra.mxu0 %v2091
      %2098 = vmatprep.subr.bf16.mxu0 0
      %2099 = vmatpush1.bf16.msra.mxu0 0
      %2100 = vmatprep.subr.bf16.mxu0 0
      %2101 = vmatpush1.bf16.msra.mxu0 0
      %2102 = vmatprep.subr.bf16.mxu0 0
      %2103 = vmatpush1.bf16.msra.mxu0 0
      %2104 = vmatprep.subr.bf16.mxu0 0
      %2105 = vmatpush1.bf16.msra.mxu0 0
      %2106 = vmatprep.subr.bf16.mxu0 0
      %2107 = vmatpush1.bf16.msra.mxu0 0
      %2108 = vmatprep.subr.bf16.mxu0 0
      %2109 = vmatpush1.bf16.msra.mxu0 0
      %2110 = vmatprep.subr.bf16.mxu0 0
      %2111 = vmatpush1.bf16.msra.mxu0 0
      %2112 = vmatprep.subr.bf16.mxu0 0
      %2113 = vmatpush1.bf16.msra.mxu0 0
      %2114 = vmatprep.subr.bf16.mxu0 0
      %2115 = vmatpush1.bf16.msra.mxu0 0
      %2116 = vmatprep.subr.bf16.mxu0 0
      %2117 = vmatpush1.bf16.msra.mxu0 0
      %2118 = vmatprep.subr.bf16.mxu0 0
      %2119 = vmatpush1.bf16.msra.mxu0 0
      %2120 = vmatprep.subr.bf16.mxu0 0
      %2121 = vmatpush1.bf16.msra.mxu0 0
      %2122 = vmatprep.subr.bf16.mxu0 0
      %2123 = vmatpush1.bf16.msra.mxu0 0
      %2124 = vmatprep.subr.bf16.mxu0 0
      %2125 = vmatpush1.bf16.msra.mxu0 0
      %2126 = vmatprep.subr.bf16.mxu0 0
      %2127 = vmatpush1.bf16.msra.mxu0 0
      %2128 = vmatprep.mubr.bf16.mxu0 0
      %2129 = vmatmul.mubr.bf16.gmra.mrb[0].mxu0 %v2094
      %v2130 = vpop.f32.mrb[0].mxu0
      %v2131 = vadd.f32 0.0, %v2130
      %v2132 = vpop.f32.mrb[0].mxu0
      %v2133 = vpop.f32.mrb[0].mxu0
      %v2134 = vadd.f32 0.0, %v2133
      %v2135 = vpop.f32.mrb[0].mxu0
      %2136 = vdwg.mxu0
      %2137 = vrot.lane.b32.xlu0 %v459, 56
      %v2138 = vpop.permute.xlu0 %2137
      %v2141 = vsel %vm874, %v2037, 0
      %2143 = vmatprep.subr.bf16.mxu0 0
      %2144 = vmatpush1.bf16.msra.mxu0 %v2138
      %2145 = vmatprep.subr.bf16.mxu0 0
      %2146 = vmatpush1.bf16.msra.mxu0 0
      %2147 = vmatprep.subr.bf16.mxu0 0
      %2148 = vmatpush1.bf16.msra.mxu0 0
      %2149 = vmatprep.subr.bf16.mxu0 0
      %2150 = vmatpush1.bf16.msra.mxu0 0
      %2151 = vmatprep.subr.bf16.mxu0 0
      %2152 = vmatpush1.bf16.msra.mxu0 0
      %2153 = vmatprep.subr.bf16.mxu0 0
      %2154 = vmatpush1.bf16.msra.mxu0 0
      %2155 = vmatprep.subr.bf16.mxu0 0
      %2156 = vmatpush1.bf16.msra.mxu0 0
      %2157 = vmatprep.subr.bf16.mxu0 0
      %2158 = vmatpush1.bf16.msra.mxu0 0
      %2159 = vmatprep.subr.bf16.mxu0 0
      %2160 = vmatpush1.bf16.msra.mxu0 0
      %2161 = vmatprep.subr.bf16.mxu0 0
      %2162 = vmatpush1.bf16.msra.mxu0 0
      %2163 = vmatprep.subr.bf16.mxu0 0
      %2164 = vmatpush1.bf16.msra.mxu0 0
      %2165 = vmatprep.subr.bf16.mxu0 0
      %2166 = vmatpush1.bf16.msra.mxu0 0
      %2167 = vmatprep.subr.bf16.mxu0 0
      %2168 = vmatpush1.bf16.msra.mxu0 0
      %2169 = vmatprep.subr.bf16.mxu0 0
      %2170 = vmatpush1.bf16.msra.mxu0 0
      %2171 = vmatprep.subr.bf16.mxu0 0
      %2172 = vmatpush1.bf16.msra.mxu0 0
      %2173 = vmatprep.subr.bf16.mxu0 0
      %2174 = vmatpush1.bf16.msra.mxu0 0
      %2175 = vmatprep.mubr.bf16.mxu0 0
      %2176 = vmatmul.mubr.bf16.gmra.mrb[0].mxu0 %v2141
      %v2177 = vpop.f32.mrb[0].mxu0
      %v2178 = vadd.f32 0.0, %v2177
      %v2179 = vpop.f32.mrb[0].mxu0
      %v2180 = vpop.f32.mrb[0].mxu0
      %v2181 = vadd.f32 0.0, %v2180
      %v2182 = vpop.f32.mrb[0].mxu0
      %2183 = vdwg.mxu0
      %2184 = vrot.lane.b32.xlu0 %v460, 56
      %v2185 = vpop.permute.xlu0 %2184
      %v2188 = vsel %vm874, %v2038, 0
      %2190 = vmatprep.subr.bf16.mxu0 0
      %2191 = vmatpush1.bf16.msra.mxu0 %v2185
      %2192 = vmatprep.subr.bf16.mxu0 0
      %2193 = vmatpush1.bf16.msra.mxu0 0
      %2194 = vmatprep.subr.bf16.mxu0 0
      %2195 = vmatpush1.bf16.msra.mxu0 0
      %2196 = vmatprep.subr.bf16.mxu0 0
      %2197 = vmatpush1.bf16.msra.mxu0 0
      %2198 = vmatprep.subr.bf16.mxu0 0
      %2199 = vmatpush1.bf16.msra.mxu0 0
      %2200 = vmatprep.subr.bf16.mxu0 0
      %2201 = vmatpush1.bf16.msra.mxu0 0
      %2202 = vmatprep.subr.bf16.mxu0 0
      %2203 = vmatpush1.bf16.msra.mxu0 0
      %2204 = vmatprep.subr.bf16.mxu0 0
      %2205 = vmatpush1.bf16.msra.mxu0 0
      %2206 = vmatprep.subr.bf16.mxu0 0
      %2207 = vmatpush1.bf16.msra.mxu0 0
      %2208 = vmatprep.subr.bf16.mxu0 0
      %2209 = vmatpush1.bf16.msra.mxu0 0
      %2210 = vmatprep.subr.bf16.mxu0 0
      %2211 = vmatpush1.bf16.msra.mxu0 0
      %2212 = vmatprep.subr.bf16.mxu0 0
      %2213 = vmatpush1.bf16.msra.mxu0 0
      %2214 = vmatprep.subr.bf16.mxu0 0
      %2215 = vmatpush1.bf16.msra.mxu0 0
      %2216 = vmatprep.subr.bf16.mxu0 0
      %2217 = vmatpush1.bf16.msra.mxu0 0
      %2218 = vmatprep.subr.bf16.mxu0 0
      %2219 = vmatpush1.bf16.msra.mxu0 0
      %2220 = vmatprep.subr.bf16.mxu0 0
      %2221 = vmatpush1.bf16.msra.mxu0 0
      %2222 = vmatprep.mubr.bf16.mxu0 0
      %2223 = vmatmul.mubr.bf16.gmra.mrb[0].mxu0 %v2188
      %v2224 = vpop.f32.mrb[0].mxu0
      %v2225 = vadd.f32 0.0, %v2224
      %v2226 = vpop.f32.mrb[0].mxu0
      %v2227 = vpop.f32.mrb[0].mxu0
      %v2228 = vadd.f32 0.0, %v2227
      %v2229 = vpop.f32.mrb[0].mxu0
      %2230 = vdwg.mxu0
      %2231 = vrot.lane.b32.xlu0 %v461, 56
      %v2232 = vpop.permute.xlu0 %2231
      %v2235 = vsel %vm874, %v2039, 0
      %2237 = vmatprep.subr.bf16.mxu0 0
      %2238 = vmatpush1.bf16.msra.mxu0 %v2232
      %2239 = vmatprep.subr.bf16.mxu0 0
      %2240 = vmatpush1.bf16.msra.mxu0 0
      %2241 = vmatprep.subr.bf16.mxu0 0
      %2242 = vmatpush1.bf16.msra.mxu0 0
      %2243 = vmatprep.subr.bf16.mxu0 0
      %2244 = vmatpush1.bf16.msra.mxu0 0
      %2245 = vmatprep.subr.bf16.mxu0 0
      %2246 = vmatpush1.bf16.msra.mxu0 0
      %2247 = vmatprep.subr.bf16.mxu0 0
      %2248 = vmatpush1.bf16.msra.mxu0 0
      %2249 = vmatprep.subr.bf16.mxu0 0
      %2250 = vmatpush1.bf16.msra.mxu0 0
      %2251 = vmatprep.subr.bf16.mxu0 0
      %2252 = vmatpush1.bf16.msra.mxu0 0
      %2253 = vmatprep.subr.bf16.mxu0 0
      %2254 = vmatpush1.bf16.msra.mxu0 0
      %2255 = vmatprep.subr.bf16.mxu0 0
      %2256 = vmatpush1.bf16.msra.mxu0 0
      %2257 = vmatprep.subr.bf16.mxu0 0
      %2258 = vmatpush1.bf16.msra.mxu0 0
      %2259 = vmatprep.subr.bf16.mxu0 0
      %2260 = vmatpush1.bf16.msra.mxu0 0
      %2261 = vmatprep.subr.bf16.mxu0 0
      %2262 = vmatpush1.bf16.msra.mxu0 0
      %2263 = vmatprep.subr.bf16.mxu0 0
      %2264 = vmatpush1.bf16.msra.mxu0 0
      %2265 = vmatprep.subr.bf16.mxu0 0
      %2266 = vmatpush1.bf16.msra.mxu0 0
      %2267 = vmatprep.subr.bf16.mxu0 0
      %2268 = vmatpush1.bf16.msra.mxu0 0
      %2269 = vmatprep.mubr.bf16.mxu0 0
      %2270 = vmatmul.mubr.bf16.gmra.mrb[0].mxu0 %v2235
      %v2271 = vpop.f32.mrb[0].mxu0
      %v2272 = vadd.f32 0.0, %v2271
      %v2273 = vpop.f32.mrb[0].mxu0
      %v2274 = vpop.f32.mrb[0].mxu0
      %v2275 = vadd.f32 0.0, %v2274
      %v2276 = vpop.f32.mrb[0].mxu0
      %2277 = vdwg.mxu0
      %2278 = vrot.lane.b32.xlu0 %v462, 56
      %v2279 = vpop.permute.xlu0 %2278
      %v2282 = vsel %vm874, %v2040, 0
      %2284 = vmatprep.subr.bf16.mxu0 0
      %2285 = vmatpush1.bf16.msra.mxu0 %v2279
      %2286 = vmatprep.subr.bf16.mxu0 0
      %2287 = vmatpush1.bf16.msra.mxu0 0
      %2288 = vmatprep.subr.bf16.mxu0 0
      %2289 = vmatpush1.bf16.msra.mxu0 0
      %2290 = vmatprep.subr.bf16.mxu0 0
      %2291 = vmatpush1.bf16.msra.mxu0 0
      %2292 = vmatprep.subr.bf16.mxu0 0
      %2293 = vmatpush1.bf16.msra.mxu0 0
      %2294 = vmatprep.subr.bf16.mxu0 0
      %2295 = vmatpush1.bf16.msra.mxu0 0
      %2296 = vmatprep.subr.bf16.mxu0 0
      %2297 = vmatpush1.bf16.msra.mxu0 0
      %2298 = vmatprep.subr.bf16.mxu0 0
      %2299 = vmatpush1.bf16.msra.mxu0 0
      %2300 = vmatprep.subr.bf16.mxu0 0
      %2301 = vmatpush1.bf16.msra.mxu0 0
      %2302 = vmatprep.subr.bf16.mxu0 0
      %2303 = vmatpush1.bf16.msra.mxu0 0
      %2304 = vmatprep.subr.bf16.mxu0 0
      %2305 = vmatpush1.bf16.msra.mxu0 0
      %2306 = vmatprep.subr.bf16.mxu0 0
      %2307 = vmatpush1.bf16.msra.mxu0 0
      %2308 = vmatprep.subr.bf16.mxu0 0
      %2309 = vmatpush1.bf16.msra.mxu0 0
      %2310 = vmatprep.subr.bf16.mxu0 0
      %2311 = vmatpush1.bf16.msra.mxu0 0
      %2312 = vmatprep.subr.bf16.mxu0 0
      %2313 = vmatpush1.bf16.msra.mxu0 0
      %2314 = vmatprep.subr.bf16.mxu0 0
      %2315 = vmatpush1.bf16.msra.mxu0 0
      %2316 = vmatprep.mubr.bf16.mxu0 0
      %2317 = vmatmul.mubr.bf16.gmra.mrb[0].mxu0 %v2282
      %v2318 = vpop.f32.mrb[0].mxu0
      %v2319 = vadd.f32 0.0, %v2318
      %v2320 = vpop.f32.mrb[0].mxu0
      %v2321 = vpop.f32.mrb[0].mxu0
      %v2322 = vadd.f32 0.0, %v2321
      %v2323 = vpop.f32.mrb[0].mxu0
      %2324 = vdwg.mxu0
      %2325 = vrot.lane.b32.xlu0 %v463, 56
      %v2326 = vpop.permute.xlu0 %2325
      %v2329 = vsel %vm874, %v2041, 0
      %2331 = vmatprep.subr.bf16.mxu0 0
      %2332 = vmatpush1.bf16.msra.mxu0 %v2326
      %2333 = vmatprep.subr.bf16.mxu0 0
      %2334 = vmatpush1.bf16.msra.mxu0 0
      %2335 = vmatprep.subr.bf16.mxu0 0
      %2336 = vmatpush1.bf16.msra.mxu0 0
      %2337 = vmatprep.subr.bf16.mxu0 0
      %2338 = vmatpush1.bf16.msra.mxu0 0
      %2339 = vmatprep.subr.bf16.mxu0 0
      %2340 = vmatpush1.bf16.msra.mxu0 0
      %2341 = vmatprep.subr.bf16.mxu0 0
      %2342 = vmatpush1.bf16.msra.mxu0 0
      %2343 = vmatprep.subr.bf16.mxu0 0
      %2344 = vmatpush1.bf16.msra.mxu0 0
      %2345 = vmatprep.subr.bf16.mxu0 0
      %2346 = vmatpush1.bf16.msra.mxu0 0
      %2347 = vmatprep.subr.bf16.mxu0 0
      %2348 = vmatpush1.bf16.msra.mxu0 0
      %2349 = vmatprep.subr.bf16.mxu0 0
      %2350 = vmatpush1.bf16.msra.mxu0 0
      %2351 = vmatprep.subr.bf16.mxu0 0
      %2352 = vmatpush1.bf16.msra.mxu0 0
      %2353 = vmatprep.subr.bf16.mxu0 0
      %2354 = vmatpush1.bf16.msra.mxu0 0
      %2355 = vmatprep.subr.bf16.mxu0 0
      %2356 = vmatpush1.bf16.msra.mxu0 0
      %2357 = vmatprep.subr.bf16.mxu0 0
      %2358 = vmatpush1.bf16.msra.mxu0 0
      %2359 = vmatprep.subr.bf16.mxu0 0
      %2360 = vmatpush1.bf16.msra.mxu0 0
      %2361 = vmatprep.subr.bf16.mxu0 0
      %2362 = vmatpush1.bf16.msra.mxu0 0
      %2363 = vmatprep.mubr.bf16.mxu0 0
      %2364 = vmatmul.mubr.bf16.gmra.mrb[0].mxu0 %v2329
      %v2365 = vpop.f32.mrb[0].mxu0
      %v2366 = vadd.f32 0.0, %v2365
      %v2367 = vpop.f32.mrb[0].mxu0
      %v2368 = vpop.f32.mrb[0].mxu0
      %v2369 = vadd.f32 0.0, %v2368
      %v2370 = vpop.f32.mrb[0].mxu0
      %2371 = vdwg.mxu0
      %2372 = vrot.lane.b32.xlu0 %v464, 56
      %v2373 = vpop.permute.xlu0 %2372
      %v2376 = vsel %vm874, %v2042, 0
      %2378 = vmatprep.subr.bf16.mxu0 0
      %2379 = vmatpush1.bf16.msra.mxu0 %v2373
      %2380 = vmatprep.subr.bf16.mxu0 0
      %2381 = vmatpush1.bf16.msra.mxu0 0
      %2382 = vmatprep.subr.bf16.mxu0 0
      %2383 = vmatpush1.bf16.msra.mxu0 0
      %2384 = vmatprep.subr.bf16.mxu0 0
      %2385 = vmatpush1.bf16.msra.mxu0 0
      %2386 = vmatprep.subr.bf16.mxu0 0
      %2387 = vmatpush1.bf16.msra.mxu0 0
      %2388 = vmatprep.subr.bf16.mxu0 0
      %2389 = vmatpush1.bf16.msra.mxu0 0
      %2390 = vmatprep.subr.bf16.mxu0 0
      %2391 = vmatpush1.bf16.msra.mxu0 0
      %2392 = vmatprep.subr.bf16.mxu0 0
      %2393 = vmatpush1.bf16.msra.mxu0 0
      %2394 = vmatprep.subr.bf16.mxu0 0
      %2395 = vmatpush1.bf16.msra.mxu0 0
      %2396 = vmatprep.subr.bf16.mxu0 0
      %2397 = vmatpush1.bf16.msra.mxu0 0
      %2398 = vmatprep.subr.bf16.mxu0 0
      %2399 = vmatpush1.bf16.msra.mxu0 0
      %2400 = vmatprep.subr.bf16.mxu0 0
      %2401 = vmatpush1.bf16.msra.mxu0 0
      %2402 = vmatprep.subr.bf16.mxu0 0
      %2403 = vmatpush1.bf16.msra.mxu0 0
      %2404 = vmatprep.subr.bf16.mxu0 0
      %2405 = vmatpush1.bf16.msra.mxu0 0
      %2406 = vmatprep.subr.bf16.mxu0 0
      %2407 = vmatpush1.bf16.msra.mxu0 0
      %2408 = vmatprep.subr.bf16.mxu0 0
      %2409 = vmatpush1.bf16.msra.mxu0 0
      %2410 = vmatprep.mubr.bf16.mxu0 0
      %2411 = vmatmul.mubr.bf16.gmra.mrb[0].mxu0 %v2376
      %v2412 = vpop.f32.mrb[0].mxu0
      %v2413 = vadd.f32 0.0, %v2412
      %v2414 = vpop.f32.mrb[0].mxu0
      %v2415 = vpop.f32.mrb[0].mxu0
      %v2416 = vadd.f32 0.0, %v2415
      %v2417 = vpop.f32.mrb[0].mxu0
      %2418 = vdwg.mxu0
      %v2419 = vpack.c.bf16 %v2087, %v2084
      %v2420 = vpack.c.bf16 %v2134, %v2131
      %v2421 = vpack.c.bf16 %v2181, %v2178
      %v2422 = vpack.c.bf16 %v2228, %v2225
      %v2423 = vpack.c.bf16 %v2275, %v2272
      %v2424 = vpack.c.bf16 %v2322, %v2319
      %v2425 = vpack.c.bf16 %v2369, %v2366
      %v2426 = vpack.c.bf16 %v2416, %v2413
      %2435 = vrot.lane.b32.xlu0 %v2419, 8
      %v2436 = vpop.permute.xlu0 %2435
      %2437 = vrot.lane.b32.xlu0 %v2420, 8
      %v2438 = vpop.permute.xlu0 %2437
      %2439 = vrot.lane.b32.xlu0 %v2421, 8
      %v2440 = vpop.permute.xlu0 %2439
      %2441 = vrot.lane.b32.xlu0 %v2422, 8
      %v2442 = vpop.permute.xlu0 %2441
      %2443 = vrot.lane.b32.xlu0 %v2423, 8
      %v2444 = vpop.permute.xlu0 %2443
      %2445 = vrot.lane.b32.xlu0 %v2424, 8
      %v2446 = vpop.permute.xlu0 %2445
      %2447 = vrot.lane.b32.xlu0 %v2425, 8
      %v2448 = vpop.permute.xlu0 %2447
      %2449 = vrot.lane.b32.xlu0 %v2426, 8
      %v2450 = vpop.permute.xlu0 %2449
      %vm2459 = vcmask 130112
      %2460 = vst.msk [vmem:[#allocation2] sm:$0xff] %vm2459, %v2436
      %2461 = vst.msk [vmem:[#allocation2 + $0x8] sm:$0xff] %vm2459, %v2438
      %2462 = vst.msk [vmem:[#allocation2 + $0x10] sm:$0xff] %vm2459, %v2440
      %2463 = vst.msk [vmem:[#allocation2 + $0x18] sm:$0xff] %vm2459, %v2442
      %2464 = vst.msk [vmem:[#allocation2 + $0x20] sm:$0xff] %vm2459, %v2444
      %2465 = vst.msk [vmem:[#allocation2 + $0x28] sm:$0xff] %vm2459, %v2446
      %2466 = vst.msk [vmem:[#allocation2 + $0x30] sm:$0xff] %vm2459, %v2448
      %2467 = vst.msk [vmem:[#allocation2 + $0x38] sm:$0xff] %vm2459, %v2450
      %2468 = vrot.lane.b32.xlu0 %v457, 112
      %v2469 = vpop.permute.xlu0 %2468
      %2470 = vrot.lane.b32.xlu0 %v457, 80
      %v2471 = vpop.permute.xlu0 %2470
      %v2473 = vsel %vm476, %v2469, 0
      %v2476 = vsel %vm476, %v2471, 0
      %2478 = vmatprep.subr.bf16.mxu0 0
      %2479 = vmatpush1.bf16.xpose.msra.mxu0 %v2476
      %2480 = vmatprep.subr.bf16.mxu0 0
      %2481 = vmatpush1.bf16.xpose.msra.mxu0 0
      %2482 = vmatprep.subr.bf16.mxu0 0
      %2483 = vmatpush1.bf16.xpose.msra.mxu0 0
      %2484 = vmatprep.subr.bf16.mxu0 0
      %2485 = vmatpush1.bf16.xpose.msra.mxu0 0
      %2486 = vmatprep.subr.bf16.mxu0 0
      %2487 = vmatpush1.bf16.xpose.msra.mxu0 0
      %2488 = vmatprep.subr.bf16.mxu0 0
      %2489 = vmatpush1.bf16.xpose.msra.mxu0 0
      %2490 = vmatprep.subr.bf16.mxu0 0
      %2491 = vmatpush1.bf16.xpose.msra.mxu0 0
      %2492 = vmatprep.subr.bf16.mxu0 0
      %2493 = vmatpush1.bf16.xpose.msra.mxu0 0
      %2494 = vmatprep.subr.bf16.mxu0 0
      %2495 = vmatpush1.bf16.xpose.msra.mxu0 0
      %2496 = vmatprep.subr.bf16.mxu0 0
      %2497 = vmatpush1.bf16.xpose.msra.mxu0 0
      %2498 = vmatprep.subr.bf16.mxu0 0
      %2499 = vmatpush1.bf16.xpose.msra.mxu0 0
      %2500 = vmatprep.subr.bf16.mxu0 0
      %2501 = vmatpush1.bf16.xpose.msra.mxu0 0
      %2502 = vmatprep.subr.bf16.mxu0 0
      %2503 = vmatpush1.bf16.xpose.msra.mxu0 0
      %2504 = vmatprep.subr.bf16.mxu0 0
      %2505 = vmatpush1.bf16.xpose.msra.mxu0 0
      %2506 = vmatprep.subr.bf16.mxu0 0
      %2507 = vmatpush1.bf16.xpose.msra.mxu0 0
      %2508 = vmatprep.subr.bf16.mxu0 0
      %2509 = vmatpush1.bf16.xpose.msra.mxu0 0
      %2510 = vmatprep.mubr.bf16.mxu0 0
      %2511 = vmatmul.mubr.bf16.gmra.mrb[0].mxu0 %v2473
      %v2512 = vpop.f32.mrb[0].mxu0
      %v2513 = vadd.f32 %v469, %v2512
      %v2514 = vpop.f32.mrb[0].mxu0
      %v2515 = vpop.f32.mrb[0].mxu0
      %v2516 = vadd.f32 %v470, %v2515
      %v2517 = vpop.f32.mrb[0].mxu0
      %2518 = vdwg.mxu0
      %2519 = vrot.lane.b32.xlu0 %v458, 112
      %v2520 = vpop.permute.xlu0 %2519
      %2521 = vrot.lane.b32.xlu0 %v458, 80
      %v2522 = vpop.permute.xlu0 %2521
      %v2524 = vsel %vm476, %v2520, 0
      %v2527 = vsel %vm476, %v2522, 0
      %2529 = vmatprep.subr.bf16.mxu0 0
      %2530 = vmatpush1.bf16.xpose.msra.mxu0 %v2527
      %2531 = vmatprep.subr.bf16.mxu0 0
      %2532 = vmatpush1.bf16.xpose.msra.mxu0 0
      %2533 = vmatprep.subr.bf16.mxu0 0
      %2534 = vmatpush1.bf16.xpose.msra.mxu0 0
      %2535 = vmatprep.subr.bf16.mxu0 0
      %2536 = vmatpush1.bf16.xpose.msra.mxu0 0
      %2537 = vmatprep.subr.bf16.mxu0 0
      %2538 = vmatpush1.bf16.xpose.msra.mxu0 0
      %2539 = vmatprep.subr.bf16.mxu0 0
      %2540 = vmatpush1.bf16.xpose.msra.mxu0 0
      %2541 = vmatprep.subr.bf16.mxu0 0
      %2542 = vmatpush1.bf16.xpose.msra.mxu0 0
      %2543 = vmatprep.subr.bf16.mxu0 0
      %2544 = vmatpush1.bf16.xpose.msra.mxu0 0
      %2545 = vmatprep.subr.bf16.mxu0 0
      %2546 = vmatpush1.bf16.xpose.msra.mxu0 0
      %2547 = vmatprep.subr.bf16.mxu0 0
      %2548 = vmatpush1.bf16.xpose.msra.mxu0 0
      %2549 = vmatprep.subr.bf16.mxu0 0
      %2550 = vmatpush1.bf16.xpose.msra.mxu0 0
      %2551 = vmatprep.subr.bf16.mxu0 0
      %2552 = vmatpush1.bf16.xpose.msra.mxu0 0
      %2553 = vmatprep.subr.bf16.mxu0 0
      %2554 = vmatpush1.bf16.xpose.msra.mxu0 0
      %2555 = vmatprep.subr.bf16.mxu0 0
      %2556 = vmatpush1.bf16.xpose.msra.mxu0 0
      %2557 = vmatprep.subr.bf16.mxu0 0
      %2558 = vmatpush1.bf16.xpose.msra.mxu0 0
      %2559 = vmatprep.subr.bf16.mxu0 0
      %2560 = vmatpush1.bf16.xpose.msra.mxu0 0
      %2561 = vmatprep.mubr.bf16.mxu0 0
      %2562 = vmatmul.mubr.bf16.gmra.mrb[0].mxu0 %v2524
      %v2563 = vpop.f32.mrb[0].mxu0
      %v2564 = vadd.f32 %v469, %v2563
      %v2565 = vpop.f32.mrb[0].mxu0
      %v2566 = vpop.f32.mrb[0].mxu0
      %v2567 = vadd.f32 %v470, %v2566
      %v2568 = vpop.f32.mrb[0].mxu0
      %2569 = vdwg.mxu0
      %2570 = vrot.lane.b32.xlu0 %v459, 112
      %v2571 = vpop.permute.xlu0 %2570
      %2572 = vrot.lane.b32.xlu0 %v459, 80
      %v2573 = vpop.permute.xlu0 %2572
      %v2575 = vsel %vm476, %v2571, 0
      %v2578 = vsel %vm476, %v2573, 0
      %2580 = vmatprep.subr.bf16.mxu0 0
      %2581 = vmatpush1.bf16.xpose.msra.mxu0 %v2578
      %2582 = vmatprep.subr.bf16.mxu0 0
      %2583 = vmatpush1.bf16.xpose.msra.mxu0 0
      %2584 = vmatprep.subr.bf16.mxu0 0
      %2585 = vmatpush1.bf16.xpose.msra.mxu0 0
      %2586 = vmatprep.subr.bf16.mxu0 0
      %2587 = vmatpush1.bf16.xpose.msra.mxu0 0
      %2588 = vmatprep.subr.bf16.mxu0 0
      %2589 = vmatpush1.bf16.xpose.msra.mxu0 0
      %2590 = vmatprep.subr.bf16.mxu0 0
      %2591 = vmatpush1.bf16.xpose.msra.mxu0 0
      %2592 = vmatprep.subr.bf16.mxu0 0
      %2593 = vmatpush1.bf16.xpose.msra.mxu0 0
      %2594 = vmatprep.subr.bf16.mxu0 0
      %2595 = vmatpush1.bf16.xpose.msra.mxu0 0
      %2596 = vmatprep.subr.bf16.mxu0 0
      %2597 = vmatpush1.bf16.xpose.msra.mxu0 0
      %2598 = vmatprep.subr.bf16.mxu0 0
      %2599 = vmatpush1.bf16.xpose.msra.mxu0 0
      %2600 = vmatprep.subr.bf16.mxu0 0
      %2601 = vmatpush1.bf16.xpose.msra.mxu0 0
      %2602 = vmatprep.subr.bf16.mxu0 0
      %2603 = vmatpush1.bf16.xpose.msra.mxu0 0
      %2604 = vmatprep.subr.bf16.mxu0 0
      %2605 = vmatpush1.bf16.xpose.msra.mxu0 0
      %2606 = vmatprep.subr.bf16.mxu0 0
      %2607 = vmatpush1.bf16.xpose.msra.mxu0 0
      %2608 = vmatprep.subr.bf16.mxu0 0
      %2609 = vmatpush1.bf16.xpose.msra.mxu0 0
      %2610 = vmatprep.subr.bf16.mxu0 0
      %2611 = vmatpush1.bf16.xpose.msra.mxu0 0
      %2612 = vmatprep.mubr.bf16.mxu0 0
      %2613 = vmatmul.mubr.bf16.gmra.mrb[0].mxu0 %v2575
      %v2614 = vpop.f32.mrb[0].mxu0
      %v2615 = vadd.f32 %v469, %v2614
      %v2616 = vpop.f32.mrb[0].mxu0
      %v2617 = vpop.f32.mrb[0].mxu0
      %v2618 = vadd.f32 %v470, %v2617
      %v2619 = vpop.f32.mrb[0].mxu0
      %2620 = vdwg.mxu0
      %2621 = vrot.lane.b32.xlu0 %v460, 112
      %v2622 = vpop.permute.xlu0 %2621
      %2623 = vrot.lane.b32.xlu0 %v460, 80
      %v2624 = vpop.permute.xlu0 %2623
      %v2626 = vsel %vm476, %v2622, 0
      %v2629 = vsel %vm476, %v2624, 0
      %2631 = vmatprep.subr.bf16.mxu0 0
      %2632 = vmatpush1.bf16.xpose.msra.mxu0 %v2629
      %2633 = vmatprep.subr.bf16.mxu0 0
      %2634 = vmatpush1.bf16.xpose.msra.mxu0 0
      %2635 = vmatprep.subr.bf16.mxu0 0
      %2636 = vmatpush1.bf16.xpose.msra.mxu0 0
      %2637 = vmatprep.subr.bf16.mxu0 0
      %2638 = vmatpush1.bf16.xpose.msra.mxu0 0
      %2639 = vmatprep.subr.bf16.mxu0 0
      %2640 = vmatpush1.bf16.xpose.msra.mxu0 0
      %2641 = vmatprep.subr.bf16.mxu0 0
      %2642 = vmatpush1.bf16.xpose.msra.mxu0 0
      %2643 = vmatprep.subr.bf16.mxu0 0
      %2644 = vmatpush1.bf16.xpose.msra.mxu0 0
      %2645 = vmatprep.subr.bf16.mxu0 0
      %2646 = vmatpush1.bf16.xpose.msra.mxu0 0
      %2647 = vmatprep.subr.bf16.mxu0 0
      %2648 = vmatpush1.bf16.xpose.msra.mxu0 0
      %2649 = vmatprep.subr.bf16.mxu0 0
      %2650 = vmatpush1.bf16.xpose.msra.mxu0 0
      %2651 = vmatprep.subr.bf16.mxu0 0
      %2652 = vmatpush1.bf16.xpose.msra.mxu0 0
      %2653 = vmatprep.subr.bf16.mxu0 0
      %2654 = vmatpush1.bf16.xpose.msra.mxu0 0
      %2655 = vmatprep.subr.bf16.mxu0 0
      %2656 = vmatpush1.bf16.xpose.msra.mxu0 0
      %2657 = vmatprep.subr.bf16.mxu0 0
      %2658 = vmatpush1.bf16.xpose.msra.mxu0 0
      %2659 = vmatprep.subr.bf16.mxu0 0
      %2660 = vmatpush1.bf16.xpose.msra.mxu0 0
      %2661 = vmatprep.subr.bf16.mxu0 0
      %2662 = vmatpush1.bf16.xpose.msra.mxu0 0
      %2663 = vmatprep.mubr.bf16.mxu0 0
      %2664 = vmatmul.mubr.bf16.gmra.mrb[0].mxu0 %v2626
      %v2665 = vpop.f32.mrb[0].mxu0
      %v2666 = vadd.f32 %v469, %v2665
      %v2667 = vpop.f32.mrb[0].mxu0
      %v2668 = vpop.f32.mrb[0].mxu0
      %v2669 = vadd.f32 %v470, %v2668
      %v2670 = vpop.f32.mrb[0].mxu0
      %2671 = vdwg.mxu0
      %2672 = vrot.lane.b32.xlu0 %v461, 112
      %v2673 = vpop.permute.xlu0 %2672
      %2674 = vrot.lane.b32.xlu0 %v461, 80
      %v2675 = vpop.permute.xlu0 %2674
      %v2677 = vsel %vm476, %v2673, 0
      %v2680 = vsel %vm476, %v2675, 0
      %2682 = vmatprep.subr.bf16.mxu0 0
      %2683 = vmatpush1.bf16.xpose.msra.mxu0 %v2680
      %2684 = vmatprep.subr.bf16.mxu0 0
      %2685 = vmatpush1.bf16.xpose.msra.mxu0 0
      %2686 = vmatprep.subr.bf16.mxu0 0
      %2687 = vmatpush1.bf16.xpose.msra.mxu0 0
      %2688 = vmatprep.subr.bf16.mxu0 0
      %2689 = vmatpush1.bf16.xpose.msra.mxu0 0
      %2690 = vmatprep.subr.bf16.mxu0 0
      %2691 = vmatpush1.bf16.xpose.msra.mxu0 0
      %2692 = vmatprep.subr.bf16.mxu0 0
      %2693 = vmatpush1.bf16.xpose.msra.mxu0 0
      %2694 = vmatprep.subr.bf16.mxu0 0
      %2695 = vmatpush1.bf16.xpose.msra.mxu0 0
      %2696 = vmatprep.subr.bf16.mxu0 0
      %2697 = vmatpush1.bf16.xpose.msra.mxu0 0
      %2698 = vmatprep.subr.bf16.mxu0 0
      %2699 = vmatpush1.bf16.xpose.msra.mxu0 0
      %2700 = vmatprep.subr.bf16.mxu0 0
      %2701 = vmatpush1.bf16.xpose.msra.mxu0 0
      %2702 = vmatprep.subr.bf16.mxu0 0
      %2703 = vmatpush1.bf16.xpose.msra.mxu0 0
      %2704 = vmatprep.subr.bf16.mxu0 0
      %2705 = vmatpush1.bf16.xpose.msra.mxu0 0
      %2706 = vmatprep.subr.bf16.mxu0 0
      %2707 = vmatpush1.bf16.xpose.msra.mxu0 0
      %2708 = vmatprep.subr.bf16.mxu0 0
      %2709 = vmatpush1.bf16.xpose.msra.mxu0 0
      %2710 = vmatprep.subr.bf16.mxu0 0
      %2711 = vmatpush1.bf16.xpose.msra.mxu0 0
      %2712 = vmatprep.subr.bf16.mxu0 0
      %2713 = vmatpush1.bf16.xpose.msra.mxu0 0
      %2714 = vmatprep.mubr.bf16.mxu0 0
      %2715 = vmatmul.mubr.bf16.gmra.mrb[0].mxu0 %v2677
      %v2716 = vpop.f32.mrb[0].mxu0
      %v2717 = vadd.f32 %v469, %v2716
      %v2718 = vpop.f32.mrb[0].mxu0
      %v2719 = vpop.f32.mrb[0].mxu0
      %v2720 = vadd.f32 %v470, %v2719
      %v2721 = vpop.f32.mrb[0].mxu0
      %2722 = vdwg.mxu0
      %2723 = vrot.lane.b32.xlu0 %v462, 112
      %v2724 = vpop.permute.xlu0 %2723
      %2725 = vrot.lane.b32.xlu0 %v462, 80
      %v2726 = vpop.permute.xlu0 %2725
      %v2728 = vsel %vm476, %v2724, 0
      %v2731 = vsel %vm476, %v2726, 0
      %2733 = vmatprep.subr.bf16.mxu0 0
      %2734 = vmatpush1.bf16.xpose.msra.mxu0 %v2731
      %2735 = vmatprep.subr.bf16.mxu0 0
      %2736 = vmatpush1.bf16.xpose.msra.mxu0 0
      %2737 = vmatprep.subr.bf16.mxu0 0
      %2738 = vmatpush1.bf16.xpose.msra.mxu0 0
      %2739 = vmatprep.subr.bf16.mxu0 0
      %2740 = vmatpush1.bf16.xpose.msra.mxu0 0
      %2741 = vmatprep.subr.bf16.mxu0 0
      %2742 = vmatpush1.bf16.xpose.msra.mxu0 0
      %2743 = vmatprep.subr.bf16.mxu0 0
      %2744 = vmatpush1.bf16.xpose.msra.mxu0 0
      %2745 = vmatprep.subr.bf16.mxu0 0
      %2746 = vmatpush1.bf16.xpose.msra.mxu0 0
      %2747 = vmatprep.subr.bf16.mxu0 0
      %2748 = vmatpush1.bf16.xpose.msra.mxu0 0
      %2749 = vmatprep.subr.bf16.mxu0 0
      %2750 = vmatpush1.bf16.xpose.msra.mxu0 0
      %2751 = vmatprep.subr.bf16.mxu0 0
      %2752 = vmatpush1.bf16.xpose.msra.mxu0 0
      %2753 = vmatprep.subr.bf16.mxu0 0
      %2754 = vmatpush1.bf16.xpose.msra.mxu0 0
      %2755 = vmatprep.subr.bf16.mxu0 0
      %2756 = vmatpush1.bf16.xpose.msra.mxu0 0
      %2757 = vmatprep.subr.bf16.mxu0 0
      %2758 = vmatpush1.bf16.xpose.msra.mxu0 0
      %2759 = vmatprep.subr.bf16.mxu0 0
      %2760 = vmatpush1.bf16.xpose.msra.mxu0 0
      %2761 = vmatprep.subr.bf16.mxu0 0
      %2762 = vmatpush1.bf16.xpose.msra.mxu0 0
      %2763 = vmatprep.subr.bf16.mxu0 0
      %2764 = vmatpush1.bf16.xpose.msra.mxu0 0
      %2765 = vmatprep.mubr.bf16.mxu0 0
      %2766 = vmatmul.mubr.bf16.gmra.mrb[0].mxu0 %v2728
      %v2767 = vpop.f32.mrb[0].mxu0
      %v2768 = vadd.f32 %v469, %v2767
      %v2769 = vpop.f32.mrb[0].mxu0
      %v2770 = vpop.f32.mrb[0].mxu0
      %v2771 = vadd.f32 %v470, %v2770
      %v2772 = vpop.f32.mrb[0].mxu0
      %2773 = vdwg.mxu0
      %2774 = vrot.lane.b32.xlu0 %v463, 112
      %v2775 = vpop.permute.xlu0 %2774
      %2776 = vrot.lane.b32.xlu0 %v463, 80
      %v2777 = vpop.permute.xlu0 %2776
      %v2779 = vsel %vm476, %v2775, 0
      %v2782 = vsel %vm476, %v2777, 0
      %2784 = vmatprep.subr.bf16.mxu0 0
      %2785 = vmatpush1.bf16.xpose.msra.mxu0 %v2782
      %2786 = vmatprep.subr.bf16.mxu0 0
      %2787 = vmatpush1.bf16.xpose.msra.mxu0 0
      %2788 = vmatprep.subr.bf16.mxu0 0
      %2789 = vmatpush1.bf16.xpose.msra.mxu0 0
      %2790 = vmatprep.subr.bf16.mxu0 0
      %2791 = vmatpush1.bf16.xpose.msra.mxu0 0
      %2792 = vmatprep.subr.bf16.mxu0 0
      %2793 = vmatpush1.bf16.xpose.msra.mxu0 0
      %2794 = vmatprep.subr.bf16.mxu0 0
      %2795 = vmatpush1.bf16.xpose.msra.mxu0 0
      %2796 = vmatprep.subr.bf16.mxu0 0
      %2797 = vmatpush1.bf16.xpose.msra.mxu0 0
      %2798 = vmatprep.subr.bf16.mxu0 0
      %2799 = vmatpush1.bf16.xpose.msra.mxu0 0
      %2800 = vmatprep.subr.bf16.mxu0 0
      %2801 = vmatpush1.bf16.xpose.msra.mxu0 0
      %2802 = vmatprep.subr.bf16.mxu0 0
      %2803 = vmatpush1.bf16.xpose.msra.mxu0 0
      %2804 = vmatprep.subr.bf16.mxu0 0
      %2805 = vmatpush1.bf16.xpose.msra.mxu0 0
      %2806 = vmatprep.subr.bf16.mxu0 0
      %2807 = vmatpush1.bf16.xpose.msra.mxu0 0
      %2808 = vmatprep.subr.bf16.mxu0 0
      %2809 = vmatpush1.bf16.xpose.msra.mxu0 0
      %2810 = vmatprep.subr.bf16.mxu0 0
      %2811 = vmatpush1.bf16.xpose.msra.mxu0 0
      %2812 = vmatprep.subr.bf16.mxu0 0
      %2813 = vmatpush1.bf16.xpose.msra.mxu0 0
      %2814 = vmatprep.subr.bf16.mxu0 0
      %2815 = vmatpush1.bf16.xpose.msra.mxu0 0
      %2816 = vmatprep.mubr.bf16.mxu0 0
      %2817 = vmatmul.mubr.bf16.gmra.mrb[0].mxu0 %v2779
      %v2818 = vpop.f32.mrb[0].mxu0
      %v2819 = vadd.f32 %v469, %v2818
      %v2820 = vpop.f32.mrb[0].mxu0
      %v2821 = vpop.f32.mrb[0].mxu0
      %v2822 = vadd.f32 %v470, %v2821
      %v2823 = vpop.f32.mrb[0].mxu0
      %2824 = vdwg.mxu0
      %2825 = vrot.lane.b32.xlu0 %v464, 112
      %v2826 = vpop.permute.xlu0 %2825
      %2827 = vrot.lane.b32.xlu0 %v464, 80
      %v2828 = vpop.permute.xlu0 %2827
      %v2830 = vsel %vm476, %v2826, 0
      %v2833 = vsel %vm476, %v2828, 0
      %2835 = vmatprep.subr.bf16.mxu0 0
      %2836 = vmatpush1.bf16.xpose.msra.mxu0 %v2833
      %2837 = vmatprep.subr.bf16.mxu0 0
      %2838 = vmatpush1.bf16.xpose.msra.mxu0 0
      %2839 = vmatprep.subr.bf16.mxu0 0
      %2840 = vmatpush1.bf16.xpose.msra.mxu0 0
      %2841 = vmatprep.subr.bf16.mxu0 0
      %2842 = vmatpush1.bf16.xpose.msra.mxu0 0
      %2843 = vmatprep.subr.bf16.mxu0 0
      %2844 = vmatpush1.bf16.xpose.msra.mxu0 0
      %2845 = vmatprep.subr.bf16.mxu0 0
      %2846 = vmatpush1.bf16.xpose.msra.mxu0 0
      %2847 = vmatprep.subr.bf16.mxu0 0
      %2848 = vmatpush1.bf16.xpose.msra.mxu0 0
      %2849 = vmatprep.subr.bf16.mxu0 0
      %2850 = vmatpush1.bf16.xpose.msra.mxu0 0
      %2851 = vmatprep.subr.bf16.mxu0 0
      %2852 = vmatpush1.bf16.xpose.msra.mxu0 0
      %2853 = vmatprep.subr.bf16.mxu0 0
      %2854 = vmatpush1.bf16.xpose.msra.mxu0 0
      %2855 = vmatprep.subr.bf16.mxu0 0
      %2856 = vmatpush1.bf16.xpose.msra.mxu0 0
      %2857 = vmatprep.subr.bf16.mxu0 0
      %2858 = vmatpush1.bf16.xpose.msra.mxu0 0
      %2859 = vmatprep.subr.bf16.mxu0 0
      %2860 = vmatpush1.bf16.xpose.msra.mxu0 0
      %2861 = vmatprep.subr.bf16.mxu0 0
      %2862 = vmatpush1.bf16.xpose.msra.mxu0 0
      %2863 = vmatprep.subr.bf16.mxu0 0
      %2864 = vmatpush1.bf16.xpose.msra.mxu0 0
      %2865 = vmatprep.subr.bf16.mxu0 0
      %2866 = vmatpush1.bf16.xpose.msra.mxu0 0
      %2867 = vmatprep.mubr.bf16.mxu0 0
      %2868 = vmatmul.mubr.bf16.gmra.mrb[0].mxu0 %v2830
      %v2869 = vpop.f32.mrb[0].mxu0
      %v2870 = vadd.f32 %v469, %v2869
      %v2871 = vpop.f32.mrb[0].mxu0
      %v2872 = vpop.f32.mrb[0].mxu0
      %v2873 = vadd.f32 %v470, %v2872
      %v2874 = vpop.f32.mrb[0].mxu0
      %2875 = vdwg.mxu0
      %v2876 = vsel %vm874, %v2513, -inf
      %2877 = vmax.xlane.f32.xlu0 %v2876
      %v2878 = vpop.xlane.xlu0 %2877
      %v2879 = vsel %vm874, %v2516, -inf
      %2880 = vmax.xlane.f32.xlu0 %v2879
      %v2881 = vpop.xlane.xlu0 %2880
      %v2882 = vsel %vm874, %v2564, -inf
      %2883 = vmax.xlane.f32.xlu0 %v2882
      %v2884 = vpop.xlane.xlu0 %2883
      %v2885 = vsel %vm874, %v2567, -inf
      %2886 = vmax.xlane.f32.xlu0 %v2885
      %v2887 = vpop.xlane.xlu0 %2886
      %v2888 = vsel %vm874, %v2615, -inf
      %2889 = vmax.xlane.f32.xlu0 %v2888
      %v2890 = vpop.xlane.xlu0 %2889
      %v2891 = vsel %vm874, %v2618, -inf
      %2892 = vmax.xlane.f32.xlu0 %v2891
      %v2893 = vpop.xlane.xlu0 %2892
      %v2894 = vsel %vm874, %v2666, -inf
      %2895 = vmax.xlane.f32.xlu0 %v2894
      %v2896 = vpop.xlane.xlu0 %2895
      %v2897 = vsel %vm874, %v2669, -inf
      %2898 = vmax.xlane.f32.xlu0 %v2897
      %v2899 = vpop.xlane.xlu0 %2898
      %v2900 = vsel %vm874, %v2717, -inf
      %2901 = vmax.xlane.f32.xlu0 %v2900
      %v2902 = vpop.xlane.xlu0 %2901
      %v2903 = vsel %vm874, %v2720, -inf
      %2904 = vmax.xlane.f32.xlu0 %v2903
      %v2905 = vpop.xlane.xlu0 %2904
      %v2906 = vsel %vm874, %v2768, -inf
      %2907 = vmax.xlane.f32.xlu0 %v2906
      %v2908 = vpop.xlane.xlu0 %2907
      %v2909 = vsel %vm874, %v2771, -inf
      %2910 = vmax.xlane.f32.xlu0 %v2909
      %v2911 = vpop.xlane.xlu0 %2910
      %v2912 = vsel %vm874, %v2819, -inf
      %2913 = vmax.xlane.f32.xlu0 %v2912
      %v2914 = vpop.xlane.xlu0 %2913
      %v2915 = vsel %vm874, %v2822, -inf
      %2916 = vmax.xlane.f32.xlu0 %v2915
      %v2917 = vpop.xlane.xlu0 %2916
      %v2918 = vsel %vm874, %v2870, -inf
      %2919 = vmax.xlane.f32.xlu0 %v2918
      %v2920 = vpop.xlane.xlu0 %2919
      %v2921 = vsel %vm874, %v2873, -inf
      %2922 = vmax.xlane.f32.xlu0 %v2921
      %v2923 = vpop.xlane.xlu0 %2922
      %v2924 = vsub.f32 %v2513, %v2878
      %v2925 = vsub.f32 %v2516, %v2881
      %v2926 = vsub.f32 %v2564, %v2884
      %v2927 = vsub.f32 %v2567, %v2887
      %v2928 = vsub.f32 %v2615, %v2890
      %v2929 = vsub.f32 %v2618, %v2893
      %v2930 = vsub.f32 %v2666, %v2896
      %v2931 = vsub.f32 %v2669, %v2899
      %v2932 = vsub.f32 %v2717, %v2902
      %v2933 = vsub.f32 %v2720, %v2905
      %v2934 = vsub.f32 %v2768, %v2908
      %v2935 = vsub.f32 %v2771, %v2911
      %v2936 = vsub.f32 %v2819, %v2914
      %v2937 = vsub.f32 %v2822, %v2917
      %v2938 = vsub.f32 %v2870, %v2920
      %v2939 = vsub.f32 %v2873, %v2923
      %v2940 = vmul.f32 %v2924, 1.442695
      %v2941 = vpow.pop %v2940
      %v2942 = vmul.f32 %v2925, 1.442695
      %v2943 = vpow.pop %v2942
      %v2944 = vmul.f32 %v2926, 1.442695
      %v2945 = vpow.pop %v2944
      %v2946 = vmul.f32 %v2927, 1.442695
      %v2947 = vpow.pop %v2946
      %v2948 = vmul.f32 %v2928, 1.442695
      %v2949 = vpow.pop %v2948
      %v2950 = vmul.f32 %v2929, 1.442695
      %v2951 = vpow.pop %v2950
      %v2952 = vmul.f32 %v2930, 1.442695
      %v2953 = vpow.pop %v2952
      %v2954 = vmul.f32 %v2931, 1.442695
      %v2955 = vpow.pop %v2954
      %v2956 = vmul.f32 %v2932, 1.442695
      %v2957 = vpow.pop %v2956
      %v2958 = vmul.f32 %v2933, 1.442695
      %v2959 = vpow.pop %v2958
      %v2960 = vmul.f32 %v2934, 1.442695
      %v2961 = vpow.pop %v2960
      %v2962 = vmul.f32 %v2935, 1.442695
      %v2963 = vpow.pop %v2962
      %v2964 = vmul.f32 %v2936, 1.442695
      %v2965 = vpow.pop %v2964
      %v2966 = vmul.f32 %v2937, 1.442695
      %v2967 = vpow.pop %v2966
      %v2968 = vmul.f32 %v2938, 1.442695
      %v2969 = vpow.pop %v2968
      %v2970 = vmul.f32 %v2939, 1.442695
      %v2971 = vpow.pop %v2970
      %v2972 = vsel %vm874, %v2941, 0.0
      %2973 = vadd.xlane.f32.xlu0 %v2972
      %v2974 = vpop.xlane.xlu0 %2973
      %v2975 = vsel %vm874, %v2943, 0.0
      %2976 = vadd.xlane.f32.xlu0 %v2975
      %v2977 = vpop.xlane.xlu0 %2976
      %v2978 = vsel %vm874, %v2945, 0.0
      %2979 = vadd.xlane.f32.xlu0 %v2978
      %v2980 = vpop.xlane.xlu0 %2979
      %v2981 = vsel %vm874, %v2947, 0.0
      %2982 = vadd.xlane.f32.xlu0 %v2981
      %v2983 = vpop.xlane.xlu0 %2982
      %v2984 = vsel %vm874, %v2949, 0.0
      %2985 = vadd.xlane.f32.xlu0 %v2984
      %v2986 = vpop.xlane.xlu0 %2985
      %v2987 = vsel %vm874, %v2951, 0.0
      %2988 = vadd.xlane.f32.xlu0 %v2987
      %v2989 = vpop.xlane.xlu0 %2988
      %v2990 = vsel %vm874, %v2953, 0.0
      %2991 = vadd.xlane.f32.xlu0 %v2990
      %v2992 = vpop.xlane.xlu0 %2991
      %v2993 = vsel %vm874, %v2955, 0.0
      %2994 = vadd.xlane.f32.xlu0 %v2993
      %v2995 = vpop.xlane.xlu0 %2994
      %v2996 = vsel %vm874, %v2957, 0.0
      %2997 = vadd.xlane.f32.xlu0 %v2996
      %v2998 = vpop.xlane.xlu0 %2997
      %v2999 = vsel %vm874, %v2959, 0.0
      %3000 = vadd.xlane.f32.xlu0 %v2999
      %v3001 = vpop.xlane.xlu0 %3000
      %v3002 = vsel %vm874, %v2961, 0.0
      %3003 = vadd.xlane.f32.xlu0 %v3002
      %v3004 = vpop.xlane.xlu0 %3003
      %v3005 = vsel %vm874, %v2963, 0.0
      %3006 = vadd.xlane.f32.xlu0 %v3005
      %v3007 = vpop.xlane.xlu0 %3006
      %v3008 = vsel %vm874, %v2965, 0.0
      %3009 = vadd.xlane.f32.xlu0 %v3008
      %v3010 = vpop.xlane.xlu0 %3009
      %v3011 = vsel %vm874, %v2967, 0.0
      %3012 = vadd.xlane.f32.xlu0 %v3011
      %v3013 = vpop.xlane.xlu0 %3012
      %v3014 = vsel %vm874, %v2969, 0.0
      %3015 = vadd.xlane.f32.xlu0 %v3014
      %v3016 = vpop.xlane.xlu0 %3015
      %v3017 = vsel %vm874, %v2971, 0.0
      %3018 = vadd.xlane.f32.xlu0 %v3017
      %v3019 = vpop.xlane.xlu0 %3018
      %v3020 = vrcp.pop %v2974
      %v3021 = vrcp.pop %v2977
      %v3022 = vrcp.pop %v2980
      %v3023 = vrcp.pop %v2983
      %v3024 = vrcp.pop %v2986
      %v3025 = vrcp.pop %v2989
      %v3026 = vrcp.pop %v2992
      %v3027 = vrcp.pop %v2995
      %v3028 = vrcp.pop %v2998
      %v3029 = vrcp.pop %v3001
      %v3030 = vrcp.pop %v3004
      %v3031 = vrcp.pop %v3007
      %v3032 = vrcp.pop %v3010
      %v3033 = vrcp.pop %v3013
      %v3034 = vrcp.pop %v3016
      %v3035 = vrcp.pop %v3019
      %v3036 = vmul.f32 %v2941, %v3020
      %v3037 = vmul.f32 %v2943, %v3021
      %v3038 = vmul.f32 %v2945, %v3022
      %v3039 = vmul.f32 %v2947, %v3023
      %v3040 = vmul.f32 %v2949, %v3024
      %v3041 = vmul.f32 %v2951, %v3025
      %v3042 = vmul.f32 %v2953, %v3026
      %v3043 = vmul.f32 %v2955, %v3027
      %v3044 = vmul.f32 %v2957, %v3028
      %v3045 = vmul.f32 %v2959, %v3029
      %v3046 = vmul.f32 %v2961, %v3030
      %v3047 = vmul.f32 %v2963, %v3031
      %v3048 = vmul.f32 %v2965, %v3032
      %v3049 = vmul.f32 %v2967, %v3033
      %v3050 = vmul.f32 %v2969, %v3034
      %v3051 = vmul.f32 %v2971, %v3035
      %v3052 = vpack.c.bf16 %v3037, %v3036
      %v3053 = vpack.c.bf16 %v3039, %v3038
      %v3054 = vpack.c.bf16 %v3041, %v3040
      %v3055 = vpack.c.bf16 %v3043, %v3042
      %v3056 = vpack.c.bf16 %v3045, %v3044
      %v3057 = vpack.c.bf16 %v3047, %v3046
      %v3058 = vpack.c.bf16 %v3049, %v3048
      %v3059 = vpack.c.bf16 %v3051, %v3050
      %3060 = vrot.lane.b32.xlu0 %v457, 48
      %v3061 = vpop.permute.xlu0 %3060
      %v3064 = vsel %vm874, %v3052, 0
      %3066 = vmatprep.subr.bf16.mxu0 0
      %3067 = vmatpush1.bf16.msra.mxu0 %v3061
      %3068 = vmatprep.subr.bf16.mxu0 0
      %3069 = vmatpush1.bf16.msra.mxu0 0
      %3070 = vmatprep.subr.bf16.mxu0 0
      %3071 = vmatpush1.bf16.msra.mxu0 0
      %3072 = vmatprep.subr.bf16.mxu0 0
      %3073 = vmatpush1.bf16.msra.mxu0 0
      %3074 = vmatprep.subr.bf16.mxu0 0
      %3075 = vmatpush1.bf16.msra.mxu0 0
      %3076 = vmatprep.subr.bf16.mxu0 0
      %3077 = vmatpush1.bf16.msra.mxu0 0
      %3078 = vmatprep.subr.bf16.mxu0 0
      %3079 = vmatpush1.bf16.msra.mxu0 0
      %3080 = vmatprep.subr.bf16.mxu0 0
      %3081 = vmatpush1.bf16.msra.mxu0 0
      %3082 = vmatprep.subr.bf16.mxu0 0
      %3083 = vmatpush1.bf16.msra.mxu0 0
      %3084 = vmatprep.subr.bf16.mxu0 0
      %3085 = vmatpush1.bf16.msra.mxu0 0
      %3086 = vmatprep.subr.bf16.mxu0 0
      %3087 = vmatpush1.bf16.msra.mxu0 0
      %3088 = vmatprep.subr.bf16.mxu0 0
      %3089 = vmatpush1.bf16.msra.mxu0 0
      %3090 = vmatprep.subr.bf16.mxu0 0
      %3091 = vmatpush1.bf16.msra.mxu0 0
      %3092 = vmatprep.subr.bf16.mxu0 0
      %3093 = vmatpush1.bf16.msra.mxu0 0
      %3094 = vmatprep.subr.bf16.mxu0 0
      %3095 = vmatpush1.bf16.msra.mxu0 0
      %3096 = vmatprep.subr.bf16.mxu0 0
      %3097 = vmatpush1.bf16.msra.mxu0 0
      %3098 = vmatprep.mubr.bf16.mxu0 0
      %3099 = vmatmul.mubr.bf16.gmra.mrb[0].mxu0 %v3064
      %v3100 = vpop.f32.mrb[0].mxu0
      %v3101 = vadd.f32 0.0, %v3100
      %v3102 = vpop.f32.mrb[0].mxu0
      %v3103 = vpop.f32.mrb[0].mxu0
      %v3104 = vadd.f32 0.0, %v3103
      %v3105 = vpop.f32.mrb[0].mxu0
      %3106 = vdwg.mxu0
      %3107 = vrot.lane.b32.xlu0 %v458, 48
      %v3108 = vpop.permute.xlu0 %3107
      %v3111 = vsel %vm874, %v3053, 0
      %3113 = vmatprep.subr.bf16.mxu0 0
      %3114 = vmatpush1.bf16.msra.mxu0 %v3108
      %3115 = vmatprep.subr.bf16.mxu0 0
      %3116 = vmatpush1.bf16.msra.mxu0 0
      %3117 = vmatprep.subr.bf16.mxu0 0
      %3118 = vmatpush1.bf16.msra.mxu0 0
      %3119 = vmatprep.subr.bf16.mxu0 0
      %3120 = vmatpush1.bf16.msra.mxu0 0
      %3121 = vmatprep.subr.bf16.mxu0 0
      %3122 = vmatpush1.bf16.msra.mxu0 0
      %3123 = vmatprep.subr.bf16.mxu0 0
      %3124 = vmatpush1.bf16.msra.mxu0 0
      %3125 = vmatprep.subr.bf16.mxu0 0
      %3126 = vmatpush1.bf16.msra.mxu0 0
      %3127 = vmatprep.subr.bf16.mxu0 0
      %3128 = vmatpush1.bf16.msra.mxu0 0
      %3129 = vmatprep.subr.bf16.mxu0 0
      %3130 = vmatpush1.bf16.msra.mxu0 0
      %3131 = vmatprep.subr.bf16.mxu0 0
      %3132 = vmatpush1.bf16.msra.mxu0 0
      %3133 = vmatprep.subr.bf16.mxu0 0
      %3134 = vmatpush1.bf16.msra.mxu0 0
      %3135 = vmatprep.subr.bf16.mxu0 0
      %3136 = vmatpush1.bf16.msra.mxu0 0
      %3137 = vmatprep.subr.bf16.mxu0 0
      %3138 = vmatpush1.bf16.msra.mxu0 0
      %3139 = vmatprep.subr.bf16.mxu0 0
      %3140 = vmatpush1.bf16.msra.mxu0 0
      %3141 = vmatprep.subr.bf16.mxu0 0
      %3142 = vmatpush1.bf16.msra.mxu0 0
      %3143 = vmatprep.subr.bf16.mxu0 0
      %3144 = vmatpush1.bf16.msra.mxu0 0
      %3145 = vmatprep.mubr.bf16.mxu0 0
      %3146 = vmatmul.mubr.bf16.gmra.mrb[0].mxu0 %v3111
      %v3147 = vpop.f32.mrb[0].mxu0
      %v3148 = vadd.f32 0.0, %v3147
      %v3149 = vpop.f32.mrb[0].mxu0
      %v3150 = vpop.f32.mrb[0].mxu0
      %v3151 = vadd.f32 0.0, %v3150
      %v3152 = vpop.f32.mrb[0].mxu0
      %3153 = vdwg.mxu0
      %3154 = vrot.lane.b32.xlu0 %v459, 48
      %v3155 = vpop.permute.xlu0 %3154
      %v3158 = vsel %vm874, %v3054, 0
      %3160 = vmatprep.subr.bf16.mxu0 0
      %3161 = vmatpush1.bf16.msra.mxu0 %v3155
      %3162 = vmatprep.subr.bf16.mxu0 0
      %3163 = vmatpush1.bf16.msra.mxu0 0
      %3164 = vmatprep.subr.bf16.mxu0 0
      %3165 = vmatpush1.bf16.msra.mxu0 0
      %3166 = vmatprep.subr.bf16.mxu0 0
      %3167 = vmatpush1.bf16.msra.mxu0 0
      %3168 = vmatprep.subr.bf16.mxu0 0
      %3169 = vmatpush1.bf16.msra.mxu0 0
      %3170 = vmatprep.subr.bf16.mxu0 0
      %3171 = vmatpush1.bf16.msra.mxu0 0
      %3172 = vmatprep.subr.bf16.mxu0 0
      %3173 = vmatpush1.bf16.msra.mxu0 0
      %3174 = vmatprep.subr.bf16.mxu0 0
      %3175 = vmatpush1.bf16.msra.mxu0 0
      %3176 = vmatprep.subr.bf16.mxu0 0
      %3177 = vmatpush1.bf16.msra.mxu0 0
      %3178 = vmatprep.subr.bf16.mxu0 0
      %3179 = vmatpush1.bf16.msra.mxu0 0
      %3180 = vmatprep.subr.bf16.mxu0 0
      %3181 = vmatpush1.bf16.msra.mxu0 0
      %3182 = vmatprep.subr.bf16.mxu0 0
      %3183 = vmatpush1.bf16.msra.mxu0 0
      %3184 = vmatprep.subr.bf16.mxu0 0
      %3185 = vmatpush1.bf16.msra.mxu0 0
      %3186 = vmatprep.subr.bf16.mxu0 0
      %3187 = vmatpush1.bf16.msra.mxu0 0
      %3188 = vmatprep.subr.bf16.mxu0 0
      %3189 = vmatpush1.bf16.msra.mxu0 0
      %3190 = vmatprep.subr.bf16.mxu0 0
      %3191 = vmatpush1.bf16.msra.mxu0 0
      %3192 = vmatprep.mubr.bf16.mxu0 0
      %3193 = vmatmul.mubr.bf16.gmra.mrb[0].mxu0 %v3158
      %v3194 = vpop.f32.mrb[0].mxu0
      %v3195 = vadd.f32 0.0, %v3194
      %v3196 = vpop.f32.mrb[0].mxu0
      %v3197 = vpop.f32.mrb[0].mxu0
      %v3198 = vadd.f32 0.0, %v3197
      %v3199 = vpop.f32.mrb[0].mxu0
      %3200 = vdwg.mxu0
      %3201 = vrot.lane.b32.xlu0 %v460, 48
      %v3202 = vpop.permute.xlu0 %3201
      %v3205 = vsel %vm874, %v3055, 0
      %3207 = vmatprep.subr.bf16.mxu0 0
      %3208 = vmatpush1.bf16.msra.mxu0 %v3202
      %3209 = vmatprep.subr.bf16.mxu0 0
      %3210 = vmatpush1.bf16.msra.mxu0 0
      %3211 = vmatprep.subr.bf16.mxu0 0
      %3212 = vmatpush1.bf16.msra.mxu0 0
      %3213 = vmatprep.subr.bf16.mxu0 0
      %3214 = vmatpush1.bf16.msra.mxu0 0
      %3215 = vmatprep.subr.bf16.mxu0 0
      %3216 = vmatpush1.bf16.msra.mxu0 0
      %3217 = vmatprep.subr.bf16.mxu0 0
      %3218 = vmatpush1.bf16.msra.mxu0 0
      %3219 = vmatprep.subr.bf16.mxu0 0
      %3220 = vmatpush1.bf16.msra.mxu0 0
      %3221 = vmatprep.subr.bf16.mxu0 0
      %3222 = vmatpush1.bf16.msra.mxu0 0
      %3223 = vmatprep.subr.bf16.mxu0 0
      %3224 = vmatpush1.bf16.msra.mxu0 0
      %3225 = vmatprep.subr.bf16.mxu0 0
      %3226 = vmatpush1.bf16.msra.mxu0 0
      %3227 = vmatprep.subr.bf16.mxu0 0
      %3228 = vmatpush1.bf16.msra.mxu0 0
      %3229 = vmatprep.subr.bf16.mxu0 0
      %3230 = vmatpush1.bf16.msra.mxu0 0
      %3231 = vmatprep.subr.bf16.mxu0 0
      %3232 = vmatpush1.bf16.msra.mxu0 0
      %3233 = vmatprep.subr.bf16.mxu0 0
      %3234 = vmatpush1.bf16.msra.mxu0 0
      %3235 = vmatprep.subr.bf16.mxu0 0
      %3236 = vmatpush1.bf16.msra.mxu0 0
      %3237 = vmatprep.subr.bf16.mxu0 0
      %3238 = vmatpush1.bf16.msra.mxu0 0
      %3239 = vmatprep.mubr.bf16.mxu0 0
      %3240 = vmatmul.mubr.bf16.gmra.mrb[0].mxu0 %v3205
      %v3241 = vpop.f32.mrb[0].mxu0
      %v3242 = vadd.f32 0.0, %v3241
      %v3243 = vpop.f32.mrb[0].mxu0
      %v3244 = vpop.f32.mrb[0].mxu0
      %v3245 = vadd.f32 0.0, %v3244
      %v3246 = vpop.f32.mrb[0].mxu0
      %3247 = vdwg.mxu0
      %3248 = vrot.lane.b32.xlu0 %v461, 48
      %v3249 = vpop.permute.xlu0 %3248
      %v3252 = vsel %vm874, %v3056, 0
      %3254 = vmatprep.subr.bf16.mxu0 0
      %3255 = vmatpush1.bf16.msra.mxu0 %v3249
      %3256 = vmatprep.subr.bf16.mxu0 0
      %3257 = vmatpush1.bf16.msra.mxu0 0
      %3258 = vmatprep.subr.bf16.mxu0 0
      %3259 = vmatpush1.bf16.msra.mxu0 0
      %3260 = vmatprep.subr.bf16.mxu0 0
      %3261 = vmatpush1.bf16.msra.mxu0 0
      %3262 = vmatprep.subr.bf16.mxu0 0
      %3263 = vmatpush1.bf16.msra.mxu0 0
      %3264 = vmatprep.subr.bf16.mxu0 0
      %3265 = vmatpush1.bf16.msra.mxu0 0
      %3266 = vmatprep.subr.bf16.mxu0 0
      %3267 = vmatpush1.bf16.msra.mxu0 0
      %3268 = vmatprep.subr.bf16.mxu0 0
      %3269 = vmatpush1.bf16.msra.mxu0 0
      %3270 = vmatprep.subr.bf16.mxu0 0
      %3271 = vmatpush1.bf16.msra.mxu0 0
      %3272 = vmatprep.subr.bf16.mxu0 0
      %3273 = vmatpush1.bf16.msra.mxu0 0
      %3274 = vmatprep.subr.bf16.mxu0 0
      %3275 = vmatpush1.bf16.msra.mxu0 0
      %3276 = vmatprep.subr.bf16.mxu0 0
      %3277 = vmatpush1.bf16.msra.mxu0 0
      %3278 = vmatprep.subr.bf16.mxu0 0
      %3279 = vmatpush1.bf16.msra.mxu0 0
      %3280 = vmatprep.subr.bf16.mxu0 0
      %3281 = vmatpush1.bf16.msra.mxu0 0
      %3282 = vmatprep.subr.bf16.mxu0 0
      %3283 = vmatpush1.bf16.msra.mxu0 0
      %3284 = vmatprep.subr.bf16.mxu0 0
      %3285 = vmatpush1.bf16.msra.mxu0 0
      %3286 = vmatprep.mubr.bf16.mxu0 0
      %3287 = vmatmul.mubr.bf16.gmra.mrb[0].mxu0 %v3252
      %v3288 = vpop.f32.mrb[0].mxu0
      %v3289 = vadd.f32 0.0, %v3288
      %v3290 = vpop.f32.mrb[0].mxu0
      %v3291 = vpop.f32.mrb[0].mxu0
      %v3292 = vadd.f32 0.0, %v3291
      %v3293 = vpop.f32.mrb[0].mxu0
      %3294 = vdwg.mxu0
      %3295 = vrot.lane.b32.xlu0 %v462, 48
      %v3296 = vpop.permute.xlu0 %3295
      %v3299 = vsel %vm874, %v3057, 0
      %3301 = vmatprep.subr.bf16.mxu0 0
      %3302 = vmatpush1.bf16.msra.mxu0 %v3296
      %3303 = vmatprep.subr.bf16.mxu0 0
      %3304 = vmatpush1.bf16.msra.mxu0 0
      %3305 = vmatprep.subr.bf16.mxu0 0
      %3306 = vmatpush1.bf16.msra.mxu0 0
      %3307 = vmatprep.subr.bf16.mxu0 0
      %3308 = vmatpush1.bf16.msra.mxu0 0
      %3309 = vmatprep.subr.bf16.mxu0 0
      %3310 = vmatpush1.bf16.msra.mxu0 0
      %3311 = vmatprep.subr.bf16.mxu0 0
      %3312 = vmatpush1.bf16.msra.mxu0 0
      %3313 = vmatprep.subr.bf16.mxu0 0
      %3314 = vmatpush1.bf16.msra.mxu0 0
      %3315 = vmatprep.subr.bf16.mxu0 0
      %3316 = vmatpush1.bf16.msra.mxu0 0
      %3317 = vmatprep.subr.bf16.mxu0 0
      %3318 = vmatpush1.bf16.msra.mxu0 0
      %3319 = vmatprep.subr.bf16.mxu0 0
      %3320 = vmatpush1.bf16.msra.mxu0 0
      %3321 = vmatprep.subr.bf16.mxu0 0
      %3322 = vmatpush1.bf16.msra.mxu0 0
      %3323 = vmatprep.subr.bf16.mxu0 0
      %3324 = vmatpush1.bf16.msra.mxu0 0
      %3325 = vmatprep.subr.bf16.mxu0 0
      %3326 = vmatpush1.bf16.msra.mxu0 0
      %3327 = vmatprep.subr.bf16.mxu0 0
      %3328 = vmatpush1.bf16.msra.mxu0 0
      %3329 = vmatprep.subr.bf16.mxu0 0
      %3330 = vmatpush1.bf16.msra.mxu0 0
      %3331 = vmatprep.subr.bf16.mxu0 0
      %3332 = vmatpush1.bf16.msra.mxu0 0
      %3333 = vmatprep.mubr.bf16.mxu0 0
      %3334 = vmatmul.mubr.bf16.gmra.mrb[0].mxu0 %v3299
      %v3335 = vpop.f32.mrb[0].mxu0
      %v3336 = vadd.f32 0.0, %v3335
      %v3337 = vpop.f32.mrb[0].mxu0
      %v3338 = vpop.f32.mrb[0].mxu0
      %v3339 = vadd.f32 0.0, %v3338
      %v3340 = vpop.f32.mrb[0].mxu0
      %3341 = vdwg.mxu0
      %3342 = vrot.lane.b32.xlu0 %v463, 48
      %v3343 = vpop.permute.xlu0 %3342
      %v3346 = vsel %vm874, %v3058, 0
      %3348 = vmatprep.subr.bf16.mxu0 0
      %3349 = vmatpush1.bf16.msra.mxu0 %v3343
      %3350 = vmatprep.subr.bf16.mxu0 0
      %3351 = vmatpush1.bf16.msra.mxu0 0
      %3352 = vmatprep.subr.bf16.mxu0 0
      %3353 = vmatpush1.bf16.msra.mxu0 0
      %3354 = vmatprep.subr.bf16.mxu0 0
      %3355 = vmatpush1.bf16.msra.mxu0 0
      %3356 = vmatprep.subr.bf16.mxu0 0
      %3357 = vmatpush1.bf16.msra.mxu0 0
      %3358 = vmatprep.subr.bf16.mxu0 0
      %3359 = vmatpush1.bf16.msra.mxu0 0
      %3360 = vmatprep.subr.bf16.mxu0 0
      %3361 = vmatpush1.bf16.msra.mxu0 0
      %3362 = vmatprep.subr.bf16.mxu0 0
      %3363 = vmatpush1.bf16.msra.mxu0 0
      %3364 = vmatprep.subr.bf16.mxu0 0
      %3365 = vmatpush1.bf16.msra.mxu0 0
      %3366 = vmatprep.subr.bf16.mxu0 0
      %3367 = vmatpush1.bf16.msra.mxu0 0
      %3368 = vmatprep.subr.bf16.mxu0 0
      %3369 = vmatpush1.bf16.msra.mxu0 0
      %3370 = vmatprep.subr.bf16.mxu0 0
      %3371 = vmatpush1.bf16.msra.mxu0 0
      %3372 = vmatprep.subr.bf16.mxu0 0
      %3373 = vmatpush1.bf16.msra.mxu0 0
      %3374 = vmatprep.subr.bf16.mxu0 0
      %3375 = vmatpush1.bf16.msra.mxu0 0
      %3376 = vmatprep.subr.bf16.mxu0 0
      %3377 = vmatpush1.bf16.msra.mxu0 0
      %3378 = vmatprep.subr.bf16.mxu0 0
      %3379 = vmatpush1.bf16.msra.mxu0 0
      %3380 = vmatprep.mubr.bf16.mxu0 0
      %3381 = vmatmul.mubr.bf16.gmra.mrb[0].mxu0 %v3346
      %v3382 = vpop.f32.mrb[0].mxu0
      %v3383 = vadd.f32 0.0, %v3382
      %v3384 = vpop.f32.mrb[0].mxu0
      %v3385 = vpop.f32.mrb[0].mxu0
      %v3386 = vadd.f32 0.0, %v3385
      %v3387 = vpop.f32.mrb[0].mxu0
      %3388 = vdwg.mxu0
      %3389 = vrot.lane.b32.xlu0 %v464, 48
      %v3390 = vpop.permute.xlu0 %3389
      %v3393 = vsel %vm874, %v3059, 0
      %3395 = vmatprep.subr.bf16.mxu0 0
      %3396 = vmatpush1.bf16.msra.mxu0 %v3390
      %3397 = vmatprep.subr.bf16.mxu0 0
      %3398 = vmatpush1.bf16.msra.mxu0 0
      %3399 = vmatprep.subr.bf16.mxu0 0
      %3400 = vmatpush1.bf16.msra.mxu0 0
      %3401 = vmatprep.subr.bf16.mxu0 0
      %3402 = vmatpush1.bf16.msra.mxu0 0
      %3403 = vmatprep.subr.bf16.mxu0 0
      %3404 = vmatpush1.bf16.msra.mxu0 0
      %3405 = vmatprep.subr.bf16.mxu0 0
      %3406 = vmatpush1.bf16.msra.mxu0 0
      %3407 = vmatprep.subr.bf16.mxu0 0
      %3408 = vmatpush1.bf16.msra.mxu0 0
      %3409 = vmatprep.subr.bf16.mxu0 0
      %3410 = vmatpush1.bf16.msra.mxu0 0
      %3411 = vmatprep.subr.bf16.mxu0 0
      %3412 = vmatpush1.bf16.msra.mxu0 0
      %3413 = vmatprep.subr.bf16.mxu0 0
      %3414 = vmatpush1.bf16.msra.mxu0 0
      %3415 = vmatprep.subr.bf16.mxu0 0
      %3416 = vmatpush1.bf16.msra.mxu0 0
      %3417 = vmatprep.subr.bf16.mxu0 0
      %3418 = vmatpush1.bf16.msra.mxu0 0
      %3419 = vmatprep.subr.bf16.mxu0 0
      %3420 = vmatpush1.bf16.msra.mxu0 0
      %3421 = vmatprep.subr.bf16.mxu0 0
      %3422 = vmatpush1.bf16.msra.mxu0 0
      %3423 = vmatprep.subr.bf16.mxu0 0
      %3424 = vmatpush1.bf16.msra.mxu0 0
      %3425 = vmatprep.subr.bf16.mxu0 0
      %3426 = vmatpush1.bf16.msra.mxu0 0
      %3427 = vmatprep.mubr.bf16.mxu0 0
      %3428 = vmatmul.mubr.bf16.gmra.mrb[0].mxu0 %v3393
      %v3429 = vpop.f32.mrb[0].mxu0
      %v3430 = vadd.f32 0.0, %v3429
      %v3431 = vpop.f32.mrb[0].mxu0
      %v3432 = vpop.f32.mrb[0].mxu0
      %v3433 = vadd.f32 0.0, %v3432
      %v3434 = vpop.f32.mrb[0].mxu0
      %3435 = vdwg.mxu0
      %v3436 = vpack.c.bf16 %v3104, %v3101
      %v3437 = vpack.c.bf16 %v3151, %v3148
      %v3438 = vpack.c.bf16 %v3198, %v3195
      %v3439 = vpack.c.bf16 %v3245, %v3242
      %v3440 = vpack.c.bf16 %v3292, %v3289
      %v3441 = vpack.c.bf16 %v3339, %v3336
      %v3442 = vpack.c.bf16 %v3386, %v3383
      %v3443 = vpack.c.bf16 %v3433, %v3430
      %3452 = vrot.lane.b32.xlu0 %v3436, 16
      %v3453 = vpop.permute.xlu0 %3452
      %3454 = vrot.lane.b32.xlu0 %v3437, 16
      %v3455 = vpop.permute.xlu0 %3454
      %3456 = vrot.lane.b32.xlu0 %v3438, 16
      %v3457 = vpop.permute.xlu0 %3456
      %3458 = vrot.lane.b32.xlu0 %v3439, 16
      %v3459 = vpop.permute.xlu0 %3458
      %3460 = vrot.lane.b32.xlu0 %v3440, 16
      %v3461 = vpop.permute.xlu0 %3460
      %3462 = vrot.lane.b32.xlu0 %v3441, 16
      %v3463 = vpop.permute.xlu0 %3462
      %3464 = vrot.lane.b32.xlu0 %v3442, 16
      %v3465 = vpop.permute.xlu0 %3464
      %3466 = vrot.lane.b32.xlu0 %v3443, 16
      %v3467 = vpop.permute.xlu0 %3466
      %vm3476 = vcmask 195712
      %3477 = vst.msk [vmem:[#allocation2] sm:$0xff] %vm3476, %v3453
      %3478 = vst.msk [vmem:[#allocation2 + $0x8] sm:$0xff] %vm3476, %v3455
      %3479 = vst.msk [vmem:[#allocation2 + $0x10] sm:$0xff] %vm3476, %v3457
      %3480 = vst.msk [vmem:[#allocation2 + $0x18] sm:$0xff] %vm3476, %v3459
      %3481 = vst.msk [vmem:[#allocation2 + $0x20] sm:$0xff] %vm3476, %v3461
      %3482 = vst.msk [vmem:[#allocation2 + $0x28] sm:$0xff] %vm3476, %v3463
      %3483 = vst.msk [vmem:[#allocation2 + $0x30] sm:$0xff] %vm3476, %v3465
      %3484 = vst.msk [vmem:[#allocation2 + $0x38] sm:$0xff] %vm3476, %v3467
      %3485 = vrot.lane.b32.xlu0 %v457, 104
      %v3486 = vpop.permute.xlu0 %3485
      %3487 = vrot.lane.b32.xlu0 %v457, 72
      %v3488 = vpop.permute.xlu0 %3487
      %v3490 = vsel %vm476, %v3486, 0
      %v3493 = vsel %vm476, %v3488, 0
      %3495 = vmatprep.subr.bf16.mxu0 0
      %3496 = vmatpush1.bf16.xpose.msra.mxu0 %v3493
      %3497 = vmatprep.subr.bf16.mxu0 0
      %3498 = vmatpush1.bf16.xpose.msra.mxu0 0
      %3499 = vmatprep.subr.bf16.mxu0 0
      %3500 = vmatpush1.bf16.xpose.msra.mxu0 0
      %3501 = vmatprep.subr.bf16.mxu0 0
      %3502 = vmatpush1.bf16.xpose.msra.mxu0 0
      %3503 = vmatprep.subr.bf16.mxu0 0
      %3504 = vmatpush1.bf16.xpose.msra.mxu0 0
      %3505 = vmatprep.subr.bf16.mxu0 0
      %3506 = vmatpush1.bf16.xpose.msra.mxu0 0
      %3507 = vmatprep.subr.bf16.mxu0 0
      %3508 = vmatpush1.bf16.xpose.msra.mxu0 0
      %3509 = vmatprep.subr.bf16.mxu0 0
      %3510 = vmatpush1.bf16.xpose.msra.mxu0 0
      %3511 = vmatprep.subr.bf16.mxu0 0
      %3512 = vmatpush1.bf16.xpose.msra.mxu0 0
      %3513 = vmatprep.subr.bf16.mxu0 0
      %3514 = vmatpush1.bf16.xpose.msra.mxu0 0
      %3515 = vmatprep.subr.bf16.mxu0 0
      %3516 = vmatpush1.bf16.xpose.msra.mxu0 0
      %3517 = vmatprep.subr.bf16.mxu0 0
      %3518 = vmatpush1.bf16.xpose.msra.mxu0 0
      %3519 = vmatprep.subr.bf16.mxu0 0
      %3520 = vmatpush1.bf16.xpose.msra.mxu0 0
      %3521 = vmatprep.subr.bf16.mxu0 0
      %3522 = vmatpush1.bf16.xpose.msra.mxu0 0
      %3523 = vmatprep.subr.bf16.mxu0 0
      %3524 = vmatpush1.bf16.xpose.msra.mxu0 0
      %3525 = vmatprep.subr.bf16.mxu0 0
      %3526 = vmatpush1.bf16.xpose.msra.mxu0 0
      %3527 = vmatprep.mubr.bf16.mxu0 0
      %3528 = vmatmul.mubr.bf16.gmra.mrb[0].mxu0 %v3490
      %v3529 = vpop.f32.mrb[0].mxu0
      %v3530 = vadd.f32 %v471, %v3529
      %v3531 = vpop.f32.mrb[0].mxu0
      %v3532 = vpop.f32.mrb[0].mxu0
      %v3533 = vadd.f32 %v472, %v3532
      %v3534 = vpop.f32.mrb[0].mxu0
      %3535 = vdwg.mxu0
      %3536 = vrot.lane.b32.xlu0 %v458, 104
      %v3537 = vpop.permute.xlu0 %3536
      %3538 = vrot.lane.b32.xlu0 %v458, 72
      %v3539 = vpop.permute.xlu0 %3538
      %v3541 = vsel %vm476, %v3537, 0
      %v3544 = vsel %vm476, %v3539, 0
      %3546 = vmatprep.subr.bf16.mxu0 0
      %3547 = vmatpush1.bf16.xpose.msra.mxu0 %v3544
      %3548 = vmatprep.subr.bf16.mxu0 0
      %3549 = vmatpush1.bf16.xpose.msra.mxu0 0
      %3550 = vmatprep.subr.bf16.mxu0 0
      %3551 = vmatpush1.bf16.xpose.msra.mxu0 0
      %3552 = vmatprep.subr.bf16.mxu0 0
      %3553 = vmatpush1.bf16.xpose.msra.mxu0 0
      %3554 = vmatprep.subr.bf16.mxu0 0
      %3555 = vmatpush1.bf16.xpose.msra.mxu0 0
      %3556 = vmatprep.subr.bf16.mxu0 0
      %3557 = vmatpush1.bf16.xpose.msra.mxu0 0
      %3558 = vmatprep.subr.bf16.mxu0 0
      %3559 = vmatpush1.bf16.xpose.msra.mxu0 0
      %3560 = vmatprep.subr.bf16.mxu0 0
      %3561 = vmatpush1.bf16.xpose.msra.mxu0 0
      %3562 = vmatprep.subr.bf16.mxu0 0
      %3563 = vmatpush1.bf16.xpose.msra.mxu0 0
      %3564 = vmatprep.subr.bf16.mxu0 0
      %3565 = vmatpush1.bf16.xpose.msra.mxu0 0
      %3566 = vmatprep.subr.bf16.mxu0 0
      %3567 = vmatpush1.bf16.xpose.msra.mxu0 0
      %3568 = vmatprep.subr.bf16.mxu0 0
      %3569 = vmatpush1.bf16.xpose.msra.mxu0 0
      %3570 = vmatprep.subr.bf16.mxu0 0
      %3571 = vmatpush1.bf16.xpose.msra.mxu0 0
      %3572 = vmatprep.subr.bf16.mxu0 0
      %3573 = vmatpush1.bf16.xpose.msra.mxu0 0
      %3574 = vmatprep.subr.bf16.mxu0 0
      %3575 = vmatpush1.bf16.xpose.msra.mxu0 0
      %3576 = vmatprep.subr.bf16.mxu0 0
      %3577 = vmatpush1.bf16.xpose.msra.mxu0 0
      %3578 = vmatprep.mubr.bf16.mxu0 0
      %3579 = vmatmul.mubr.bf16.gmra.mrb[0].mxu0 %v3541
      %v3580 = vpop.f32.mrb[0].mxu0
      %v3581 = vadd.f32 %v471, %v3580
      %v3582 = vpop.f32.mrb[0].mxu0
      %v3583 = vpop.f32.mrb[0].mxu0
      %v3584 = vadd.f32 %v472, %v3583
      %v3585 = vpop.f32.mrb[0].mxu0
      %3586 = vdwg.mxu0
      %3587 = vrot.lane.b32.xlu0 %v459, 104
      %v3588 = vpop.permute.xlu0 %3587
      %3589 = vrot.lane.b32.xlu0 %v459, 72
      %v3590 = vpop.permute.xlu0 %3589
      %v3592 = vsel %vm476, %v3588, 0
      %v3595 = vsel %vm476, %v3590, 0
      %3597 = vmatprep.subr.bf16.mxu0 0
      %3598 = vmatpush1.bf16.xpose.msra.mxu0 %v3595
      %3599 = vmatprep.subr.bf16.mxu0 0
      %3600 = vmatpush1.bf16.xpose.msra.mxu0 0
      %3601 = vmatprep.subr.bf16.mxu0 0
      %3602 = vmatpush1.bf16.xpose.msra.mxu0 0
      %3603 = vmatprep.subr.bf16.mxu0 0
      %3604 = vmatpush1.bf16.xpose.msra.mxu0 0
      %3605 = vmatprep.subr.bf16.mxu0 0
      %3606 = vmatpush1.bf16.xpose.msra.mxu0 0
      %3607 = vmatprep.subr.bf16.mxu0 0
      %3608 = vmatpush1.bf16.xpose.msra.mxu0 0
      %3609 = vmatprep.subr.bf16.mxu0 0
      %3610 = vmatpush1.bf16.xpose.msra.mxu0 0
      %3611 = vmatprep.subr.bf16.mxu0 0
      %3612 = vmatpush1.bf16.xpose.msra.mxu0 0
      %3613 = vmatprep.subr.bf16.mxu0 0
      %3614 = vmatpush1.bf16.xpose.msra.mxu0 0
      %3615 = vmatprep.subr.bf16.mxu0 0
      %3616 = vmatpush1.bf16.xpose.msra.mxu0 0
      %3617 = vmatprep.subr.bf16.mxu0 0
      %3618 = vmatpush1.bf16.xpose.msra.mxu0 0
      %3619 = vmatprep.subr.bf16.mxu0 0
      %3620 = vmatpush1.bf16.xpose.msra.mxu0 0
      %3621 = vmatprep.subr.bf16.mxu0 0
      %3622 = vmatpush1.bf16.xpose.msra.mxu0 0
      %3623 = vmatprep.subr.bf16.mxu0 0
      %3624 = vmatpush1.bf16.xpose.msra.mxu0 0
      %3625 = vmatprep.subr.bf16.mxu0 0
      %3626 = vmatpush1.bf16.xpose.msra.mxu0 0
      %3627 = vmatprep.subr.bf16.mxu0 0
      %3628 = vmatpush1.bf16.xpose.msra.mxu0 0
      %3629 = vmatprep.mubr.bf16.mxu0 0
      %3630 = vmatmul.mubr.bf16.gmra.mrb[0].mxu0 %v3592
      %v3631 = vpop.f32.mrb[0].mxu0
      %v3632 = vadd.f32 %v471, %v3631
      %v3633 = vpop.f32.mrb[0].mxu0
      %v3634 = vpop.f32.mrb[0].mxu0
      %v3635 = vadd.f32 %v472, %v3634
      %v3636 = vpop.f32.mrb[0].mxu0
      %3637 = vdwg.mxu0
      %3638 = vrot.lane.b32.xlu0 %v460, 104
      %v3639 = vpop.permute.xlu0 %3638
      %3640 = vrot.lane.b32.xlu0 %v460, 72
      %v3641 = vpop.permute.xlu0 %3640
      %v3643 = vsel %vm476, %v3639, 0
      %v3646 = vsel %vm476, %v3641, 0
      %3648 = vmatprep.subr.bf16.mxu0 0
      %3649 = vmatpush1.bf16.xpose.msra.mxu0 %v3646
      %3650 = vmatprep.subr.bf16.mxu0 0
      %3651 = vmatpush1.bf16.xpose.msra.mxu0 0
      %3652 = vmatprep.subr.bf16.mxu0 0
      %3653 = vmatpush1.bf16.xpose.msra.mxu0 0
      %3654 = vmatprep.subr.bf16.mxu0 0
      %3655 = vmatpush1.bf16.xpose.msra.mxu0 0
      %3656 = vmatprep.subr.bf16.mxu0 0
      %3657 = vmatpush1.bf16.xpose.msra.mxu0 0
      %3658 = vmatprep.subr.bf16.mxu0 0
      %3659 = vmatpush1.bf16.xpose.msra.mxu0 0
      %3660 = vmatprep.subr.bf16.mxu0 0
      %3661 = vmatpush1.bf16.xpose.msra.mxu0 0
      %3662 = vmatprep.subr.bf16.mxu0 0
      %3663 = vmatpush1.bf16.xpose.msra.mxu0 0
      %3664 = vmatprep.subr.bf16.mxu0 0
      %3665 = vmatpush1.bf16.xpose.msra.mxu0 0
      %3666 = vmatprep.subr.bf16.mxu0 0
      %3667 = vmatpush1.bf16.xpose.msra.mxu0 0
      %3668 = vmatprep.subr.bf16.mxu0 0
      %3669 = vmatpush1.bf16.xpose.msra.mxu0 0
      %3670 = vmatprep.subr.bf16.mxu0 0
      %3671 = vmatpush1.bf16.xpose.msra.mxu0 0
      %3672 = vmatprep.subr.bf16.mxu0 0
      %3673 = vmatpush1.bf16.xpose.msra.mxu0 0
      %3674 = vmatprep.subr.bf16.mxu0 0
      %3675 = vmatpush1.bf16.xpose.msra.mxu0 0
      %3676 = vmatprep.subr.bf16.mxu0 0
      %3677 = vmatpush1.bf16.xpose.msra.mxu0 0
      %3678 = vmatprep.subr.bf16.mxu0 0
      %3679 = vmatpush1.bf16.xpose.msra.mxu0 0
      %3680 = vmatprep.mubr.bf16.mxu0 0
      %3681 = vmatmul.mubr.bf16.gmra.mrb[0].mxu0 %v3643
      %v3682 = vpop.f32.mrb[0].mxu0
      %v3683 = vadd.f32 %v471, %v3682
      %v3684 = vpop.f32.mrb[0].mxu0
      %v3685 = vpop.f32.mrb[0].mxu0
      %v3686 = vadd.f32 %v472, %v3685
      %v3687 = vpop.f32.mrb[0].mxu0
      %3688 = vdwg.mxu0
      %3689 = vrot.lane.b32.xlu0 %v461, 104
      %v3690 = vpop.permute.xlu0 %3689
      %3691 = vrot.lane.b32.xlu0 %v461, 72
      %v3692 = vpop.permute.xlu0 %3691
      %v3694 = vsel %vm476, %v3690, 0
      %v3697 = vsel %vm476, %v3692, 0
      %3699 = vmatprep.subr.bf16.mxu0 0
      %3700 = vmatpush1.bf16.xpose.msra.mxu0 %v3697
      %3701 = vmatprep.subr.bf16.mxu0 0
      %3702 = vmatpush1.bf16.xpose.msra.mxu0 0
      %3703 = vmatprep.subr.bf16.mxu0 0
      %3704 = vmatpush1.bf16.xpose.msra.mxu0 0
      %3705 = vmatprep.subr.bf16.mxu0 0
      %3706 = vmatpush1.bf16.xpose.msra.mxu0 0
      %3707 = vmatprep.subr.bf16.mxu0 0
      %3708 = vmatpush1.bf16.xpose.msra.mxu0 0
      %3709 = vmatprep.subr.bf16.mxu0 0
      %3710 = vmatpush1.bf16.xpose.msra.mxu0 0
      %3711 = vmatprep.subr.bf16.mxu0 0
      %3712 = vmatpush1.bf16.xpose.msra.mxu0 0
      %3713 = vmatprep.subr.bf16.mxu0 0
      %3714 = vmatpush1.bf16.xpose.msra.mxu0 0
      %3715 = vmatprep.subr.bf16.mxu0 0
      %3716 = vmatpush1.bf16.xpose.msra.mxu0 0
      %3717 = vmatprep.subr.bf16.mxu0 0
      %3718 = vmatpush1.bf16.xpose.msra.mxu0 0
      %3719 = vmatprep.subr.bf16.mxu0 0
      %3720 = vmatpush1.bf16.xpose.msra.mxu0 0
      %3721 = vmatprep.subr.bf16.mxu0 0
      %3722 = vmatpush1.bf16.xpose.msra.mxu0 0
      %3723 = vmatprep.subr.bf16.mxu0 0
      %3724 = vmatpush1.bf16.xpose.msra.mxu0 0
      %3725 = vmatprep.subr.bf16.mxu0 0
      %3726 = vmatpush1.bf16.xpose.msra.mxu0 0
      %3727 = vmatprep.subr.bf16.mxu0 0
      %3728 = vmatpush1.bf16.xpose.msra.mxu0 0
      %3729 = vmatprep.subr.bf16.mxu0 0
      %3730 = vmatpush1.bf16.xpose.msra.mxu0 0
      %3731 = vmatprep.mubr.bf16.mxu0 0
      %3732 = vmatmul.mubr.bf16.gmra.mrb[0].mxu0 %v3694
      %v3733 = vpop.f32.mrb[0].mxu0
      %v3734 = vadd.f32 %v471, %v3733
      %v3735 = vpop.f32.mrb[0].mxu0
      %v3736 = vpop.f32.mrb[0].mxu0
      %v3737 = vadd.f32 %v472, %v3736
      %v3738 = vpop.f32.mrb[0].mxu0
      %3739 = vdwg.mxu0
      %3740 = vrot.lane.b32.xlu0 %v462, 104
      %v3741 = vpop.permute.xlu0 %3740
      %3742 = vrot.lane.b32.xlu0 %v462, 72
      %v3743 = vpop.permute.xlu0 %3742
      %v3745 = vsel %vm476, %v3741, 0
      %v3748 = vsel %vm476, %v3743, 0
      %3750 = vmatprep.subr.bf16.mxu0 0
      %3751 = vmatpush1.bf16.xpose.msra.mxu0 %v3748
      %3752 = vmatprep.subr.bf16.mxu0 0
      %3753 = vmatpush1.bf16.xpose.msra.mxu0 0
      %3754 = vmatprep.subr.bf16.mxu0 0
      %3755 = vmatpush1.bf16.xpose.msra.mxu0 0
      %3756 = vmatprep.subr.bf16.mxu0 0
      %3757 = vmatpush1.bf16.xpose.msra.mxu0 0
      %3758 = vmatprep.subr.bf16.mxu0 0
      %3759 = vmatpush1.bf16.xpose.msra.mxu0 0
      %3760 = vmatprep.subr.bf16.mxu0 0
      %3761 = vmatpush1.bf16.xpose.msra.mxu0 0
      %3762 = vmatprep.subr.bf16.mxu0 0
      %3763 = vmatpush1.bf16.xpose.msra.mxu0 0
      %3764 = vmatprep.subr.bf16.mxu0 0
      %3765 = vmatpush1.bf16.xpose.msra.mxu0 0
      %3766 = vmatprep.subr.bf16.mxu0 0
      %3767 = vmatpush1.bf16.xpose.msra.mxu0 0
      %3768 = vmatprep.subr.bf16.mxu0 0
      %3769 = vmatpush1.bf16.xpose.msra.mxu0 0
      %3770 = vmatprep.subr.bf16.mxu0 0
      %3771 = vmatpush1.bf16.xpose.msra.mxu0 0
      %3772 = vmatprep.subr.bf16.mxu0 0
      %3773 = vmatpush1.bf16.xpose.msra.mxu0 0
      %3774 = vmatprep.subr.bf16.mxu0 0
      %3775 = vmatpush1.bf16.xpose.msra.mxu0 0
      %3776 = vmatprep.subr.bf16.mxu0 0
      %3777 = vmatpush1.bf16.xpose.msra.mxu0 0
      %3778 = vmatprep.subr.bf16.mxu0 0
      %3779 = vmatpush1.bf16.xpose.msra.mxu0 0
      %3780 = vmatprep.subr.bf16.mxu0 0
      %3781 = vmatpush1.bf16.xpose.msra.mxu0 0
      %3782 = vmatprep.mubr.bf16.mxu0 0
      %3783 = vmatmul.mubr.bf16.gmra.mrb[0].mxu0 %v3745
      %v3784 = vpop.f32.mrb[0].mxu0
      %v3785 = vadd.f32 %v471, %v3784
      %v3786 = vpop.f32.mrb[0].mxu0
      %v3787 = vpop.f32.mrb[0].mxu0
      %v3788 = vadd.f32 %v472, %v3787
      %v3789 = vpop.f32.mrb[0].mxu0
      %3790 = vdwg.mxu0
      %3791 = vrot.lane.b32.xlu0 %v463, 104
      %v3792 = vpop.permute.xlu0 %3791
      %3793 = vrot.lane.b32.xlu0 %v463, 72
      %v3794 = vpop.permute.xlu0 %3793
      %v3796 = vsel %vm476, %v3792, 0
      %v3799 = vsel %vm476, %v3794, 0
      %3801 = vmatprep.subr.bf16.mxu0 0
      %3802 = vmatpush1.bf16.xpose.msra.mxu0 %v3799
      %3803 = vmatprep.subr.bf16.mxu0 0
      %3804 = vmatpush1.bf16.xpose.msra.mxu0 0
      %3805 = vmatprep.subr.bf16.mxu0 0
      %3806 = vmatpush1.bf16.xpose.msra.mxu0 0
      %3807 = vmatprep.subr.bf16.mxu0 0
      %3808 = vmatpush1.bf16.xpose.msra.mxu0 0
      %3809 = vmatprep.subr.bf16.mxu0 0
      %3810 = vmatpush1.bf16.xpose.msra.mxu0 0
      %3811 = vmatprep.subr.bf16.mxu0 0
      %3812 = vmatpush1.bf16.xpose.msra.mxu0 0
      %3813 = vmatprep.subr.bf16.mxu0 0
      %3814 = vmatpush1.bf16.xpose.msra.mxu0 0
      %3815 = vmatprep.subr.bf16.mxu0 0
      %3816 = vmatpush1.bf16.xpose.msra.mxu0 0
      %3817 = vmatprep.subr.bf16.mxu0 0
      %3818 = vmatpush1.bf16.xpose.msra.mxu0 0
      %3819 = vmatprep.subr.bf16.mxu0 0
      %3820 = vmatpush1.bf16.xpose.msra.mxu0 0
      %3821 = vmatprep.subr.bf16.mxu0 0
      %3822 = vmatpush1.bf16.xpose.msra.mxu0 0
      %3823 = vmatprep.subr.bf16.mxu0 0
      %3824 = vmatpush1.bf16.xpose.msra.mxu0 0
      %3825 = vmatprep.subr.bf16.mxu0 0
      %3826 = vmatpush1.bf16.xpose.msra.mxu0 0
      %3827 = vmatprep.subr.bf16.mxu0 0
      %3828 = vmatpush1.bf16.xpose.msra.mxu0 0
      %3829 = vmatprep.subr.bf16.mxu0 0
      %3830 = vmatpush1.bf16.xpose.msra.mxu0 0
      %3831 = vmatprep.subr.bf16.mxu0 0
      %3832 = vmatpush1.bf16.xpose.msra.mxu0 0
      %3833 = vmatprep.mubr.bf16.mxu0 0
      %3834 = vmatmul.mubr.bf16.gmra.mrb[0].mxu0 %v3796
      %v3835 = vpop.f32.mrb[0].mxu0
      %v3836 = vadd.f32 %v471, %v3835
      %v3837 = vpop.f32.mrb[0].mxu0
      %v3838 = vpop.f32.mrb[0].mxu0
      %v3839 = vadd.f32 %v472, %v3838
      %v3840 = vpop.f32.mrb[0].mxu0
      %3841 = vdwg.mxu0
      %3842 = vrot.lane.b32.xlu0 %v464, 104
      %v3843 = vpop.permute.xlu0 %3842
      %3844 = vrot.lane.b32.xlu0 %v464, 72
      %v3845 = vpop.permute.xlu0 %3844
      %v3847 = vsel %vm476, %v3843, 0
      %v3850 = vsel %vm476, %v3845, 0
      %3852 = vmatprep.subr.bf16.mxu0 0
      %3853 = vmatpush1.bf16.xpose.msra.mxu0 %v3850
      %3854 = vmatprep.subr.bf16.mxu0 0
      %3855 = vmatpush1.bf16.xpose.msra.mxu0 0
      %3856 = vmatprep.subr.bf16.mxu0 0
      %3857 = vmatpush1.bf16.xpose.msra.mxu0 0
      %3858 = vmatprep.subr.bf16.mxu0 0
      %3859 = vmatpush1.bf16.xpose.msra.mxu0 0
      %3860 = vmatprep.subr.bf16.mxu0 0
      %3861 = vmatpush1.bf16.xpose.msra.mxu0 0
      %3862 = vmatprep.subr.bf16.mxu0 0
      %3863 = vmatpush1.bf16.xpose.msra.mxu0 0
      %3864 = vmatprep.subr.bf16.mxu0 0
      %3865 = vmatpush1.bf16.xpose.msra.mxu0 0
      %3866 = vmatprep.subr.bf16.mxu0 0
      %3867 = vmatpush1.bf16.xpose.msra.mxu0 0
      %3868 = vmatprep.subr.bf16.mxu0 0
      %3869 = vmatpush1.bf16.xpose.msra.mxu0 0
      %3870 = vmatprep.subr.bf16.mxu0 0
      %3871 = vmatpush1.bf16.xpose.msra.mxu0 0
      %3872 = vmatprep.subr.bf16.mxu0 0
      %3873 = vmatpush1.bf16.xpose.msra.mxu0 0
      %3874 = vmatprep.subr.bf16.mxu0 0
      %3875 = vmatpush1.bf16.xpose.msra.mxu0 0
      %3876 = vmatprep.subr.bf16.mxu0 0
      %3877 = vmatpush1.bf16.xpose.msra.mxu0 0
      %3878 = vmatprep.subr.bf16.mxu0 0
      %3879 = vmatpush1.bf16.xpose.msra.mxu0 0
      %3880 = vmatprep.subr.bf16.mxu0 0
      %3881 = vmatpush1.bf16.xpose.msra.mxu0 0
      %3882 = vmatprep.subr.bf16.mxu0 0
      %3883 = vmatpush1.bf16.xpose.msra.mxu0 0
      %3884 = vmatprep.mubr.bf16.mxu0 0
      %3885 = vmatmul.mubr.bf16.gmra.mrb[0].mxu0 %v3847
      %v3886 = vpop.f32.mrb[0].mxu0
      %v3887 = vadd.f32 %v471, %v3886
      %v3888 = vpop.f32.mrb[0].mxu0
      %v3889 = vpop.f32.mrb[0].mxu0
      %v3890 = vadd.f32 %v472, %v3889
      %v3891 = vpop.f32.mrb[0].mxu0
      %3892 = vdwg.mxu0
      %v3893 = vsel %vm874, %v3530, -inf
      %3894 = vmax.xlane.f32.xlu0 %v3893
      %v3895 = vpop.xlane.xlu0 %3894
      %v3896 = vsel %vm874, %v3533, -inf
      %3897 = vmax.xlane.f32.xlu0 %v3896
      %v3898 = vpop.xlane.xlu0 %3897
      %v3899 = vsel %vm874, %v3581, -inf
      %3900 = vmax.xlane.f32.xlu0 %v3899
      %v3901 = vpop.xlane.xlu0 %3900
      %v3902 = vsel %vm874, %v3584, -inf
      %3903 = vmax.xlane.f32.xlu0 %v3902
      %v3904 = vpop.xlane.xlu0 %3903
      %v3905 = vsel %vm874, %v3632, -inf
      %3906 = vmax.xlane.f32.xlu0 %v3905
      %v3907 = vpop.xlane.xlu0 %3906
      %v3908 = vsel %vm874, %v3635, -inf
      %3909 = vmax.xlane.f32.xlu0 %v3908
      %v3910 = vpop.xlane.xlu0 %3909
      %v3911 = vsel %vm874, %v3683, -inf
      %3912 = vmax.xlane.f32.xlu0 %v3911
      %v3913 = vpop.xlane.xlu0 %3912
      %v3914 = vsel %vm874, %v3686, -inf
      %3915 = vmax.xlane.f32.xlu0 %v3914
      %v3916 = vpop.xlane.xlu0 %3915
      %v3917 = vsel %vm874, %v3734, -inf
      %3918 = vmax.xlane.f32.xlu0 %v3917
      %v3919 = vpop.xlane.xlu0 %3918
      %v3920 = vsel %vm874, %v3737, -inf
      %3921 = vmax.xlane.f32.xlu0 %v3920
      %v3922 = vpop.xlane.xlu0 %3921
      %v3923 = vsel %vm874, %v3785, -inf
      %3924 = vmax.xlane.f32.xlu0 %v3923
      %v3925 = vpop.xlane.xlu0 %3924
      %v3926 = vsel %vm874, %v3788, -inf
      %3927 = vmax.xlane.f32.xlu0 %v3926
      %v3928 = vpop.xlane.xlu0 %3927
      %v3929 = vsel %vm874, %v3836, -inf
      %3930 = vmax.xlane.f32.xlu0 %v3929
      %v3931 = vpop.xlane.xlu0 %3930
      %v3932 = vsel %vm874, %v3839, -inf
      %3933 = vmax.xlane.f32.xlu0 %v3932
      %v3934 = vpop.xlane.xlu0 %3933
      %v3935 = vsel %vm874, %v3887, -inf
      %3936 = vmax.xlane.f32.xlu0 %v3935
      %v3937 = vpop.xlane.xlu0 %3936
      %v3938 = vsel %vm874, %v3890, -inf
      %3939 = vmax.xlane.f32.xlu0 %v3938
      %v3940 = vpop.xlane.xlu0 %3939
      %v3941 = vsub.f32 %v3530, %v3895
      %v3942 = vsub.f32 %v3533, %v3898
      %v3943 = vsub.f32 %v3581, %v3901
      %v3944 = vsub.f32 %v3584, %v3904
      %v3945 = vsub.f32 %v3632, %v3907
      %v3946 = vsub.f32 %v3635, %v3910
      %v3947 = vsub.f32 %v3683, %v3913
      %v3948 = vsub.f32 %v3686, %v3916
      %v3949 = vsub.f32 %v3734, %v3919
      %v3950 = vsub.f32 %v3737, %v3922
      %v3951 = vsub.f32 %v3785, %v3925
      %v3952 = vsub.f32 %v3788, %v3928
      %v3953 = vsub.f32 %v3836, %v3931
      %v3954 = vsub.f32 %v3839, %v3934
      %v3955 = vsub.f32 %v3887, %v3937
      %v3956 = vsub.f32 %v3890, %v3940
      %v3957 = vmul.f32 %v3941, 1.442695
      %v3958 = vpow.pop %v3957
      %v3959 = vmul.f32 %v3942, 1.442695
      %v3960 = vpow.pop %v3959
      %v3961 = vmul.f32 %v3943, 1.442695
      %v3962 = vpow.pop %v3961
      %v3963 = vmul.f32 %v3944, 1.442695
      %v3964 = vpow.pop %v3963
      %v3965 = vmul.f32 %v3945, 1.442695
      %v3966 = vpow.pop %v3965
      %v3967 = vmul.f32 %v3946, 1.442695
      %v3968 = vpow.pop %v3967
      %v3969 = vmul.f32 %v3947, 1.442695
      %v3970 = vpow.pop %v3969
      %v3971 = vmul.f32 %v3948, 1.442695
      %v3972 = vpow.pop %v3971
      %v3973 = vmul.f32 %v3949, 1.442695
      %v3974 = vpow.pop %v3973
      %v3975 = vmul.f32 %v3950, 1.442695
      %v3976 = vpow.pop %v3975
      %v3977 = vmul.f32 %v3951, 1.442695
      %v3978 = vpow.pop %v3977
      %v3979 = vmul.f32 %v3952, 1.442695
      %v3980 = vpow.pop %v3979
      %v3981 = vmul.f32 %v3953, 1.442695
      %v3982 = vpow.pop %v3981
      %v3983 = vmul.f32 %v3954, 1.442695
      %v3984 = vpow.pop %v3983
      %v3985 = vmul.f32 %v3955, 1.442695
      %v3986 = vpow.pop %v3985
      %v3987 = vmul.f32 %v3956, 1.442695
      %v3988 = vpow.pop %v3987
      %v3989 = vsel %vm874, %v3958, 0.0
      %3990 = vadd.xlane.f32.xlu0 %v3989
      %v3991 = vpop.xlane.xlu0 %3990
      %v3992 = vsel %vm874, %v3960, 0.0
      %3993 = vadd.xlane.f32.xlu0 %v3992
      %v3994 = vpop.xlane.xlu0 %3993
      %v3995 = vsel %vm874, %v3962, 0.0
      %3996 = vadd.xlane.f32.xlu0 %v3995
      %v3997 = vpop.xlane.xlu0 %3996
      %v3998 = vsel %vm874, %v3964, 0.0
      %3999 = vadd.xlane.f32.xlu0 %v3998
      %v4000 = vpop.xlane.xlu0 %3999
      %v4001 = vsel %vm874, %v3966, 0.0
      %4002 = vadd.xlane.f32.xlu0 %v4001
      %v4003 = vpop.xlane.xlu0 %4002
      %v4004 = vsel %vm874, %v3968, 0.0
      %4005 = vadd.xlane.f32.xlu0 %v4004
      %v4006 = vpop.xlane.xlu0 %4005
      %v4007 = vsel %vm874, %v3970, 0.0
      %4008 = vadd.xlane.f32.xlu0 %v4007
      %v4009 = vpop.xlane.xlu0 %4008
      %v4010 = vsel %vm874, %v3972, 0.0
      %4011 = vadd.xlane.f32.xlu0 %v4010
      %v4012 = vpop.xlane.xlu0 %4011
      %v4013 = vsel %vm874, %v3974, 0.0
      %4014 = vadd.xlane.f32.xlu0 %v4013
      %v4015 = vpop.xlane.xlu0 %4014
      %v4016 = vsel %vm874, %v3976, 0.0
      %4017 = vadd.xlane.f32.xlu0 %v4016
      %v4018 = vpop.xlane.xlu0 %4017
      %v4019 = vsel %vm874, %v3978, 0.0
      %4020 = vadd.xlane.f32.xlu0 %v4019
      %v4021 = vpop.xlane.xlu0 %4020
      %v4022 = vsel %vm874, %v3980, 0.0
      %4023 = vadd.xlane.f32.xlu0 %v4022
      %v4024 = vpop.xlane.xlu0 %4023
      %v4025 = vsel %vm874, %v3982, 0.0
      %4026 = vadd.xlane.f32.xlu0 %v4025
      %v4027 = vpop.xlane.xlu0 %4026
      %v4028 = vsel %vm874, %v3984, 0.0
      %4029 = vadd.xlane.f32.xlu0 %v4028
      %v4030 = vpop.xlane.xlu0 %4029
      %v4031 = vsel %vm874, %v3986, 0.0
      %4032 = vadd.xlane.f32.xlu0 %v4031
      %v4033 = vpop.xlane.xlu0 %4032
      %v4034 = vsel %vm874, %v3988, 0.0
      %4035 = vadd.xlane.f32.xlu0 %v4034
      %v4036 = vpop.xlane.xlu0 %4035
      %v4037 = vrcp.pop %v3991
      %v4038 = vrcp.pop %v3994
      %v4039 = vrcp.pop %v3997
      %v4040 = vrcp.pop %v4000
      %v4041 = vrcp.pop %v4003
      %v4042 = vrcp.pop %v4006
      %v4043 = vrcp.pop %v4009
      %v4044 = vrcp.pop %v4012
      %v4045 = vrcp.pop %v4015
      %v4046 = vrcp.pop %v4018
      %v4047 = vrcp.pop %v4021
      %v4048 = vrcp.pop %v4024
      %v4049 = vrcp.pop %v4027
      %v4050 = vrcp.pop %v4030
      %v4051 = vrcp.pop %v4033
      %v4052 = vrcp.pop %v4036
      %v4053 = vmul.f32 %v3958, %v4037
      %v4054 = vmul.f32 %v3960, %v4038
      %v4055 = vmul.f32 %v3962, %v4039
      %v4056 = vmul.f32 %v3964, %v4040
      %v4057 = vmul.f32 %v3966, %v4041
      %v4058 = vmul.f32 %v3968, %v4042
      %v4059 = vmul.f32 %v3970, %v4043
      %v4060 = vmul.f32 %v3972, %v4044
      %v4061 = vmul.f32 %v3974, %v4045
      %v4062 = vmul.f32 %v3976, %v4046
      %v4063 = vmul.f32 %v3978, %v4047
      %v4064 = vmul.f32 %v3980, %v4048
      %v4065 = vmul.f32 %v3982, %v4049
      %v4066 = vmul.f32 %v3984, %v4050
      %v4067 = vmul.f32 %v3986, %v4051
      %v4068 = vmul.f32 %v3988, %v4052
      %v4069 = vpack.c.bf16 %v4054, %v4053
      %v4070 = vpack.c.bf16 %v4056, %v4055
      %v4071 = vpack.c.bf16 %v4058, %v4057
      %v4072 = vpack.c.bf16 %v4060, %v4059
      %v4073 = vpack.c.bf16 %v4062, %v4061
      %v4074 = vpack.c.bf16 %v4064, %v4063
      %v4075 = vpack.c.bf16 %v4066, %v4065
      %v4076 = vpack.c.bf16 %v4068, %v4067
      %4077 = vrot.lane.b32.xlu0 %v457, 40
      %v4078 = vpop.permute.xlu0 %4077
      %v4081 = vsel %vm874, %v4069, 0
      %4083 = vmatprep.subr.bf16.mxu0 0
      %4084 = vmatpush1.bf16.msra.mxu0 %v4078
      %4085 = vmatprep.subr.bf16.mxu0 0
      %4086 = vmatpush1.bf16.msra.mxu0 0
      %4087 = vmatprep.subr.bf16.mxu0 0
      %4088 = vmatpush1.bf16.msra.mxu0 0
      %4089 = vmatprep.subr.bf16.mxu0 0
      %4090 = vmatpush1.bf16.msra.mxu0 0
      %4091 = vmatprep.subr.bf16.mxu0 0
      %4092 = vmatpush1.bf16.msra.mxu0 0
      %4093 = vmatprep.subr.bf16.mxu0 0
      %4094 = vmatpush1.bf16.msra.mxu0 0
      %4095 = vmatprep.subr.bf16.mxu0 0
      %4096 = vmatpush1.bf16.msra.mxu0 0
      %4097 = vmatprep.subr.bf16.mxu0 0
      %4098 = vmatpush1.bf16.msra.mxu0 0
      %4099 = vmatprep.subr.bf16.mxu0 0
      %4100 = vmatpush1.bf16.msra.mxu0 0
      %4101 = vmatprep.subr.bf16.mxu0 0
      %4102 = vmatpush1.bf16.msra.mxu0 0
      %4103 = vmatprep.subr.bf16.mxu0 0
      %4104 = vmatpush1.bf16.msra.mxu0 0
      %4105 = vmatprep.subr.bf16.mxu0 0
      %4106 = vmatpush1.bf16.msra.mxu0 0
      %4107 = vmatprep.subr.bf16.mxu0 0
      %4108 = vmatpush1.bf16.msra.mxu0 0
      %4109 = vmatprep.subr.bf16.mxu0 0
      %4110 = vmatpush1.bf16.msra.mxu0 0
      %4111 = vmatprep.subr.bf16.mxu0 0
      %4112 = vmatpush1.bf16.msra.mxu0 0
      %4113 = vmatprep.subr.bf16.mxu0 0
      %4114 = vmatpush1.bf16.msra.mxu0 0
      %4115 = vmatprep.mubr.bf16.mxu0 0
      %4116 = vmatmul.mubr.bf16.gmra.mrb[0].mxu0 %v4081
      %v4117 = vpop.f32.mrb[0].mxu0
      %v4118 = vadd.f32 0.0, %v4117
      %v4119 = vpop.f32.mrb[0].mxu0
      %v4120 = vpop.f32.mrb[0].mxu0
      %v4121 = vadd.f32 0.0, %v4120
      %v4122 = vpop.f32.mrb[0].mxu0
      %4123 = vdwg.mxu0
      %4124 = vrot.lane.b32.xlu0 %v458, 40
      %v4125 = vpop.permute.xlu0 %4124
      %v4128 = vsel %vm874, %v4070, 0
      %4130 = vmatprep.subr.bf16.mxu0 0
      %4131 = vmatpush1.bf16.msra.mxu0 %v4125
      %4132 = vmatprep.subr.bf16.mxu0 0
      %4133 = vmatpush1.bf16.msra.mxu0 0
      %4134 = vmatprep.subr.bf16.mxu0 0
      %4135 = vmatpush1.bf16.msra.mxu0 0
      %4136 = vmatprep.subr.bf16.mxu0 0
      %4137 = vmatpush1.bf16.msra.mxu0 0
      %4138 = vmatprep.subr.bf16.mxu0 0
      %4139 = vmatpush1.bf16.msra.mxu0 0
      %4140 = vmatprep.subr.bf16.mxu0 0
      %4141 = vmatpush1.bf16.msra.mxu0 0
      %4142 = vmatprep.subr.bf16.mxu0 0
      %4143 = vmatpush1.bf16.msra.mxu0 0
      %4144 = vmatprep.subr.bf16.mxu0 0
      %4145 = vmatpush1.bf16.msra.mxu0 0
      %4146 = vmatprep.subr.bf16.mxu0 0
      %4147 = vmatpush1.bf16.msra.mxu0 0
      %4148 = vmatprep.subr.bf16.mxu0 0
      %4149 = vmatpush1.bf16.msra.mxu0 0
      %4150 = vmatprep.subr.bf16.mxu0 0
      %4151 = vmatpush1.bf16.msra.mxu0 0
      %4152 = vmatprep.subr.bf16.mxu0 0
      %4153 = vmatpush1.bf16.msra.mxu0 0
      %4154 = vmatprep.subr.bf16.mxu0 0
      %4155 = vmatpush1.bf16.msra.mxu0 0
      %4156 = vmatprep.subr.bf16.mxu0 0
      %4157 = vmatpush1.bf16.msra.mxu0 0
      %4158 = vmatprep.subr.bf16.mxu0 0
      %4159 = vmatpush1.bf16.msra.mxu0 0
      %4160 = vmatprep.subr.bf16.mxu0 0
      %4161 = vmatpush1.bf16.msra.mxu0 0
      %4162 = vmatprep.mubr.bf16.mxu0 0
      %4163 = vmatmul.mubr.bf16.gmra.mrb[0].mxu0 %v4128
      %v4164 = vpop.f32.mrb[0].mxu0
      %v4165 = vadd.f32 0.0, %v4164
      %v4166 = vpop.f32.mrb[0].mxu0
      %v4167 = vpop.f32.mrb[0].mxu0
      %v4168 = vadd.f32 0.0, %v4167
      %v4169 = vpop.f32.mrb[0].mxu0
      %4170 = vdwg.mxu0
      %4171 = vrot.lane.b32.xlu0 %v459, 40
      %v4172 = vpop.permute.xlu0 %4171
      %v4175 = vsel %vm874, %v4071, 0
      %4177 = vmatprep.subr.bf16.mxu0 0
      %4178 = vmatpush1.bf16.msra.mxu0 %v4172
      %4179 = vmatprep.subr.bf16.mxu0 0
      %4180 = vmatpush1.bf16.msra.mxu0 0
      %4181 = vmatprep.subr.bf16.mxu0 0
      %4182 = vmatpush1.bf16.msra.mxu0 0
      %4183 = vmatprep.subr.bf16.mxu0 0
      %4184 = vmatpush1.bf16.msra.mxu0 0
      %4185 = vmatprep.subr.bf16.mxu0 0
      %4186 = vmatpush1.bf16.msra.mxu0 0
      %4187 = vmatprep.subr.bf16.mxu0 0
      %4188 = vmatpush1.bf16.msra.mxu0 0
      %4189 = vmatprep.subr.bf16.mxu0 0
      %4190 = vmatpush1.bf16.msra.mxu0 0
      %4191 = vmatprep.subr.bf16.mxu0 0
      %4192 = vmatpush1.bf16.msra.mxu0 0
      %4193 = vmatprep.subr.bf16.mxu0 0
      %4194 = vmatpush1.bf16.msra.mxu0 0
      %4195 = vmatprep.subr.bf16.mxu0 0
      %4196 = vmatpush1.bf16.msra.mxu0 0
      %4197 = vmatprep.subr.bf16.mxu0 0
      %4198 = vmatpush1.bf16.msra.mxu0 0
      %4199 = vmatprep.subr.bf16.mxu0 0
      %4200 = vmatpush1.bf16.msra.mxu0 0
      %4201 = vmatprep.subr.bf16.mxu0 0
      %4202 = vmatpush1.bf16.msra.mxu0 0
      %4203 = vmatprep.subr.bf16.mxu0 0
      %4204 = vmatpush1.bf16.msra.mxu0 0
      %4205 = vmatprep.subr.bf16.mxu0 0
      %4206 = vmatpush1.bf16.msra.mxu0 0
      %4207 = vmatprep.subr.bf16.mxu0 0
      %4208 = vmatpush1.bf16.msra.mxu0 0
      %4209 = vmatprep.mubr.bf16.mxu0 0
      %4210 = vmatmul.mubr.bf16.gmra.mrb[0].mxu0 %v4175
      %v4211 = vpop.f32.mrb[0].mxu0
      %v4212 = vadd.f32 0.0, %v4211
      %v4213 = vpop.f32.mrb[0].mxu0
      %v4214 = vpop.f32.mrb[0].mxu0
      %v4215 = vadd.f32 0.0, %v4214
      %v4216 = vpop.f32.mrb[0].mxu0
      %4217 = vdwg.mxu0
      %4218 = vrot.lane.b32.xlu0 %v460, 40
      %v4219 = vpop.permute.xlu0 %4218
      %v4222 = vsel %vm874, %v4072, 0
      %4224 = vmatprep.subr.bf16.mxu0 0
      %4225 = vmatpush1.bf16.msra.mxu0 %v4219
      %4226 = vmatprep.subr.bf16.mxu0 0
      %4227 = vmatpush1.bf16.msra.mxu0 0
      %4228 = vmatprep.subr.bf16.mxu0 0
      %4229 = vmatpush1.bf16.msra.mxu0 0
      %4230 = vmatprep.subr.bf16.mxu0 0
      %4231 = vmatpush1.bf16.msra.mxu0 0
      %4232 = vmatprep.subr.bf16.mxu0 0
      %4233 = vmatpush1.bf16.msra.mxu0 0
      %4234 = vmatprep.subr.bf16.mxu0 0
      %4235 = vmatpush1.bf16.msra.mxu0 0
      %4236 = vmatprep.subr.bf16.mxu0 0
      %4237 = vmatpush1.bf16.msra.mxu0 0
      %4238 = vmatprep.subr.bf16.mxu0 0
      %4239 = vmatpush1.bf16.msra.mxu0 0
      %4240 = vmatprep.subr.bf16.mxu0 0
      %4241 = vmatpush1.bf16.msra.mxu0 0
      %4242 = vmatprep.subr.bf16.mxu0 0
      %4243 = vmatpush1.bf16.msra.mxu0 0
      %4244 = vmatprep.subr.bf16.mxu0 0
      %4245 = vmatpush1.bf16.msra.mxu0 0
      %4246 = vmatprep.subr.bf16.mxu0 0
      %4247 = vmatpush1.bf16.msra.mxu0 0
      %4248 = vmatprep.subr.bf16.mxu0 0
      %4249 = vmatpush1.bf16.msra.mxu0 0
      %4250 = vmatprep.subr.bf16.mxu0 0
      %4251 = vmatpush1.bf16.msra.mxu0 0
      %4252 = vmatprep.subr.bf16.mxu0 0
      %4253 = vmatpush1.bf16.msra.mxu0 0
      %4254 = vmatprep.subr.bf16.mxu0 0
      %4255 = vmatpush1.bf16.msra.mxu0 0
      %4256 = vmatprep.mubr.bf16.mxu0 0
      %4257 = vmatmul.mubr.bf16.gmra.mrb[0].mxu0 %v4222
      %v4258 = vpop.f32.mrb[0].mxu0
      %v4259 = vadd.f32 0.0, %v4258
      %v4260 = vpop.f32.mrb[0].mxu0
      %v4261 = vpop.f32.mrb[0].mxu0
      %v4262 = vadd.f32 0.0, %v4261
      %v4263 = vpop.f32.mrb[0].mxu0
      %4264 = vdwg.mxu0
      %4265 = vrot.lane.b32.xlu0 %v461, 40
      %v4266 = vpop.permute.xlu0 %4265
      %v4269 = vsel %vm874, %v4073, 0
      %4271 = vmatprep.subr.bf16.mxu0 0
      %4272 = vmatpush1.bf16.msra.mxu0 %v4266
      %4273 = vmatprep.subr.bf16.mxu0 0
      %4274 = vmatpush1.bf16.msra.mxu0 0
      %4275 = vmatprep.subr.bf16.mxu0 0
      %4276 = vmatpush1.bf16.msra.mxu0 0
      %4277 = vmatprep.subr.bf16.mxu0 0
      %4278 = vmatpush1.bf16.msra.mxu0 0
      %4279 = vmatprep.subr.bf16.mxu0 0
      %4280 = vmatpush1.bf16.msra.mxu0 0
      %4281 = vmatprep.subr.bf16.mxu0 0
      %4282 = vmatpush1.bf16.msra.mxu0 0
      %4283 = vmatprep.subr.bf16.mxu0 0
      %4284 = vmatpush1.bf16.msra.mxu0 0
      %4285 = vmatprep.subr.bf16.mxu0 0
      %4286 = vmatpush1.bf16.msra.mxu0 0
      %4287 = vmatprep.subr.bf16.mxu0 0
      %4288 = vmatpush1.bf16.msra.mxu0 0
      %4289 = vmatprep.subr.bf16.mxu0 0
      %4290 = vmatpush1.bf16.msra.mxu0 0
      %4291 = vmatprep.subr.bf16.mxu0 0
      %4292 = vmatpush1.bf16.msra.mxu0 0
      %4293 = vmatprep.subr.bf16.mxu0 0
      %4294 = vmatpush1.bf16.msra.mxu0 0
      %4295 = vmatprep.subr.bf16.mxu0 0
      %4296 = vmatpush1.bf16.msra.mxu0 0
      %4297 = vmatprep.subr.bf16.mxu0 0
      %4298 = vmatpush1.bf16.msra.mxu0 0
      %4299 = vmatprep.subr.bf16.mxu0 0
      %4300 = vmatpush1.bf16.msra.mxu0 0
      %4301 = vmatprep.subr.bf16.mxu0 0
      %4302 = vmatpush1.bf16.msra.mxu0 0
      %4303 = vmatprep.mubr.bf16.mxu0 0
      %4304 = vmatmul.mubr.bf16.gmra.mrb[0].mxu0 %v4269
      %v4305 = vpop.f32.mrb[0].mxu0
      %v4306 = vadd.f32 0.0, %v4305
      %v4307 = vpop.f32.mrb[0].mxu0
      %v4308 = vpop.f32.mrb[0].mxu0
      %v4309 = vadd.f32 0.0, %v4308
      %v4310 = vpop.f32.mrb[0].mxu0
      %4311 = vdwg.mxu0
      %4312 = vrot.lane.b32.xlu0 %v462, 40
      %v4313 = vpop.permute.xlu0 %4312
      %v4316 = vsel %vm874, %v4074, 0
      %4318 = vmatprep.subr.bf16.mxu0 0
      %4319 = vmatpush1.bf16.msra.mxu0 %v4313
      %4320 = vmatprep.subr.bf16.mxu0 0
      %4321 = vmatpush1.bf16.msra.mxu0 0
      %4322 = vmatprep.subr.bf16.mxu0 0
      %4323 = vmatpush1.bf16.msra.mxu0 0
      %4324 = vmatprep.subr.bf16.mxu0 0
      %4325 = vmatpush1.bf16.msra.mxu0 0
      %4326 = vmatprep.subr.bf16.mxu0 0
      %4327 = vmatpush1.bf16.msra.mxu0 0
      %4328 = vmatprep.subr.bf16.mxu0 0
      %4329 = vmatpush1.bf16.msra.mxu0 0
      %4330 = vmatprep.subr.bf16.mxu0 0
      %4331 = vmatpush1.bf16.msra.mxu0 0
      %4332 = vmatprep.subr.bf16.mxu0 0
      %4333 = vmatpush1.bf16.msra.mxu0 0
      %4334 = vmatprep.subr.bf16.mxu0 0
      %4335 = vmatpush1.bf16.msra.mxu0 0
      %4336 = vmatprep.subr.bf16.mxu0 0
      %4337 = vmatpush1.bf16.msra.mxu0 0
      %4338 = vmatprep.subr.bf16.mxu0 0
      %4339 = vmatpush1.bf16.msra.mxu0 0
      %4340 = vmatprep.subr.bf16.mxu0 0
      %4341 = vmatpush1.bf16.msra.mxu0 0
      %4342 = vmatprep.subr.bf16.mxu0 0
      %4343 = vmatpush1.bf16.msra.mxu0 0
      %4344 = vmatprep.subr.bf16.mxu0 0
      %4345 = vmatpush1.bf16.msra.mxu0 0
      %4346 = vmatprep.subr.bf16.mxu0 0
      %4347 = vmatpush1.bf16.msra.mxu0 0
      %4348 = vmatprep.subr.bf16.mxu0 0
      %4349 = vmatpush1.bf16.msra.mxu0 0
      %4350 = vmatprep.mubr.bf16.mxu0 0
      %4351 = vmatmul.mubr.bf16.gmra.mrb[0].mxu0 %v4316
      %v4352 = vpop.f32.mrb[0].mxu0
      %v4353 = vadd.f32 0.0, %v4352
      %v4354 = vpop.f32.mrb[0].mxu0
      %v4355 = vpop.f32.mrb[0].mxu0
      %v4356 = vadd.f32 0.0, %v4355
      %v4357 = vpop.f32.mrb[0].mxu0
      %4358 = vdwg.mxu0
      %4359 = vrot.lane.b32.xlu0 %v463, 40
      %v4360 = vpop.permute.xlu0 %4359
      %v4363 = vsel %vm874, %v4075, 0
      %4365 = vmatprep.subr.bf16.mxu0 0
      %4366 = vmatpush1.bf16.msra.mxu0 %v4360
      %4367 = vmatprep.subr.bf16.mxu0 0
      %4368 = vmatpush1.bf16.msra.mxu0 0
      %4369 = vmatprep.subr.bf16.mxu0 0
      %4370 = vmatpush1.bf16.msra.mxu0 0
      %4371 = vmatprep.subr.bf16.mxu0 0
      %4372 = vmatpush1.bf16.msra.mxu0 0
      %4373 = vmatprep.subr.bf16.mxu0 0
      %4374 = vmatpush1.bf16.msra.mxu0 0
      %4375 = vmatprep.subr.bf16.mxu0 0
      %4376 = vmatpush1.bf16.msra.mxu0 0
      %4377 = vmatprep.subr.bf16.mxu0 0
      %4378 = vmatpush1.bf16.msra.mxu0 0
      %4379 = vmatprep.subr.bf16.mxu0 0
      %4380 = vmatpush1.bf16.msra.mxu0 0
      %4381 = vmatprep.subr.bf16.mxu0 0
      %4382 = vmatpush1.bf16.msra.mxu0 0
      %4383 = vmatprep.subr.bf16.mxu0 0
      %4384 = vmatpush1.bf16.msra.mxu0 0
      %4385 = vmatprep.subr.bf16.mxu0 0
      %4386 = vmatpush1.bf16.msra.mxu0 0
      %4387 = vmatprep.subr.bf16.mxu0 0
      %4388 = vmatpush1.bf16.msra.mxu0 0
      %4389 = vmatprep.subr.bf16.mxu0 0
      %4390 = vmatpush1.bf16.msra.mxu0 0
      %4391 = vmatprep.subr.bf16.mxu0 0
      %4392 = vmatpush1.bf16.msra.mxu0 0
      %4393 = vmatprep.subr.bf16.mxu0 0
      %4394 = vmatpush1.bf16.msra.mxu0 0
      %4395 = vmatprep.subr.bf16.mxu0 0
      %4396 = vmatpush1.bf16.msra.mxu0 0
      %4397 = vmatprep.mubr.bf16.mxu0 0
      %4398 = vmatmul.mubr.bf16.gmra.mrb[0].mxu0 %v4363
      %v4399 = vpop.f32.mrb[0].mxu0
      %v4400 = vadd.f32 0.0, %v4399
      %v4401 = vpop.f32.mrb[0].mxu0
      %v4402 = vpop.f32.mrb[0].mxu0
      %v4403 = vadd.f32 0.0, %v4402
      %v4404 = vpop.f32.mrb[0].mxu0
      %4405 = vdwg.mxu0
      %4406 = vrot.lane.b32.xlu0 %v464, 40
      %v4407 = vpop.permute.xlu0 %4406
      %v4410 = vsel %vm874, %v4076, 0
      %4412 = vmatprep.subr.bf16.mxu0 0
      %4413 = vmatpush1.bf16.msra.mxu0 %v4407
      %4414 = vmatprep.subr.bf16.mxu0 0
      %4415 = vmatpush1.bf16.msra.mxu0 0
      %4416 = vmatprep.subr.bf16.mxu0 0
      %4417 = vmatpush1.bf16.msra.mxu0 0
      %4418 = vmatprep.subr.bf16.mxu0 0
      %4419 = vmatpush1.bf16.msra.mxu0 0
      %4420 = vmatprep.subr.bf16.mxu0 0
      %4421 = vmatpush1.bf16.msra.mxu0 0
      %4422 = vmatprep.subr.bf16.mxu0 0
      %4423 = vmatpush1.bf16.msra.mxu0 0
      %4424 = vmatprep.subr.bf16.mxu0 0
      %4425 = vmatpush1.bf16.msra.mxu0 0
      %4426 = vmatprep.subr.bf16.mxu0 0
      %4427 = vmatpush1.bf16.msra.mxu0 0
      %4428 = vmatprep.subr.bf16.mxu0 0
      %4429 = vmatpush1.bf16.msra.mxu0 0
      %4430 = vmatprep.subr.bf16.mxu0 0
      %4431 = vmatpush1.bf16.msra.mxu0 0
      %4432 = vmatprep.subr.bf16.mxu0 0
      %4433 = vmatpush1.bf16.msra.mxu0 0
      %4434 = vmatprep.subr.bf16.mxu0 0
      %4435 = vmatpush1.bf16.msra.mxu0 0
      %4436 = vmatprep.subr.bf16.mxu0 0
      %4437 = vmatpush1.bf16.msra.mxu0 0
      %4438 = vmatprep.subr.bf16.mxu0 0
      %4439 = vmatpush1.bf16.msra.mxu0 0
      %4440 = vmatprep.subr.bf16.mxu0 0
      %4441 = vmatpush1.bf16.msra.mxu0 0
      %4442 = vmatprep.subr.bf16.mxu0 0
      %4443 = vmatpush1.bf16.msra.mxu0 0
      %4444 = vmatprep.mubr.bf16.mxu0 0
      %4445 = vmatmul.mubr.bf16.gmra.mrb[0].mxu0 %v4410
      %v4446 = vpop.f32.mrb[0].mxu0
      %v4447 = vadd.f32 0.0, %v4446
      %v4448 = vpop.f32.mrb[0].mxu0
      %v4449 = vpop.f32.mrb[0].mxu0
      %v4450 = vadd.f32 0.0, %v4449
      %v4451 = vpop.f32.mrb[0].mxu0
      %4452 = vdwg.mxu0
      %v4453 = vpack.c.bf16 %v4121, %v4118
      %v4454 = vpack.c.bf16 %v4168, %v4165
      %v4455 = vpack.c.bf16 %v4215, %v4212
      %v4456 = vpack.c.bf16 %v4262, %v4259
      %v4457 = vpack.c.bf16 %v4309, %v4306
      %v4458 = vpack.c.bf16 %v4356, %v4353
      %v4459 = vpack.c.bf16 %v4403, %v4400
      %v4460 = vpack.c.bf16 %v4450, %v4447
      %4469 = vrot.lane.b32.xlu0 %v4453, 24
      %v4470 = vpop.permute.xlu0 %4469
      %4471 = vrot.lane.b32.xlu0 %v4454, 24
      %v4472 = vpop.permute.xlu0 %4471
      %4473 = vrot.lane.b32.xlu0 %v4455, 24
      %v4474 = vpop.permute.xlu0 %4473
      %4475 = vrot.lane.b32.xlu0 %v4456, 24
      %v4476 = vpop.permute.xlu0 %4475
      %4477 = vrot.lane.b32.xlu0 %v4457, 24
      %v4478 = vpop.permute.xlu0 %4477
      %4479 = vrot.lane.b32.xlu0 %v4458, 24
      %v4480 = vpop.permute.xlu0 %4479
      %4481 = vrot.lane.b32.xlu0 %v4459, 24
      %v4482 = vpop.permute.xlu0 %4481
      %4483 = vrot.lane.b32.xlu0 %v4460, 24
      %v4484 = vpop.permute.xlu0 %4483
      %vm4493 = vcmask 261312
      %4494 = vst.msk [vmem:[#allocation2] sm:$0xff] %vm4493, %v4470
      %4495 = vst.msk [vmem:[#allocation2 + $0x8] sm:$0xff] %vm4493, %v4472
      %4496 = vst.msk [vmem:[#allocation2 + $0x10] sm:$0xff] %vm4493, %v4474
      %4497 = vst.msk [vmem:[#allocation2 + $0x18] sm:$0xff] %vm4493, %v4476
      %4498 = vst.msk [vmem:[#allocation2 + $0x20] sm:$0xff] %vm4493, %v4478
      %4499 = vst.msk [vmem:[#allocation2 + $0x28] sm:$0xff] %vm4493, %v4480
      %4500 = vst.msk [vmem:[#allocation2 + $0x30] sm:$0xff] %vm4493, %v4482
      %4501 = vst.msk [vmem:[#allocation2 + $0x38] sm:$0xff] %vm4493, %v4484
      %v4502 = vld [vmem:[#allocation2] sm:$0xff]
      %v4503 = vld [vmem:[#allocation2 + $0x8] sm:$0xff]
      %v4504 = vld [vmem:[#allocation2 + $0x10] sm:$0xff]
      %v4505 = vld [vmem:[#allocation2 + $0x18] sm:$0xff]
      %v4506 = vld [vmem:[#allocation2 + $0x20] sm:$0xff]
      %v4507 = vld [vmem:[#allocation2 + $0x28] sm:$0xff]
      %v4508 = vld [vmem:[#allocation2 + $0x30] sm:$0xff]
      %v4509 = vld [vmem:[#allocation2 + $0x38] sm:$0xff]
      %v4510 = vld [vmem:[%s4] sm:$0xf]
      %v4511 = vld [vmem:[%s4 + $0x4] sm:$0xf]
      %v4512 = vld [vmem:[%s4 + $0x8] sm:$0xf]
      %v4513 = vld [vmem:[%s4 + $0xc] sm:$0xf]
      %v4514 = vld [vmem:[%s5] sm:$0x1]
      %v4516 = vlaneseq
      %v4517 = vshrl.u32 %v4516, 7
      %v4518 = vsub.s32 0, %v4517
      %v4519 = vrot.slane %v4514, %v4518
      %v4525 = vunpack.c.l.b16 %v4510
      %v4526 = vunpack.c.l.b16 %v4511
      %v4527 = vunpack.c.l.b16 %v4512
      %v4528 = vunpack.c.l.b16 %v4513
      %v4529 = vpack.c.b16 %v4526, %v4525
      %v4530 = vpack.c.b16 %v4528, %v4527
      %v4534 = vsel %vm335, %v4502, 0
      %v4537 = vsel %vm335, %v4503, 0
      %v4540 = vsel %vm335, %v4504, 0
      %v4543 = vsel %vm335, %v4505, 0
      %v4546 = vsel %vm335, %v4506, 0
      %v4549 = vsel %vm335, %v4507, 0
      %v4552 = vsel %vm335, %v4508, 0
      %v4555 = vsel %vm335, %v4509, 0
      %4557 = vmatprep.subr.bf16.mxu0 0
      %4558 = vmatpush1.bf16.msra.mxu0 %v4529
      %4559 = vmatprep.subr.bf16.mxu0 0
      %4560 = vmatpush1.bf16.msra.mxu0 %v4530
      %4561 = vmatprep.subr.bf16.mxu0 0
      %4562 = vmatpush1.bf16.msra.mxu0 0
      %4563 = vmatprep.subr.bf16.mxu0 0
      %4564 = vmatpush1.bf16.msra.mxu0 0
      %4565 = vmatprep.subr.bf16.mxu0 0
      %4566 = vmatpush1.bf16.msra.mxu0 0
      %4567 = vmatprep.subr.bf16.mxu0 0
      %4568 = vmatpush1.bf16.msra.mxu0 0
      %4569 = vmatprep.subr.bf16.mxu0 0
      %4570 = vmatpush1.bf16.msra.mxu0 0
      %4571 = vmatprep.subr.bf16.mxu0 0
      %4572 = vmatpush1.bf16.msra.mxu0 0
      %4573 = vmatprep.subr.bf16.mxu0 0
      %4574 = vmatpush1.bf16.msra.mxu0 0
      %4575 = vmatprep.subr.bf16.mxu0 0
      %4576 = vmatpush1.bf16.msra.mxu0 0
      %4577 = vmatprep.subr.bf16.mxu0 0
      %4578 = vmatpush1.bf16.msra.mxu0 0
      %4579 = vmatprep.subr.bf16.mxu0 0
      %4580 = vmatpush1.bf16.msra.mxu0 0
      %4581 = vmatprep.subr.bf16.mxu0 0
      %4582 = vmatpush1.bf16.msra.mxu0 0
      %4583 = vmatprep.subr.bf16.mxu0 0
      %4584 = vmatpush1.bf16.msra.mxu0 0
      %4585 = vmatprep.subr.bf16.mxu0 0
      %4586 = vmatpush1.bf16.msra.mxu0 0
      %4587 = vmatprep.subr.bf16.mxu0 0
      %4588 = vmatpush1.bf16.msra.mxu0 0
      %4589 = vmatprep.mubr.bf16.mxu0 0
      %4590 = vmatmul.mubr.bf16.gmra.mrb[0].mxu0 %v4534
      %v4591 = vpop.f32.mrb[0].mxu0
      %v4592 = vadd.f32 %v4519, %v4591
      %v4593 = vpop.f32.mrb[0].mxu0
      %v4594 = vpop.f32.mrb[0].mxu0
      %v4595 = vadd.f32 %v4519, %v4594
      %v4596 = vpop.f32.mrb[0].mxu0
      %4597 = vmatprep.mubr.bf16.mxu0 0
      %4598 = vmatmul.mubr.bf16.gmra.mrb[0].mxu0 %v4537
      %v4599 = vpop.f32.mrb[0].mxu0
      %v4600 = vadd.f32 %v4519, %v4599
      %v4601 = vpop.f32.mrb[0].mxu0
      %v4602 = vpop.f32.mrb[0].mxu0
      %v4603 = vadd.f32 %v4519, %v4602
      %v4604 = vpop.f32.mrb[0].mxu0
      %4605 = vmatprep.mubr.bf16.mxu0 0
      %4606 = vmatmul.mubr.bf16.gmra.mrb[0].mxu0 %v4540
      %v4607 = vpop.f32.mrb[0].mxu0
      %v4608 = vadd.f32 %v4519, %v4607
      %v4609 = vpop.f32.mrb[0].mxu0
      %v4610 = vpop.f32.mrb[0].mxu0
      %v4611 = vadd.f32 %v4519, %v4610
      %v4612 = vpop.f32.mrb[0].mxu0
      %4613 = vmatprep.mubr.bf16.mxu0 0
      %4614 = vmatmul.mubr.bf16.gmra.mrb[0].mxu0 %v4543
      %v4615 = vpop.f32.mrb[0].mxu0
      %v4616 = vadd.f32 %v4519, %v4615
      %v4617 = vpop.f32.mrb[0].mxu0
      %v4618 = vpop.f32.mrb[0].mxu0
      %v4619 = vadd.f32 %v4519, %v4618
      %v4620 = vpop.f32.mrb[0].mxu0
      %4621 = vmatprep.mubr.bf16.mxu0 0
      %4622 = vmatmul.mubr.bf16.gmra.mrb[0].mxu0 %v4546
      %v4623 = vpop.f32.mrb[0].mxu0
      %v4624 = vadd.f32 %v4519, %v4623
      %v4625 = vpop.f32.mrb[0].mxu0
      %v4626 = vpop.f32.mrb[0].mxu0
      %v4627 = vadd.f32 %v4519, %v4626
      %v4628 = vpop.f32.mrb[0].mxu0
      %4629 = vmatprep.mubr.bf16.mxu0 0
      %4630 = vmatmul.mubr.bf16.gmra.mrb[0].mxu0 %v4549
      %v4631 = vpop.f32.mrb[0].mxu0
      %v4632 = vadd.f32 %v4519, %v4631
      %v4633 = vpop.f32.mrb[0].mxu0
      %v4634 = vpop.f32.mrb[0].mxu0
      %v4635 = vadd.f32 %v4519, %v4634
      %v4636 = vpop.f32.mrb[0].mxu0
      %4637 = vmatprep.mubr.bf16.mxu0 0
      %4638 = vmatmul.mubr.bf16.gmra.mrb[0].mxu0 %v4552
      %v4639 = vpop.f32.mrb[0].mxu0
      %v4640 = vadd.f32 %v4519, %v4639
      %v4641 = vpop.f32.mrb[0].mxu0
      %v4642 = vpop.f32.mrb[0].mxu0
      %v4643 = vadd.f32 %v4519, %v4642
      %v4644 = vpop.f32.mrb[0].mxu0
      %4645 = vmatprep.mubr.bf16.mxu0 0
      %4646 = vmatmul.mubr.bf16.gmra.mrb[0].mxu0 %v4555
      %v4647 = vpop.f32.mrb[0].mxu0
      %v4648 = vadd.f32 %v4519, %v4647
      %v4649 = vpop.f32.mrb[0].mxu0
      %v4650 = vpop.f32.mrb[0].mxu0
      %v4651 = vadd.f32 %v4519, %v4650
      %v4652 = vpop.f32.mrb[0].mxu0
      %4653 = vdwg.mxu0
      %4654 = vst.msk [vmem:[%s253] sm:$0xff] %vm335, %v4592
      %4655 = vst.msk [vmem:[%s253 + $0x8] sm:$0xff] %vm335, %v4595
      %4656 = vst.msk [vmem:[%s253 + $0x10] sm:$0xff] %vm335, %v4600
      %4657 = vst.msk [vmem:[%s253 + $0x18] sm:$0xff] %vm335, %v4603
      %4658 = vst.msk [vmem:[%s253 + $0x20] sm:$0xff] %vm335, %v4608
      %4659 = vst.msk [vmem:[%s253 + $0x28] sm:$0xff] %vm335, %v4611
      %4660 = vst.msk [vmem:[%s253 + $0x30] sm:$0xff] %vm335, %v4616
      %4661 = vst.msk [vmem:[%s253 + $0x38] sm:$0xff] %vm335, %v4619
      %4662 = vst.msk [vmem:[%s253 + $0x40] sm:$0xff] %vm335, %v4624
      %4663 = vst.msk [vmem:[%s253 + $0x48] sm:$0xff] %vm335, %v4627
      %4664 = vst.msk [vmem:[%s253 + $0x50] sm:$0xff] %vm335, %v4632
      %4665 = vst.msk [vmem:[%s253 + $0x58] sm:$0xff] %vm335, %v4635
      %4666 = vst.msk [vmem:[%s253 + $0x60] sm:$0xff] %vm335, %v4640
      %4667 = vst.msk [vmem:[%s253 + $0x68] sm:$0xff] %vm335, %v4643
      %4668 = vst.msk [vmem:[%s253 + $0x70] sm:$0xff] %vm335, %v4648
      %4669 = vst.msk [vmem:[%s253 + $0x78] sm:$0xff] %vm335, %v4651
      %s4670 = smul.u32 16, %s17
      %p4671 = scmp.lt.s32.totalorder %s4670, 31
      %s4672 = scalar_select %p4671, %s4670, 31
      %s4673 = smul.addr %s4672, 8
      %s4674 = scalar_lea.vmem %s6, %s4673
      // Predicated region
      $region45: #{tpu_custom_call.1} parent=43 // pred_check
        %p4675 = pneg %p166
      $region46: #{tpu_custom_call.1} parent=43 // pred_check_branch
        %4677 = sbr.rel (%p4675) target = $region48
      $region47: #{tpu_custom_call.1} parent=43 // pred_region
        %s4678 = smul.u32 16, %s17
      $region48: #{tpu_custom_call.1} parent=43 // pred_fallthru
        _
    $region44: #{tpu_custom_call.1} parent=5 // pred_fallthru
      _
    %p4679 = scmp.le.s32.totalorder 2, %s12
    // Predicated region
    $region49: #{tpu_custom_call.1} parent=5 // pred_check
      %p4680 = pneg %p4679
    $region50: #{tpu_custom_call.1} parent=5 // pred_check_branch
      %4682 = sbr.rel (%p4680) target = $region52
    $region51: #{tpu_custom_call.1} parent=5 // pred_region
      %s4683 = ssub.s32 %s12, 2
      // Predicated region
      $region53: #{tpu_custom_call.1} parent=51 // pred_check
        %p4684 = pneg %p172
      $region54: #{tpu_custom_call.1} parent=51 // pred_check_branch
        %4686 = sbr.rel (%p4684) target = $region56
      $region55: #{tpu_custom_call.1} parent=51 // pred_region
        %s4687 = smul.u32 16, %s18
        %p4688 = scmp.lt.s32.totalorder %s4687, 31
        %s4689 = scalar_select %p4688, %s4687, 31
        %s4690 = smul.addr %s4689, 8
        %s4691 = scalar_lea.vmem %s6, %s4690
      $region56: #{tpu_custom_call.1} parent=51 // pred_fallthru
        _
    $region52: #{tpu_custom_call.1} parent=5 // pred_fallthru
      _
  $region6: #{tpu_custom_call.1} parent=0 // loop_footer
    %s16 = sadd.s32 1, %s12
  $region7: #{tpu_custom_call.1} parent=0 // loop_footer_branch
    %11 = sbr.rel target = $region3
  $region8: #{tpu_custom_call.1} parent=0 // loop_exit
    _

</llo_original>
